<compile_context>
chip_gen: v6e
topology: v6e:2x2x1
jax: 0.10.0
libtpu: 0.0.40
codegen_flags: <defaults>
</compile_context>

<pallas_src>
import functools

import jax
import jax.numpy as jnp
from jax.experimental import pallas as pl
from jax.experimental.pallas import tpu as pltpu


def _round_up(x, m):
    return (x + m - 1) // m * m


# ---------------------------------------------------------------------------
# Pallas kernel: full 3x3x3 conv (all 27 taps) + bias (+residual) (+ReLU)
# for one output depth plane, in one grid step.
# ---------------------------------------------------------------------------
def _conv3x3x3_kernel(*refs, D, H, W, relu, out_halo, has_mask, has_res):
    x0_ref, x1_ref, x2_ref, w_ref, b_ref = refs[:5]
    i = 5
    mask_ref = None
    res_ref = None
    if has_mask:
        mask_ref = refs[i]; i += 1
    if has_res:
        res_ref = refs[i]; i += 1
    o_ref = refs[i]

    wp = W + 2
    L = H * wp                       # rows of the (over-wide) output slab
    Lp = (H + 3) * wp                # rows of one halo-padded input plane
    Cp = o_ref.shape[-1]

    m = pl.program_id(0)
    z = m % D                        # output depth within one batch item

    def depth_group(x_ref, kd):
        # 9 in-plane taps as shifted contiguous row-slices -> MXU matmuls.
        acc = None
        for kh in range(3):
            for kw in range(3):
                s = kh * wp + kw
                patch = x_ref[0, s:s + L, :]                 # (L, Cp) bf16
                tap = w_ref[kd * 9 + kh * 3 + kw]            # (Cp, Cp) bf16
                d = jnp.dot(patch, tap, preferred_element_type=jnp.float32)
                acc = d if acc is None else acc + d
        return acc

    acc = depth_group(x1_ref, 1)                             # center plane
    g0 = depth_group(x0_ref, 0)                              # plane z-1
    g2 = depth_group(x2_ref, 2)                              # plane z+1
    # Depth halo: the index_maps clamp to a valid plane, so zero the
    # contribution at the depth boundaries with a cheap scalar select.
    acc = acc + jnp.where(z == 0, 0.0, g0)
    acc = acc + jnp.where(z == D - 1, 0.0, g2)

    y = acc + b_ref[...]                                     # folded-BN bias
    if has_res:
        # Identity residual read directly from the halo slab of the original
        # input (interior starts at flat row W+3).
        y = y + res_ref[0, W + 3:W + 3 + L, :].astype(jnp.float32)
    if relu:
        y = jnp.maximum(y, 0.0)

    if out_halo:
        # Emit directly in the halo-slab layout the next conv consumes:
        # wrap-around columns zeroed, halo rows zeroed, interior at row W+3.
        y = y * mask_ref[...]                                # (L,Cp)*(L,1)
        o_ref[0] = jnp.zeros((Lp, Cp), o_ref.dtype)
        o_ref[0, W + 3:W + 3 + L, :] = y.astype(o_ref.dtype)
    else:
        o_ref[0] = y.astype(o_ref.dtype)


def conv3x3x3_fused(x_slab, w_taps, bias, *, residual=None, col_mask=None,
                    relu=True, out_halo=False,
                    N, D, H, W, Cp, out_dtype=jnp.bfloat16):
    """One fused 3x3x3 conv (stride 1, pad 1) with BN folded into the weights.

    x_slab  : (N*D, (H+3)*(W+2), Cp) bf16   spatially halo-padded planes
    w_taps  : (27, Cp, Cp) bf16             tap-major, BN scale pre-folded
    bias    : (1, Cp) f32                   folded BatchNorm bias
    col_mask: (H*(W+2), 1) f32              required iff out_halo
    residual: optional (N*D, (H+3)*(W+2), Cp) bf16 (identity path)
    returns : out_halo ? halo-slab layout : compact (N*D, H*(W+2), Cp) slab
    """
    wp = W + 2
    Lp = (H + 3) * wp
    L = H * wp
    M = N * D
    assert x_slab.shape == (M, Lp, Cp)
    assert (col_mask is not None) == out_halo

    def x_prev(m):
        return (jnp.maximum(m - 1, 0), 0, 0)

    def x_cur(m):
        return (m, 0, 0)

    def x_next(m):
        return (jnp.minimum(m + 1, M - 1), 0, 0)

    plane_spec = lambda f: pl.BlockSpec((1, Lp, Cp), f)

    in_specs = [plane_spec(x_prev), plane_spec(x_cur), plane_spec(x_next),
                pl.BlockSpec((27, Cp, Cp), lambda m: (0, 0, 0)),   # resident
                pl.BlockSpec((1, Cp), lambda m: (0, 0))]
    args = [x_slab, x_slab, x_slab, w_taps, bias]
    if col_mask is not None:
        in_specs.append(pl.BlockSpec((L, 1), lambda m: (0, 0)))
        args.append(col_mask)
    if residual is not None:
        in_specs.append(plane_spec(x_cur))
        args.append(residual)

    out_rows = Lp if out_halo else L
    o_spec = pl.BlockSpec((1, out_rows, Cp), lambda m: (m, 0, 0))

    kernel = functools.partial(
        _conv3x3x3_kernel, D=D, H=H, W=W, relu=relu, out_halo=out_halo,
        has_mask=col_mask is not None, has_res=residual is not None)

    flops = 2 * M * L * Cp * Cp * 27
    bytes_accessed = int(
        3 * x_slab.size * x_slab.dtype.itemsize
        + w_taps.size * w_taps.dtype.itemsize
        + M * out_rows * Cp * jnp.dtype(out_dtype).itemsize
        + (residual.size * residual.dtype.itemsize if residual is not None else 0))

    # VMEM budget: resident weights + double-buffered plane blocks + f32
    # working set.  Floor 32 MiB, cap kept below v7x's 64 MiB physical VMEM.
    vmem_est = (2 * 27 * Cp * Cp * 2
                + 2 * 4 * Lp * Cp * 2
                + 2 * out_rows * Cp * 2
                + 8 * L * Cp * 4)
    vmem_limit = int(min(max(2 * vmem_est, 32 * 1024 * 1024), 56 * 1024 * 1024))

    return pl.pallas_call(
        kernel,
        out_shape=jax.ShapeDtypeStruct((M, out_rows, Cp), out_dtype),
        grid_spec=pltpu.PrefetchScalarGridSpec(
            num_scalar_prefetch=0,
            grid=(M,),
            in_specs=in_specs,
            out_specs=o_spec),
        compiler_params=pltpu.CompilerParams(
            dimension_semantics=("parallel",),
            vmem_limit_bytes=vmem_limit),
        cost_estimate=pl.CostEstimate(
            flops=flops, transcendentals=0, bytes_accessed=bytes_accessed),
    )(*args)


# ---------------------------------------------------------------------------
# Parameter preparation (plain-JAX glue)
# ---------------------------------------------------------------------------
def _fold_bn(gamma, beta, mean, var, eps=1e-5):
    scale = gamma / jnp.sqrt(var + eps)
    bias = beta - mean * scale
    return scale, bias


def _prep_weight(w, bn_scale, cp):
    # PyTorch Conv3d weight (Cout, Cin, kD, kH, kW); fold BN scale into Cout,
    # emit tap-major (kd*9+kh*3+kw, Cin_pad, Cout_pad) bf16.
    cout, cin = w.shape[0], w.shape[1]
    w = w * bn_scale.reshape(cout, 1, 1, 1, 1)
    wt = jnp.transpose(w, (2, 3, 4, 1, 0)).reshape(27, cin, cout)
    wt = jnp.pad(wt, ((0, 0), (0, cp - cin), (0, cp - cout)))
    return wt.astype(jnp.bfloat16)


def _prep_bias(bn_bias, cp):
    c = bn_bias.shape[0]
    return jnp.pad(bn_bias, (0, cp - c)).reshape(1, cp).astype(jnp.float32)


# ---------------------------------------------------------------------------
# BasicBlock forward (stride=1, downsample=None, inplanes == planes)
# ---------------------------------------------------------------------------
def basic_block_forward(x_ncdhw, params):
    # TODO(synk): stride>1 / downsample path and training-mode BatchNorm
    # (batch statistics) are not implemented; inference-mode folded BN is used.
    n, c, d, h, w = x_ncdhw.shape
    planes = params["w1"].shape[0]
    assert planes == c and params["w2"].shape[0] == planes
    cp = _round_up(max(c, planes), 128)        # lane-dense channel width
    wp = w + 2
    L = h * wp
    Lp = (h + 3) * wp

    # NCDHW -> NDHWC bf16, pad channels to cp, add the spatial halo (1 on each
    # face, +1 extra bottom H-row so the shifted in-kernel slabs stay in
    # bounds), flatten each depth plane.  No depth padding: depth-halo taps
    # are masked in-kernel, so this slab also serves as conv2's residual.
    xc = jnp.transpose(x_ncdhw, (0, 2, 3, 4, 1)).astype(jnp.bfloat16)
    xc = jnp.pad(xc, ((0, 0), (0, 0), (1, 2), (1, 1), (0, cp - c)))
    xp = xc.reshape(n * d, Lp, cp)

    s1, bb1 = _fold_bn(params["g1"], params["be1"], params["m1"], params["v1"])
    s2, bb2 = _fold_bn(params["g2"], params["be2"], params["m2"], params["v2"])
    w1 = _prep_weight(params["w1"], s1, cp)
    w2 = _prep_weight(params["w2"], s2, cp)
    b1 = _prep_bias(bb1, cp)
    b2 = _prep_bias(bb2, cp)

    # 1.0 for real output columns, 0.0 for the 2 slab wrap-around columns.
    col_mask = ((jnp.arange(L) % wp) < w).astype(jnp.float32).reshape(L, 1)

    # conv1 -> BN1 -> ReLU, emitted directly in the halo-slab layout so conv2
    # consumes it with zero wrapper-side relayout between the two calls.
    o1 = conv3x3x3_fused(xp, w1, b1, col_mask=col_mask, relu=True,
                         out_halo=True, N=n, D=d, H=h, W=w, Cp=cp)

    # conv2 -> BN2 -> +identity (read straight from xp inside the kernel) -> ReLU.
    o2 = conv3x3x3_fused(o1, w2, b2, residual=xp, relu=True,
                         out_halo=False, N=n, D=d, H=h, W=w, Cp=cp)

    out = o2.reshape(n, d, h, wp, cp)[:, :, :, :w, :planes]
    return jnp.transpose(out, (0, 4, 1, 2, 3)).astype(x_ncdhw.dtype)


# ---------------------------------------------------------------------------
# Pure-JAX f32 reference (correctness check)
# ---------------------------------------------------------------------------
def reference_forward(x, params):
    def conv3d(inp, w):
        return jax.lax.conv_general_dilated(
            inp, w, window_strides=(1, 1, 1),
            padding=((1, 1), (1, 1), (1, 1)),
            dimension_numbers=("NCDHW", "OIDHW", "NCDHW"))

    def bn(inp, g, be, m, v, eps=1e-5):
        sh = (1, -1, 1, 1, 1)
        return (inp - m.reshape(sh)) / jnp.sqrt(v.reshape(sh) + eps) \
            * g.reshape(sh) + be.reshape(sh)

    o = jax.nn.relu(bn(conv3d(x, params["w1"]), params["g1"], params["be1"],
                       params["m1"], params["v1"]))
    o = bn(conv3d(o, params["w2"]), params["g2"], params["be2"],
           params["m2"], params["v2"])
    return jax.nn.relu(o + x)


if __name__ == "__main__":
    # Small, shape-consistent instantiation: inplanes = planes = 4, stride = 1.
    # (midplanes is only used by the Conv2Plus1D builder; Conv3DSimple ignores it.)
    N, C, D, H, W = 2, 4, 8, 8, 8
    planes = C

    key = jax.random.PRNGKey(0)
    k = jax.random.split(key, 8)
    x = jax.random.normal(k[0], (N, C, D, H, W), dtype=jnp.float32)

    params = {
        "w1": 0.1 * jax.random.normal(k[1], (planes, C, 3, 3, 3), jnp.float32),
        "w2": 0.1 * jax.random.normal(k[2], (planes, planes, 3, 3, 3), jnp.float32),
        # BatchNorm3d parameters (inference / running statistics).
        "g1": 1.0 + 0.05 * jax.random.normal(k[3], (planes,), jnp.float32),
        "be1": 0.05 * jax.random.normal(k[4], (planes,), jnp.float32),
        "m1": 0.01 * jnp.arange(planes, dtype=jnp.float32),
        "v1": 1.0 + 0.02 * jnp.arange(planes, dtype=jnp.float32),
        "g2": 1.0 + 0.05 * jax.random.normal(k[5], (planes,), jnp.float32),
        "be2": 0.05 * jax.random.normal(k[6], (planes,), jnp.float32),
        "m2": 0.02 * jnp.arange(planes, dtype=jnp.float32),
        "v2": 1.0 + 0.03 * jnp.arange(planes, dtype=jnp.float32),
    }

    out = jax.block_until_ready(jax.jit(basic_block_forward)(x, params))
    ref = jax.block_until_ready(reference_forward(x, params))

    assert out.shape == (N, planes, D, H, W), out.shape
    # bf16 activations/weights (BN scale folded into bf16 weights) with f32
    # accumulation vs. a pure-f32 reference: expect ~1e-2 level differences.
    assert jnp.allclose(out, ref, atol=1e-1, rtol=1e-1), \
        float(jnp.max(jnp.abs(out - ref)))

    print("KERNEL_OK")
</pallas_src>

<mosaic_0001>
module attributes {stable_mosaic.version = 11 : i64} {
  func.func @_conv3x3x3_kernel(%arg0: i32, %arg1: memref<1x110x128xbf16, #tpu.memory_space<vmem>>, %arg2: memref<1x110x128xbf16, #tpu.memory_space<vmem>>, %arg3: memref<1x110x128xbf16, #tpu.memory_space<vmem>>, %arg4: memref<27x128x128xbf16, #tpu.memory_space<vmem>>, %arg5: memref<1x128xf32, #tpu.memory_space<vmem>>, %arg6: memref<80x1xf32, #tpu.memory_space<vmem>>, %arg7: memref<1x110x128xbf16, #tpu.memory_space<vmem>>) attributes {dimension_semantics = [#tpu.dimension_semantics<parallel>], iteration_bounds = array<i64: 16>, scalar_prefetch = 0 : i64, scratch_operands = 0 : i64, tpu.core_type = #tpu.core_type<tc>, window_params = [{transform_indices = @transform_0, window_bounds = array<i64: 1, 110, 128>}, {transform_indices = @transform_1, window_bounds = array<i64: 1, 110, 128>}, {transform_indices = @transform_2, window_bounds = array<i64: 1, 110, 128>}, {pipeline_mode = #tpu.pipeline_mode<synchronous>, transform_indices = @transform_3, window_bounds = array<i64: 27, 128, 128>}, {pipeline_mode = #tpu.pipeline_mode<synchronous>, transform_indices = @transform_4, window_bounds = array<i64: 1, 128>}, {pipeline_mode = #tpu.pipeline_mode<synchronous>, transform_indices = @transform_5, window_bounds = array<i64: 80, 1>}, {transform_indices = @transform_6, window_bounds = array<i64: 1, 110, 128>}]} {
    %c8_i32 = arith.constant 8 : i32
    %c0_i32 = arith.constant 0 : i32
    %0 = arith.cmpi eq, %c8_i32, %c0_i32 : i32
    %c1_i32 = arith.constant 1 : i32
    %1 = arith.select %0, %c1_i32, %c8_i32 : i32
    %2 = arith.remsi %arg0, %1 : i32
    %c0_i32_0 = arith.constant 0 : i32
    %3 = arith.cmpi ne, %2, %c0_i32_0 : i32
    %c0_i32_1 = arith.constant 0 : i32
    %4 = arith.cmpi slt, %2, %c0_i32_1 : i32
    %c0_i32_2 = arith.constant 0 : i32
    %5 = arith.cmpi slt, %1, %c0_i32_2 : i32
    %6 = arith.xori %4, %5 : i1
    %7 = arith.andi %6, %3 : i1
    %8 = arith.addi %2, %1 : i32
    %9 = arith.select %7, %8, %2 : i32
    %c0 = arith.constant 0 : index
    %c0_3 = arith.constant 0 : index
    %c0_4 = arith.constant 0 : index
    %10 = vector.load %arg2[%c0, %c0_3, %c0_4] : memref<1x110x128xbf16, #tpu.memory_space<vmem>>, vector<1x80x128xbf16>
    %11 = vector.shape_cast %10 : vector<1x80x128xbf16> to vector<80x128xbf16>
    %c9 = arith.constant 9 : index
    %c0_5 = arith.constant 0 : index
    %c0_6 = arith.constant 0 : index
    %12 = vector.load %arg4[%c9, %c0_5, %c0_6] : memref<27x128x128xbf16, #tpu.memory_space<vmem>>, vector<1x128x128xbf16>
    %13 = vector.shape_cast %12 : vector<1x128x128xbf16> to vector<128x128xbf16>
    %cst = arith.constant dense<0.000000e+00> : vector<80x128xf32>
    %14 = tpu.matmul %11, %13, %cst {dimension_numbers = #tpu.dot_dimension_numbers<[1], [0], [0], [1], [0, 0, 1, 1], [], []>} : vector<80x128xbf16>, vector<128x128xbf16>, vector<80x128xf32> -> vector<80x128xf32>
    %c0_7 = arith.constant 0 : index
    %c1 = arith.constant 1 : index
    %c0_8 = arith.constant 0 : index
    %15 = vector.load %arg2[%c0_7, %c1, %c0_8] : memref<1x110x128xbf16, #tpu.memory_space<vmem>>, vector<1x80x128xbf16>
    %16 = vector.shape_cast %15 : vector<1x80x128xbf16> to vector<80x128xbf16>
    %c10 = arith.constant 10 : index
    %c0_9 = arith.constant 0 : index
    %c0_10 = arith.constant 0 : index
    %17 = vector.load %arg4[%c10, %c0_9, %c0_10] : memref<27x128x128xbf16, #tpu.memory_space<vmem>>, vector<1x128x128xbf16>
    %18 = vector.shape_cast %17 : vector<1x128x128xbf16> to vector<128x128xbf16>
    %cst_11 = arith.constant dense<0.000000e+00> : vector<80x128xf32>
    %19 = tpu.matmul %16, %18, %cst_11 {dimension_numbers = #tpu.dot_dimension_numbers<[1], [0], [0], [1], [0, 0, 1, 1], [], []>} : vector<80x128xbf16>, vector<128x128xbf16>, vector<80x128xf32> -> vector<80x128xf32>
    %20 = arith.addf %14, %19 : vector<80x128xf32>
    %c0_12 = arith.constant 0 : index
    %c2 = arith.constant 2 : index
    %c0_13 = arith.constant 0 : index
    %21 = vector.load %arg2[%c0_12, %c2, %c0_13] : memref<1x110x128xbf16, #tpu.memory_space<vmem>>, vector<1x80x128xbf16>
    %22 = vector.shape_cast %21 : vector<1x80x128xbf16> to vector<80x128xbf16>
    %c11 = arith.constant 11 : index
    %c0_14 = arith.constant 0 : index
    %c0_15 = arith.constant 0 : index
    %23 = vector.load %arg4[%c11, %c0_14, %c0_15] : memref<27x128x128xbf16, #tpu.memory_space<vmem>>, vector<1x128x128xbf16>
    %24 = vector.shape_cast %23 : vector<1x128x128xbf16> to vector<128x128xbf16>
    %cst_16 = arith.constant dense<0.000000e+00> : vector<80x128xf32>
    %25 = tpu.matmul %22, %24, %cst_16 {dimension_numbers = #tpu.dot_dimension_numbers<[1], [0], [0], [1], [0, 0, 1, 1], [], []>} : vector<80x128xbf16>, vector<128x128xbf16>, vector<80x128xf32> -> vector<80x128xf32>
    %26 = arith.addf %20, %25 : vector<80x128xf32>
    %c0_17 = arith.constant 0 : index
    %c10_18 = arith.constant 10 : index
    %c0_19 = arith.constant 0 : index
    %27 = vector.load %arg2[%c0_17, %c10_18, %c0_19] : memref<1x110x128xbf16, #tpu.memory_space<vmem>>, vector<1x80x128xbf16>
    %28 = vector.shape_cast %27 : vector<1x80x128xbf16> to vector<80x128xbf16>
    %c12 = arith.constant 12 : index
    %c0_20 = arith.constant 0 : index
    %c0_21 = arith.constant 0 : index
    %29 = vector.load %arg4[%c12, %c0_20, %c0_21] : memref<27x128x128xbf16, #tpu.memory_space<vmem>>, vector<1x128x128xbf16>
    %30 = vector.shape_cast %29 : vector<1x128x128xbf16> to vector<128x128xbf16>
    %cst_22 = arith.constant dense<0.000000e+00> : vector<80x128xf32>
    %31 = tpu.matmul %28, %30, %cst_22 {dimension_numbers = #tpu.dot_dimension_numbers<[1], [0], [0], [1], [0, 0, 1, 1], [], []>} : vector<80x128xbf16>, vector<128x128xbf16>, vector<80x128xf32> -> vector<80x128xf32>
    %32 = arith.addf %26, %31 : vector<80x128xf32>
    %c0_23 = arith.constant 0 : index
    %c11_24 = arith.constant 11 : index
    %c0_25 = arith.constant 0 : index
    %33 = vector.load %arg2[%c0_23, %c11_24, %c0_25] : memref<1x110x128xbf16, #tpu.memory_space<vmem>>, vector<1x80x128xbf16>
    %34 = vector.shape_cast %33 : vector<1x80x128xbf16> to vector<80x128xbf16>
    %c13 = arith.constant 13 : index
    %c0_26 = arith.constant 0 : index
    %c0_27 = arith.constant 0 : index
    %35 = vector.load %arg4[%c13, %c0_26, %c0_27] : memref<27x128x128xbf16, #tpu.memory_space<vmem>>, vector<1x128x128xbf16>
    %36 = vector.shape_cast %35 : vector<1x128x128xbf16> to vector<128x128xbf16>
    %cst_28 = arith.constant dense<0.000000e+00> : vector<80x128xf32>
    %37 = tpu.matmul %34, %36, %cst_28 {dimension_numbers = #tpu.dot_dimension_numbers<[1], [0], [0], [1], [0, 0, 1, 1], [], []>} : vector<80x128xbf16>, vector<128x128xbf16>, vector<80x128xf32> -> vector<80x128xf32>
    %38 = arith.addf %32, %37 : vector<80x128xf32>
    %c0_29 = arith.constant 0 : index
    %c12_30 = arith.constant 12 : index
    %c0_31 = arith.constant 0 : index
    %39 = vector.load %arg2[%c0_29, %c12_30, %c0_31] : memref<1x110x128xbf16, #tpu.memory_space<vmem>>, vector<1x80x128xbf16>
    %40 = vector.shape_cast %39 : vector<1x80x128xbf16> to vector<80x128xbf16>
    %c14 = arith.constant 14 : index
    %c0_32 = arith.constant 0 : index
    %c0_33 = arith.constant 0 : index
    %41 = vector.load %arg4[%c14, %c0_32, %c0_33] : memref<27x128x128xbf16, #tpu.memory_space<vmem>>, vector<1x128x128xbf16>
    %42 = vector.shape_cast %41 : vector<1x128x128xbf16> to vector<128x128xbf16>
    %cst_34 = arith.constant dense<0.000000e+00> : vector<80x128xf32>
    %43 = tpu.matmul %40, %42, %cst_34 {dimension_numbers = #tpu.dot_dimension_numbers<[1], [0], [0], [1], [0, 0, 1, 1], [], []>} : vector<80x128xbf16>, vector<128x128xbf16>, vector<80x128xf32> -> vector<80x128xf32>
    %44 = arith.addf %38, %43 : vector<80x128xf32>
    %c0_35 = arith.constant 0 : index
    %c20 = arith.constant 20 : index
    %c0_36 = arith.constant 0 : index
    %45 = vector.load %arg2[%c0_35, %c20, %c0_36] : memref<1x110x128xbf16, #tpu.memory_space<vmem>>, vector<1x80x128xbf16>
    %46 = vector.shape_cast %45 : vector<1x80x128xbf16> to vector<80x128xbf16>
    %c15 = arith.constant 15 : index
    %c0_37 = arith.constant 0 : index
    %c0_38 = arith.constant 0 : index
    %47 = vector.load %arg4[%c15, %c0_37, %c0_38] : memref<27x128x128xbf16, #tpu.memory_space<vmem>>, vector<1x128x128xbf16>
    %48 = vector.shape_cast %47 : vector<1x128x128xbf16> to vector<128x128xbf16>
    %cst_39 = arith.constant dense<0.000000e+00> : vector<80x128xf32>
    %49 = tpu.matmul %46, %48, %cst_39 {dimension_numbers = #tpu.dot_dimension_numbers<[1], [0], [0], [1], [0, 0, 1, 1], [], []>} : vector<80x128xbf16>, vector<128x128xbf16>, vector<80x128xf32> -> vector<80x128xf32>
    %50 = arith.addf %44, %49 : vector<80x128xf32>
    %c0_40 = arith.constant 0 : index
    %c21 = arith.constant 21 : index
    %c0_41 = arith.constant 0 : index
    %51 = vector.load %arg2[%c0_40, %c21, %c0_41] : memref<1x110x128xbf16, #tpu.memory_space<vmem>>, vector<1x80x128xbf16>
    %52 = vector.shape_cast %51 : vector<1x80x128xbf16> to vector<80x128xbf16>
    %c16 = arith.constant 16 : index
    %c0_42 = arith.constant 0 : index
    %c0_43 = arith.constant 0 : index
    %53 = vector.load %arg4[%c16, %c0_42, %c0_43] : memref<27x128x128xbf16, #tpu.memory_space<vmem>>, vector<1x128x128xbf16>
    %54 = vector.shape_cast %53 : vector<1x128x128xbf16> to vector<128x128xbf16>
    %cst_44 = arith.constant dense<0.000000e+00> : vector<80x128xf32>
    %55 = tpu.matmul %52, %54, %cst_44 {dimension_numbers = #tpu.dot_dimension_numbers<[1], [0], [0], [1], [0, 0, 1, 1], [], []>} : vector<80x128xbf16>, vector<128x128xbf16>, vector<80x128xf32> -> vector<80x128xf32>
    %56 = arith.addf %50, %55 : vector<80x128xf32>
    %c0_45 = arith.constant 0 : index
    %c22 = arith.constant 22 : index
    %c0_46 = arith.constant 0 : index
    %57 = vector.load %arg2[%c0_45, %c22, %c0_46] : memref<1x110x128xbf16, #tpu.memory_space<vmem>>, vector<1x80x128xbf16>
    %58 = vector.shape_cast %57 : vector<1x80x128xbf16> to vector<80x128xbf16>
    %c17 = arith.constant 17 : index
    %c0_47 = arith.constant 0 : index
    %c0_48 = arith.constant 0 : index
    %59 = vector.load %arg4[%c17, %c0_47, %c0_48] : memref<27x128x128xbf16, #tpu.memory_space<vmem>>, vector<1x128x128xbf16>
    %60 = vector.shape_cast %59 : vector<1x128x128xbf16> to vector<128x128xbf16>
    %cst_49 = arith.constant dense<0.000000e+00> : vector<80x128xf32>
    %61 = tpu.matmul %58, %60, %cst_49 {dimension_numbers = #tpu.dot_dimension_numbers<[1], [0], [0], [1], [0, 0, 1, 1], [], []>} : vector<80x128xbf16>, vector<128x128xbf16>, vector<80x128xf32> -> vector<80x128xf32>
    %62 = arith.addf %56, %61 : vector<80x128xf32>
    %c0_50 = arith.constant 0 : index
    %c0_51 = arith.constant 0 : index
    %c0_52 = arith.constant 0 : index
    %63 = vector.load %arg1[%c0_50, %c0_51, %c0_52] : memref<1x110x128xbf16, #tpu.memory_space<vmem>>, vector<1x80x128xbf16>
    %64 = vector.shape_cast %63 : vector<1x80x128xbf16> to vector<80x128xbf16>
    %c0_53 = arith.constant 0 : index
    %c0_54 = arith.constant 0 : index
    %c0_55 = arith.constant 0 : index
    %65 = vector.load %arg4[%c0_53, %c0_54, %c0_55] : memref<27x128x128xbf16, #tpu.memory_space<vmem>>, vector<1x128x128xbf16>
    %66 = vector.shape_cast %65 : vector<1x128x128xbf16> to vector<128x128xbf16>
    %cst_56 = arith.constant dense<0.000000e+00> : vector<80x128xf32>
    %67 = tpu.matmul %64, %66, %cst_56 {dimension_numbers = #tpu.dot_dimension_numbers<[1], [0], [0], [1], [0, 0, 1, 1], [], []>} : vector<80x128xbf16>, vector<128x128xbf16>, vector<80x128xf32> -> vector<80x128xf32>
    %c0_57 = arith.constant 0 : index
    %c1_58 = arith.constant 1 : index
    %c0_59 = arith.constant 0 : index
    %68 = vector.load %arg1[%c0_57, %c1_58, %c0_59] : memref<1x110x128xbf16, #tpu.memory_space<vmem>>, vector<1x80x128xbf16>
    %69 = vector.shape_cast %68 : vector<1x80x128xbf16> to vector<80x128xbf16>
    %c1_60 = arith.constant 1 : index
    %c0_61 = arith.constant 0 : index
    %c0_62 = arith.constant 0 : index
    %70 = vector.load %arg4[%c1_60, %c0_61, %c0_62] : memref<27x128x128xbf16, #tpu.memory_space<vmem>>, vector<1x128x128xbf16>
    %71 = vector.shape_cast %70 : vector<1x128x128xbf16> to vector<128x128xbf16>
    %cst_63 = arith.constant dense<0.000000e+00> : vector<80x128xf32>
    %72 = tpu.matmul %69, %71, %cst_63 {dimension_numbers = #tpu.dot_dimension_numbers<[1], [0], [0], [1], [0, 0, 1, 1], [], []>} : vector<80x128xbf16>, vector<128x128xbf16>, vector<80x128xf32> -> vector<80x128xf32>
    %73 = arith.addf %67, %72 : vector<80x128xf32>
    %c0_64 = arith.constant 0 : index
    %c2_65 = arith.constant 2 : index
    %c0_66 = arith.constant 0 : index
    %74 = vector.load %arg1[%c0_64, %c2_65, %c0_66] : memref<1x110x128xbf16, #tpu.memory_space<vmem>>, vector<1x80x128xbf16>
    %75 = vector.shape_cast %74 : vector<1x80x128xbf16> to vector<80x128xbf16>
    %c2_67 = arith.constant 2 : index
    %c0_68 = arith.constant 0 : index
    %c0_69 = arith.constant 0 : index
    %76 = vector.load %arg4[%c2_67, %c0_68, %c0_69] : memref<27x128x128xbf16, #tpu.memory_space<vmem>>, vector<1x128x128xbf16>
    %77 = vector.shape_cast %76 : vector<1x128x128xbf16> to vector<128x128xbf16>
    %cst_70 = arith.constant dense<0.000000e+00> : vector<80x128xf32>
    %78 = tpu.matmul %75, %77, %cst_70 {dimension_numbers = #tpu.dot_dimension_numbers<[1], [0], [0], [1], [0, 0, 1, 1], [], []>} : vector<80x128xbf16>, vector<128x128xbf16>, vector<80x128xf32> -> vector<80x128xf32>
    %79 = arith.addf %73, %78 : vector<80x128xf32>
    %c0_71 = arith.constant 0 : index
    %c10_72 = arith.constant 10 : index
    %c0_73 = arith.constant 0 : index
    %80 = vector.load %arg1[%c0_71, %c10_72, %c0_73] : memref<1x110x128xbf16, #tpu.memory_space<vmem>>, vector<1x80x128xbf16>
    %81 = vector.shape_cast %80 : vector<1x80x128xbf16> to vector<80x128xbf16>
    %c3 = arith.constant 3 : index
    %c0_74 = arith.constant 0 : index
    %c0_75 = arith.constant 0 : index
    %82 = vector.load %arg4[%c3, %c0_74, %c0_75] : memref<27x128x128xbf16, #tpu.memory_space<vmem>>, vector<1x128x128xbf16>
    %83 = vector.shape_cast %82 : vector<1x128x128xbf16> to vector<128x128xbf16>
    %cst_76 = arith.constant dense<0.000000e+00> : vector<80x128xf32>
    %84 = tpu.matmul %81, %83, %cst_76 {dimension_numbers = #tpu.dot_dimension_numbers<[1], [0], [0], [1], [0, 0, 1, 1], [], []>} : vector<80x128xbf16>, vector<128x128xbf16>, vector<80x128xf32> -> vector<80x128xf32>
    %85 = arith.addf %79, %84 : vector<80x128xf32>
    %c0_77 = arith.constant 0 : index
    %c11_78 = arith.constant 11 : index
    %c0_79 = arith.constant 0 : index
    %86 = vector.load %arg1[%c0_77, %c11_78, %c0_79] : memref<1x110x128xbf16, #tpu.memory_space<vmem>>, vector<1x80x128xbf16>
    %87 = vector.shape_cast %86 : vector<1x80x128xbf16> to vector<80x128xbf16>
    %c4 = arith.constant 4 : index
    %c0_80 = arith.constant 0 : index
    %c0_81 = arith.constant 0 : index
    %88 = vector.load %arg4[%c4, %c0_80, %c0_81] : memref<27x128x128xbf16, #tpu.memory_space<vmem>>, vector<1x128x128xbf16>
    %89 = vector.shape_cast %88 : vector<1x128x128xbf16> to vector<128x128xbf16>
    %cst_82 = arith.constant dense<0.000000e+00> : vector<80x128xf32>
    %90 = tpu.matmul %87, %89, %cst_82 {dimension_numbers = #tpu.dot_dimension_numbers<[1], [0], [0], [1], [0, 0, 1, 1], [], []>} : vector<80x128xbf16>, vector<128x128xbf16>, vector<80x128xf32> -> vector<80x128xf32>
    %91 = arith.addf %85, %90 : vector<80x128xf32>
    %c0_83 = arith.constant 0 : index
    %c12_84 = arith.constant 12 : index
    %c0_85 = arith.constant 0 : index
    %92 = vector.load %arg1[%c0_83, %c12_84, %c0_85] : memref<1x110x128xbf16, #tpu.memory_space<vmem>>, vector<1x80x128xbf16>
    %93 = vector.shape_cast %92 : vector<1x80x128xbf16> to vector<80x128xbf16>
    %c5 = arith.constant 5 : index
    %c0_86 = arith.constant 0 : index
    %c0_87 = arith.constant 0 : index
    %94 = vector.load %arg4[%c5, %c0_86, %c0_87] : memref<27x128x128xbf16, #tpu.memory_space<vmem>>, vector<1x128x128xbf16>
    %95 = vector.shape_cast %94 : vector<1x128x128xbf16> to vector<128x128xbf16>
    %cst_88 = arith.constant dense<0.000000e+00> : vector<80x128xf32>
    %96 = tpu.matmul %93, %95, %cst_88 {dimension_numbers = #tpu.dot_dimension_numbers<[1], [0], [0], [1], [0, 0, 1, 1], [], []>} : vector<80x128xbf16>, vector<128x128xbf16>, vector<80x128xf32> -> vector<80x128xf32>
    %97 = arith.addf %91, %96 : vector<80x128xf32>
    %c0_89 = arith.constant 0 : index
    %c20_90 = arith.constant 20 : index
    %c0_91 = arith.constant 0 : index
    %98 = vector.load %arg1[%c0_89, %c20_90, %c0_91] : memref<1x110x128xbf16, #tpu.memory_space<vmem>>, vector<1x80x128xbf16>
    %99 = vector.shape_cast %98 : vector<1x80x128xbf16> to vector<80x128xbf16>
    %c6 = arith.constant 6 : index
    %c0_92 = arith.constant 0 : index
    %c0_93 = arith.constant 0 : index
    %100 = vector.load %arg4[%c6, %c0_92, %c0_93] : memref<27x128x128xbf16, #tpu.memory_space<vmem>>, vector<1x128x128xbf16>
    %101 = vector.shape_cast %100 : vector<1x128x128xbf16> to vector<128x128xbf16>
    %cst_94 = arith.constant dense<0.000000e+00> : vector<80x128xf32>
    %102 = tpu.matmul %99, %101, %cst_94 {dimension_numbers = #tpu.dot_dimension_numbers<[1], [0], [0], [1], [0, 0, 1, 1], [], []>} : vector<80x128xbf16>, vector<128x128xbf16>, vector<80x128xf32> -> vector<80x128xf32>
    %103 = arith.addf %97, %102 : vector<80x128xf32>
    %c0_95 = arith.constant 0 : index
    %c21_96 = arith.constant 21 : index
    %c0_97 = arith.constant 0 : index
    %104 = vector.load %arg1[%c0_95, %c21_96, %c0_97] : memref<1x110x128xbf16, #tpu.memory_space<vmem>>, vector<1x80x128xbf16>
    %105 = vector.shape_cast %104 : vector<1x80x128xbf16> to vector<80x128xbf16>
    %c7 = arith.constant 7 : index
    %c0_98 = arith.constant 0 : index
    %c0_99 = arith.constant 0 : index
    %106 = vector.load %arg4[%c7, %c0_98, %c0_99] : memref<27x128x128xbf16, #tpu.memory_space<vmem>>, vector<1x128x128xbf16>
    %107 = vector.shape_cast %106 : vector<1x128x128xbf16> to vector<128x128xbf16>
    %cst_100 = arith.constant dense<0.000000e+00> : vector<80x128xf32>
    %108 = tpu.matmul %105, %107, %cst_100 {dimension_numbers = #tpu.dot_dimension_numbers<[1], [0], [0], [1], [0, 0, 1, 1], [], []>} : vector<80x128xbf16>, vector<128x128xbf16>, vector<80x128xf32> -> vector<80x128xf32>
    %109 = arith.addf %103, %108 : vector<80x128xf32>
    %c0_101 = arith.constant 0 : index
    %c22_102 = arith.constant 22 : index
    %c0_103 = arith.constant 0 : index
    %110 = vector.load %arg1[%c0_101, %c22_102, %c0_103] : memref<1x110x128xbf16, #tpu.memory_space<vmem>>, vector<1x80x128xbf16>
    %111 = vector.shape_cast %110 : vector<1x80x128xbf16> to vector<80x128xbf16>
    %c8 = arith.constant 8 : index
    %c0_104 = arith.constant 0 : index
    %c0_105 = arith.constant 0 : index
    %112 = vector.load %arg4[%c8, %c0_104, %c0_105] : memref<27x128x128xbf16, #tpu.memory_space<vmem>>, vector<1x128x128xbf16>
    %113 = vector.shape_cast %112 : vector<1x128x128xbf16> to vector<128x128xbf16>
    %cst_106 = arith.constant dense<0.000000e+00> : vector<80x128xf32>
    %114 = tpu.matmul %111, %113, %cst_106 {dimension_numbers = #tpu.dot_dimension_numbers<[1], [0], [0], [1], [0, 0, 1, 1], [], []>} : vector<80x128xbf16>, vector<128x128xbf16>, vector<80x128xf32> -> vector<80x128xf32>
    %115 = arith.addf %109, %114 : vector<80x128xf32>
    %c0_107 = arith.constant 0 : index
    %c0_108 = arith.constant 0 : index
    %c0_109 = arith.constant 0 : index
    %116 = vector.load %arg3[%c0_107, %c0_108, %c0_109] : memref<1x110x128xbf16, #tpu.memory_space<vmem>>, vector<1x80x128xbf16>
    %117 = vector.shape_cast %116 : vector<1x80x128xbf16> to vector<80x128xbf16>
    %c18 = arith.constant 18 : index
    %c0_110 = arith.constant 0 : index
    %c0_111 = arith.constant 0 : index
    %118 = vector.load %arg4[%c18, %c0_110, %c0_111] : memref<27x128x128xbf16, #tpu.memory_space<vmem>>, vector<1x128x128xbf16>
    %119 = vector.shape_cast %118 : vector<1x128x128xbf16> to vector<128x128xbf16>
    %cst_112 = arith.constant dense<0.000000e+00> : vector<80x128xf32>
    %120 = tpu.matmul %117, %119, %cst_112 {dimension_numbers = #tpu.dot_dimension_numbers<[1], [0], [0], [1], [0, 0, 1, 1], [], []>} : vector<80x128xbf16>, vector<128x128xbf16>, vector<80x128xf32> -> vector<80x128xf32>
    %c0_113 = arith.constant 0 : index
    %c1_114 = arith.constant 1 : index
    %c0_115 = arith.constant 0 : index
    %121 = vector.load %arg3[%c0_113, %c1_114, %c0_115] : memref<1x110x128xbf16, #tpu.memory_space<vmem>>, vector<1x80x128xbf16>
    %122 = vector.shape_cast %121 : vector<1x80x128xbf16> to vector<80x128xbf16>
    %c19 = arith.constant 19 : index
    %c0_116 = arith.constant 0 : index
    %c0_117 = arith.constant 0 : index
    %123 = vector.load %arg4[%c19, %c0_116, %c0_117] : memref<27x128x128xbf16, #tpu.memory_space<vmem>>, vector<1x128x128xbf16>
    %124 = vector.shape_cast %123 : vector<1x128x128xbf16> to vector<128x128xbf16>
    %cst_118 = arith.constant dense<0.000000e+00> : vector<80x128xf32>
    %125 = tpu.matmul %122, %124, %cst_118 {dimension_numbers = #tpu.dot_dimension_numbers<[1], [0], [0], [1], [0, 0, 1, 1], [], []>} : vector<80x128xbf16>, vector<128x128xbf16>, vector<80x128xf32> -> vector<80x128xf32>
    %126 = arith.addf %120, %125 : vector<80x128xf32>
    %c0_119 = arith.constant 0 : index
    %c2_120 = arith.constant 2 : index
    %c0_121 = arith.constant 0 : index
    %127 = vector.load %arg3[%c0_119, %c2_120, %c0_121] : memref<1x110x128xbf16, #tpu.memory_space<vmem>>, vector<1x80x128xbf16>
    %128 = vector.shape_cast %127 : vector<1x80x128xbf16> to vector<80x128xbf16>
    %c20_122 = arith.constant 20 : index
    %c0_123 = arith.constant 0 : index
    %c0_124 = arith.constant 0 : index
    %129 = vector.load %arg4[%c20_122, %c0_123, %c0_124] : memref<27x128x128xbf16, #tpu.memory_space<vmem>>, vector<1x128x128xbf16>
    %130 = vector.shape_cast %129 : vector<1x128x128xbf16> to vector<128x128xbf16>
    %cst_125 = arith.constant dense<0.000000e+00> : vector<80x128xf32>
    %131 = tpu.matmul %128, %130, %cst_125 {dimension_numbers = #tpu.dot_dimension_numbers<[1], [0], [0], [1], [0, 0, 1, 1], [], []>} : vector<80x128xbf16>, vector<128x128xbf16>, vector<80x128xf32> -> vector<80x128xf32>
    %132 = arith.addf %126, %131 : vector<80x128xf32>
    %c0_126 = arith.constant 0 : index
    %c10_127 = arith.constant 10 : index
    %c0_128 = arith.constant 0 : index
    %133 = vector.load %arg3[%c0_126, %c10_127, %c0_128] : memref<1x110x128xbf16, #tpu.memory_space<vmem>>, vector<1x80x128xbf16>
    %134 = vector.shape_cast %133 : vector<1x80x128xbf16> to vector<80x128xbf16>
    %c21_129 = arith.constant 21 : index
    %c0_130 = arith.constant 0 : index
    %c0_131 = arith.constant 0 : index
    %135 = vector.load %arg4[%c21_129, %c0_130, %c0_131] : memref<27x128x128xbf16, #tpu.memory_space<vmem>>, vector<1x128x128xbf16>
    %136 = vector.shape_cast %135 : vector<1x128x128xbf16> to vector<128x128xbf16>
    %cst_132 = arith.constant dense<0.000000e+00> : vector<80x128xf32>
    %137 = tpu.matmul %134, %136, %cst_132 {dimension_numbers = #tpu.dot_dimension_numbers<[1], [0], [0], [1], [0, 0, 1, 1], [], []>} : vector<80x128xbf16>, vector<128x128xbf16>, vector<80x128xf32> -> vector<80x128xf32>
    %138 = arith.addf %132, %137 : vector<80x128xf32>
    %c0_133 = arith.constant 0 : index
    %c11_134 = arith.constant 11 : index
    %c0_135 = arith.constant 0 : index
    %139 = vector.load %arg3[%c0_133, %c11_134, %c0_135] : memref<1x110x128xbf16, #tpu.memory_space<vmem>>, vector<1x80x128xbf16>
    %140 = vector.shape_cast %139 : vector<1x80x128xbf16> to vector<80x128xbf16>
    %c22_136 = arith.constant 22 : index
    %c0_137 = arith.constant 0 : index
    %c0_138 = arith.constant 0 : index
    %141 = vector.load %arg4[%c22_136, %c0_137, %c0_138] : memref<27x128x128xbf16, #tpu.memory_space<vmem>>, vector<1x128x128xbf16>
    %142 = vector.shape_cast %141 : vector<1x128x128xbf16> to vector<128x128xbf16>
    %cst_139 = arith.constant dense<0.000000e+00> : vector<80x128xf32>
    %143 = tpu.matmul %140, %142, %cst_139 {dimension_numbers = #tpu.dot_dimension_numbers<[1], [0], [0], [1], [0, 0, 1, 1], [], []>} : vector<80x128xbf16>, vector<128x128xbf16>, vector<80x128xf32> -> vector<80x128xf32>
    %144 = arith.addf %138, %143 : vector<80x128xf32>
    %c0_140 = arith.constant 0 : index
    %c12_141 = arith.constant 12 : index
    %c0_142 = arith.constant 0 : index
    %145 = vector.load %arg3[%c0_140, %c12_141, %c0_142] : memref<1x110x128xbf16, #tpu.memory_space<vmem>>, vector<1x80x128xbf16>
    %146 = vector.shape_cast %145 : vector<1x80x128xbf16> to vector<80x128xbf16>
    %c23 = arith.constant 23 : index
    %c0_143 = arith.constant 0 : index
    %c0_144 = arith.constant 0 : index
    %147 = vector.load %arg4[%c23, %c0_143, %c0_144] : memref<27x128x128xbf16, #tpu.memory_space<vmem>>, vector<1x128x128xbf16>
    %148 = vector.shape_cast %147 : vector<1x128x128xbf16> to vector<128x128xbf16>
    %cst_145 = arith.constant dense<0.000000e+00> : vector<80x128xf32>
    %149 = tpu.matmul %146, %148, %cst_145 {dimension_numbers = #tpu.dot_dimension_numbers<[1], [0], [0], [1], [0, 0, 1, 1], [], []>} : vector<80x128xbf16>, vector<128x128xbf16>, vector<80x128xf32> -> vector<80x128xf32>
    %150 = arith.addf %144, %149 : vector<80x128xf32>
    %c0_146 = arith.constant 0 : index
    %c20_147 = arith.constant 20 : index
    %c0_148 = arith.constant 0 : index
    %151 = vector.load %arg3[%c0_146, %c20_147, %c0_148] : memref<1x110x128xbf16, #tpu.memory_space<vmem>>, vector<1x80x128xbf16>
    %152 = vector.shape_cast %151 : vector<1x80x128xbf16> to vector<80x128xbf16>
    %c24 = arith.constant 24 : index
    %c0_149 = arith.constant 0 : index
    %c0_150 = arith.constant 0 : index
    %153 = vector.load %arg4[%c24, %c0_149, %c0_150] : memref<27x128x128xbf16, #tpu.memory_space<vmem>>, vector<1x128x128xbf16>
    %154 = vector.shape_cast %153 : vector<1x128x128xbf16> to vector<128x128xbf16>
    %cst_151 = arith.constant dense<0.000000e+00> : vector<80x128xf32>
    %155 = tpu.matmul %152, %154, %cst_151 {dimension_numbers = #tpu.dot_dimension_numbers<[1], [0], [0], [1], [0, 0, 1, 1], [], []>} : vector<80x128xbf16>, vector<128x128xbf16>, vector<80x128xf32> -> vector<80x128xf32>
    %156 = arith.addf %150, %155 : vector<80x128xf32>
    %c0_152 = arith.constant 0 : index
    %c21_153 = arith.constant 21 : index
    %c0_154 = arith.constant 0 : index
    %157 = vector.load %arg3[%c0_152, %c21_153, %c0_154] : memref<1x110x128xbf16, #tpu.memory_space<vmem>>, vector<1x80x128xbf16>
    %158 = vector.shape_cast %157 : vector<1x80x128xbf16> to vector<80x128xbf16>
    %c25 = arith.constant 25 : index
    %c0_155 = arith.constant 0 : index
    %c0_156 = arith.constant 0 : index
    %159 = vector.load %arg4[%c25, %c0_155, %c0_156] : memref<27x128x128xbf16, #tpu.memory_space<vmem>>, vector<1x128x128xbf16>
    %160 = vector.shape_cast %159 : vector<1x128x128xbf16> to vector<128x128xbf16>
    %cst_157 = arith.constant dense<0.000000e+00> : vector<80x128xf32>
    %161 = tpu.matmul %158, %160, %cst_157 {dimension_numbers = #tpu.dot_dimension_numbers<[1], [0], [0], [1], [0, 0, 1, 1], [], []>} : vector<80x128xbf16>, vector<128x128xbf16>, vector<80x128xf32> -> vector<80x128xf32>
    %162 = arith.addf %156, %161 : vector<80x128xf32>
    %c0_158 = arith.constant 0 : index
    %c22_159 = arith.constant 22 : index
    %c0_160 = arith.constant 0 : index
    %163 = vector.load %arg3[%c0_158, %c22_159, %c0_160] : memref<1x110x128xbf16, #tpu.memory_space<vmem>>, vector<1x80x128xbf16>
    %164 = vector.shape_cast %163 : vector<1x80x128xbf16> to vector<80x128xbf16>
    %c26 = arith.constant 26 : index
    %c0_161 = arith.constant 0 : index
    %c0_162 = arith.constant 0 : index
    %165 = vector.load %arg4[%c26, %c0_161, %c0_162] : memref<27x128x128xbf16, #tpu.memory_space<vmem>>, vector<1x128x128xbf16>
    %166 = vector.shape_cast %165 : vector<1x128x128xbf16> to vector<128x128xbf16>
    %cst_163 = arith.constant dense<0.000000e+00> : vector<80x128xf32>
    %167 = tpu.matmul %164, %166, %cst_163 {dimension_numbers = #tpu.dot_dimension_numbers<[1], [0], [0], [1], [0, 0, 1, 1], [], []>} : vector<80x128xbf16>, vector<128x128xbf16>, vector<80x128xf32> -> vector<80x128xf32>
    %168 = arith.addf %162, %167 : vector<80x128xf32>
    %c0_i32_164 = arith.constant 0 : i32
    %169 = arith.cmpi eq, %9, %c0_i32_164 : i32
    %cst_165 = arith.constant 0.000000e+00 : f32
    %170 = vector.broadcast %cst_165 : f32 to vector<80x128xf32>
    %171 = arith.select %169, %170, %115 : vector<80x128xf32>
    %172 = arith.addf %62, %171 : vector<80x128xf32>
    %c7_i32 = arith.constant 7 : i32
    %173 = arith.cmpi eq, %9, %c7_i32 : i32
    %cst_166 = arith.constant 0.000000e+00 : f32
    %174 = vector.broadcast %cst_166 : f32 to vector<80x128xf32>
    %175 = arith.select %173, %174, %168 : vector<80x128xf32>
    %176 = arith.addf %172, %175 : vector<80x128xf32>
    %c0_167 = arith.constant 0 : index
    %c0_168 = arith.constant 0 : index
    %177 = vector.load %arg5[%c0_167, %c0_168] : memref<1x128xf32, #tpu.memory_space<vmem>>, vector<1x128xf32>
    %178 = vector.broadcast %177 : vector<1x128xf32> to vector<80x128xf32>
    %179 = arith.addf %176, %178 : vector<80x128xf32>
    %cst_169 = arith.constant 0.000000e+00 : f32
    %180 = vector.broadcast %cst_169 : f32 to vector<80x128xf32>
    %181 = arith.maximumf %179, %180 : vector<80x128xf32>
    %c0_170 = arith.constant 0 : index
    %c0_171 = arith.constant 0 : index
    %182 = vector.load %arg6[%c0_170, %c0_171] : memref<80x1xf32, #tpu.memory_space<vmem>>, vector<80x1xf32>
    %183 = vector.broadcast %182 : vector<80x1xf32> to vector<80x128xf32>
    %184 = arith.mulf %181, %183 : vector<80x128xf32>
    %cst_172 = arith.constant 0.000000e+00 : bf16
    %185 = vector.broadcast %cst_172 : bf16 to vector<110x128xbf16>
    %c0_173 = arith.constant 0 : index
    %c0_174 = arith.constant 0 : index
    %c0_175 = arith.constant 0 : index
    %186 = vector.load %arg7[%c0_173, %c0_174, %c0_175] : memref<1x110x128xbf16, #tpu.memory_space<vmem>>, vector<1x110x128xbf16>
    %187 = vector.shape_cast %186 : vector<1x110x128xbf16> to vector<110x128xbf16>
    %188 = vector.shape_cast %185 : vector<110x128xbf16> to vector<1x110x128xbf16>
    tpu.vector_store %arg7[%c0_173, %c0_174, %c0_175], %188 {strides = array<i32>} : memref<1x110x128xbf16, #tpu.memory_space<vmem>>, vector<1x110x128xbf16>,
    %189 = arith.truncf %184 : vector<80x128xf32> to vector<80x128xbf16>
    %c0_176 = arith.constant 0 : index
    %c11_177 = arith.constant 11 : index
    %c0_178 = arith.constant 0 : index
    %190 = vector.load %arg7[%c0_176, %c11_177, %c0_178] : memref<1x110x128xbf16, #tpu.memory_space<vmem>>, vector<1x80x128xbf16>
    %191 = vector.shape_cast %190 : vector<1x80x128xbf16> to vector<80x128xbf16>
    %192 = vector.shape_cast %189 : vector<80x128xbf16> to vector<1x80x128xbf16>
    tpu.vector_store %arg7[%c0_176, %c11_177, %c0_178], %192 {strides = array<i32>} : memref<1x110x128xbf16, #tpu.memory_space<vmem>>, vector<1x80x128xbf16>,
    return
  }
  func.func @transform_0(%arg0: i32) -> (i32, i32, i32) {
    %c1_i32 = arith.constant 1 : i32
    %0 = arith.subi %arg0, %c1_i32 : i32
    %c0_i32 = arith.constant 0 : i32
    %1 = arith.maxsi %0, %c0_i32 : i32
    %c0_i32_0 = arith.constant 0 : i32
    %c0_i32_1 = arith.constant 0 : i32
    %c0_i32_2 = arith.constant 0 : i32
    return %1, %c0_i32_0, %c0_i32_1 : i32, i32, i32
  }
  func.func @transform_1(%arg0: i32) -> (i32, i32, i32) {
    %c0_i32 = arith.constant 0 : i32
    %c0_i32_0 = arith.constant 0 : i32
    %c0_i32_1 = arith.constant 0 : i32
    return %arg0, %c0_i32, %c0_i32_0 : i32, i32, i32
  }
  func.func @transform_2(%arg0: i32) -> (i32, i32, i32) {
    %c1_i32 = arith.constant 1 : i32
    %0 = arith.addi %arg0, %c1_i32 : i32
    %c15_i32 = arith.constant 15 : i32
    %1 = arith.minsi %0, %c15_i32 : i32
    %c0_i32 = arith.constant 0 : i32
    %c0_i32_0 = arith.constant 0 : i32
    %c0_i32_1 = arith.constant 0 : i32
    return %1, %c0_i32, %c0_i32_0 : i32, i32, i32
  }
  func.func @transform_3(%arg0: i32) -> (i32, i32, i32) {
    %c0_i32 = arith.constant 0 : i32
    %c0_i32_0 = arith.constant 0 : i32
    %c0_i32_1 = arith.constant 0 : i32
    %c0_i32_2 = arith.constant 0 : i32
    return %c0_i32, %c0_i32_0, %c0_i32_1 : i32, i32, i32
  }
  func.func @transform_4(%arg0: i32) -> (i32, i32) {
    %c0_i32 = arith.constant 0 : i32
    %c0_i32_0 = arith.constant 0 : i32
    %c0_i32_1 = arith.constant 0 : i32
    return %c0_i32, %c0_i32_0 : i32, i32
  }
  func.func @transform_5(%arg0: i32) -> (i32, i32) {
    %c0_i32 = arith.constant 0 : i32
    %c0_i32_0 = arith.constant 0 : i32
    %c0_i32_1 = arith.constant 0 : i32
    return %c0_i32, %c0_i32_0 : i32, i32
  }
  func.func @transform_6(%arg0: i32) -> (i32, i32, i32) {
    %c0_i32 = arith.constant 0 : i32
    %c0_i32_0 = arith.constant 0 : i32
    %c0_i32_1 = arith.constant 0 : i32
    return %arg0, %c0_i32, %c0_i32_0 : i32, i32, i32
  }
}

module attributes {stable_mosaic.version = 11 : i64} {
  func.func @_conv3x3x3_kernel(%arg0: i32, %arg1: memref<1x110x128xbf16, #tpu.memory_space<vmem>>, %arg2: memref<1x110x128xbf16, #tpu.memory_space<vmem>>, %arg3: memref<1x110x128xbf16, #tpu.memory_space<vmem>>, %arg4: memref<27x128x128xbf16, #tpu.memory_space<vmem>>, %arg5: memref<1x128xf32, #tpu.memory_space<vmem>>, %arg6: memref<1x110x128xbf16, #tpu.memory_space<vmem>>, %arg7: memref<1x80x128xbf16, #tpu.memory_space<vmem>>) attributes {dimension_semantics = [#tpu.dimension_semantics<parallel>], iteration_bounds = array<i64: 16>, scalar_prefetch = 0 : i64, scratch_operands = 0 : i64, tpu.core_type = #tpu.core_type<tc>, window_params = [{transform_indices = @transform_0, window_bounds = array<i64: 1, 110, 128>}, {transform_indices = @transform_1, window_bounds = array<i64: 1, 110, 128>}, {transform_indices = @transform_2, window_bounds = array<i64: 1, 110, 128>}, {pipeline_mode = #tpu.pipeline_mode<synchronous>, transform_indices = @transform_3, window_bounds = array<i64: 27, 128, 128>}, {pipeline_mode = #tpu.pipeline_mode<synchronous>, transform_indices = @transform_4, window_bounds = array<i64: 1, 128>}, {transform_indices = @transform_5, window_bounds = array<i64: 1, 110, 128>}, {transform_indices = @transform_6, window_bounds = array<i64: 1, 80, 128>}]} {
    %c8_i32 = arith.constant 8 : i32
    %c0_i32 = arith.constant 0 : i32
    %0 = arith.cmpi eq, %c8_i32, %c0_i32 : i32
    %c1_i32 = arith.constant 1 : i32
    %1 = arith.select %0, %c1_i32, %c8_i32 : i32
    %2 = arith.remsi %arg0, %1 : i32
    %c0_i32_0 = arith.constant 0 : i32
    %3 = arith.cmpi ne, %2, %c0_i32_0 : i32
    %c0_i32_1 = arith.constant 0 : i32
    %4 = arith.cmpi slt, %2, %c0_i32_1 : i32
    %c0_i32_2 = arith.constant 0 : i32
    %5 = arith.cmpi slt, %1, %c0_i32_2 : i32
    %6 = arith.xori %4, %5 : i1
    %7 = arith.andi %6, %3 : i1
    %8 = arith.addi %2, %1 : i32
    %9 = arith.select %7, %8, %2 : i32
    %c0 = arith.constant 0 : index
    %c0_3 = arith.constant 0 : index
    %c0_4 = arith.constant 0 : index
    %10 = vector.load %arg2[%c0, %c0_3, %c0_4] : memref<1x110x128xbf16, #tpu.memory_space<vmem>>, vector<1x80x128xbf16>
    %11 = vector.shape_cast %10 : vector<1x80x128xbf16> to vector<80x128xbf16>
    %c9 = arith.constant 9 : index
    %c0_5 = arith.constant 0 : index
    %c0_6 = arith.constant 0 : index
    %12 = vector.load %arg4[%c9, %c0_5, %c0_6] : memref<27x128x128xbf16, #tpu.memory_space<vmem>>, vector<1x128x128xbf16>
    %13 = vector.shape_cast %12 : vector<1x128x128xbf16> to vector<128x128xbf16>
    %cst = arith.constant dense<0.000000e+00> : vector<80x128xf32>
    %14 = tpu.matmul %11, %13, %cst {dimension_numbers = #tpu.dot_dimension_numbers<[1], [0], [0], [1], [0, 0, 1, 1], [], []>} : vector<80x128xbf16>, vector<128x128xbf16>, vector<80x128xf32> -> vector<80x128xf32>
    %c0_7 = arith.constant 0 : index
    %c1 = arith.constant 1 : index
    %c0_8 = arith.constant 0 : index
    %15 = vector.load %arg2[%c0_7, %c1, %c0_8] : memref<1x110x128xbf16, #tpu.memory_space<vmem>>, vector<1x80x128xbf16>
    %16 = vector.shape_cast %15 : vector<1x80x128xbf16> to vector<80x128xbf16>
    %c10 = arith.constant 10 : index
    %c0_9 = arith.constant 0 : index
    %c0_10 = arith.constant 0 : index
    %17 = vector.load %arg4[%c10, %c0_9, %c0_10] : memref<27x128x128xbf16, #tpu.memory_space<vmem>>, vector<1x128x128xbf16>
    %18 = vector.shape_cast %17 : vector<1x128x128xbf16> to vector<128x128xbf16>
    %cst_11 = arith.constant dense<0.000000e+00> : vector<80x128xf32>
    %19 = tpu.matmul %16, %18, %cst_11 {dimension_numbers = #tpu.dot_dimension_numbers<[1], [0], [0], [1], [0, 0, 1, 1], [], []>} : vector<80x128xbf16>, vector<128x128xbf16>, vector<80x128xf32> -> vector<80x128xf32>
    %20 = arith.addf %14, %19 : vector<80x128xf32>
    %c0_12 = arith.constant 0 : index
    %c2 = arith.constant 2 : index
    %c0_13 = arith.constant 0 : index
    %21 = vector.load %arg2[%c0_12, %c2, %c0_13] : memref<1x110x128xbf16, #tpu.memory_space<vmem>>, vector<1x80x128xbf16>
    %22 = vector.shape_cast %21 : vector<1x80x128xbf16> to vector<80x128xbf16>
    %c11 = arith.constant 11 : index
    %c0_14 = arith.constant 0 : index
    %c0_15 = arith.constant 0 : index
    %23 = vector.load %arg4[%c11, %c0_14, %c0_15] : memref<27x128x128xbf16, #tpu.memory_space<vmem>>, vector<1x128x128xbf16>
    %24 = vector.shape_cast %23 : vector<1x128x128xbf16> to vector<128x128xbf16>
    %cst_16 = arith.constant dense<0.000000e+00> : vector<80x128xf32>
    %25 = tpu.matmul %22, %24, %cst_16 {dimension_numbers = #tpu.dot_dimension_numbers<[1], [0], [0], [1], [0, 0, 1, 1], [], []>} : vector<80x128xbf16>, vector<128x128xbf16>, vector<80x128xf32> -> vector<80x128xf32>
    %26 = arith.addf %20, %25 : vector<80x128xf32>
    %c0_17 = arith.constant 0 : index
    %c10_18 = arith.constant 10 : index
    %c0_19 = arith.constant 0 : index
    %27 = vector.load %arg2[%c0_17, %c10_18, %c0_19] : memref<1x110x128xbf16, #tpu.memory_space<vmem>>, vector<1x80x128xbf16>
    %28 = vector.shape_cast %27 : vector<1x80x128xbf16> to vector<80x128xbf16>
    %c12 = arith.constant 12 : index
    %c0_20 = arith.constant 0 : index
    %c0_21 = arith.constant 0 : index
    %29 = vector.load %arg4[%c12, %c0_20, %c0_21] : memref<27x128x128xbf16, #tpu.memory_space<vmem>>, vector<1x128x128xbf16>
    %30 = vector.shape_cast %29 : vector<1x128x128xbf16> to vector<128x128xbf16>
    %cst_22 = arith.constant dense<0.000000e+00> : vector<80x128xf32>
    %31 = tpu.matmul %28, %30, %cst_22 {dimension_numbers = #tpu.dot_dimension_numbers<[1], [0], [0], [1], [0, 0, 1, 1], [], []>} : vector<80x128xbf16>, vector<128x128xbf16>, vector<80x128xf32> -> vector<80x128xf32>
    %32 = arith.addf %26, %31 : vector<80x128xf32>
    %c0_23 = arith.constant 0 : index
    %c11_24 = arith.constant 11 : index
    %c0_25 = arith.constant 0 : index
    %33 = vector.load %arg2[%c0_23, %c11_24, %c0_25] : memref<1x110x128xbf16, #tpu.memory_space<vmem>>, vector<1x80x128xbf16>
    %34 = vector.shape_cast %33 : vector<1x80x128xbf16> to vector<80x128xbf16>
    %c13 = arith.constant 13 : index
    %c0_26 = arith.constant 0 : index
    %c0_27 = arith.constant 0 : index
    %35 = vector.load %arg4[%c13, %c0_26, %c0_27] : memref<27x128x128xbf16, #tpu.memory_space<vmem>>, vector<1x128x128xbf16>
    %36 = vector.shape_cast %35 : vector<1x128x128xbf16> to vector<128x128xbf16>
    %cst_28 = arith.constant dense<0.000000e+00> : vector<80x128xf32>
    %37 = tpu.matmul %34, %36, %cst_28 {dimension_numbers = #tpu.dot_dimension_numbers<[1], [0], [0], [1], [0, 0, 1, 1], [], []>} : vector<80x128xbf16>, vector<128x128xbf16>, vector<80x128xf32> -> vector<80x128xf32>
    %38 = arith.addf %32, %37 : vector<80x128xf32>
    %c0_29 = arith.constant 0 : index
    %c12_30 = arith.constant 12 : index
    %c0_31 = arith.constant 0 : index
    %39 = vector.load %arg2[%c0_29, %c12_30, %c0_31] : memref<1x110x128xbf16, #tpu.memory_space<vmem>>, vector<1x80x128xbf16>
    %40 = vector.shape_cast %39 : vector<1x80x128xbf16> to vector<80x128xbf16>
    %c14 = arith.constant 14 : index
    %c0_32 = arith.constant 0 : index
    %c0_33 = arith.constant 0 : index
    %41 = vector.load %arg4[%c14, %c0_32, %c0_33] : memref<27x128x128xbf16, #tpu.memory_space<vmem>>, vector<1x128x128xbf16>
    %42 = vector.shape_cast %41 : vector<1x128x128xbf16> to vector<128x128xbf16>
    %cst_34 = arith.constant dense<0.000000e+00> : vector<80x128xf32>
    %43 = tpu.matmul %40, %42, %cst_34 {dimension_numbers = #tpu.dot_dimension_numbers<[1], [0], [0], [1], [0, 0, 1, 1], [], []>} : vector<80x128xbf16>, vector<128x128xbf16>, vector<80x128xf32> -> vector<80x128xf32>
    %44 = arith.addf %38, %43 : vector<80x128xf32>
    %c0_35 = arith.constant 0 : index
    %c20 = arith.constant 20 : index
    %c0_36 = arith.constant 0 : index
    %45 = vector.load %arg2[%c0_35, %c20, %c0_36] : memref<1x110x128xbf16, #tpu.memory_space<vmem>>, vector<1x80x128xbf16>
    %46 = vector.shape_cast %45 : vector<1x80x128xbf16> to vector<80x128xbf16>
    %c15 = arith.constant 15 : index
    %c0_37 = arith.constant 0 : index
    %c0_38 = arith.constant 0 : index
    %47 = vector.load %arg4[%c15, %c0_37, %c0_38] : memref<27x128x128xbf16, #tpu.memory_space<vmem>>, vector<1x128x128xbf16>
    %48 = vector.shape_cast %47 : vector<1x128x128xbf16> to vector<128x128xbf16>
    %cst_39 = arith.constant dense<0.000000e+00> : vector<80x128xf32>
    %49 = tpu.matmul %46, %48, %cst_39 {dimension_numbers = #tpu.dot_dimension_numbers<[1], [0], [0], [1], [0, 0, 1, 1], [], []>} : vector<80x128xbf16>, vector<128x128xbf16>, vector<80x128xf32> -> vector<80x128xf32>
    %50 = arith.addf %44, %49 : vector<80x128xf32>
    %c0_40 = arith.constant 0 : index
    %c21 = arith.constant 21 : index
    %c0_41 = arith.constant 0 : index
    %51 = vector.load %arg2[%c0_40, %c21, %c0_41] : memref<1x110x128xbf16, #tpu.memory_space<vmem>>, vector<1x80x128xbf16>
    %52 = vector.shape_cast %51 : vector<1x80x128xbf16> to vector<80x128xbf16>
    %c16 = arith.constant 16 : index
    %c0_42 = arith.constant 0 : index
    %c0_43 = arith.constant 0 : index
    %53 = vector.load %arg4[%c16, %c0_42, %c0_43] : memref<27x128x128xbf16, #tpu.memory_space<vmem>>, vector<1x128x128xbf16>
    %54 = vector.shape_cast %53 : vector<1x128x128xbf16> to vector<128x128xbf16>
    %cst_44 = arith.constant dense<0.000000e+00> : vector<80x128xf32>
    %55 = tpu.matmul %52, %54, %cst_44 {dimension_numbers = #tpu.dot_dimension_numbers<[1], [0], [0], [1], [0, 0, 1, 1], [], []>} : vector<80x128xbf16>, vector<128x128xbf16>, vector<80x128xf32> -> vector<80x128xf32>
    %56 = arith.addf %50, %55 : vector<80x128xf32>
    %c0_45 = arith.constant 0 : index
    %c22 = arith.constant 22 : index
    %c0_46 = arith.constant 0 : index
    %57 = vector.load %arg2[%c0_45, %c22, %c0_46] : memref<1x110x128xbf16, #tpu.memory_space<vmem>>, vector<1x80x128xbf16>
    %58 = vector.shape_cast %57 : vector<1x80x128xbf16> to vector<80x128xbf16>
    %c17 = arith.constant 17 : index
    %c0_47 = arith.constant 0 : index
    %c0_48 = arith.constant 0 : index
    %59 = vector.load %arg4[%c17, %c0_47, %c0_48] : memref<27x128x128xbf16, #tpu.memory_space<vmem>>, vector<1x128x128xbf16>
    %60 = vector.shape_cast %59 : vector<1x128x128xbf16> to vector<128x128xbf16>
    %cst_49 = arith.constant dense<0.000000e+00> : vector<80x128xf32>
    %61 = tpu.matmul %58, %60, %cst_49 {dimension_numbers = #tpu.dot_dimension_numbers<[1], [0], [0], [1], [0, 0, 1, 1], [], []>} : vector<80x128xbf16>, vector<128x128xbf16>, vector<80x128xf32> -> vector<80x128xf32>
    %62 = arith.addf %56, %61 : vector<80x128xf32>
    %c0_50 = arith.constant 0 : index
    %c0_51 = arith.constant 0 : index
    %c0_52 = arith.constant 0 : index
    %63 = vector.load %arg1[%c0_50, %c0_51, %c0_52] : memref<1x110x128xbf16, #tpu.memory_space<vmem>>, vector<1x80x128xbf16>
    %64 = vector.shape_cast %63 : vector<1x80x128xbf16> to vector<80x128xbf16>
    %c0_53 = arith.constant 0 : index
    %c0_54 = arith.constant 0 : index
    %c0_55 = arith.constant 0 : index
    %65 = vector.load %arg4[%c0_53, %c0_54, %c0_55] : memref<27x128x128xbf16, #tpu.memory_space<vmem>>, vector<1x128x128xbf16>
    %66 = vector.shape_cast %65 : vector<1x128x128xbf16> to vector<128x128xbf16>
    %cst_56 = arith.constant dense<0.000000e+00> : vector<80x128xf32>
    %67 = tpu.matmul %64, %66, %cst_56 {dimension_numbers = #tpu.dot_dimension_numbers<[1], [0], [0], [1], [0, 0, 1, 1], [], []>} : vector<80x128xbf16>, vector<128x128xbf16>, vector<80x128xf32> -> vector<80x128xf32>
    %c0_57 = arith.constant 0 : index
    %c1_58 = arith.constant 1 : index
    %c0_59 = arith.constant 0 : index
    %68 = vector.load %arg1[%c0_57, %c1_58, %c0_59] : memref<1x110x128xbf16, #tpu.memory_space<vmem>>, vector<1x80x128xbf16>
    %69 = vector.shape_cast %68 : vector<1x80x128xbf16> to vector<80x128xbf16>
    %c1_60 = arith.constant 1 : index
    %c0_61 = arith.constant 0 : index
    %c0_62 = arith.constant 0 : index
    %70 = vector.load %arg4[%c1_60, %c0_61, %c0_62] : memref<27x128x128xbf16, #tpu.memory_space<vmem>>, vector<1x128x128xbf16>
    %71 = vector.shape_cast %70 : vector<1x128x128xbf16> to vector<128x128xbf16>
    %cst_63 = arith.constant dense<0.000000e+00> : vector<80x128xf32>
    %72 = tpu.matmul %69, %71, %cst_63 {dimension_numbers = #tpu.dot_dimension_numbers<[1], [0], [0], [1], [0, 0, 1, 1], [], []>} : vector<80x128xbf16>, vector<128x128xbf16>, vector<80x128xf32> -> vector<80x128xf32>
    %73 = arith.addf %67, %72 : vector<80x128xf32>
    %c0_64 = arith.constant 0 : index
    %c2_65 = arith.constant 2 : index
    %c0_66 = arith.constant 0 : index
    %74 = vector.load %arg1[%c0_64, %c2_65, %c0_66] : memref<1x110x128xbf16, #tpu.memory_space<vmem>>, vector<1x80x128xbf16>
    %75 = vector.shape_cast %74 : vector<1x80x128xbf16> to vector<80x128xbf16>
    %c2_67 = arith.constant 2 : index
    %c0_68 = arith.constant 0 : index
    %c0_69 = arith.constant 0 : index
    %76 = vector.load %arg4[%c2_67, %c0_68, %c0_69] : memref<27x128x128xbf16, #tpu.memory_space<vmem>>, vector<1x128x128xbf16>
    %77 = vector.shape_cast %76 : vector<1x128x128xbf16> to vector<128x128xbf16>
    %cst_70 = arith.constant dense<0.000000e+00> : vector<80x128xf32>
    %78 = tpu.matmul %75, %77, %cst_70 {dimension_numbers = #tpu.dot_dimension_numbers<[1], [0], [0], [1], [0, 0, 1, 1], [], []>} : vector<80x128xbf16>, vector<128x128xbf16>, vector<80x128xf32> -> vector<80x128xf32>
    %79 = arith.addf %73, %78 : vector<80x128xf32>
    %c0_71 = arith.constant 0 : index
    %c10_72 = arith.constant 10 : index
    %c0_73 = arith.constant 0 : index
    %80 = vector.load %arg1[%c0_71, %c10_72, %c0_73] : memref<1x110x128xbf16, #tpu.memory_space<vmem>>, vector<1x80x128xbf16>
    %81 = vector.shape_cast %80 : vector<1x80x128xbf16> to vector<80x128xbf16>
    %c3 = arith.constant 3 : index
    %c0_74 = arith.constant 0 : index
    %c0_75 = arith.constant 0 : index
    %82 = vector.load %arg4[%c3, %c0_74, %c0_75] : memref<27x128x128xbf16, #tpu.memory_space<vmem>>, vector<1x128x128xbf16>
    %83 = vector.shape_cast %82 : vector<1x128x128xbf16> to vector<128x128xbf16>
    %cst_76 = arith.constant dense<0.000000e+00> : vector<80x128xf32>
    %84 = tpu.matmul %81, %83, %cst_76 {dimension_numbers = #tpu.dot_dimension_numbers<[1], [0], [0], [1], [0, 0, 1, 1], [], []>} : vector<80x128xbf16>, vector<128x128xbf16>, vector<80x128xf32> -> vector<80x128xf32>
    %85 = arith.addf %79, %84 : vector<80x128xf32>
    %c0_77 = arith.constant 0 : index
    %c11_78 = arith.constant 11 : index
    %c0_79 = arith.constant 0 : index
    %86 = vector.load %arg1[%c0_77, %c11_78, %c0_79] : memref<1x110x128xbf16, #tpu.memory_space<vmem>>, vector<1x80x128xbf16>
    %87 = vector.shape_cast %86 : vector<1x80x128xbf16> to vector<80x128xbf16>
    %c4 = arith.constant 4 : index
    %c0_80 = arith.constant 0 : index
    %c0_81 = arith.constant 0 : index
    %88 = vector.load %arg4[%c4, %c0_80, %c0_81] : memref<27x128x128xbf16, #tpu.memory_space<vmem>>, vector<1x128x128xbf16>
    %89 = vector.shape_cast %88 : vector<1x128x128xbf16> to vector<128x128xbf16>
    %cst_82 = arith.constant dense<0.000000e+00> : vector<80x128xf32>
    %90 = tpu.matmul %87, %89, %cst_82 {dimension_numbers = #tpu.dot_dimension_numbers<[1], [0], [0], [1], [0, 0, 1, 1], [], []>} : vector<80x128xbf16>, vector<128x128xbf16>, vector<80x128xf32> -> vector<80x128xf32>
    %91 = arith.addf %85, %90 : vector<80x128xf32>
    %c0_83 = arith.constant 0 : index
    %c12_84 = arith.constant 12 : index
    %c0_85 = arith.constant 0 : index
    %92 = vector.load %arg1[%c0_83, %c12_84, %c0_85] : memref<1x110x128xbf16, #tpu.memory_space<vmem>>, vector<1x80x128xbf16>
    %93 = vector.shape_cast %92 : vector<1x80x128xbf16> to vector<80x128xbf16>
    %c5 = arith.constant 5 : index
    %c0_86 = arith.constant 0 : index
    %c0_87 = arith.constant 0 : index
    %94 = vector.load %arg4[%c5, %c0_86, %c0_87] : memref<27x128x128xbf16, #tpu.memory_space<vmem>>, vector<1x128x128xbf16>
    %95 = vector.shape_cast %94 : vector<1x128x128xbf16> to vector<128x128xbf16>
    %cst_88 = arith.constant dense<0.000000e+00> : vector<80x128xf32>
    %96 = tpu.matmul %93, %95, %cst_88 {dimension_numbers = #tpu.dot_dimension_numbers<[1], [0], [0], [1], [0, 0, 1, 1], [], []>} : vector<80x128xbf16>, vector<128x128xbf16>, vector<80x128xf32> -> vector<80x128xf32>
    %97 = arith.addf %91, %96 : vector<80x128xf32>
    %c0_89 = arith.constant 0 : index
    %c20_90 = arith.constant 20 : index
    %c0_91 = arith.constant 0 : index
    %98 = vector.load %arg1[%c0_89, %c20_90, %c0_91] : memref<1x110x128xbf16, #tpu.memory_space<vmem>>, vector<1x80x128xbf16>
    %99 = vector.shape_cast %98 : vector<1x80x128xbf16> to vector<80x128xbf16>
    %c6 = arith.constant 6 : index
    %c0_92 = arith.constant 0 : index
    %c0_93 = arith.constant 0 : index
    %100 = vector.load %arg4[%c6, %c0_92, %c0_93] : memref<27x128x128xbf16, #tpu.memory_space<vmem>>, vector<1x128x128xbf16>
    %101 = vector.shape_cast %100 : vector<1x128x128xbf16> to vector<128x128xbf16>
    %cst_94 = arith.constant dense<0.000000e+00> : vector<80x128xf32>
    %102 = tpu.matmul %99, %101, %cst_94 {dimension_numbers = #tpu.dot_dimension_numbers<[1], [0], [0], [1], [0, 0, 1, 1], [], []>} : vector<80x128xbf16>, vector<128x128xbf16>, vector<80x128xf32> -> vector<80x128xf32>
    %103 = arith.addf %97, %102 : vector<80x128xf32>
    %c0_95 = arith.constant 0 : index
    %c21_96 = arith.constant 21 : index
    %c0_97 = arith.constant 0 : index
    %104 = vector.load %arg1[%c0_95, %c21_96, %c0_97] : memref<1x110x128xbf16, #tpu.memory_space<vmem>>, vector<1x80x128xbf16>
    %105 = vector.shape_cast %104 : vector<1x80x128xbf16> to vector<80x128xbf16>
    %c7 = arith.constant 7 : index
    %c0_98 = arith.constant 0 : index
    %c0_99 = arith.constant 0 : index
    %106 = vector.load %arg4[%c7, %c0_98, %c0_99] : memref<27x128x128xbf16, #tpu.memory_space<vmem>>, vector<1x128x128xbf16>
    %107 = vector.shape_cast %106 : vector<1x128x128xbf16> to vector<128x128xbf16>
    %cst_100 = arith.constant dense<0.000000e+00> : vector<80x128xf32>
    %108 = tpu.matmul %105, %107, %cst_100 {dimension_numbers = #tpu.dot_dimension_numbers<[1], [0], [0], [1], [0, 0, 1, 1], [], []>} : vector<80x128xbf16>, vector<128x128xbf16>, vector<80x128xf32> -> vector<80x128xf32>
    %109 = arith.addf %103, %108 : vector<80x128xf32>
    %c0_101 = arith.constant 0 : index
    %c22_102 = arith.constant 22 : index
    %c0_103 = arith.constant 0 : index
    %110 = vector.load %arg1[%c0_101, %c22_102, %c0_103] : memref<1x110x128xbf16, #tpu.memory_space<vmem>>, vector<1x80x128xbf16>
    %111 = vector.shape_cast %110 : vector<1x80x128xbf16> to vector<80x128xbf16>
    %c8 = arith.constant 8 : index
    %c0_104 = arith.constant 0 : index
    %c0_105 = arith.constant 0 : index
    %112 = vector.load %arg4[%c8, %c0_104, %c0_105] : memref<27x128x128xbf16, #tpu.memory_space<vmem>>, vector<1x128x128xbf16>
    %113 = vector.shape_cast %112 : vector<1x128x128xbf16> to vector<128x128xbf16>
    %cst_106 = arith.constant dense<0.000000e+00> : vector<80x128xf32>
    %114 = tpu.matmul %111, %113, %cst_106 {dimension_numbers = #tpu.dot_dimension_numbers<[1], [0], [0], [1], [0, 0, 1, 1], [], []>} : vector<80x128xbf16>, vector<128x128xbf16>, vector<80x128xf32> -> vector<80x128xf32>
    %115 = arith.addf %109, %114 : vector<80x128xf32>
    %c0_107 = arith.constant 0 : index
    %c0_108 = arith.constant 0 : index
    %c0_109 = arith.constant 0 : index
    %116 = vector.load %arg3[%c0_107, %c0_108, %c0_109] : memref<1x110x128xbf16, #tpu.memory_space<vmem>>, vector<1x80x128xbf16>
    %117 = vector.shape_cast %116 : vector<1x80x128xbf16> to vector<80x128xbf16>
    %c18 = arith.constant 18 : index
    %c0_110 = arith.constant 0 : index
    %c0_111 = arith.constant 0 : index
    %118 = vector.load %arg4[%c18, %c0_110, %c0_111] : memref<27x128x128xbf16, #tpu.memory_space<vmem>>, vector<1x128x128xbf16>
    %119 = vector.shape_cast %118 : vector<1x128x128xbf16> to vector<128x128xbf16>
    %cst_112 = arith.constant dense<0.000000e+00> : vector<80x128xf32>
    %120 = tpu.matmul %117, %119, %cst_112 {dimension_numbers = #tpu.dot_dimension_numbers<[1], [0], [0], [1], [0, 0, 1, 1], [], []>} : vector<80x128xbf16>, vector<128x128xbf16>, vector<80x128xf32> -> vector<80x128xf32>
    %c0_113 = arith.constant 0 : index
    %c1_114 = arith.constant 1 : index
    %c0_115 = arith.constant 0 : index
    %121 = vector.load %arg3[%c0_113, %c1_114, %c0_115] : memref<1x110x128xbf16, #tpu.memory_space<vmem>>, vector<1x80x128xbf16>
    %122 = vector.shape_cast %121 : vector<1x80x128xbf16> to vector<80x128xbf16>
    %c19 = arith.constant 19 : index
    %c0_116 = arith.constant 0 : index
    %c0_117 = arith.constant 0 : index
    %123 = vector.load %arg4[%c19, %c0_116, %c0_117] : memref<27x128x128xbf16, #tpu.memory_space<vmem>>, vector<1x128x128xbf16>
    %124 = vector.shape_cast %123 : vector<1x128x128xbf16> to vector<128x128xbf16>
    %cst_118 = arith.constant dense<0.000000e+00> : vector<80x128xf32>
    %125 = tpu.matmul %122, %124, %cst_118 {dimension_numbers = #tpu.dot_dimension_numbers<[1], [0], [0], [1], [0, 0, 1, 1], [], []>} : vector<80x128xbf16>, vector<128x128xbf16>, vector<80x128xf32> -> vector<80x128xf32>
    %126 = arith.addf %120, %125 : vector<80x128xf32>
    %c0_119 = arith.constant 0 : index
    %c2_120 = arith.constant 2 : index
    %c0_121 = arith.constant 0 : index
    %127 = vector.load %arg3[%c0_119, %c2_120, %c0_121] : memref<1x110x128xbf16, #tpu.memory_space<vmem>>, vector<1x80x128xbf16>
    %128 = vector.shape_cast %127 : vector<1x80x128xbf16> to vector<80x128xbf16>
    %c20_122 = arith.constant 20 : index
    %c0_123 = arith.constant 0 : index
    %c0_124 = arith.constant 0 : index
    %129 = vector.load %arg4[%c20_122, %c0_123, %c0_124] : memref<27x128x128xbf16, #tpu.memory_space<vmem>>, vector<1x128x128xbf16>
    %130 = vector.shape_cast %129 : vector<1x128x128xbf16> to vector<128x128xbf16>
    %cst_125 = arith.constant dense<0.000000e+00> : vector<80x128xf32>
    %131 = tpu.matmul %128, %130, %cst_125 {dimension_numbers = #tpu.dot_dimension_numbers<[1], [0], [0], [1], [0, 0, 1, 1], [], []>} : vector<80x128xbf16>, vector<128x128xbf16>, vector<80x128xf32> -> vector<80x128xf32>
    %132 = arith.addf %126, %131 : vector<80x128xf32>
    %c0_126 = arith.constant 0 : index
    %c10_127 = arith.constant 10 : index
    %c0_128 = arith.constant 0 : index
    %133 = vector.load %arg3[%c0_126, %c10_127, %c0_128] : memref<1x110x128xbf16, #tpu.memory_space<vmem>>, vector<1x80x128xbf16>
    %134 = vector.shape_cast %133 : vector<1x80x128xbf16> to vector<80x128xbf16>
    %c21_129 = arith.constant 21 : index
    %c0_130 = arith.constant 0 : index
    %c0_131 = arith.constant 0 : index
    %135 = vector.load %arg4[%c21_129, %c0_130, %c0_131] : memref<27x128x128xbf16, #tpu.memory_space<vmem>>, vector<1x128x128xbf16>
    %136 = vector.shape_cast %135 : vector<1x128x128xbf16> to vector<128x128xbf16>
    %cst_132 = arith.constant dense<0.000000e+00> : vector<80x128xf32>
    %137 = tpu.matmul %134, %136, %cst_132 {dimension_numbers = #tpu.dot_dimension_numbers<[1], [0], [0], [1], [0, 0, 1, 1], [], []>} : vector<80x128xbf16>, vector<128x128xbf16>, vector<80x128xf32> -> vector<80x128xf32>
    %138 = arith.addf %132, %137 : vector<80x128xf32>
    %c0_133 = arith.constant 0 : index
    %c11_134 = arith.constant 11 : index
    %c0_135 = arith.constant 0 : index
    %139 = vector.load %arg3[%c0_133, %c11_134, %c0_135] : memref<1x110x128xbf16, #tpu.memory_space<vmem>>, vector<1x80x128xbf16>
    %140 = vector.shape_cast %139 : vector<1x80x128xbf16> to vector<80x128xbf16>
    %c22_136 = arith.constant 22 : index
    %c0_137 = arith.constant 0 : index
    %c0_138 = arith.constant 0 : index
    %141 = vector.load %arg4[%c22_136, %c0_137, %c0_138] : memref<27x128x128xbf16, #tpu.memory_space<vmem>>, vector<1x128x128xbf16>
    %142 = vector.shape_cast %141 : vector<1x128x128xbf16> to vector<128x128xbf16>
    %cst_139 = arith.constant dense<0.000000e+00> : vector<80x128xf32>
    %143 = tpu.matmul %140, %142, %cst_139 {dimension_numbers = #tpu.dot_dimension_numbers<[1], [0], [0], [1], [0, 0, 1, 1], [], []>} : vector<80x128xbf16>, vector<128x128xbf16>, vector<80x128xf32> -> vector<80x128xf32>
    %144 = arith.addf %138, %143 : vector<80x128xf32>
    %c0_140 = arith.constant 0 : index
    %c12_141 = arith.constant 12 : index
    %c0_142 = arith.constant 0 : index
    %145 = vector.load %arg3[%c0_140, %c12_141, %c0_142] : memref<1x110x128xbf16, #tpu.memory_space<vmem>>, vector<1x80x128xbf16>
    %146 = vector.shape_cast %145 : vector<1x80x128xbf16> to vector<80x128xbf16>
    %c23 = arith.constant 23 : index
    %c0_143 = arith.constant 0 : index
    %c0_144 = arith.constant 0 : index
    %147 = vector.load %arg4[%c23, %c0_143, %c0_144] : memref<27x128x128xbf16, #tpu.memory_space<vmem>>, vector<1x128x128xbf16>
    %148 = vector.shape_cast %147 : vector<1x128x128xbf16> to vector<128x128xbf16>
    %cst_145 = arith.constant dense<0.000000e+00> : vector<80x128xf32>
    %149 = tpu.matmul %146, %148, %cst_145 {dimension_numbers = #tpu.dot_dimension_numbers<[1], [0], [0], [1], [0, 0, 1, 1], [], []>} : vector<80x128xbf16>, vector<128x128xbf16>, vector<80x128xf32> -> vector<80x128xf32>
    %150 = arith.addf %144, %149 : vector<80x128xf32>
    %c0_146 = arith.constant 0 : index
    %c20_147 = arith.constant 20 : index
    %c0_148 = arith.constant 0 : index
    %151 = vector.load %arg3[%c0_146, %c20_147, %c0_148] : memref<1x110x128xbf16, #tpu.memory_space<vmem>>, vector<1x80x128xbf16>
    %152 = vector.shape_cast %151 : vector<1x80x128xbf16> to vector<80x128xbf16>
    %c24 = arith.constant 24 : index
    %c0_149 = arith.constant 0 : index
    %c0_150 = arith.constant 0 : index
    %153 = vector.load %arg4[%c24, %c0_149, %c0_150] : memref<27x128x128xbf16, #tpu.memory_space<vmem>>, vector<1x128x128xbf16>
    %154 = vector.shape_cast %153 : vector<1x128x128xbf16> to vector<128x128xbf16>
    %cst_151 = arith.constant dense<0.000000e+00> : vector<80x128xf32>
    %155 = tpu.matmul %152, %154, %cst_151 {dimension_numbers = #tpu.dot_dimension_numbers<[1], [0], [0], [1], [0, 0, 1, 1], [], []>} : vector<80x128xbf16>, vector<128x128xbf16>, vector<80x128xf32> -> vector<80x128xf32>
    %156 = arith.addf %150, %155 : vector<80x128xf32>
    %c0_152 = arith.constant 0 : index
    %c21_153 = arith.constant 21 : index
    %c0_154 = arith.constant 0 : index
    %157 = vector.load %arg3[%c0_152, %c21_153, %c0_154] : memref<1x110x128xbf16, #tpu.memory_space<vmem>>, vector<1x80x128xbf16>
    %158 = vector.shape_cast %157 : vector<1x80x128xbf16> to vector<80x128xbf16>
    %c25 = arith.constant 25 : index
    %c0_155 = arith.constant 0 : index
    %c0_156 = arith.constant 0 : index
    %159 = vector.load %arg4[%c25, %c0_155, %c0_156] : memref<27x128x128xbf16, #tpu.memory_space<vmem>>, vector<1x128x128xbf16>
    %160 = vector.shape_cast %159 : vector<1x128x128xbf16> to vector<128x128xbf16>
    %cst_157 = arith.constant dense<0.000000e+00> : vector<80x128xf32>
    %161 = tpu.matmul %158, %160, %cst_157 {dimension_numbers = #tpu.dot_dimension_numbers<[1], [0], [0], [1], [0, 0, 1, 1], [], []>} : vector<80x128xbf16>, vector<128x128xbf16>, vector<80x128xf32> -> vector<80x128xf32>
    %162 = arith.addf %156, %161 : vector<80x128xf32>
    %c0_158 = arith.constant 0 : index
    %c22_159 = arith.constant 22 : index
    %c0_160 = arith.constant 0 : index
    %163 = vector.load %arg3[%c0_158, %c22_159, %c0_160] : memref<1x110x128xbf16, #tpu.memory_space<vmem>>, vector<1x80x128xbf16>
    %164 = vector.shape_cast %163 : vector<1x80x128xbf16> to vector<80x128xbf16>
    %c26 = arith.constant 26 : index
    %c0_161 = arith.constant 0 : index
    %c0_162 = arith.constant 0 : index
    %165 = vector.load %arg4[%c26, %c0_161, %c0_162] : memref<27x128x128xbf16, #tpu.memory_space<vmem>>, vector<1x128x128xbf16>
    %166 = vector.shape_cast %165 : vector<1x128x128xbf16> to vector<128x128xbf16>
    %cst_163 = arith.constant dense<0.000000e+00> : vector<80x128xf32>
    %167 = tpu.matmul %164, %166, %cst_163 {dimension_numbers = #tpu.dot_dimension_numbers<[1], [0], [0], [1], [0, 0, 1, 1], [], []>} : vector<80x128xbf16>, vector<128x128xbf16>, vector<80x128xf32> -> vector<80x128xf32>
    %168 = arith.addf %162, %167 : vector<80x128xf32>
    %c0_i32_164 = arith.constant 0 : i32
    %169 = arith.cmpi eq, %9, %c0_i32_164 : i32
    %cst_165 = arith.constant 0.000000e+00 : f32
    %170 = vector.broadcast %cst_165 : f32 to vector<80x128xf32>
    %171 = arith.select %169, %170, %115 : vector<80x128xf32>
    %172 = arith.addf %62, %171 : vector<80x128xf32>
    %c7_i32 = arith.constant 7 : i32
    %173 = arith.cmpi eq, %9, %c7_i32 : i32
    %cst_166 = arith.constant 0.000000e+00 : f32
    %174 = vector.broadcast %cst_166 : f32 to vector<80x128xf32>
    %175 = arith.select %173, %174, %168 : vector<80x128xf32>
    %176 = arith.addf %172, %175 : vector<80x128xf32>
    %c0_167 = arith.constant 0 : index
    %c0_168 = arith.constant 0 : index
    %177 = vector.load %arg5[%c0_167, %c0_168] : memref<1x128xf32, #tpu.memory_space<vmem>>, vector<1x128xf32>
    %178 = vector.broadcast %177 : vector<1x128xf32> to vector<80x128xf32>
    %179 = arith.addf %176, %178 : vector<80x128xf32>
    %c0_169 = arith.constant 0 : index
    %c11_170 = arith.constant 11 : index
    %c0_171 = arith.constant 0 : index
    %180 = vector.load %arg6[%c0_169, %c11_170, %c0_171] : memref<1x110x128xbf16, #tpu.memory_space<vmem>>, vector<1x80x128xbf16>
    %181 = vector.shape_cast %180 : vector<1x80x128xbf16> to vector<80x128xbf16>
    %182 = arith.extf %181 : vector<80x128xbf16> to vector<80x128xf32>
    %183 = arith.addf %179, %182 : vector<80x128xf32>
    %cst_172 = arith.constant 0.000000e+00 : f32
    %184 = vector.broadcast %cst_172 : f32 to vector<80x128xf32>
    %185 = arith.maximumf %183, %184 : vector<80x128xf32>
    %186 = arith.truncf %185 : vector<80x128xf32> to vector<80x128xbf16>
    %c0_173 = arith.constant 0 : index
    %c0_174 = arith.constant 0 : index
    %c0_175 = arith.constant 0 : index
    %187 = vector.load %arg7[%c0_173, %c0_174, %c0_175] : memref<1x80x128xbf16, #tpu.memory_space<vmem>>, vector<1x80x128xbf16>
    %188 = vector.shape_cast %187 : vector<1x80x128xbf16> to vector<80x128xbf16>
    %189 = vector.shape_cast %186 : vector<80x128xbf16> to vector<1x80x128xbf16>
    tpu.vector_store %arg7[%c0_173, %c0_174, %c0_175], %189 {strides = array<i32>} : memref<1x80x128xbf16, #tpu.memory_space<vmem>>, vector<1x80x128xbf16>,
    return
  }
  func.func @transform_0(%arg0: i32) -> (i32, i32, i32) {
    %c1_i32 = arith.constant 1 : i32
    %0 = arith.subi %arg0, %c1_i32 : i32
    %c0_i32 = arith.constant 0 : i32
    %1 = arith.maxsi %0, %c0_i32 : i32
    %c0_i32_0 = arith.constant 0 : i32
    %c0_i32_1 = arith.constant 0 : i32
    %c0_i32_2 = arith.constant 0 : i32
    return %1, %c0_i32_0, %c0_i32_1 : i32, i32, i32
  }
  func.func @transform_1(%arg0: i32) -> (i32, i32, i32) {
    %c0_i32 = arith.constant 0 : i32
    %c0_i32_0 = arith.constant 0 : i32
    %c0_i32_1 = arith.constant 0 : i32
    return %arg0, %c0_i32, %c0_i32_0 : i32, i32, i32
  }
  func.func @transform_2(%arg0: i32) -> (i32, i32, i32) {
    %c1_i32 = arith.constant 1 : i32
    %0 = arith.addi %arg0, %c1_i32 : i32
    %c15_i32 = arith.constant 15 : i32
    %1 = arith.minsi %0, %c15_i32 : i32
    %c0_i32 = arith.constant 0 : i32
    %c0_i32_0 = arith.constant 0 : i32
    %c0_i32_1 = arith.constant 0 : i32
    return %1, %c0_i32, %c0_i32_0 : i32, i32, i32
  }
  func.func @transform_3(%arg0: i32) -> (i32, i32, i32) {
    %c0_i32 = arith.constant 0 : i32
    %c0_i32_0 = arith.constant 0 : i32
    %c0_i32_1 = arith.constant 0 : i32
    %c0_i32_2 = arith.constant 0 : i32
    return %c0_i32, %c0_i32_0, %c0_i32_1 : i32, i32, i32
  }
  func.func @transform_4(%arg0: i32) -> (i32, i32) {
    %c0_i32 = arith.constant 0 : i32
    %c0_i32_0 = arith.constant 0 : i32
    %c0_i32_1 = arith.constant 0 : i32
    return %c0_i32, %c0_i32_0 : i32, i32
  }
  func.func @transform_5(%arg0: i32) -> (i32, i32, i32) {
    %c0_i32 = arith.constant 0 : i32
    %c0_i32_0 = arith.constant 0 : i32
    %c0_i32_1 = arith.constant 0 : i32
    return %arg0, %c0_i32, %c0_i32_0 : i32, i32, i32
  }
  func.func @transform_6(%arg0: i32) -> (i32, i32, i32) {
    %c0_i32 = arith.constant 0 : i32
    %c0_i32_0 = arith.constant 0 : i32
    %c0_i32_1 = arith.constant 0 : i32
    return %arg0, %c0_i32, %c0_i32_0 : i32, i32, i32
  }
}

</mosaic_0001>

<llo_original>
// kernel: basic_block_forward.3
$region0: #{basic_block_forward.3}
  #allocation0 [shape = 'u32[]', space=smem, size = 0x4, offset = 0x4, fixed_abs, tag = 'smem constant byte address 0x4 - core index']
  #allocation1 [shape = 'u32[144,128]{1,0:T(1,128)}', space=vmem, size = 0x12000, scoped, tag = 'internal scratch']
  %s0 = inlined_call_operand.vmem [shape: bf16[16,110,128], index: 0, kind: input, shape index: {}, may-alias: {0,1,2}]
  %s1 = inlined_call_operand.vmem [shape: bf16[16,110,128], index: 1, kind: input, shape index: {}, may-alias: {0,1,2}]
  %s2 = inlined_call_operand.vmem [shape: bf16[16,110,128], index: 2, kind: input, shape index: {}, may-alias: {0,1,2}]
  %s3 = inlined_call_operand.vmem [shape: bf16[27,128,128], index: 3, kind: input, shape index: {}]
  %s4 = inlined_call_operand.vmem [shape: f32[1,128], index: 4, kind: input, shape index: {}]
  %s5 = inlined_call_operand.vmem [shape: bf16[16,110,128], index: 5, kind: input, shape index: {}]
  %s6 = inlined_call_operand.vmem [shape: bf16[16,80,128], index: 6, kind: output, shape index: {}]
  %s7 = sld [smem:[#allocation0]]
  $region57: #{basic_block_forward.3} parent=0
    _
  %s9 = ssub.s32 1, %s7
  %s10 = scalar_select 0, %s9, %s7
  loop: start=0, step=1, limit=18
  $region2: #{basic_block_forward.3} parent=0 // loop_pre_header
    _
  $region3: #{basic_block_forward.3} parent=0 // loop_header
    %s12 = sphi 0, %s16
    %p13 = scmp.ge.s32.totalorder %s12, 18
    %s28 = sphi 0, %s30
    %s31 = sphi 0, %s28
    %s32 = sphi 0, %s31
    %s48 = sphi 0, %s32
    %s54 = sphi 0, %s56
    %s57 = sphi 0, %s54
    %s58 = sphi 0, %s57
    %s74 = sphi 0, %s58
    %s86 = sphi 0, %s88
    %s89 = sphi 0, %s86
    %s90 = sphi 0, %s89
    %s106 = sphi 0, %s90
    %s110 = sphi 0, %s110
    %s112 = sphi 0, %s110
    %s113 = sphi 0, %s112
    %s127 = sphi 0, %s113
    %s131 = sphi 0, %s131
    %s133 = sphi 0, %s131
    %s134 = sphi 0, %s133
    %s148 = sphi 0, %s134
    %s154 = sphi 0, %s156
    %s157 = sphi 0, %s154
    %s158 = sphi 0, %s157
    %s174 = sphi 0, %s158
    %s180 = sphi 0, %s182
    %s183 = sphi 0, %s180
    %s184 = sphi 0, %s183
    %s200 = sphi 0, %s184
  $region4: #{basic_block_forward.3} parent=0 // loop_header_branch
    %15 = sbr.rel (%p13) target = $region8
  $region5: #{basic_block_forward.3} parent=0 // loop_body
    %s17 = ssub.s32 %s12, 1
    %s18 = ssub.s32 %s12, 2
    %s19 = sadd.s32 %s12, 1
    %s20 = ssub.s32 %s12, 1
    %p21 = scmp.gt.s32.totalorder %s20, 0
    %s22 = scalar_select %p21, %s20, 0
    %s23 = ssub.s32 %s19, 1
    %p24 = scmp.gt.s32.totalorder %s23, 0
    %s25 = scalar_select %p24, %s23, 0
    %s26 = ssub.s32 %s22, %s25
    %p27 = scmp.eq.s32.totalorder %s26, 0
    %s29 = sadd.s32 %s28, 1
    %s30 = scalar_select %p27, %s28, %s29
    %p33 = pneg %p27
    %p34 = scmp.eq.s32.totalorder %s12, 15
    %p35 = por %p33, %p34
    %p36 = scmp.ne.s32.totalorder %s28, %s31
    %p37 = scmp.eq.s32.totalorder %s12, 0
    %p38 = por %p36, %p37
    %p39 = scmp.ne.s32.totalorder %s28, %s31
    %p40 = scmp.eq.s32.totalorder %s17, 15
    %p41 = por %p39, %p40
    %p42 = scmp.ne.s32.totalorder %s31, %s32
    %p43 = scmp.eq.s32.totalorder %s17, 0
    %p44 = por %p42, %p43
    %p45 = scmp.ne.s32.totalorder %s31, %s32
    %p46 = scmp.eq.s32.totalorder %s18, 15
    %p47 = por %p45, %p46
    %p49 = scmp.ne.s32.totalorder %s32, %s48
    %p50 = scmp.eq.s32.totalorder %s18, 0
    %p51 = por %p49, %p50
    %s52 = ssub.s32 %s12, %s19
    %p53 = scmp.eq.s32.totalorder %s52, 0
    %s55 = sadd.s32 %s54, 1
    %s56 = scalar_select %p53, %s54, %s55
    %p59 = pneg %p53
    %p60 = scmp.eq.s32.totalorder %s12, 15
    %p61 = por %p59, %p60
    %p62 = scmp.ne.s32.totalorder %s54, %s57
    %p63 = scmp.eq.s32.totalorder %s12, 0
    %p64 = por %p62, %p63
    %p65 = scmp.ne.s32.totalorder %s54, %s57
    %p66 = scmp.eq.s32.totalorder %s17, 15
    %p67 = por %p65, %p66
    %p68 = scmp.ne.s32.totalorder %s57, %s58
    %p69 = scmp.eq.s32.totalorder %s17, 0
    %p70 = por %p68, %p69
    %p71 = scmp.ne.s32.totalorder %s57, %s58
    %p72 = scmp.eq.s32.totalorder %s18, 15
    %p73 = por %p71, %p72
    %p75 = scmp.ne.s32.totalorder %s58, %s74
    %p76 = scmp.eq.s32.totalorder %s18, 0
    %p77 = por %p75, %p76
    %s78 = sadd.s32 %s12, 1
    %p79 = scmp.lt.s32.totalorder %s78, 15
    %s80 = scalar_select %p79, %s78, 15
    %s81 = sadd.s32 %s19, 1
    %p82 = scmp.lt.s32.totalorder %s81, 15
    %s83 = scalar_select %p82, %s81, 15
    %s84 = ssub.s32 %s80, %s83
    %p85 = scmp.eq.s32.totalorder %s84, 0
    %s87 = sadd.s32 %s86, 1
    %s88 = scalar_select %p85, %s86, %s87
    %p91 = pneg %p85
    %p92 = scmp.eq.s32.totalorder %s12, 15
    %p93 = por %p91, %p92
    %p94 = scmp.ne.s32.totalorder %s86, %s89
    %p95 = scmp.eq.s32.totalorder %s12, 0
    %p96 = por %p94, %p95
    %p97 = scmp.ne.s32.totalorder %s86, %s89
    %p98 = scmp.eq.s32.totalorder %s17, 15
    %p99 = por %p97, %p98
    %p100 = scmp.ne.s32.totalorder %s89, %s90
    %p101 = scmp.eq.s32.totalorder %s17, 0
    %p102 = por %p100, %p101
    %p103 = scmp.ne.s32.totalorder %s89, %s90
    %p104 = scmp.eq.s32.totalorder %s18, 15
    %p105 = por %p103, %p104
    %p107 = scmp.ne.s32.totalorder %s90, %s106
    %p108 = scmp.eq.s32.totalorder %s18, 0
    %p109 = por %p107, %p108
    %s111 = sadd.s32 %s110, 1
    %p114 = scmp.eq.s32.totalorder %s12, 15
    %p115 = scmp.ne.s32.totalorder %s110, %s112
    %p116 = scmp.eq.s32.totalorder %s12, 0
    %p117 = por %p115, %p116
    %p118 = scmp.ne.s32.totalorder %s110, %s112
    %p119 = scmp.eq.s32.totalorder %s17, 15
    %p120 = por %p118, %p119
    %p121 = scmp.ne.s32.totalorder %s112, %s113
    %p122 = scmp.eq.s32.totalorder %s17, 0
    %p123 = por %p121, %p122
    %p124 = scmp.ne.s32.totalorder %s112, %s113
    %p125 = scmp.eq.s32.totalorder %s18, 15
    %p126 = por %p124, %p125
    %p128 = scmp.ne.s32.totalorder %s113, %s127
    %p129 = scmp.eq.s32.totalorder %s18, 0
    %p130 = por %p128, %p129
    %s132 = sadd.s32 %s131, 1
    %p135 = scmp.eq.s32.totalorder %s12, 15
    %p136 = scmp.ne.s32.totalorder %s131, %s133
    %p137 = scmp.eq.s32.totalorder %s12, 0
    %p138 = por %p136, %p137
    %p139 = scmp.ne.s32.totalorder %s131, %s133
    %p140 = scmp.eq.s32.totalorder %s17, 15
    %p141 = por %p139, %p140
    %p142 = scmp.ne.s32.totalorder %s133, %s134
    %p143 = scmp.eq.s32.totalorder %s17, 0
    %p144 = por %p142, %p143
    %p145 = scmp.ne.s32.totalorder %s133, %s134
    %p146 = scmp.eq.s32.totalorder %s18, 15
    %p147 = por %p145, %p146
    %p149 = scmp.ne.s32.totalorder %s134, %s148
    %p150 = scmp.eq.s32.totalorder %s18, 0
    %p151 = por %p149, %p150
    %s152 = ssub.s32 %s12, %s19
    %p153 = scmp.eq.s32.totalorder %s152, 0
    %s155 = sadd.s32 %s154, 1
    %s156 = scalar_select %p153, %s154, %s155
    %p159 = pneg %p153
    %p160 = scmp.eq.s32.totalorder %s12, 15
    %p161 = por %p159, %p160
    %p162 = scmp.ne.s32.totalorder %s154, %s157
    %p163 = scmp.eq.s32.totalorder %s12, 0
    %p164 = por %p162, %p163
    %p165 = scmp.ne.s32.totalorder %s154, %s157
    %p166 = scmp.eq.s32.totalorder %s17, 15
    %p167 = por %p165, %p166
    %p168 = scmp.ne.s32.totalorder %s157, %s158
    %p169 = scmp.eq.s32.totalorder %s17, 0
    %p170 = por %p168, %p169
    %p171 = scmp.ne.s32.totalorder %s157, %s158
    %p172 = scmp.eq.s32.totalorder %s18, 15
    %p173 = por %p171, %p172
    %p175 = scmp.ne.s32.totalorder %s158, %s174
    %p176 = scmp.eq.s32.totalorder %s18, 0
    %p177 = por %p175, %p176
    %s178 = ssub.s32 %s12, %s19
    %p179 = scmp.eq.s32.totalorder %s178, 0
    %s181 = sadd.s32 %s180, 1
    %s182 = scalar_select %p179, %s180, %s181
    %p185 = pneg %p179
    %p186 = scmp.eq.s32.totalorder %s12, 15
    %p187 = por %p185, %p186
    %p188 = scmp.ne.s32.totalorder %s180, %s183
    %p189 = scmp.eq.s32.totalorder %s12, 0
    %p190 = por %p188, %p189
    %p191 = scmp.ne.s32.totalorder %s180, %s183
    %p192 = scmp.eq.s32.totalorder %s17, 15
    %p193 = por %p191, %p192
    %p194 = scmp.ne.s32.totalorder %s183, %s184
    %p195 = scmp.eq.s32.totalorder %s17, 0
    %p196 = por %p194, %p195
    %p197 = scmp.ne.s32.totalorder %s183, %s184
    %p198 = scmp.eq.s32.totalorder %s18, 15
    %p199 = por %p197, %p198
    %p201 = scmp.ne.s32.totalorder %s184, %s200
    %p202 = scmp.eq.s32.totalorder %s18, 0
    %p203 = por %p201, %p202
    %p204 = scmp.le.s32.totalorder 1, %s12
    %p205 = scmp.lt.s32.totalorder %s12, 17
    %p206 = pnand %p204, %p205
    %p207 = pneg %p206
    // Predicated region
    $region9: #{basic_block_forward.3} parent=5 // pred_check
      _
    $region10: #{basic_block_forward.3} parent=5 // pred_check_branch
      %209 = sbr.rel (%p206) target = $region12
    $region11: #{basic_block_forward.3} parent=5 // pred_region
      %s210 = ssub.s32 %s12, 1
      // Predicated region
      $region13: #{basic_block_forward.3} parent=11 // pred_check
        %p211 = pneg %p123
      $region14: #{basic_block_forward.3} parent=11 // pred_check_branch
        %213 = sbr.rel (%p211) target = $region16
      $region15: #{basic_block_forward.3} parent=11 // pred_region
        _
      $region16: #{basic_block_forward.3} parent=11 // pred_fallthru
        _
      // Predicated region
      $region17: #{basic_block_forward.3} parent=11 // pred_check
        %p214 = pneg %p144
      $region18: #{basic_block_forward.3} parent=11 // pred_check_branch
        %216 = sbr.rel (%p214) target = $region20
      $region19: #{basic_block_forward.3} parent=11 // pred_region
        _
      $region20: #{basic_block_forward.3} parent=11 // pred_fallthru
        _
    $region12: #{basic_block_forward.3} parent=5 // pred_fallthru
      _
    %p217 = scmp.lt.s32.totalorder %s12, 16
    // Predicated region
    $region21: #{basic_block_forward.3} parent=5 // pred_check
      %p218 = pneg %p217
    $region22: #{basic_block_forward.3} parent=5 // pred_check_branch
      %220 = sbr.rel (%p218) target = $region24
    $region23: #{basic_block_forward.3} parent=5 // pred_region
      // Predicated region
      $region25: #{basic_block_forward.3} parent=23 // pred_check
        %p221 = pneg %p38
      $region26: #{basic_block_forward.3} parent=23 // pred_check_branch
        %223 = sbr.rel (%p221) target = $region28
      $region27: #{basic_block_forward.3} parent=23 // pred_region
        %s224 = ssub.s32 %s12, 1
        %p225 = scmp.gt.s32.totalorder %s224, 0
        %s226 = scalar_select %p225, %s224, 0
        %p227 = scmp.lt.s32.totalorder %s226, 15
        %s228 = scalar_select %p227, %s226, 15
        %s229 = smul.addr %s228, 14
        %s230 = smul.addr %s229, 4
        %s231 = scalar_lea.vmem %s0, %s230
        %s232 = ssub.s32 %s12, 1
        %p233 = scmp.gt.s32.totalorder %s232, 0
        %s234 = scalar_select %p233, %s232, 0
      $region28: #{basic_block_forward.3} parent=23 // pred_fallthru
        _
      // Predicated region
      $region29: #{basic_block_forward.3} parent=23 // pred_check
        %p235 = pneg %p64
      $region30: #{basic_block_forward.3} parent=23 // pred_check_branch
        %237 = sbr.rel (%p235) target = $region32
      $region31: #{basic_block_forward.3} parent=23 // pred_region
        %p238 = scmp.lt.s32.totalorder %s12, 15
        %s239 = scalar_select %p238, %s12, 15
        %s240 = smul.addr %s239, 14
        %s241 = smul.addr %s240, 4
        %s242 = scalar_lea.vmem %s1, %s241
      $region32: #{basic_block_forward.3} parent=23 // pred_fallthru
        _
      // Predicated region
      $region33: #{basic_block_forward.3} parent=23 // pred_check
        %p243 = pneg %p96
      $region34: #{basic_block_forward.3} parent=23 // pred_check_branch
        %245 = sbr.rel (%p243) target = $region36
      $region35: #{basic_block_forward.3} parent=23 // pred_region
        %s246 = sadd.s32 %s12, 1
        %p247 = scmp.lt.s32.totalorder %s246, 15
        %s248 = scalar_select %p247, %s246, 15
        %p249 = scmp.lt.s32.totalorder %s248, 15
        %s250 = scalar_select %p249, %s248, 15
        %s251 = smul.addr %s250, 14
        %s252 = smul.addr %s251, 4
        %s253 = scalar_lea.vmem %s2, %s252
        %s254 = sadd.s32 %s12, 1
        %p255 = scmp.lt.s32.totalorder %s254, 15
        %s256 = scalar_select %p255, %s254, 15
      $region36: #{basic_block_forward.3} parent=23 // pred_fallthru
        _
      // Predicated region
      $region37: #{basic_block_forward.3} parent=23 // pred_check
        %p257 = pneg %p164
      $region38: #{basic_block_forward.3} parent=23 // pred_check_branch
        %259 = sbr.rel (%p257) target = $region40
      $region39: #{basic_block_forward.3} parent=23 // pred_region
        %p260 = scmp.lt.s32.totalorder %s12, 15
        %s261 = scalar_select %p260, %s12, 15
        %s262 = smul.addr %s261, 14
        %s263 = smul.addr %s262, 4
        %s264 = scalar_lea.vmem %s5, %s263
      $region40: #{basic_block_forward.3} parent=23 // pred_fallthru
        _
    $region24: #{basic_block_forward.3} parent=5 // pred_fallthru
      _
    %p265 = scmp.le.s32.totalorder 1, %s12
    %p266 = scmp.lt.s32.totalorder %s12, 17
    %p267 = pnand %p265, %p266
    %p268 = pneg %p267
    // Predicated region
    $region41: #{basic_block_forward.3} parent=5 // pred_check
      _
    $region42: #{basic_block_forward.3} parent=5 // pred_check_branch
      %270 = sbr.rel (%p267) target = $region44
    $region43: #{basic_block_forward.3} parent=5 // pred_region
      %s271 = ssub.s32 %s12, 1
      %s272 = ssub.s32 %s17, 1
      %p273 = scmp.gt.s32.totalorder %s272, 0
      %s274 = scalar_select %p273, %s272, 0
      %p275 = scmp.lt.s32.totalorder %s274, 15
      %s276 = scalar_select %p275, %s274, 15
      %s277 = smul.addr %s276, 14
      %s278 = smul.addr %s277, 4
      %s279 = scalar_lea.vmem %s0, %s278
      %p280 = pneg %p44
      %p281 = pneg %p41
      %p282 = scmp.lt.s32.totalorder %s17, 15
      %s283 = scalar_select %p282, %s17, 15
      %s284 = smul.addr %s283, 14
      %s285 = smul.addr %s284, 4
      %s286 = scalar_lea.vmem %s1, %s285
      %p287 = pneg %p70
      %p288 = pneg %p67
      %s289 = sadd.s32 %s17, 1
      %p290 = scmp.lt.s32.totalorder %s289, 15
      %s291 = scalar_select %p290, %s289, 15
      %p292 = scmp.lt.s32.totalorder %s291, 15
      %s293 = scalar_select %p292, %s291, 15
      %s294 = smul.addr %s293, 14
      %s295 = smul.addr %s294, 4
      %s296 = scalar_lea.vmem %s2, %s295
      %p297 = pneg %p102
      %p298 = pneg %p99
      %p299 = pneg %p123
      %p300 = pneg %p120
      %p301 = pneg %p144
      %p302 = pneg %p141
      %p303 = scmp.lt.s32.totalorder %s17, 15
      %s304 = scalar_select %p303, %s17, 15
      %s305 = smul.addr %s304, 14
      %s306 = smul.addr %s305, 4
      %s307 = scalar_lea.vmem %s5, %s306
      %p308 = pneg %p170
      %p309 = pneg %p167
      %p310 = pneg %p196
      %p311 = pneg %p193
      %p312 = scmp.lt.s32.totalorder %s17, 15
      %s313 = scalar_select %p312, %s17, 15
      %s314 = smul.addr %s313, 10
      %s315 = smul.addr %s314, 4
      %s316 = scalar_lea.vmem %s6, %s315
      %s317 = ssub.s32 %s17, 1
      %p318 = scmp.gt.s32.totalorder %s317, 0
      %s319 = scalar_select %p318, %s317, 0
      %p320 = scmp.lt.s32.totalorder %s319, 15
      %s321 = scalar_select %p320, %s319, 15
      %s322 = smul.addr %s321, 14
      %s323 = smul.addr %s322, 4
      %s324 = scalar_lea.vmem %s0, %s323
      %s325 = ssub.s32 %s17, 1
      %p326 = scmp.gt.s32.totalorder %s325, 0
      %s327 = scalar_select %p326, %s325, 0
      %p328 = scmp.lt.s32.totalorder %s17, 15
      %s329 = scalar_select %p328, %s17, 15
      %s330 = smul.addr %s329, 14
      %s331 = smul.addr %s330, 4
      %s332 = scalar_lea.vmem %s1, %s331
      %s333 = sadd.s32 %s17, 1
      %p334 = scmp.lt.s32.totalorder %s333, 15
      %s335 = scalar_select %p334, %s333, 15
      %p336 = scmp.lt.s32.totalorder %s335, 15
      %s337 = scalar_select %p336, %s335, 15
      %s338 = smul.addr %s337, 14
      %s339 = smul.addr %s338, 4
      %s340 = scalar_lea.vmem %s2, %s339
      %s341 = sadd.s32 %s17, 1
      %p342 = scmp.lt.s32.totalorder %s341, 15
      %s343 = scalar_select %p342, %s341, 15
      %p344 = scmp.lt.s32.totalorder %s17, 15
      %s345 = scalar_select %p344, %s17, 15
      %s346 = smul.addr %s345, 14
      %s347 = smul.addr %s346, 4
      %s348 = scalar_lea.vmem %s5, %s347
      %p349 = scmp.lt.s32.totalorder %s17, 15
      %s350 = scalar_select %p349, %s17, 15
      %s351 = smul.addr %s350, 10
      %s352 = smul.addr %s351, 4
      %s353 = scalar_lea.vmem %s6, %s352
      %p355 = scmp.lt.s32.totalorder %s17, 0
      %s356 = ssub.s32 0, %s17
      %s357 = scalar_select %p355, %s356, %s17
      %s358 = sand.u32 %s357, 7
      %s359 = ssub.s32 0, %s358
      %s360 = scalar_select %p355, %s359, %s358
      %p361 = scmp.ne.s32.totalorder %s360, 0
      %p362 = scmp.lt.s32.totalorder %s360, 0
      %p363 = pnand %p362, %p361
      %p364 = pneg %p363
      %s365 = sadd.s32 %s360, 8
      %s366 = scalar_select %p364, %s365, %s360
      %v367 = vld [vmem:[%s332] sm:$0xf]
      %v368 = vld [vmem:[%s332 + $0x4] sm:$0xf]
      %v369 = vld [vmem:[%s332 + $0x8] sm:$0xf]
      %v370 = vld [vmem:[%s332 + $0xc] sm:$0xf]
      %v371 = vld [vmem:[%s332 + $0x10] sm:$0xf]
      %v372 = vld [vmem:[%s332 + $0x14] sm:$0xf]
      %v373 = vld [vmem:[%s332 + $0x18] sm:$0xf]
      %v374 = vld [vmem:[%s332 + $0x1c] sm:$0xf]
      %v375 = vld [vmem:[%s332 + $0x20] sm:$0xf]
      %v376 = vld [vmem:[%s332 + $0x24] sm:$0xf]
      %s377 = scalar_lea.vmem %s3, 576
      %v378 = vld [vmem:[%s377] sm:$0xf]
      %v379 = vld [vmem:[%s377 + $0x4] sm:$0xf]
      %v380 = vld [vmem:[%s377 + $0x8] sm:$0xf]
      %v381 = vld [vmem:[%s377 + $0xc] sm:$0xf]
      %v382 = vld [vmem:[%s377 + $0x10] sm:$0xf]
      %v383 = vld [vmem:[%s377 + $0x14] sm:$0xf]
      %v384 = vld [vmem:[%s377 + $0x18] sm:$0xf]
      %v385 = vld [vmem:[%s377 + $0x1c] sm:$0xf]
      %v386 = vld [vmem:[%s377 + $0x20] sm:$0xf]
      %v387 = vld [vmem:[%s377 + $0x24] sm:$0xf]
      %v388 = vld [vmem:[%s377 + $0x28] sm:$0xf]
      %v389 = vld [vmem:[%s377 + $0x2c] sm:$0xf]
      %v390 = vld [vmem:[%s377 + $0x30] sm:$0xf]
      %v391 = vld [vmem:[%s377 + $0x34] sm:$0xf]
      %v392 = vld [vmem:[%s377 + $0x38] sm:$0xf]
      %v393 = vld [vmem:[%s377 + $0x3c] sm:$0xf]
      %v394 = vld [vmem:[%s332 + $0x28] sm:$0x1]
      %s395 = scalar_lea.vmem %s3, 640
      %v396 = vld [vmem:[%s395] sm:$0xf]
      %v397 = vld [vmem:[%s395 + $0x4] sm:$0xf]
      %v398 = vld [vmem:[%s395 + $0x8] sm:$0xf]
      %v399 = vld [vmem:[%s395 + $0xc] sm:$0xf]
      %v400 = vld [vmem:[%s395 + $0x10] sm:$0xf]
      %v401 = vld [vmem:[%s395 + $0x14] sm:$0xf]
      %v402 = vld [vmem:[%s395 + $0x18] sm:$0xf]
      %v403 = vld [vmem:[%s395 + $0x1c] sm:$0xf]
      %v404 = vld [vmem:[%s395 + $0x20] sm:$0xf]
      %v405 = vld [vmem:[%s395 + $0x24] sm:$0xf]
      %v406 = vld [vmem:[%s395 + $0x28] sm:$0xf]
      %v407 = vld [vmem:[%s395 + $0x2c] sm:$0xf]
      %v408 = vld [vmem:[%s395 + $0x30] sm:$0xf]
      %v409 = vld [vmem:[%s395 + $0x34] sm:$0xf]
      %v410 = vld [vmem:[%s395 + $0x38] sm:$0xf]
      %v411 = vld [vmem:[%s395 + $0x3c] sm:$0xf]
      %v423 = vunpack.c.l.b16 %v367
      %v424 = vunpack.c.l.b16 %v368
      %v425 = vunpack.c.l.b16 %v369
      %v426 = vunpack.c.l.b16 %v370
      %v427 = vunpack.c.l.b16 %v371
      %v428 = vunpack.c.l.b16 %v372
      %v429 = vunpack.c.l.b16 %v373
      %v430 = vunpack.c.l.b16 %v374
      %v431 = vunpack.c.l.b16 %v375
      %v432 = vunpack.c.l.b16 %v376
      %v433 = vunpack.c.l.b16 %v394
      %v434 = vpack.c.b16 %v424, %v423
      %v435 = vpack.c.b16 %v426, %v425
      %v436 = vpack.c.b16 %v428, %v427
      %v437 = vpack.c.b16 %v430, %v429
      %v438 = vpack.c.b16 %v432, %v431
      %v439 = vpack.c.b16 %v433, %v433
      %vm440 = vsmask.f32 7424
      %v442 = vshrl.u32 %v434, 16
      %v444 = vshll.u32 %v434, 16
      %v446 = vrot.slane %v444, 1
      %v447 = vor.u32 %v442, %v446
      %v449 = vshll.u32 %v435, 16
      %v451 = vrot.slane %v449, 1
      %v452 = vsel %vm440, %v447, %v451
      %v453 = vshrl.u32 %v435, 16
      %v455 = vor.u32 %v453, %v451
      %v457 = vshll.u32 %v436, 16
      %v459 = vrot.slane %v457, 1
      %v460 = vsel %vm440, %v455, %v459
      %v461 = vshrl.u32 %v436, 16
      %v463 = vor.u32 %v461, %v459
      %v465 = vshll.u32 %v437, 16
      %v467 = vrot.slane %v465, 1
      %v468 = vsel %vm440, %v463, %v467
      %v469 = vshrl.u32 %v437, 16
      %v471 = vor.u32 %v469, %v467
      %v473 = vshll.u32 %v438, 16
      %v475 = vrot.slane %v473, 1
      %v476 = vsel %vm440, %v471, %v475
      %v477 = vshrl.u32 %v438, 16
      %v479 = vor.u32 %v477, %v475
      %v481 = vshll.u32 %v439, 16
      %v483 = vrot.slane %v481, 1
      %v484 = vsel %vm440, %v479, %v483
      %v506 = vunpack.c.l.b16 %v396
      %v507 = vunpack.c.l.b16 %v397
      %v508 = vunpack.c.l.b16 %v398
      %v509 = vunpack.c.l.b16 %v399
      %v510 = vunpack.c.l.b16 %v400
      %v511 = vunpack.c.l.b16 %v401
      %v512 = vunpack.c.l.b16 %v402
      %v513 = vunpack.c.l.b16 %v403
      %v514 = vunpack.c.l.b16 %v404
      %v515 = vunpack.c.l.b16 %v405
      %v516 = vunpack.c.l.b16 %v406
      %v517 = vunpack.c.l.b16 %v407
      %v518 = vunpack.c.l.b16 %v408
      %v519 = vunpack.c.l.b16 %v409
      %v520 = vunpack.c.l.b16 %v410
      %v521 = vunpack.c.l.b16 %v411
      %v522 = vpack.c.b16 %v507, %v506
      %v523 = vpack.c.b16 %v509, %v508
      %v524 = vpack.c.b16 %v511, %v510
      %v525 = vpack.c.b16 %v513, %v512
      %v526 = vpack.c.b16 %v515, %v514
      %v527 = vpack.c.b16 %v517, %v516
      %v528 = vpack.c.b16 %v519, %v518
      %v529 = vpack.c.b16 %v521, %v520
      %538 = vmatprep.subr.bf16.mxu0 0
      %539 = vmatpush1.bf16.msra.mxu0 %v529
      %540 = vmatprep.subr.bf16.mxu0 0
      %541 = vmatpush1.bf16.msra.mxu0 %v528
      %542 = vmatprep.subr.bf16.mxu0 0
      %543 = vmatpush1.bf16.msra.mxu0 %v527
      %544 = vmatprep.subr.bf16.mxu0 0
      %545 = vmatpush1.bf16.msra.mxu0 %v526
      %546 = vmatprep.subr.bf16.mxu0 0
      %547 = vmatpush1.bf16.msra.mxu0 %v525
      %548 = vmatprep.subr.bf16.mxu0 0
      %549 = vmatpush1.bf16.msra.mxu0 %v524
      %550 = vmatprep.subr.bf16.mxu0 0
      %551 = vmatpush1.bf16.msra.mxu0 %v523
      %552 = vmatprep.subr.bf16.mxu0 0
      %553 = vmatpush1.bf16.msra.mxu0 %v522
      %554 = vmatprep.subr.bf16.mxu0 0
      %555 = vmatpush2.bf16.msra.mxu0 0
      %556 = vmatprep.subr.bf16.mxu0 0
      %557 = vmatpush2.bf16.msra.mxu0 0
      %558 = vmatprep.subr.bf16.mxu0 0
      %559 = vmatpush2.bf16.msra.mxu0 0
      %560 = vmatprep.subr.bf16.mxu0 0
      %561 = vmatpush2.bf16.msra.mxu0 0
      %562 = vmatprep.subr.bf16.mxu0 0
      %563 = vmatpush2.bf16.msra.mxu0 0
      %564 = vmatprep.subr.bf16.mxu0 0
      %565 = vmatpush2.bf16.msra.mxu0 0
      %566 = vmatprep.subr.bf16.mxu0 0
      %567 = vmatpush2.bf16.msra.mxu0 0
      %568 = vmatprep.subr.bf16.mxu0 0
      %569 = vmatpush2.bf16.msra.mxu0 0
      %570 = vmatprep.mubr.bf16.mxu0 0
      %571 = vmatmul.mubr.bf16.gmra.mxu0 %v452
      %v572 = vpop.f32.mrf.mxu0
      %v573 = vadd.f32 0.0, %v572
      %v574 = vpop.f32.mrf.mxu0
      %v575 = vpop.f32.mrf.mxu0
      %v576 = vadd.f32 0.0, %v575
      %v577 = vpop.f32.mrf.mxu0
      %578 = vmatprep.mubr.bf16.mxu0 0
      %579 = vmatmul.mubr.bf16.gmra.mxu0 %v460
      %v580 = vpop.f32.mrf.mxu0
      %v581 = vadd.f32 0.0, %v580
      %v582 = vpop.f32.mrf.mxu0
      %v583 = vpop.f32.mrf.mxu0
      %v584 = vadd.f32 0.0, %v583
      %v585 = vpop.f32.mrf.mxu0
      %586 = vmatprep.mubr.bf16.mxu0 0
      %587 = vmatmul.mubr.bf16.gmra.mxu0 %v468
      %v588 = vpop.f32.mrf.mxu0
      %v589 = vadd.f32 0.0, %v588
      %v590 = vpop.f32.mrf.mxu0
      %v591 = vpop.f32.mrf.mxu0
      %v592 = vadd.f32 0.0, %v591
      %v593 = vpop.f32.mrf.mxu0
      %594 = vmatprep.mubr.bf16.mxu0 0
      %595 = vmatmul.mubr.bf16.gmra.mxu0 %v476
      %v596 = vpop.f32.mrf.mxu0
      %v597 = vadd.f32 0.0, %v596
      %v598 = vpop.f32.mrf.mxu0
      %v599 = vpop.f32.mrf.mxu0
      %v600 = vadd.f32 0.0, %v599
      %v601 = vpop.f32.mrf.mxu0
      %602 = vmatprep.mubr.bf16.mxu0 0
      %603 = vmatmul.mubr.bf16.gmra.mxu0 %v484
      %v604 = vpop.f32.mrf.mxu0
      %v605 = vadd.f32 0.0, %v604
      %v606 = vpop.f32.mrf.mxu0
      %v607 = vpop.f32.mrf.mxu0
      %v608 = vadd.f32 0.0, %v607
      %v609 = vpop.f32.mrf.mxu0
      %610 = vdwg.mxu0
      %v632 = vunpack.c.l.b16 %v378
      %v633 = vunpack.c.l.b16 %v379
      %v634 = vunpack.c.l.b16 %v380
      %v635 = vunpack.c.l.b16 %v381
      %v636 = vunpack.c.l.b16 %v382
      %v637 = vunpack.c.l.b16 %v383
      %v638 = vunpack.c.l.b16 %v384
      %v639 = vunpack.c.l.b16 %v385
      %v640 = vunpack.c.l.b16 %v386
      %v641 = vunpack.c.l.b16 %v387
      %v642 = vunpack.c.l.b16 %v388
      %v643 = vunpack.c.l.b16 %v389
      %v644 = vunpack.c.l.b16 %v390
      %v645 = vunpack.c.l.b16 %v391
      %v646 = vunpack.c.l.b16 %v392
      %v647 = vunpack.c.l.b16 %v393
      %v648 = vpack.c.b16 %v633, %v632
      %v649 = vpack.c.b16 %v635, %v634
      %v650 = vpack.c.b16 %v637, %v636
      %v651 = vpack.c.b16 %v639, %v638
      %v652 = vpack.c.b16 %v641, %v640
      %v653 = vpack.c.b16 %v643, %v642
      %v654 = vpack.c.b16 %v645, %v644
      %v655 = vpack.c.b16 %v647, %v646
      %664 = vmatprep.subr.bf16.mxu0 0
      %665 = vmatpush1.bf16.msra.mxu0 %v655
      %666 = vmatprep.subr.bf16.mxu0 0
      %667 = vmatpush1.bf16.msra.mxu0 %v654
      %668 = vmatprep.subr.bf16.mxu0 0
      %669 = vmatpush1.bf16.msra.mxu0 %v653
      %670 = vmatprep.subr.bf16.mxu0 0
      %671 = vmatpush1.bf16.msra.mxu0 %v652
      %672 = vmatprep.subr.bf16.mxu0 0
      %673 = vmatpush1.bf16.msra.mxu0 %v651
      %674 = vmatprep.subr.bf16.mxu0 0
      %675 = vmatpush1.bf16.msra.mxu0 %v650
      %676 = vmatprep.subr.bf16.mxu0 0
      %677 = vmatpush1.bf16.msra.mxu0 %v649
      %678 = vmatprep.subr.bf16.mxu0 0
      %679 = vmatpush1.bf16.msra.mxu0 %v648
      %680 = vmatprep.subr.bf16.mxu0 0
      %681 = vmatpush2.bf16.msra.mxu0 0
      %682 = vmatprep.subr.bf16.mxu0 0
      %683 = vmatpush2.bf16.msra.mxu0 0
      %684 = vmatprep.subr.bf16.mxu0 0
      %685 = vmatpush2.bf16.msra.mxu0 0
      %686 = vmatprep.subr.bf16.mxu0 0
      %687 = vmatpush2.bf16.msra.mxu0 0
      %688 = vmatprep.subr.bf16.mxu0 0
      %689 = vmatpush2.bf16.msra.mxu0 0
      %690 = vmatprep.subr.bf16.mxu0 0
      %691 = vmatpush2.bf16.msra.mxu0 0
      %692 = vmatprep.subr.bf16.mxu0 0
      %693 = vmatpush2.bf16.msra.mxu0 0
      %694 = vmatprep.subr.bf16.mxu0 0
      %695 = vmatpush2.bf16.msra.mxu0 0
      %696 = vmatprep.mubr.bf16.mxu0 0
      %697 = vmatmul.mubr.bf16.gmra.mxu0 %v434
      %v698 = vpop.f32.mrf.mxu0
      %v699 = vadd.f32 %v573, %v698
      %v700 = vpop.f32.mrf.mxu0
      %v701 = vpop.f32.mrf.mxu0
      %v702 = vadd.f32 %v576, %v701
      %v703 = vpop.f32.mrf.mxu0
      %704 = vmatprep.mubr.bf16.mxu0 0
      %705 = vmatmul.mubr.bf16.gmra.mxu0 %v435
      %v706 = vpop.f32.mrf.mxu0
      %v707 = vadd.f32 %v581, %v706
      %v708 = vpop.f32.mrf.mxu0
      %v709 = vpop.f32.mrf.mxu0
      %v710 = vadd.f32 %v584, %v709
      %v711 = vpop.f32.mrf.mxu0
      %712 = vmatprep.mubr.bf16.mxu0 0
      %713 = vmatmul.mubr.bf16.gmra.mxu0 %v436
      %v714 = vpop.f32.mrf.mxu0
      %v715 = vadd.f32 %v589, %v714
      %v716 = vpop.f32.mrf.mxu0
      %v717 = vpop.f32.mrf.mxu0
      %v718 = vadd.f32 %v592, %v717
      %v719 = vpop.f32.mrf.mxu0
      %720 = vmatprep.mubr.bf16.mxu0 0
      %721 = vmatmul.mubr.bf16.gmra.mxu0 %v437
      %v722 = vpop.f32.mrf.mxu0
      %v723 = vadd.f32 %v597, %v722
      %v724 = vpop.f32.mrf.mxu0
      %v725 = vpop.f32.mrf.mxu0
      %v726 = vadd.f32 %v600, %v725
      %v727 = vpop.f32.mrf.mxu0
      %728 = vmatprep.mubr.bf16.mxu0 0
      %729 = vmatmul.mubr.bf16.gmra.mxu0 %v438
      %v730 = vpop.f32.mrf.mxu0
      %v731 = vadd.f32 %v605, %v730
      %v732 = vpop.f32.mrf.mxu0
      %v733 = vpop.f32.mrf.mxu0
      %v734 = vadd.f32 %v608, %v733
      %v735 = vpop.f32.mrf.mxu0
      %736 = vdwg.mxu0
      %v737 = vld [vmem:[%s332] sm:$0xe]
      %s738 = scalar_lea.vmem %s3, 704
      %v739 = vld [vmem:[%s738] sm:$0xf]
      %v740 = vld [vmem:[%s738 + $0x4] sm:$0xf]
      %v741 = vld [vmem:[%s738 + $0x8] sm:$0xf]
      %v742 = vld [vmem:[%s738 + $0xc] sm:$0xf]
      %v743 = vld [vmem:[%s738 + $0x10] sm:$0xf]
      %v744 = vld [vmem:[%s738 + $0x14] sm:$0xf]
      %v745 = vld [vmem:[%s738 + $0x18] sm:$0xf]
      %v746 = vld [vmem:[%s738 + $0x1c] sm:$0xf]
      %v747 = vld [vmem:[%s738 + $0x20] sm:$0xf]
      %v748 = vld [vmem:[%s738 + $0x24] sm:$0xf]
      %v749 = vld [vmem:[%s738 + $0x28] sm:$0xf]
      %v750 = vld [vmem:[%s738 + $0x2c] sm:$0xf]
      %v751 = vld [vmem:[%s738 + $0x30] sm:$0xf]
      %v752 = vld [vmem:[%s738 + $0x34] sm:$0xf]
      %v753 = vld [vmem:[%s738 + $0x38] sm:$0xf]
      %v754 = vld [vmem:[%s738 + $0x3c] sm:$0xf]
      %v756 = vunpack.c.l.b16 %v737
      %v757 = vpack.c.b16 %v424, %v756
      %vm758 = vcmask 1046528
      %v759 = vrot.slane %v757, 1
      %v760 = vrot.slane %v435, 1
      %v761 = vsel %vm758, %v759, %v760
      %v762 = vrot.slane %v436, 1
      %v763 = vsel %vm758, %v760, %v762
      %v764 = vrot.slane %v437, 1
      %v765 = vsel %vm758, %v762, %v764
      %v766 = vrot.slane %v438, 1
      %v767 = vsel %vm758, %v764, %v766
      %v768 = vrot.slane %v439, 1
      %v769 = vsel %vm758, %v766, %v768
      %v791 = vunpack.c.l.b16 %v739
      %v792 = vunpack.c.l.b16 %v740
      %v793 = vunpack.c.l.b16 %v741
      %v794 = vunpack.c.l.b16 %v742
      %v795 = vunpack.c.l.b16 %v743
      %v796 = vunpack.c.l.b16 %v744
      %v797 = vunpack.c.l.b16 %v745
      %v798 = vunpack.c.l.b16 %v746
      %v799 = vunpack.c.l.b16 %v747
      %v800 = vunpack.c.l.b16 %v748
      %v801 = vunpack.c.l.b16 %v749
      %v802 = vunpack.c.l.b16 %v750
      %v803 = vunpack.c.l.b16 %v751
      %v804 = vunpack.c.l.b16 %v752
      %v805 = vunpack.c.l.b16 %v753
      %v806 = vunpack.c.l.b16 %v754
      %v807 = vpack.c.b16 %v792, %v791
      %v808 = vpack.c.b16 %v794, %v793
      %v809 = vpack.c.b16 %v796, %v795
      %v810 = vpack.c.b16 %v798, %v797
      %v811 = vpack.c.b16 %v800, %v799
      %v812 = vpack.c.b16 %v802, %v801
      %v813 = vpack.c.b16 %v804, %v803
      %v814 = vpack.c.b16 %v806, %v805
      %823 = vmatprep.subr.bf16.mxu0 0
      %824 = vmatpush1.bf16.msra.mxu0 %v814
      %825 = vmatprep.subr.bf16.mxu0 0
      %826 = vmatpush1.bf16.msra.mxu0 %v813
      %827 = vmatprep.subr.bf16.mxu0 0
      %828 = vmatpush1.bf16.msra.mxu0 %v812
      %829 = vmatprep.subr.bf16.mxu0 0
      %830 = vmatpush1.bf16.msra.mxu0 %v811
      %831 = vmatprep.subr.bf16.mxu0 0
      %832 = vmatpush1.bf16.msra.mxu0 %v810
      %833 = vmatprep.subr.bf16.mxu0 0
      %834 = vmatpush1.bf16.msra.mxu0 %v809
      %835 = vmatprep.subr.bf16.mxu0 0
      %836 = vmatpush1.bf16.msra.mxu0 %v808
      %837 = vmatprep.subr.bf16.mxu0 0
      %838 = vmatpush1.bf16.msra.mxu0 %v807
      %839 = vmatprep.subr.bf16.mxu0 0
      %840 = vmatpush2.bf16.msra.mxu0 0
      %841 = vmatprep.subr.bf16.mxu0 0
      %842 = vmatpush2.bf16.msra.mxu0 0
      %843 = vmatprep.subr.bf16.mxu0 0
      %844 = vmatpush2.bf16.msra.mxu0 0
      %845 = vmatprep.subr.bf16.mxu0 0
      %846 = vmatpush2.bf16.msra.mxu0 0
      %847 = vmatprep.subr.bf16.mxu0 0
      %848 = vmatpush2.bf16.msra.mxu0 0
      %849 = vmatprep.subr.bf16.mxu0 0
      %850 = vmatpush2.bf16.msra.mxu0 0
      %851 = vmatprep.subr.bf16.mxu0 0
      %852 = vmatpush2.bf16.msra.mxu0 0
      %853 = vmatprep.subr.bf16.mxu0 0
      %854 = vmatpush2.bf16.msra.mxu0 0
      %855 = vmatprep.mubr.bf16.mxu0 0
      %856 = vmatmul.mubr.bf16.gmra.mxu0 %v761
      %v857 = vpop.f32.mrf.mxu0
      %v858 = vadd.f32 0.0, %v857
      %v859 = vpop.f32.mrf.mxu0
      %v860 = vpop.f32.mrf.mxu0
      %v861 = vadd.f32 0.0, %v860
      %v862 = vpop.f32.mrf.mxu0
      %863 = vmatprep.mubr.bf16.mxu0 0
      %864 = vmatmul.mubr.bf16.gmra.mxu0 %v763
      %v865 = vpop.f32.mrf.mxu0
      %v866 = vadd.f32 0.0, %v865
      %v867 = vpop.f32.mrf.mxu0
      %v868 = vpop.f32.mrf.mxu0
      %v869 = vadd.f32 0.0, %v868
      %v870 = vpop.f32.mrf.mxu0
      %871 = vmatprep.mubr.bf16.mxu0 0
      %872 = vmatmul.mubr.bf16.gmra.mxu0 %v765
      %v873 = vpop.f32.mrf.mxu0
      %v874 = vadd.f32 0.0, %v873
      %v875 = vpop.f32.mrf.mxu0
      %v876 = vpop.f32.mrf.mxu0
      %v877 = vadd.f32 0.0, %v876
      %v878 = vpop.f32.mrf.mxu0
      %879 = vmatprep.mubr.bf16.mxu0 0
      %880 = vmatmul.mubr.bf16.gmra.mxu0 %v767
      %v881 = vpop.f32.mrf.mxu0
      %v882 = vadd.f32 0.0, %v881
      %v883 = vpop.f32.mrf.mxu0
      %v884 = vpop.f32.mrf.mxu0
      %v885 = vadd.f32 0.0, %v884
      %v886 = vpop.f32.mrf.mxu0
      %887 = vmatprep.mubr.bf16.mxu0 0
      %888 = vmatmul.mubr.bf16.gmra.mxu0 %v769
      %v889 = vpop.f32.mrf.mxu0
      %v890 = vadd.f32 0.0, %v889
      %v891 = vpop.f32.mrf.mxu0
      %v892 = vpop.f32.mrf.mxu0
      %v893 = vadd.f32 0.0, %v892
      %v894 = vpop.f32.mrf.mxu0
      %895 = vdwg.mxu0
      %v896 = vadd.f32 %v699, %v858
      %v897 = vadd.f32 %v702, %v861
      %v898 = vadd.f32 %v707, %v866
      %v899 = vadd.f32 %v710, %v869
      %v900 = vadd.f32 %v715, %v874
      %v901 = vadd.f32 %v718, %v877
      %v902 = vadd.f32 %v723, %v882
      %v903 = vadd.f32 %v726, %v885
      %v904 = vadd.f32 %v731, %v890
      %v905 = vadd.f32 %v734, %v893
      %v906 = vld [vmem:[%s332 + $0x4] sm:$0xe]
      %v907 = vld [vmem:[%s332 + $0x8] sm:$0xf]
      %v908 = vld [vmem:[%s332 + $0xc] sm:$0xf]
      %v909 = vld [vmem:[%s332 + $0x10] sm:$0xf]
      %v910 = vld [vmem:[%s332 + $0x14] sm:$0xf]
      %v911 = vld [vmem:[%s332 + $0x18] sm:$0xf]
      %v912 = vld [vmem:[%s332 + $0x1c] sm:$0xf]
      %v913 = vld [vmem:[%s332 + $0x20] sm:$0xf]
      %v914 = vld [vmem:[%s332 + $0x24] sm:$0xf]
      %v915 = vld [vmem:[%s332 + $0x28] sm:$0xf]
      %v916 = vld [vmem:[%s332 + $0x2c] sm:$0x1]
      %s917 = scalar_lea.vmem %s3, 768
      %v918 = vld [vmem:[%s917] sm:$0xf]
      %v919 = vld [vmem:[%s917 + $0x4] sm:$0xf]
      %v920 = vld [vmem:[%s917 + $0x8] sm:$0xf]
      %v921 = vld [vmem:[%s917 + $0xc] sm:$0xf]
      %v922 = vld [vmem:[%s917 + $0x10] sm:$0xf]
      %v923 = vld [vmem:[%s917 + $0x14] sm:$0xf]
      %v924 = vld [vmem:[%s917 + $0x18] sm:$0xf]
      %v925 = vld [vmem:[%s917 + $0x1c] sm:$0xf]
      %v926 = vld [vmem:[%s917 + $0x20] sm:$0xf]
      %v927 = vld [vmem:[%s917 + $0x24] sm:$0xf]
      %v928 = vld [vmem:[%s917 + $0x28] sm:$0xf]
      %v929 = vld [vmem:[%s917 + $0x2c] sm:$0xf]
      %v930 = vld [vmem:[%s917 + $0x30] sm:$0xf]
      %v931 = vld [vmem:[%s917 + $0x34] sm:$0xf]
      %v932 = vld [vmem:[%s917 + $0x38] sm:$0xf]
      %v933 = vld [vmem:[%s917 + $0x3c] sm:$0xf]
      %v945 = vunpack.c.l.b16 %v906
      %v946 = vunpack.c.l.b16 %v907
      %v947 = vunpack.c.l.b16 %v908
      %v948 = vunpack.c.l.b16 %v909
      %v949 = vunpack.c.l.b16 %v910
      %v950 = vunpack.c.l.b16 %v911
      %v951 = vunpack.c.l.b16 %v912
      %v952 = vunpack.c.l.b16 %v913
      %v953 = vunpack.c.l.b16 %v914
      %v954 = vunpack.c.l.b16 %v915
      %v955 = vunpack.c.l.b16 %v916
      %v956 = vpack.c.b16 %v946, %v945
      %v957 = vpack.c.b16 %v948, %v947
      %v958 = vpack.c.b16 %v950, %v949
      %v959 = vpack.c.b16 %v952, %v951
      %v960 = vpack.c.b16 %v954, %v953
      %v961 = vpack.c.b16 %v955, %v955
      %v962 = vrot.slane %v956, 1
      %v963 = vrot.slane %v957, 1
      %v964 = vsel %vm758, %v962, %v963
      %v965 = vrot.slane %v958, 1
      %v966 = vsel %vm758, %v963, %v965
      %v967 = vrot.slane %v959, 1
      %v968 = vsel %vm758, %v965, %v967
      %v969 = vrot.slane %v960, 1
      %v970 = vsel %vm758, %v967, %v969
      %v971 = vrot.slane %v961, 1
      %v972 = vsel %vm758, %v969, %v971
      %v994 = vunpack.c.l.b16 %v918
      %v995 = vunpack.c.l.b16 %v919
      %v996 = vunpack.c.l.b16 %v920
      %v997 = vunpack.c.l.b16 %v921
      %v998 = vunpack.c.l.b16 %v922
      %v999 = vunpack.c.l.b16 %v923
      %v1000 = vunpack.c.l.b16 %v924
      %v1001 = vunpack.c.l.b16 %v925
      %v1002 = vunpack.c.l.b16 %v926
      %v1003 = vunpack.c.l.b16 %v927
      %v1004 = vunpack.c.l.b16 %v928
      %v1005 = vunpack.c.l.b16 %v929
      %v1006 = vunpack.c.l.b16 %v930
      %v1007 = vunpack.c.l.b16 %v931
      %v1008 = vunpack.c.l.b16 %v932
      %v1009 = vunpack.c.l.b16 %v933
      %v1010 = vpack.c.b16 %v995, %v994
      %v1011 = vpack.c.b16 %v997, %v996
      %v1012 = vpack.c.b16 %v999, %v998
      %v1013 = vpack.c.b16 %v1001, %v1000
      %v1014 = vpack.c.b16 %v1003, %v1002
      %v1015 = vpack.c.b16 %v1005, %v1004
      %v1016 = vpack.c.b16 %v1007, %v1006
      %v1017 = vpack.c.b16 %v1009, %v1008
      %1026 = vmatprep.subr.bf16.mxu0 0
      %1027 = vmatpush1.bf16.msra.mxu0 %v1017
      %1028 = vmatprep.subr.bf16.mxu0 0
      %1029 = vmatpush1.bf16.msra.mxu0 %v1016
      %1030 = vmatprep.subr.bf16.mxu0 0
      %1031 = vmatpush1.bf16.msra.mxu0 %v1015
      %1032 = vmatprep.subr.bf16.mxu0 0
      %1033 = vmatpush1.bf16.msra.mxu0 %v1014
      %1034 = vmatprep.subr.bf16.mxu0 0
      %1035 = vmatpush1.bf16.msra.mxu0 %v1013
      %1036 = vmatprep.subr.bf16.mxu0 0
      %1037 = vmatpush1.bf16.msra.mxu0 %v1012
      %1038 = vmatprep.subr.bf16.mxu0 0
      %1039 = vmatpush1.bf16.msra.mxu0 %v1011
      %1040 = vmatprep.subr.bf16.mxu0 0
      %1041 = vmatpush1.bf16.msra.mxu0 %v1010
      %1042 = vmatprep.subr.bf16.mxu0 0
      %1043 = vmatpush2.bf16.msra.mxu0 0
      %1044 = vmatprep.subr.bf16.mxu0 0
      %1045 = vmatpush2.bf16.msra.mxu0 0
      %1046 = vmatprep.subr.bf16.mxu0 0
      %1047 = vmatpush2.bf16.msra.mxu0 0
      %1048 = vmatprep.subr.bf16.mxu0 0
      %1049 = vmatpush2.bf16.msra.mxu0 0
      %1050 = vmatprep.subr.bf16.mxu0 0
      %1051 = vmatpush2.bf16.msra.mxu0 0
      %1052 = vmatprep.subr.bf16.mxu0 0
      %1053 = vmatpush2.bf16.msra.mxu0 0
      %1054 = vmatprep.subr.bf16.mxu0 0
      %1055 = vmatpush2.bf16.msra.mxu0 0
      %1056 = vmatprep.subr.bf16.mxu0 0
      %1057 = vmatpush2.bf16.msra.mxu0 0
      %1058 = vmatprep.mubr.bf16.mxu0 0
      %1059 = vmatmul.mubr.bf16.gmra.mxu0 %v964
      %v1060 = vpop.f32.mrf.mxu0
      %v1061 = vadd.f32 0.0, %v1060
      %v1062 = vpop.f32.mrf.mxu0
      %v1063 = vpop.f32.mrf.mxu0
      %v1064 = vadd.f32 0.0, %v1063
      %v1065 = vpop.f32.mrf.mxu0
      %1066 = vmatprep.mubr.bf16.mxu0 0
      %1067 = vmatmul.mubr.bf16.gmra.mxu0 %v966
      %v1068 = vpop.f32.mrf.mxu0
      %v1069 = vadd.f32 0.0, %v1068
      %v1070 = vpop.f32.mrf.mxu0
      %v1071 = vpop.f32.mrf.mxu0
      %v1072 = vadd.f32 0.0, %v1071
      %v1073 = vpop.f32.mrf.mxu0
      %1074 = vmatprep.mubr.bf16.mxu0 0
      %1075 = vmatmul.mubr.bf16.gmra.mxu0 %v968
      %v1076 = vpop.f32.mrf.mxu0
      %v1077 = vadd.f32 0.0, %v1076
      %v1078 = vpop.f32.mrf.mxu0
      %v1079 = vpop.f32.mrf.mxu0
      %v1080 = vadd.f32 0.0, %v1079
      %v1081 = vpop.f32.mrf.mxu0
      %1082 = vmatprep.mubr.bf16.mxu0 0
      %1083 = vmatmul.mubr.bf16.gmra.mxu0 %v970
      %v1084 = vpop.f32.mrf.mxu0
      %v1085 = vadd.f32 0.0, %v1084
      %v1086 = vpop.f32.mrf.mxu0
      %v1087 = vpop.f32.mrf.mxu0
      %v1088 = vadd.f32 0.0, %v1087
      %v1089 = vpop.f32.mrf.mxu0
      %1090 = vmatprep.mubr.bf16.mxu0 0
      %1091 = vmatmul.mubr.bf16.gmra.mxu0 %v972
      %v1092 = vpop.f32.mrf.mxu0
      %v1093 = vadd.f32 0.0, %v1092
      %v1094 = vpop.f32.mrf.mxu0
      %v1095 = vpop.f32.mrf.mxu0
      %v1096 = vadd.f32 0.0, %v1095
      %v1097 = vpop.f32.mrf.mxu0
      %1098 = vdwg.mxu0
      %v1099 = vadd.f32 %v896, %v1061
      %v1100 = vadd.f32 %v897, %v1064
      %v1101 = vadd.f32 %v898, %v1069
      %v1102 = vadd.f32 %v899, %v1072
      %v1103 = vadd.f32 %v900, %v1077
      %v1104 = vadd.f32 %v901, %v1080
      %v1105 = vadd.f32 %v902, %v1085
      %v1106 = vadd.f32 %v903, %v1088
      %v1107 = vadd.f32 %v904, %v1093
      %v1108 = vadd.f32 %v905, %v1096
      %v1109 = vld [vmem:[%s332 + $0x2c] sm:$0x3]
      %s1110 = scalar_lea.vmem %s3, 832
      %v1111 = vld [vmem:[%s1110] sm:$0xf]
      %v1112 = vld [vmem:[%s1110 + $0x4] sm:$0xf]
      %v1113 = vld [vmem:[%s1110 + $0x8] sm:$0xf]
      %v1114 = vld [vmem:[%s1110 + $0xc] sm:$0xf]
      %v1115 = vld [vmem:[%s1110 + $0x10] sm:$0xf]
      %v1116 = vld [vmem:[%s1110 + $0x14] sm:$0xf]
      %v1117 = vld [vmem:[%s1110 + $0x18] sm:$0xf]
      %v1118 = vld [vmem:[%s1110 + $0x1c] sm:$0xf]
      %v1119 = vld [vmem:[%s1110 + $0x20] sm:$0xf]
      %v1120 = vld [vmem:[%s1110 + $0x24] sm:$0xf]
      %v1121 = vld [vmem:[%s1110 + $0x28] sm:$0xf]
      %v1122 = vld [vmem:[%s1110 + $0x2c] sm:$0xf]
      %v1123 = vld [vmem:[%s1110 + $0x30] sm:$0xf]
      %v1124 = vld [vmem:[%s1110 + $0x34] sm:$0xf]
      %v1125 = vld [vmem:[%s1110 + $0x38] sm:$0xf]
      %v1126 = vld [vmem:[%s1110 + $0x3c] sm:$0xf]
      %v1128 = vunpack.c.l.b16 %v1109
      %v1129 = vpack.c.b16 %v1128, %v1128
      %vm1130 = vsmask.f32 6400
      %v1132 = vshrl.u32 %v956, 16
      %v1134 = vrot.slane %v1132, 1
      %v1135 = vshll.u32 %v956, 16
      %v1137 = vrot.slane %v1135, 2
      %v1138 = vor.u32 %v1134, %v1137
      %v1140 = vshrl.u32 %v957, 16
      %v1142 = vrot.slane %v1140, 1
      %v1143 = vshll.u32 %v957, 16
      %v1145 = vrot.slane %v1143, 2
      %v1146 = vor.u32 %v1142, %v1145
      %v1147 = vsel %vm1130, %v1138, %v1146
      %v1149 = vshrl.u32 %v958, 16
      %v1151 = vrot.slane %v1149, 1
      %v1152 = vshll.u32 %v958, 16
      %v1154 = vrot.slane %v1152, 2
      %v1155 = vor.u32 %v1151, %v1154
      %v1156 = vsel %vm1130, %v1146, %v1155
      %v1158 = vshrl.u32 %v959, 16
      %v1160 = vrot.slane %v1158, 1
      %v1161 = vshll.u32 %v959, 16
      %v1163 = vrot.slane %v1161, 2
      %v1164 = vor.u32 %v1160, %v1163
      %v1165 = vsel %vm1130, %v1155, %v1164
      %v1167 = vshrl.u32 %v960, 16
      %v1169 = vrot.slane %v1167, 1
      %v1170 = vshll.u32 %v960, 16
      %v1172 = vrot.slane %v1170, 2
      %v1173 = vor.u32 %v1169, %v1172
      %v1174 = vsel %vm1130, %v1164, %v1173
      %v1176 = vshrl.u32 %v1129, 16
      %v1178 = vrot.slane %v1176, 1
      %v1179 = vshll.u32 %v1129, 16
      %v1181 = vrot.slane %v1179, 2
      %v1182 = vor.u32 %v1178, %v1181
      %v1183 = vsel %vm1130, %v1173, %v1182
      %v1205 = vunpack.c.l.b16 %v1111
      %v1206 = vunpack.c.l.b16 %v1112
      %v1207 = vunpack.c.l.b16 %v1113
      %v1208 = vunpack.c.l.b16 %v1114
      %v1209 = vunpack.c.l.b16 %v1115
      %v1210 = vunpack.c.l.b16 %v1116
      %v1211 = vunpack.c.l.b16 %v1117
      %v1212 = vunpack.c.l.b16 %v1118
      %v1213 = vunpack.c.l.b16 %v1119
      %v1214 = vunpack.c.l.b16 %v1120
      %v1215 = vunpack.c.l.b16 %v1121
      %v1216 = vunpack.c.l.b16 %v1122
      %v1217 = vunpack.c.l.b16 %v1123
      %v1218 = vunpack.c.l.b16 %v1124
      %v1219 = vunpack.c.l.b16 %v1125
      %v1220 = vunpack.c.l.b16 %v1126
      %v1221 = vpack.c.b16 %v1206, %v1205
      %v1222 = vpack.c.b16 %v1208, %v1207
      %v1223 = vpack.c.b16 %v1210, %v1209
      %v1224 = vpack.c.b16 %v1212, %v1211
      %v1225 = vpack.c.b16 %v1214, %v1213
      %v1226 = vpack.c.b16 %v1216, %v1215
      %v1227 = vpack.c.b16 %v1218, %v1217
      %v1228 = vpack.c.b16 %v1220, %v1219
      %1237 = vmatprep.subr.bf16.mxu0 0
      %1238 = vmatpush1.bf16.msra.mxu0 %v1228
      %1239 = vmatprep.subr.bf16.mxu0 0
      %1240 = vmatpush1.bf16.msra.mxu0 %v1227
      %1241 = vmatprep.subr.bf16.mxu0 0
      %1242 = vmatpush1.bf16.msra.mxu0 %v1226
      %1243 = vmatprep.subr.bf16.mxu0 0
      %1244 = vmatpush1.bf16.msra.mxu0 %v1225
      %1245 = vmatprep.subr.bf16.mxu0 0
      %1246 = vmatpush1.bf16.msra.mxu0 %v1224
      %1247 = vmatprep.subr.bf16.mxu0 0
      %1248 = vmatpush1.bf16.msra.mxu0 %v1223
      %1249 = vmatprep.subr.bf16.mxu0 0
      %1250 = vmatpush1.bf16.msra.mxu0 %v1222
      %1251 = vmatprep.subr.bf16.mxu0 0
      %1252 = vmatpush1.bf16.msra.mxu0 %v1221
      %1253 = vmatprep.subr.bf16.mxu0 0
      %1254 = vmatpush2.bf16.msra.mxu0 0
      %1255 = vmatprep.subr.bf16.mxu0 0
      %1256 = vmatpush2.bf16.msra.mxu0 0
      %1257 = vmatprep.subr.bf16.mxu0 0
      %1258 = vmatpush2.bf16.msra.mxu0 0
      %1259 = vmatprep.subr.bf16.mxu0 0
      %1260 = vmatpush2.bf16.msra.mxu0 0
      %1261 = vmatprep.subr.bf16.mxu0 0
      %1262 = vmatpush2.bf16.msra.mxu0 0
      %1263 = vmatprep.subr.bf16.mxu0 0
      %1264 = vmatpush2.bf16.msra.mxu0 0
      %1265 = vmatprep.subr.bf16.mxu0 0
      %1266 = vmatpush2.bf16.msra.mxu0 0
      %1267 = vmatprep.subr.bf16.mxu0 0
      %1268 = vmatpush2.bf16.msra.mxu0 0
      %1269 = vmatprep.mubr.bf16.mxu0 0
      %1270 = vmatmul.mubr.bf16.gmra.mxu0 %v1147
      %v1271 = vpop.f32.mrf.mxu0
      %v1272 = vadd.f32 0.0, %v1271
      %v1273 = vpop.f32.mrf.mxu0
      %v1274 = vpop.f32.mrf.mxu0
      %v1275 = vadd.f32 0.0, %v1274
      %v1276 = vpop.f32.mrf.mxu0
      %1277 = vmatprep.mubr.bf16.mxu0 0
      %1278 = vmatmul.mubr.bf16.gmra.mxu0 %v1156
      %v1279 = vpop.f32.mrf.mxu0
      %v1280 = vadd.f32 0.0, %v1279
      %v1281 = vpop.f32.mrf.mxu0
      %v1282 = vpop.f32.mrf.mxu0
      %v1283 = vadd.f32 0.0, %v1282
      %v1284 = vpop.f32.mrf.mxu0
      %1285 = vmatprep.mubr.bf16.mxu0 0
      %1286 = vmatmul.mubr.bf16.gmra.mxu0 %v1165
      %v1287 = vpop.f32.mrf.mxu0
      %v1288 = vadd.f32 0.0, %v1287
      %v1289 = vpop.f32.mrf.mxu0
      %v1290 = vpop.f32.mrf.mxu0
      %v1291 = vadd.f32 0.0, %v1290
      %v1292 = vpop.f32.mrf.mxu0
      %1293 = vmatprep.mubr.bf16.mxu0 0
      %1294 = vmatmul.mubr.bf16.gmra.mxu0 %v1174
      %v1295 = vpop.f32.mrf.mxu0
      %v1296 = vadd.f32 0.0, %v1295
      %v1297 = vpop.f32.mrf.mxu0
      %v1298 = vpop.f32.mrf.mxu0
      %v1299 = vadd.f32 0.0, %v1298
      %v1300 = vpop.f32.mrf.mxu0
      %1301 = vmatprep.mubr.bf16.mxu0 0
      %1302 = vmatmul.mubr.bf16.gmra.mxu0 %v1183
      %v1303 = vpop.f32.mrf.mxu0
      %v1304 = vadd.f32 0.0, %v1303
      %v1305 = vpop.f32.mrf.mxu0
      %v1306 = vpop.f32.mrf.mxu0
      %v1307 = vadd.f32 0.0, %v1306
      %v1308 = vpop.f32.mrf.mxu0
      %1309 = vdwg.mxu0
      %v1310 = vadd.f32 %v1099, %v1272
      %v1311 = vadd.f32 %v1100, %v1275
      %v1312 = vadd.f32 %v1101, %v1280
      %v1313 = vadd.f32 %v1102, %v1283
      %v1314 = vadd.f32 %v1103, %v1288
      %v1315 = vadd.f32 %v1104, %v1291
      %v1316 = vadd.f32 %v1105, %v1296
      %v1317 = vadd.f32 %v1106, %v1299
      %v1318 = vadd.f32 %v1107, %v1304
      %v1319 = vadd.f32 %v1108, %v1307
      %v1320 = vld [vmem:[%s332 + $0x4] sm:$0xc]
      %s1321 = scalar_lea.vmem %s3, 896
      %v1322 = vld [vmem:[%s1321] sm:$0xf]
      %v1323 = vld [vmem:[%s1321 + $0x4] sm:$0xf]
      %v1324 = vld [vmem:[%s1321 + $0x8] sm:$0xf]
      %v1325 = vld [vmem:[%s1321 + $0xc] sm:$0xf]
      %v1326 = vld [vmem:[%s1321 + $0x10] sm:$0xf]
      %v1327 = vld [vmem:[%s1321 + $0x14] sm:$0xf]
      %v1328 = vld [vmem:[%s1321 + $0x18] sm:$0xf]
      %v1329 = vld [vmem:[%s1321 + $0x1c] sm:$0xf]
      %v1330 = vld [vmem:[%s1321 + $0x20] sm:$0xf]
      %v1331 = vld [vmem:[%s1321 + $0x24] sm:$0xf]
      %v1332 = vld [vmem:[%s1321 + $0x28] sm:$0xf]
      %v1333 = vld [vmem:[%s1321 + $0x2c] sm:$0xf]
      %v1334 = vld [vmem:[%s1321 + $0x30] sm:$0xf]
      %v1335 = vld [vmem:[%s1321 + $0x34] sm:$0xf]
      %v1336 = vld [vmem:[%s1321 + $0x38] sm:$0xf]
      %v1337 = vld [vmem:[%s1321 + $0x3c] sm:$0xf]
      %v1339 = vunpack.c.l.b16 %v1320
      %v1340 = vpack.c.b16 %v946, %v1339
      %vm1341 = vcmask 1045504
      %v1342 = vrot.slane %v1340, 2
      %v1343 = vrot.slane %v957, 2
      %v1344 = vsel %vm1341, %v1342, %v1343
      %v1345 = vrot.slane %v958, 2
      %v1346 = vsel %vm1341, %v1343, %v1345
      %v1347 = vrot.slane %v959, 2
      %v1348 = vsel %vm1341, %v1345, %v1347
      %v1349 = vrot.slane %v960, 2
      %v1350 = vsel %vm1341, %v1347, %v1349
      %v1351 = vrot.slane %v1129, 2
      %v1352 = vsel %vm1341, %v1349, %v1351
      %v1374 = vunpack.c.l.b16 %v1322
      %v1375 = vunpack.c.l.b16 %v1323
      %v1376 = vunpack.c.l.b16 %v1324
      %v1377 = vunpack.c.l.b16 %v1325
      %v1378 = vunpack.c.l.b16 %v1326
      %v1379 = vunpack.c.l.b16 %v1327
      %v1380 = vunpack.c.l.b16 %v1328
      %v1381 = vunpack.c.l.b16 %v1329
      %v1382 = vunpack.c.l.b16 %v1330
      %v1383 = vunpack.c.l.b16 %v1331
      %v1384 = vunpack.c.l.b16 %v1332
      %v1385 = vunpack.c.l.b16 %v1333
      %v1386 = vunpack.c.l.b16 %v1334
      %v1387 = vunpack.c.l.b16 %v1335
      %v1388 = vunpack.c.l.b16 %v1336
      %v1389 = vunpack.c.l.b16 %v1337
      %v1390 = vpack.c.b16 %v1375, %v1374
      %v1391 = vpack.c.b16 %v1377, %v1376
      %v1392 = vpack.c.b16 %v1379, %v1378
      %v1393 = vpack.c.b16 %v1381, %v1380
      %v1394 = vpack.c.b16 %v1383, %v1382
      %v1395 = vpack.c.b16 %v1385, %v1384
      %v1396 = vpack.c.b16 %v1387, %v1386
      %v1397 = vpack.c.b16 %v1389, %v1388
      %1406 = vmatprep.subr.bf16.mxu0 0
      %1407 = vmatpush1.bf16.msra.mxu0 %v1397
      %1408 = vmatprep.subr.bf16.mxu0 0
      %1409 = vmatpush1.bf16.msra.mxu0 %v1396
      %1410 = vmatprep.subr.bf16.mxu0 0
      %1411 = vmatpush1.bf16.msra.mxu0 %v1395
      %1412 = vmatprep.subr.bf16.mxu0 0
      %1413 = vmatpush1.bf16.msra.mxu0 %v1394
      %1414 = vmatprep.subr.bf16.mxu0 0
      %1415 = vmatpush1.bf16.msra.mxu0 %v1393
      %1416 = vmatprep.subr.bf16.mxu0 0
      %1417 = vmatpush1.bf16.msra.mxu0 %v1392
      %1418 = vmatprep.subr.bf16.mxu0 0
      %1419 = vmatpush1.bf16.msra.mxu0 %v1391
      %1420 = vmatprep.subr.bf16.mxu0 0
      %1421 = vmatpush1.bf16.msra.mxu0 %v1390
      %1422 = vmatprep.subr.bf16.mxu0 0
      %1423 = vmatpush2.bf16.msra.mxu0 0
      %1424 = vmatprep.subr.bf16.mxu0 0
      %1425 = vmatpush2.bf16.msra.mxu0 0
      %1426 = vmatprep.subr.bf16.mxu0 0
      %1427 = vmatpush2.bf16.msra.mxu0 0
      %1428 = vmatprep.subr.bf16.mxu0 0
      %1429 = vmatpush2.bf16.msra.mxu0 0
      %1430 = vmatprep.subr.bf16.mxu0 0
      %1431 = vmatpush2.bf16.msra.mxu0 0
      %1432 = vmatprep.subr.bf16.mxu0 0
      %1433 = vmatpush2.bf16.msra.mxu0 0
      %1434 = vmatprep.subr.bf16.mxu0 0
      %1435 = vmatpush2.bf16.msra.mxu0 0
      %1436 = vmatprep.subr.bf16.mxu0 0
      %1437 = vmatpush2.bf16.msra.mxu0 0
      %1438 = vmatprep.mubr.bf16.mxu0 0
      %1439 = vmatmul.mubr.bf16.gmra.mxu0 %v1344
      %v1440 = vpop.f32.mrf.mxu0
      %v1441 = vadd.f32 0.0, %v1440
      %v1442 = vpop.f32.mrf.mxu0
      %v1443 = vpop.f32.mrf.mxu0
      %v1444 = vadd.f32 0.0, %v1443
      %v1445 = vpop.f32.mrf.mxu0
      %1446 = vmatprep.mubr.bf16.mxu0 0
      %1447 = vmatmul.mubr.bf16.gmra.mxu0 %v1346
      %v1448 = vpop.f32.mrf.mxu0
      %v1449 = vadd.f32 0.0, %v1448
      %v1450 = vpop.f32.mrf.mxu0
      %v1451 = vpop.f32.mrf.mxu0
      %v1452 = vadd.f32 0.0, %v1451
      %v1453 = vpop.f32.mrf.mxu0
      %1454 = vmatprep.mubr.bf16.mxu0 0
      %1455 = vmatmul.mubr.bf16.gmra.mxu0 %v1348
      %v1456 = vpop.f32.mrf.mxu0
      %v1457 = vadd.f32 0.0, %v1456
      %v1458 = vpop.f32.mrf.mxu0
      %v1459 = vpop.f32.mrf.mxu0
      %v1460 = vadd.f32 0.0, %v1459
      %v1461 = vpop.f32.mrf.mxu0
      %1462 = vmatprep.mubr.bf16.mxu0 0
      %1463 = vmatmul.mubr.bf16.gmra.mxu0 %v1350
      %v1464 = vpop.f32.mrf.mxu0
      %v1465 = vadd.f32 0.0, %v1464
      %v1466 = vpop.f32.mrf.mxu0
      %v1467 = vpop.f32.mrf.mxu0
      %v1468 = vadd.f32 0.0, %v1467
      %v1469 = vpop.f32.mrf.mxu0
      %1470 = vmatprep.mubr.bf16.mxu0 0
      %1471 = vmatmul.mubr.bf16.gmra.mxu0 %v1352
      %v1472 = vpop.f32.mrf.mxu0
      %v1473 = vadd.f32 0.0, %v1472
      %v1474 = vpop.f32.mrf.mxu0
      %v1475 = vpop.f32.mrf.mxu0
      %v1476 = vadd.f32 0.0, %v1475
      %v1477 = vpop.f32.mrf.mxu0
      %1478 = vdwg.mxu0
      %v1479 = vadd.f32 %v1310, %v1441
      %v1480 = vadd.f32 %v1311, %v1444
      %v1481 = vadd.f32 %v1312, %v1449
      %v1482 = vadd.f32 %v1313, %v1452
      %v1483 = vadd.f32 %v1314, %v1457
      %v1484 = vadd.f32 %v1315, %v1460
      %v1485 = vadd.f32 %v1316, %v1465
      %v1486 = vadd.f32 %v1317, %v1468
      %v1487 = vadd.f32 %v1318, %v1473
      %v1488 = vadd.f32 %v1319, %v1476
      %v1489 = vld [vmem:[%s332 + $0x8] sm:$0xc]
      %v1490 = vld [vmem:[%s332 + $0xc] sm:$0xf]
      %v1491 = vld [vmem:[%s332 + $0x10] sm:$0xf]
      %v1492 = vld [vmem:[%s332 + $0x14] sm:$0xf]
      %v1493 = vld [vmem:[%s332 + $0x18] sm:$0xf]
      %v1494 = vld [vmem:[%s332 + $0x1c] sm:$0xf]
      %v1495 = vld [vmem:[%s332 + $0x20] sm:$0xf]
      %v1496 = vld [vmem:[%s332 + $0x24] sm:$0xf]
      %v1497 = vld [vmem:[%s332 + $0x28] sm:$0xf]
      %v1498 = vld [vmem:[%s332 + $0x2c] sm:$0xf]
      %v1499 = vld [vmem:[%s332 + $0x30] sm:$0x3]
      %s1500 = scalar_lea.vmem %s3, 960
      %v1501 = vld [vmem:[%s1500] sm:$0xf]
      %v1502 = vld [vmem:[%s1500 + $0x4] sm:$0xf]
      %v1503 = vld [vmem:[%s1500 + $0x8] sm:$0xf]
      %v1504 = vld [vmem:[%s1500 + $0xc] sm:$0xf]
      %v1505 = vld [vmem:[%s1500 + $0x10] sm:$0xf]
      %v1506 = vld [vmem:[%s1500 + $0x14] sm:$0xf]
      %v1507 = vld [vmem:[%s1500 + $0x18] sm:$0xf]
      %v1508 = vld [vmem:[%s1500 + $0x1c] sm:$0xf]
      %v1509 = vld [vmem:[%s1500 + $0x20] sm:$0xf]
      %v1510 = vld [vmem:[%s1500 + $0x24] sm:$0xf]
      %v1511 = vld [vmem:[%s1500 + $0x28] sm:$0xf]
      %v1512 = vld [vmem:[%s1500 + $0x2c] sm:$0xf]
      %v1513 = vld [vmem:[%s1500 + $0x30] sm:$0xf]
      %v1514 = vld [vmem:[%s1500 + $0x34] sm:$0xf]
      %v1515 = vld [vmem:[%s1500 + $0x38] sm:$0xf]
      %v1516 = vld [vmem:[%s1500 + $0x3c] sm:$0xf]
      %v1528 = vunpack.c.l.b16 %v1489
      %v1529 = vunpack.c.l.b16 %v1490
      %v1530 = vunpack.c.l.b16 %v1491
      %v1531 = vunpack.c.l.b16 %v1492
      %v1532 = vunpack.c.l.b16 %v1493
      %v1533 = vunpack.c.l.b16 %v1494
      %v1534 = vunpack.c.l.b16 %v1495
      %v1535 = vunpack.c.l.b16 %v1496
      %v1536 = vunpack.c.l.b16 %v1497
      %v1537 = vunpack.c.l.b16 %v1498
      %v1538 = vunpack.c.l.b16 %v1499
      %v1539 = vpack.c.b16 %v1529, %v1528
      %v1540 = vpack.c.b16 %v1531, %v1530
      %v1541 = vpack.c.b16 %v1533, %v1532
      %v1542 = vpack.c.b16 %v1535, %v1534
      %v1543 = vpack.c.b16 %v1537, %v1536
      %v1544 = vpack.c.b16 %v1538, %v1538
      %v1545 = vrot.slane %v1539, 2
      %v1546 = vrot.slane %v1540, 2
      %v1547 = vsel %vm1341, %v1545, %v1546
      %v1548 = vrot.slane %v1541, 2
      %v1549 = vsel %vm1341, %v1546, %v1548
      %v1550 = vrot.slane %v1542, 2
      %v1551 = vsel %vm1341, %v1548, %v1550
      %v1552 = vrot.slane %v1543, 2
      %v1553 = vsel %vm1341, %v1550, %v1552
      %v1554 = vrot.slane %v1544, 2
      %v1555 = vsel %vm1341, %v1552, %v1554
      %v1577 = vunpack.c.l.b16 %v1501
      %v1578 = vunpack.c.l.b16 %v1502
      %v1579 = vunpack.c.l.b16 %v1503
      %v1580 = vunpack.c.l.b16 %v1504
      %v1581 = vunpack.c.l.b16 %v1505
      %v1582 = vunpack.c.l.b16 %v1506
      %v1583 = vunpack.c.l.b16 %v1507
      %v1584 = vunpack.c.l.b16 %v1508
      %v1585 = vunpack.c.l.b16 %v1509
      %v1586 = vunpack.c.l.b16 %v1510
      %v1587 = vunpack.c.l.b16 %v1511
      %v1588 = vunpack.c.l.b16 %v1512
      %v1589 = vunpack.c.l.b16 %v1513
      %v1590 = vunpack.c.l.b16 %v1514
      %v1591 = vunpack.c.l.b16 %v1515
      %v1592 = vunpack.c.l.b16 %v1516
      %v1593 = vpack.c.b16 %v1578, %v1577
      %v1594 = vpack.c.b16 %v1580, %v1579
      %v1595 = vpack.c.b16 %v1582, %v1581
      %v1596 = vpack.c.b16 %v1584, %v1583
      %v1597 = vpack.c.b16 %v1586, %v1585
      %v1598 = vpack.c.b16 %v1588, %v1587
      %v1599 = vpack.c.b16 %v1590, %v1589
      %v1600 = vpack.c.b16 %v1592, %v1591
      %1609 = vmatprep.subr.bf16.mxu0 0
      %1610 = vmatpush1.bf16.msra.mxu0 %v1600
      %1611 = vmatprep.subr.bf16.mxu0 0
      %1612 = vmatpush1.bf16.msra.mxu0 %v1599
      %1613 = vmatprep.subr.bf16.mxu0 0
      %1614 = vmatpush1.bf16.msra.mxu0 %v1598
      %1615 = vmatprep.subr.bf16.mxu0 0
      %1616 = vmatpush1.bf16.msra.mxu0 %v1597
      %1617 = vmatprep.subr.bf16.mxu0 0
      %1618 = vmatpush1.bf16.msra.mxu0 %v1596
      %1619 = vmatprep.subr.bf16.mxu0 0
      %1620 = vmatpush1.bf16.msra.mxu0 %v1595
      %1621 = vmatprep.subr.bf16.mxu0 0
      %1622 = vmatpush1.bf16.msra.mxu0 %v1594
      %1623 = vmatprep.subr.bf16.mxu0 0
      %1624 = vmatpush1.bf16.msra.mxu0 %v1593
      %1625 = vmatprep.subr.bf16.mxu0 0
      %1626 = vmatpush2.bf16.msra.mxu0 0
      %1627 = vmatprep.subr.bf16.mxu0 0
      %1628 = vmatpush2.bf16.msra.mxu0 0
      %1629 = vmatprep.subr.bf16.mxu0 0
      %1630 = vmatpush2.bf16.msra.mxu0 0
      %1631 = vmatprep.subr.bf16.mxu0 0
      %1632 = vmatpush2.bf16.msra.mxu0 0
      %1633 = vmatprep.subr.bf16.mxu0 0
      %1634 = vmatpush2.bf16.msra.mxu0 0
      %1635 = vmatprep.subr.bf16.mxu0 0
      %1636 = vmatpush2.bf16.msra.mxu0 0
      %1637 = vmatprep.subr.bf16.mxu0 0
      %1638 = vmatpush2.bf16.msra.mxu0 0
      %1639 = vmatprep.subr.bf16.mxu0 0
      %1640 = vmatpush2.bf16.msra.mxu0 0
      %1641 = vmatprep.mubr.bf16.mxu0 0
      %1642 = vmatmul.mubr.bf16.gmra.mxu0 %v1547
      %v1643 = vpop.f32.mrf.mxu0
      %v1644 = vadd.f32 0.0, %v1643
      %v1645 = vpop.f32.mrf.mxu0
      %v1646 = vpop.f32.mrf.mxu0
      %v1647 = vadd.f32 0.0, %v1646
      %v1648 = vpop.f32.mrf.mxu0
      %1649 = vmatprep.mubr.bf16.mxu0 0
      %1650 = vmatmul.mubr.bf16.gmra.mxu0 %v1549
      %v1651 = vpop.f32.mrf.mxu0
      %v1652 = vadd.f32 0.0, %v1651
      %v1653 = vpop.f32.mrf.mxu0
      %v1654 = vpop.f32.mrf.mxu0
      %v1655 = vadd.f32 0.0, %v1654
      %v1656 = vpop.f32.mrf.mxu0
      %1657 = vmatprep.mubr.bf16.mxu0 0
      %1658 = vmatmul.mubr.bf16.gmra.mxu0 %v1551
      %v1659 = vpop.f32.mrf.mxu0
      %v1660 = vadd.f32 0.0, %v1659
      %v1661 = vpop.f32.mrf.mxu0
      %v1662 = vpop.f32.mrf.mxu0
      %v1663 = vadd.f32 0.0, %v1662
      %v1664 = vpop.f32.mrf.mxu0
      %1665 = vmatprep.mubr.bf16.mxu0 0
      %1666 = vmatmul.mubr.bf16.gmra.mxu0 %v1553
      %v1667 = vpop.f32.mrf.mxu0
      %v1668 = vadd.f32 0.0, %v1667
      %v1669 = vpop.f32.mrf.mxu0
      %v1670 = vpop.f32.mrf.mxu0
      %v1671 = vadd.f32 0.0, %v1670
      %v1672 = vpop.f32.mrf.mxu0
      %1673 = vmatprep.mubr.bf16.mxu0 0
      %1674 = vmatmul.mubr.bf16.gmra.mxu0 %v1555
      %v1675 = vpop.f32.mrf.mxu0
      %v1676 = vadd.f32 0.0, %v1675
      %v1677 = vpop.f32.mrf.mxu0
      %v1678 = vpop.f32.mrf.mxu0
      %v1679 = vadd.f32 0.0, %v1678
      %v1680 = vpop.f32.mrf.mxu0
      %1681 = vdwg.mxu0
      %v1682 = vadd.f32 %v1479, %v1644
      %v1683 = vadd.f32 %v1480, %v1647
      %v1684 = vadd.f32 %v1481, %v1652
      %v1685 = vadd.f32 %v1482, %v1655
      %v1686 = vadd.f32 %v1483, %v1660
      %v1687 = vadd.f32 %v1484, %v1663
      %v1688 = vadd.f32 %v1485, %v1668
      %v1689 = vadd.f32 %v1486, %v1671
      %v1690 = vadd.f32 %v1487, %v1676
      %v1691 = vadd.f32 %v1488, %v1679
      %v1692 = vld [vmem:[%s332 + $0x30] sm:$0x7]
      %s1693 = scalar_lea.vmem %s3, 1024
      %v1694 = vld [vmem:[%s1693] sm:$0xf]
      %v1695 = vld [vmem:[%s1693 + $0x4] sm:$0xf]
      %v1696 = vld [vmem:[%s1693 + $0x8] sm:$0xf]
      %v1697 = vld [vmem:[%s1693 + $0xc] sm:$0xf]
      %v1698 = vld [vmem:[%s1693 + $0x10] sm:$0xf]
      %v1699 = vld [vmem:[%s1693 + $0x14] sm:$0xf]
      %v1700 = vld [vmem:[%s1693 + $0x18] sm:$0xf]
      %v1701 = vld [vmem:[%s1693 + $0x1c] sm:$0xf]
      %v1702 = vld [vmem:[%s1693 + $0x20] sm:$0xf]
      %v1703 = vld [vmem:[%s1693 + $0x24] sm:$0xf]
      %v1704 = vld [vmem:[%s1693 + $0x28] sm:$0xf]
      %v1705 = vld [vmem:[%s1693 + $0x2c] sm:$0xf]
      %v1706 = vld [vmem:[%s1693 + $0x30] sm:$0xf]
      %v1707 = vld [vmem:[%s1693 + $0x34] sm:$0xf]
      %v1708 = vld [vmem:[%s1693 + $0x38] sm:$0xf]
      %v1709 = vld [vmem:[%s1693 + $0x3c] sm:$0xf]
      %v1711 = vunpack.c.l.b16 %v1692
      %v1712 = vpack.c.b16 %v1711, %v1711
      %vm1713 = vsmask.f32 5376
      %v1715 = vshrl.u32 %v1539, 16
      %v1717 = vrot.slane %v1715, 2
      %v1718 = vshll.u32 %v1539, 16
      %v1720 = vrot.slane %v1718, 3
      %v1721 = vor.u32 %v1717, %v1720
      %v1723 = vshrl.u32 %v1540, 16
      %v1725 = vrot.slane %v1723, 2
      %v1726 = vshll.u32 %v1540, 16
      %v1728 = vrot.slane %v1726, 3
      %v1729 = vor.u32 %v1725, %v1728
      %v1730 = vsel %vm1713, %v1721, %v1729
      %v1732 = vshrl.u32 %v1541, 16
      %v1734 = vrot.slane %v1732, 2
      %v1735 = vshll.u32 %v1541, 16
      %v1737 = vrot.slane %v1735, 3
      %v1738 = vor.u32 %v1734, %v1737
      %v1739 = vsel %vm1713, %v1729, %v1738
      %v1741 = vshrl.u32 %v1542, 16
      %v1743 = vrot.slane %v1741, 2
      %v1744 = vshll.u32 %v1542, 16
      %v1746 = vrot.slane %v1744, 3
      %v1747 = vor.u32 %v1743, %v1746
      %v1748 = vsel %vm1713, %v1738, %v1747
      %v1750 = vshrl.u32 %v1543, 16
      %v1752 = vrot.slane %v1750, 2
      %v1753 = vshll.u32 %v1543, 16
      %v1755 = vrot.slane %v1753, 3
      %v1756 = vor.u32 %v1752, %v1755
      %v1757 = vsel %vm1713, %v1747, %v1756
      %v1759 = vshrl.u32 %v1712, 16
      %v1761 = vrot.slane %v1759, 2
      %v1762 = vshll.u32 %v1712, 16
      %v1764 = vrot.slane %v1762, 3
      %v1765 = vor.u32 %v1761, %v1764
      %v1766 = vsel %vm1713, %v1756, %v1765
      %v1788 = vunpack.c.l.b16 %v1694
      %v1789 = vunpack.c.l.b16 %v1695
      %v1790 = vunpack.c.l.b16 %v1696
      %v1791 = vunpack.c.l.b16 %v1697
      %v1792 = vunpack.c.l.b16 %v1698
      %v1793 = vunpack.c.l.b16 %v1699
      %v1794 = vunpack.c.l.b16 %v1700
      %v1795 = vunpack.c.l.b16 %v1701
      %v1796 = vunpack.c.l.b16 %v1702
      %v1797 = vunpack.c.l.b16 %v1703
      %v1798 = vunpack.c.l.b16 %v1704
      %v1799 = vunpack.c.l.b16 %v1705
      %v1800 = vunpack.c.l.b16 %v1706
      %v1801 = vunpack.c.l.b16 %v1707
      %v1802 = vunpack.c.l.b16 %v1708
      %v1803 = vunpack.c.l.b16 %v1709
      %v1804 = vpack.c.b16 %v1789, %v1788
      %v1805 = vpack.c.b16 %v1791, %v1790
      %v1806 = vpack.c.b16 %v1793, %v1792
      %v1807 = vpack.c.b16 %v1795, %v1794
      %v1808 = vpack.c.b16 %v1797, %v1796
      %v1809 = vpack.c.b16 %v1799, %v1798
      %v1810 = vpack.c.b16 %v1801, %v1800
      %v1811 = vpack.c.b16 %v1803, %v1802
      %1820 = vmatprep.subr.bf16.mxu0 0
      %1821 = vmatpush1.bf16.msra.mxu0 %v1811
      %1822 = vmatprep.subr.bf16.mxu0 0
      %1823 = vmatpush1.bf16.msra.mxu0 %v1810
      %1824 = vmatprep.subr.bf16.mxu0 0
      %1825 = vmatpush1.bf16.msra.mxu0 %v1809
      %1826 = vmatprep.subr.bf16.mxu0 0
      %1827 = vmatpush1.bf16.msra.mxu0 %v1808
      %1828 = vmatprep.subr.bf16.mxu0 0
      %1829 = vmatpush1.bf16.msra.mxu0 %v1807
      %1830 = vmatprep.subr.bf16.mxu0 0
      %1831 = vmatpush1.bf16.msra.mxu0 %v1806
      %1832 = vmatprep.subr.bf16.mxu0 0
      %1833 = vmatpush1.bf16.msra.mxu0 %v1805
      %1834 = vmatprep.subr.bf16.mxu0 0
      %1835 = vmatpush1.bf16.msra.mxu0 %v1804
      %1836 = vmatprep.subr.bf16.mxu0 0
      %1837 = vmatpush2.bf16.msra.mxu0 0
      %1838 = vmatprep.subr.bf16.mxu0 0
      %1839 = vmatpush2.bf16.msra.mxu0 0
      %1840 = vmatprep.subr.bf16.mxu0 0
      %1841 = vmatpush2.bf16.msra.mxu0 0
      %1842 = vmatprep.subr.bf16.mxu0 0
      %1843 = vmatpush2.bf16.msra.mxu0 0
      %1844 = vmatprep.subr.bf16.mxu0 0
      %1845 = vmatpush2.bf16.msra.mxu0 0
      %1846 = vmatprep.subr.bf16.mxu0 0
      %1847 = vmatpush2.bf16.msra.mxu0 0
      %1848 = vmatprep.subr.bf16.mxu0 0
      %1849 = vmatpush2.bf16.msra.mxu0 0
      %1850 = vmatprep.subr.bf16.mxu0 0
      %1851 = vmatpush2.bf16.msra.mxu0 0
      %1852 = vmatprep.mubr.bf16.mxu0 0
      %1853 = vmatmul.mubr.bf16.gmra.mxu0 %v1730
      %v1854 = vpop.f32.mrf.mxu0
      %v1855 = vadd.f32 0.0, %v1854
      %v1856 = vpop.f32.mrf.mxu0
      %v1857 = vpop.f32.mrf.mxu0
      %v1858 = vadd.f32 0.0, %v1857
      %v1859 = vpop.f32.mrf.mxu0
      %1860 = vmatprep.mubr.bf16.mxu0 0
      %1861 = vmatmul.mubr.bf16.gmra.mxu0 %v1739
      %v1862 = vpop.f32.mrf.mxu0
      %v1863 = vadd.f32 0.0, %v1862
      %v1864 = vpop.f32.mrf.mxu0
      %v1865 = vpop.f32.mrf.mxu0
      %v1866 = vadd.f32 0.0, %v1865
      %v1867 = vpop.f32.mrf.mxu0
      %1868 = vmatprep.mubr.bf16.mxu0 0
      %1869 = vmatmul.mubr.bf16.gmra.mxu0 %v1748
      %v1870 = vpop.f32.mrf.mxu0
      %v1871 = vadd.f32 0.0, %v1870
      %v1872 = vpop.f32.mrf.mxu0
      %v1873 = vpop.f32.mrf.mxu0
      %v1874 = vadd.f32 0.0, %v1873
      %v1875 = vpop.f32.mrf.mxu0
      %1876 = vmatprep.mubr.bf16.mxu0 0
      %1877 = vmatmul.mubr.bf16.gmra.mxu0 %v1757
      %v1878 = vpop.f32.mrf.mxu0
      %v1879 = vadd.f32 0.0, %v1878
      %v1880 = vpop.f32.mrf.mxu0
      %v1881 = vpop.f32.mrf.mxu0
      %v1882 = vadd.f32 0.0, %v1881
      %v1883 = vpop.f32.mrf.mxu0
      %1884 = vmatprep.mubr.bf16.mxu0 0
      %1885 = vmatmul.mubr.bf16.gmra.mxu0 %v1766
      %v1886 = vpop.f32.mrf.mxu0
      %v1887 = vadd.f32 0.0, %v1886
      %v1888 = vpop.f32.mrf.mxu0
      %v1889 = vpop.f32.mrf.mxu0
      %v1890 = vadd.f32 0.0, %v1889
      %v1891 = vpop.f32.mrf.mxu0
      %1892 = vdwg.mxu0
      %v1893 = vadd.f32 %v1682, %v1855
      %v1894 = vadd.f32 %v1683, %v1858
      %v1895 = vadd.f32 %v1684, %v1863
      %v1896 = vadd.f32 %v1685, %v1866
      %v1897 = vadd.f32 %v1686, %v1871
      %v1898 = vadd.f32 %v1687, %v1874
      %v1899 = vadd.f32 %v1688, %v1879
      %v1900 = vadd.f32 %v1689, %v1882
      %v1901 = vadd.f32 %v1690, %v1887
      %v1902 = vadd.f32 %v1691, %v1890
      %v1903 = vld [vmem:[%s332 + $0x8] sm:$0x8]
      %s1904 = scalar_lea.vmem %s3, 1088
      %v1905 = vld [vmem:[%s1904] sm:$0xf]
      %v1906 = vld [vmem:[%s1904 + $0x4] sm:$0xf]
      %v1907 = vld [vmem:[%s1904 + $0x8] sm:$0xf]
      %v1908 = vld [vmem:[%s1904 + $0xc] sm:$0xf]
      %v1909 = vld [vmem:[%s1904 + $0x10] sm:$0xf]
      %v1910 = vld [vmem:[%s1904 + $0x14] sm:$0xf]
      %v1911 = vld [vmem:[%s1904 + $0x18] sm:$0xf]
      %v1912 = vld [vmem:[%s1904 + $0x1c] sm:$0xf]
      %v1913 = vld [vmem:[%s1904 + $0x20] sm:$0xf]
      %v1914 = vld [vmem:[%s1904 + $0x24] sm:$0xf]
      %v1915 = vld [vmem:[%s1904 + $0x28] sm:$0xf]
      %v1916 = vld [vmem:[%s1904 + $0x2c] sm:$0xf]
      %v1917 = vld [vmem:[%s1904 + $0x30] sm:$0xf]
      %v1918 = vld [vmem:[%s1904 + $0x34] sm:$0xf]
      %v1919 = vld [vmem:[%s1904 + $0x38] sm:$0xf]
      %v1920 = vld [vmem:[%s1904 + $0x3c] sm:$0xf]
      %v1922 = vunpack.c.l.b16 %v1903
      %v1923 = vpack.c.b16 %v1529, %v1922
      %vm1924 = vcmask 1044480
      %v1925 = vrot.slane %v1923, 3
      %v1926 = vrot.slane %v1540, 3
      %v1927 = vsel %vm1924, %v1925, %v1926
      %v1928 = vrot.slane %v1541, 3
      %v1929 = vsel %vm1924, %v1926, %v1928
      %v1930 = vrot.slane %v1542, 3
      %v1931 = vsel %vm1924, %v1928, %v1930
      %v1932 = vrot.slane %v1543, 3
      %v1933 = vsel %vm1924, %v1930, %v1932
      %v1934 = vrot.slane %v1712, 3
      %v1935 = vsel %vm1924, %v1932, %v1934
      %v1957 = vunpack.c.l.b16 %v1905
      %v1958 = vunpack.c.l.b16 %v1906
      %v1959 = vunpack.c.l.b16 %v1907
      %v1960 = vunpack.c.l.b16 %v1908
      %v1961 = vunpack.c.l.b16 %v1909
      %v1962 = vunpack.c.l.b16 %v1910
      %v1963 = vunpack.c.l.b16 %v1911
      %v1964 = vunpack.c.l.b16 %v1912
      %v1965 = vunpack.c.l.b16 %v1913
      %v1966 = vunpack.c.l.b16 %v1914
      %v1967 = vunpack.c.l.b16 %v1915
      %v1968 = vunpack.c.l.b16 %v1916
      %v1969 = vunpack.c.l.b16 %v1917
      %v1970 = vunpack.c.l.b16 %v1918
      %v1971 = vunpack.c.l.b16 %v1919
      %v1972 = vunpack.c.l.b16 %v1920
      %v1973 = vpack.c.b16 %v1958, %v1957
      %v1974 = vpack.c.b16 %v1960, %v1959
      %v1975 = vpack.c.b16 %v1962, %v1961
      %v1976 = vpack.c.b16 %v1964, %v1963
      %v1977 = vpack.c.b16 %v1966, %v1965
      %v1978 = vpack.c.b16 %v1968, %v1967
      %v1979 = vpack.c.b16 %v1970, %v1969
      %v1980 = vpack.c.b16 %v1972, %v1971
      %1989 = vmatprep.subr.bf16.mxu0 0
      %1990 = vmatpush1.bf16.msra.mxu0 %v1980
      %1991 = vmatprep.subr.bf16.mxu0 0
      %1992 = vmatpush1.bf16.msra.mxu0 %v1979
      %1993 = vmatprep.subr.bf16.mxu0 0
      %1994 = vmatpush1.bf16.msra.mxu0 %v1978
      %1995 = vmatprep.subr.bf16.mxu0 0
      %1996 = vmatpush1.bf16.msra.mxu0 %v1977
      %1997 = vmatprep.subr.bf16.mxu0 0
      %1998 = vmatpush1.bf16.msra.mxu0 %v1976
      %1999 = vmatprep.subr.bf16.mxu0 0
      %2000 = vmatpush1.bf16.msra.mxu0 %v1975
      %2001 = vmatprep.subr.bf16.mxu0 0
      %2002 = vmatpush1.bf16.msra.mxu0 %v1974
      %2003 = vmatprep.subr.bf16.mxu0 0
      %2004 = vmatpush1.bf16.msra.mxu0 %v1973
      %2005 = vmatprep.subr.bf16.mxu0 0
      %2006 = vmatpush2.bf16.msra.mxu0 0
      %2007 = vmatprep.subr.bf16.mxu0 0
      %2008 = vmatpush2.bf16.msra.mxu0 0
      %2009 = vmatprep.subr.bf16.mxu0 0
      %2010 = vmatpush2.bf16.msra.mxu0 0
      %2011 = vmatprep.subr.bf16.mxu0 0
      %2012 = vmatpush2.bf16.msra.mxu0 0
      %2013 = vmatprep.subr.bf16.mxu0 0
      %2014 = vmatpush2.bf16.msra.mxu0 0
      %2015 = vmatprep.subr.bf16.mxu0 0
      %2016 = vmatpush2.bf16.msra.mxu0 0
      %2017 = vmatprep.subr.bf16.mxu0 0
      %2018 = vmatpush2.bf16.msra.mxu0 0
      %2019 = vmatprep.subr.bf16.mxu0 0
      %2020 = vmatpush2.bf16.msra.mxu0 0
      %2021 = vmatprep.mubr.bf16.mxu0 0
      %2022 = vmatmul.mubr.bf16.gmra.mxu0 %v1927
      %v2023 = vpop.f32.mrf.mxu0
      %v2024 = vadd.f32 0.0, %v2023
      %v2025 = vpop.f32.mrf.mxu0
      %v2026 = vpop.f32.mrf.mxu0
      %v2027 = vadd.f32 0.0, %v2026
      %v2028 = vpop.f32.mrf.mxu0
      %2029 = vmatprep.mubr.bf16.mxu0 0
      %2030 = vmatmul.mubr.bf16.gmra.mxu0 %v1929
      %v2031 = vpop.f32.mrf.mxu0
      %v2032 = vadd.f32 0.0, %v2031
      %v2033 = vpop.f32.mrf.mxu0
      %v2034 = vpop.f32.mrf.mxu0
      %v2035 = vadd.f32 0.0, %v2034
      %v2036 = vpop.f32.mrf.mxu0
      %2037 = vmatprep.mubr.bf16.mxu0 0
      %2038 = vmatmul.mubr.bf16.gmra.mxu0 %v1931
      %v2039 = vpop.f32.mrf.mxu0
      %v2040 = vadd.f32 0.0, %v2039
      %v2041 = vpop.f32.mrf.mxu0
      %v2042 = vpop.f32.mrf.mxu0
      %v2043 = vadd.f32 0.0, %v2042
      %v2044 = vpop.f32.mrf.mxu0
      %2045 = vmatprep.mubr.bf16.mxu0 0
      %2046 = vmatmul.mubr.bf16.gmra.mxu0 %v1933
      %v2047 = vpop.f32.mrf.mxu0
      %v2048 = vadd.f32 0.0, %v2047
      %v2049 = vpop.f32.mrf.mxu0
      %v2050 = vpop.f32.mrf.mxu0
      %v2051 = vadd.f32 0.0, %v2050
      %v2052 = vpop.f32.mrf.mxu0
      %2053 = vmatprep.mubr.bf16.mxu0 0
      %2054 = vmatmul.mubr.bf16.gmra.mxu0 %v1935
      %v2055 = vpop.f32.mrf.mxu0
      %v2056 = vadd.f32 0.0, %v2055
      %v2057 = vpop.f32.mrf.mxu0
      %v2058 = vpop.f32.mrf.mxu0
      %v2059 = vadd.f32 0.0, %v2058
      %v2060 = vpop.f32.mrf.mxu0
      %2061 = vdwg.mxu0
      %v2062 = vadd.f32 %v1893, %v2024
      %v2063 = vadd.f32 %v1894, %v2027
      %v2064 = vadd.f32 %v1895, %v2032
      %v2065 = vadd.f32 %v1896, %v2035
      %v2066 = vadd.f32 %v1897, %v2040
      %v2067 = vadd.f32 %v1898, %v2043
      %v2068 = vadd.f32 %v1899, %v2048
      %v2069 = vadd.f32 %v1900, %v2051
      %v2070 = vadd.f32 %v1901, %v2056
      %v2071 = vadd.f32 %v1902, %v2059
      %v2072 = vld [vmem:[%s324] sm:$0xf]
      %v2073 = vld [vmem:[%s324 + $0x4] sm:$0xf]
      %v2074 = vld [vmem:[%s324 + $0x8] sm:$0xf]
      %v2075 = vld [vmem:[%s324 + $0xc] sm:$0xf]
      %v2076 = vld [vmem:[%s324 + $0x10] sm:$0xf]
      %v2077 = vld [vmem:[%s324 + $0x14] sm:$0xf]
      %v2078 = vld [vmem:[%s324 + $0x18] sm:$0xf]
      %v2079 = vld [vmem:[%s324 + $0x1c] sm:$0xf]
      %v2080 = vld [vmem:[%s324 + $0x20] sm:$0xf]
      %v2081 = vld [vmem:[%s324 + $0x24] sm:$0xf]
      %v2082 = vld [vmem:[%s3] sm:$0xf]
      %v2083 = vld [vmem:[%s3 + $0x4] sm:$0xf]
      %v2084 = vld [vmem:[%s3 + $0x8] sm:$0xf]
      %v2085 = vld [vmem:[%s3 + $0xc] sm:$0xf]
      %v2086 = vld [vmem:[%s3 + $0x10] sm:$0xf]
      %v2087 = vld [vmem:[%s3 + $0x14] sm:$0xf]
      %v2088 = vld [vmem:[%s3 + $0x18] sm:$0xf]
      %v2089 = vld [vmem:[%s3 + $0x1c] sm:$0xf]
      %v2090 = vld [vmem:[%s3 + $0x20] sm:$0xf]
      %v2091 = vld [vmem:[%s3 + $0x24] sm:$0xf]
      %v2092 = vld [vmem:[%s3 + $0x28] sm:$0xf]
      %v2093 = vld [vmem:[%s3 + $0x2c] sm:$0xf]
      %v2094 = vld [vmem:[%s3 + $0x30] sm:$0xf]
      %v2095 = vld [vmem:[%s3 + $0x34] sm:$0xf]
      %v2096 = vld [vmem:[%s3 + $0x38] sm:$0xf]
      %v2097 = vld [vmem:[%s3 + $0x3c] sm:$0xf]
      %v2098 = vld [vmem:[%s324 + $0x28] sm:$0x1]
      %s2099 = scalar_lea.vmem %s3, 64
      %v2100 = vld [vmem:[%s2099] sm:$0xf]
      %v2101 = vld [vmem:[%s2099 + $0x4] sm:$0xf]
      %v2102 = vld [vmem:[%s2099 + $0x8] sm:$0xf]
      %v2103 = vld [vmem:[%s2099 + $0xc] sm:$0xf]
      %v2104 = vld [vmem:[%s2099 + $0x10] sm:$0xf]
      %v2105 = vld [vmem:[%s2099 + $0x14] sm:$0xf]
      %v2106 = vld [vmem:[%s2099 + $0x18] sm:$0xf]
      %v2107 = vld [vmem:[%s2099 + $0x1c] sm:$0xf]
      %v2108 = vld [vmem:[%s2099 + $0x20] sm:$0xf]
      %v2109 = vld [vmem:[%s2099 + $0x24] sm:$0xf]
      %v2110 = vld [vmem:[%s2099 + $0x28] sm:$0xf]
      %v2111 = vld [vmem:[%s2099 + $0x2c] sm:$0xf]
      %v2112 = vld [vmem:[%s2099 + $0x30] sm:$0xf]
      %v2113 = vld [vmem:[%s2099 + $0x34] sm:$0xf]
      %v2114 = vld [vmem:[%s2099 + $0x38] sm:$0xf]
      %v2115 = vld [vmem:[%s2099 + $0x3c] sm:$0xf]
      %v2127 = vunpack.c.l.b16 %v2072
      %v2128 = vunpack.c.l.b16 %v2073
      %v2129 = vunpack.c.l.b16 %v2074
      %v2130 = vunpack.c.l.b16 %v2075
      %v2131 = vunpack.c.l.b16 %v2076
      %v2132 = vunpack.c.l.b16 %v2077
      %v2133 = vunpack.c.l.b16 %v2078
      %v2134 = vunpack.c.l.b16 %v2079
      %v2135 = vunpack.c.l.b16 %v2080
      %v2136 = vunpack.c.l.b16 %v2081
      %v2137 = vunpack.c.l.b16 %v2098
      %v2138 = vpack.c.b16 %v2128, %v2127
      %v2139 = vpack.c.b16 %v2130, %v2129
      %v2140 = vpack.c.b16 %v2132, %v2131
      %v2141 = vpack.c.b16 %v2134, %v2133
      %v2142 = vpack.c.b16 %v2136, %v2135
      %v2143 = vpack.c.b16 %v2137, %v2137
      %v2145 = vshrl.u32 %v2138, 16
      %v2147 = vshll.u32 %v2138, 16
      %v2149 = vrot.slane %v2147, 1
      %v2150 = vor.u32 %v2145, %v2149
      %v2152 = vshll.u32 %v2139, 16
      %v2154 = vrot.slane %v2152, 1
      %v2155 = vsel %vm440, %v2150, %v2154
      %v2156 = vshrl.u32 %v2139, 16
      %v2158 = vor.u32 %v2156, %v2154
      %v2160 = vshll.u32 %v2140, 16
      %v2162 = vrot.slane %v2160, 1
      %v2163 = vsel %vm440, %v2158, %v2162
      %v2164 = vshrl.u32 %v2140, 16
      %v2166 = vor.u32 %v2164, %v2162
      %v2168 = vshll.u32 %v2141, 16
      %v2170 = vrot.slane %v2168, 1
      %v2171 = vsel %vm440, %v2166, %v2170
      %v2172 = vshrl.u32 %v2141, 16
      %v2174 = vor.u32 %v2172, %v2170
      %v2176 = vshll.u32 %v2142, 16
      %v2178 = vrot.slane %v2176, 1
      %v2179 = vsel %vm440, %v2174, %v2178
      %v2180 = vshrl.u32 %v2142, 16
      %v2182 = vor.u32 %v2180, %v2178
      %v2184 = vshll.u32 %v2143, 16
      %v2186 = vrot.slane %v2184, 1
      %v2187 = vsel %vm440, %v2182, %v2186
      %v2209 = vunpack.c.l.b16 %v2100
      %v2210 = vunpack.c.l.b16 %v2101
      %v2211 = vunpack.c.l.b16 %v2102
      %v2212 = vunpack.c.l.b16 %v2103
      %v2213 = vunpack.c.l.b16 %v2104
      %v2214 = vunpack.c.l.b16 %v2105
      %v2215 = vunpack.c.l.b16 %v2106
      %v2216 = vunpack.c.l.b16 %v2107
      %v2217 = vunpack.c.l.b16 %v2108
      %v2218 = vunpack.c.l.b16 %v2109
      %v2219 = vunpack.c.l.b16 %v2110
      %v2220 = vunpack.c.l.b16 %v2111
      %v2221 = vunpack.c.l.b16 %v2112
      %v2222 = vunpack.c.l.b16 %v2113
      %v2223 = vunpack.c.l.b16 %v2114
      %v2224 = vunpack.c.l.b16 %v2115
      %v2225 = vpack.c.b16 %v2210, %v2209
      %v2226 = vpack.c.b16 %v2212, %v2211
      %v2227 = vpack.c.b16 %v2214, %v2213
      %v2228 = vpack.c.b16 %v2216, %v2215
      %v2229 = vpack.c.b16 %v2218, %v2217
      %v2230 = vpack.c.b16 %v2220, %v2219
      %v2231 = vpack.c.b16 %v2222, %v2221
      %v2232 = vpack.c.b16 %v2224, %v2223
      %2241 = vmatprep.subr.bf16.mxu0 0
      %2242 = vmatpush1.bf16.msra.mxu0 %v2232
      %2243 = vmatprep.subr.bf16.mxu0 0
      %2244 = vmatpush1.bf16.msra.mxu0 %v2231
      %2245 = vmatprep.subr.bf16.mxu0 0
      %2246 = vmatpush1.bf16.msra.mxu0 %v2230
      %2247 = vmatprep.subr.bf16.mxu0 0
      %2248 = vmatpush1.bf16.msra.mxu0 %v2229
      %2249 = vmatprep.subr.bf16.mxu0 0
      %2250 = vmatpush1.bf16.msra.mxu0 %v2228
      %2251 = vmatprep.subr.bf16.mxu0 0
      %2252 = vmatpush1.bf16.msra.mxu0 %v2227
      %2253 = vmatprep.subr.bf16.mxu0 0
      %2254 = vmatpush1.bf16.msra.mxu0 %v2226
      %2255 = vmatprep.subr.bf16.mxu0 0
      %2256 = vmatpush1.bf16.msra.mxu0 %v2225
      %2257 = vmatprep.subr.bf16.mxu0 0
      %2258 = vmatpush2.bf16.msra.mxu0 0
      %2259 = vmatprep.subr.bf16.mxu0 0
      %2260 = vmatpush2.bf16.msra.mxu0 0
      %2261 = vmatprep.subr.bf16.mxu0 0
      %2262 = vmatpush2.bf16.msra.mxu0 0
      %2263 = vmatprep.subr.bf16.mxu0 0
      %2264 = vmatpush2.bf16.msra.mxu0 0
      %2265 = vmatprep.subr.bf16.mxu0 0
      %2266 = vmatpush2.bf16.msra.mxu0 0
      %2267 = vmatprep.subr.bf16.mxu0 0
      %2268 = vmatpush2.bf16.msra.mxu0 0
      %2269 = vmatprep.subr.bf16.mxu0 0
      %2270 = vmatpush2.bf16.msra.mxu0 0
      %2271 = vmatprep.subr.bf16.mxu0 0
      %2272 = vmatpush2.bf16.msra.mxu0 0
      %2273 = vmatprep.mubr.bf16.mxu0 0
      %2274 = vmatmul.mubr.bf16.gmra.mxu0 %v2155
      %v2275 = vpop.f32.mrf.mxu0
      %v2276 = vadd.f32 0.0, %v2275
      %v2277 = vpop.f32.mrf.mxu0
      %v2278 = vpop.f32.mrf.mxu0
      %v2279 = vadd.f32 0.0, %v2278
      %v2280 = vpop.f32.mrf.mxu0
      %2281 = vmatprep.mubr.bf16.mxu0 0
      %2282 = vmatmul.mubr.bf16.gmra.mxu0 %v2163
      %v2283 = vpop.f32.mrf.mxu0
      %v2284 = vadd.f32 0.0, %v2283
      %v2285 = vpop.f32.mrf.mxu0
      %v2286 = vpop.f32.mrf.mxu0
      %v2287 = vadd.f32 0.0, %v2286
      %v2288 = vpop.f32.mrf.mxu0
      %2289 = vmatprep.mubr.bf16.mxu0 0
      %2290 = vmatmul.mubr.bf16.gmra.mxu0 %v2171
      %v2291 = vpop.f32.mrf.mxu0
      %v2292 = vadd.f32 0.0, %v2291
      %v2293 = vpop.f32.mrf.mxu0
      %v2294 = vpop.f32.mrf.mxu0
      %v2295 = vadd.f32 0.0, %v2294
      %v2296 = vpop.f32.mrf.mxu0
      %2297 = vmatprep.mubr.bf16.mxu0 0
      %2298 = vmatmul.mubr.bf16.gmra.mxu0 %v2179
      %v2299 = vpop.f32.mrf.mxu0
      %v2300 = vadd.f32 0.0, %v2299
      %v2301 = vpop.f32.mrf.mxu0
      %v2302 = vpop.f32.mrf.mxu0
      %v2303 = vadd.f32 0.0, %v2302
      %v2304 = vpop.f32.mrf.mxu0
      %2305 = vmatprep.mubr.bf16.mxu0 0
      %2306 = vmatmul.mubr.bf16.gmra.mxu0 %v2187
      %v2307 = vpop.f32.mrf.mxu0
      %v2308 = vadd.f32 0.0, %v2307
      %v2309 = vpop.f32.mrf.mxu0
      %v2310 = vpop.f32.mrf.mxu0
      %v2311 = vadd.f32 0.0, %v2310
      %v2312 = vpop.f32.mrf.mxu0
      %2313 = vdwg.mxu0
      %v2335 = vunpack.c.l.b16 %v2082
      %v2336 = vunpack.c.l.b16 %v2083
      %v2337 = vunpack.c.l.b16 %v2084
      %v2338 = vunpack.c.l.b16 %v2085
      %v2339 = vunpack.c.l.b16 %v2086
      %v2340 = vunpack.c.l.b16 %v2087
      %v2341 = vunpack.c.l.b16 %v2088
      %v2342 = vunpack.c.l.b16 %v2089
      %v2343 = vunpack.c.l.b16 %v2090
      %v2344 = vunpack.c.l.b16 %v2091
      %v2345 = vunpack.c.l.b16 %v2092
      %v2346 = vunpack.c.l.b16 %v2093
      %v2347 = vunpack.c.l.b16 %v2094
      %v2348 = vunpack.c.l.b16 %v2095
      %v2349 = vunpack.c.l.b16 %v2096
      %v2350 = vunpack.c.l.b16 %v2097
      %v2351 = vpack.c.b16 %v2336, %v2335
      %v2352 = vpack.c.b16 %v2338, %v2337
      %v2353 = vpack.c.b16 %v2340, %v2339
      %v2354 = vpack.c.b16 %v2342, %v2341
      %v2355 = vpack.c.b16 %v2344, %v2343
      %v2356 = vpack.c.b16 %v2346, %v2345
      %v2357 = vpack.c.b16 %v2348, %v2347
      %v2358 = vpack.c.b16 %v2350, %v2349
      %2367 = vmatprep.subr.bf16.mxu0 0
      %2368 = vmatpush1.bf16.msra.mxu0 %v2358
      %2369 = vmatprep.subr.bf16.mxu0 0
      %2370 = vmatpush1.bf16.msra.mxu0 %v2357
      %2371 = vmatprep.subr.bf16.mxu0 0
      %2372 = vmatpush1.bf16.msra.mxu0 %v2356
      %2373 = vmatprep.subr.bf16.mxu0 0
      %2374 = vmatpush1.bf16.msra.mxu0 %v2355
      %2375 = vmatprep.subr.bf16.mxu0 0
      %2376 = vmatpush1.bf16.msra.mxu0 %v2354
      %2377 = vmatprep.subr.bf16.mxu0 0
      %2378 = vmatpush1.bf16.msra.mxu0 %v2353
      %2379 = vmatprep.subr.bf16.mxu0 0
      %2380 = vmatpush1.bf16.msra.mxu0 %v2352
      %2381 = vmatprep.subr.bf16.mxu0 0
      %2382 = vmatpush1.bf16.msra.mxu0 %v2351
      %2383 = vmatprep.subr.bf16.mxu0 0
      %2384 = vmatpush2.bf16.msra.mxu0 0
      %2385 = vmatprep.subr.bf16.mxu0 0
      %2386 = vmatpush2.bf16.msra.mxu0 0
      %2387 = vmatprep.subr.bf16.mxu0 0
      %2388 = vmatpush2.bf16.msra.mxu0 0
      %2389 = vmatprep.subr.bf16.mxu0 0
      %2390 = vmatpush2.bf16.msra.mxu0 0
      %2391 = vmatprep.subr.bf16.mxu0 0
      %2392 = vmatpush2.bf16.msra.mxu0 0
      %2393 = vmatprep.subr.bf16.mxu0 0
      %2394 = vmatpush2.bf16.msra.mxu0 0
      %2395 = vmatprep.subr.bf16.mxu0 0
      %2396 = vmatpush2.bf16.msra.mxu0 0
      %2397 = vmatprep.subr.bf16.mxu0 0
      %2398 = vmatpush2.bf16.msra.mxu0 0
      %2399 = vmatprep.mubr.bf16.mxu0 0
      %2400 = vmatmul.mubr.bf16.gmra.mxu0 %v2138
      %v2401 = vpop.f32.mrf.mxu0
      %v2402 = vadd.f32 %v2276, %v2401
      %v2403 = vpop.f32.mrf.mxu0
      %v2404 = vpop.f32.mrf.mxu0
      %v2405 = vadd.f32 %v2279, %v2404
      %v2406 = vpop.f32.mrf.mxu0
      %2407 = vmatprep.mubr.bf16.mxu0 0
      %2408 = vmatmul.mubr.bf16.gmra.mxu0 %v2139
      %v2409 = vpop.f32.mrf.mxu0
      %v2410 = vadd.f32 %v2284, %v2409
      %v2411 = vpop.f32.mrf.mxu0
      %v2412 = vpop.f32.mrf.mxu0
      %v2413 = vadd.f32 %v2287, %v2412
      %v2414 = vpop.f32.mrf.mxu0
      %2415 = vmatprep.mubr.bf16.mxu0 0
      %2416 = vmatmul.mubr.bf16.gmra.mxu0 %v2140
      %v2417 = vpop.f32.mrf.mxu0
      %v2418 = vadd.f32 %v2292, %v2417
      %v2419 = vpop.f32.mrf.mxu0
      %v2420 = vpop.f32.mrf.mxu0
      %v2421 = vadd.f32 %v2295, %v2420
      %v2422 = vpop.f32.mrf.mxu0
      %2423 = vmatprep.mubr.bf16.mxu0 0
      %2424 = vmatmul.mubr.bf16.gmra.mxu0 %v2141
      %v2425 = vpop.f32.mrf.mxu0
      %v2426 = vadd.f32 %v2300, %v2425
      %v2427 = vpop.f32.mrf.mxu0
      %v2428 = vpop.f32.mrf.mxu0
      %v2429 = vadd.f32 %v2303, %v2428
      %v2430 = vpop.f32.mrf.mxu0
      %2431 = vmatprep.mubr.bf16.mxu0 0
      %2432 = vmatmul.mubr.bf16.gmra.mxu0 %v2142
      %v2433 = vpop.f32.mrf.mxu0
      %v2434 = vadd.f32 %v2308, %v2433
      %v2435 = vpop.f32.mrf.mxu0
      %v2436 = vpop.f32.mrf.mxu0
      %v2437 = vadd.f32 %v2311, %v2436
      %v2438 = vpop.f32.mrf.mxu0
      %2439 = vdwg.mxu0
      %v2440 = vld [vmem:[%s324] sm:$0xe]
      %s2441 = scalar_lea.vmem %s3, 128
      %v2442 = vld [vmem:[%s2441] sm:$0xf]
      %v2443 = vld [vmem:[%s2441 + $0x4] sm:$0xf]
      %v2444 = vld [vmem:[%s2441 + $0x8] sm:$0xf]
      %v2445 = vld [vmem:[%s2441 + $0xc] sm:$0xf]
      %v2446 = vld [vmem:[%s2441 + $0x10] sm:$0xf]
      %v2447 = vld [vmem:[%s2441 + $0x14] sm:$0xf]
      %v2448 = vld [vmem:[%s2441 + $0x18] sm:$0xf]
      %v2449 = vld [vmem:[%s2441 + $0x1c] sm:$0xf]
      %v2450 = vld [vmem:[%s2441 + $0x20] sm:$0xf]
      %v2451 = vld [vmem:[%s2441 + $0x24] sm:$0xf]
      %v2452 = vld [vmem:[%s2441 + $0x28] sm:$0xf]
      %v2453 = vld [vmem:[%s2441 + $0x2c] sm:$0xf]
      %v2454 = vld [vmem:[%s2441 + $0x30] sm:$0xf]
      %v2455 = vld [vmem:[%s2441 + $0x34] sm:$0xf]
      %v2456 = vld [vmem:[%s2441 + $0x38] sm:$0xf]
      %v2457 = vld [vmem:[%s2441 + $0x3c] sm:$0xf]
      %v2459 = vunpack.c.l.b16 %v2440
      %v2460 = vpack.c.b16 %v2128, %v2459
      %v2461 = vrot.slane %v2460, 1
      %v2462 = vrot.slane %v2139, 1
      %v2463 = vsel %vm758, %v2461, %v2462
      %v2464 = vrot.slane %v2140, 1
      %v2465 = vsel %vm758, %v2462, %v2464
      %v2466 = vrot.slane %v2141, 1
      %v2467 = vsel %vm758, %v2464, %v2466
      %v2468 = vrot.slane %v2142, 1
      %v2469 = vsel %vm758, %v2466, %v2468
      %v2470 = vrot.slane %v2143, 1
      %v2471 = vsel %vm758, %v2468, %v2470
      %v2493 = vunpack.c.l.b16 %v2442
      %v2494 = vunpack.c.l.b16 %v2443
      %v2495 = vunpack.c.l.b16 %v2444
      %v2496 = vunpack.c.l.b16 %v2445
      %v2497 = vunpack.c.l.b16 %v2446
      %v2498 = vunpack.c.l.b16 %v2447
      %v2499 = vunpack.c.l.b16 %v2448
      %v2500 = vunpack.c.l.b16 %v2449
      %v2501 = vunpack.c.l.b16 %v2450
      %v2502 = vunpack.c.l.b16 %v2451
      %v2503 = vunpack.c.l.b16 %v2452
      %v2504 = vunpack.c.l.b16 %v2453
      %v2505 = vunpack.c.l.b16 %v2454
      %v2506 = vunpack.c.l.b16 %v2455
      %v2507 = vunpack.c.l.b16 %v2456
      %v2508 = vunpack.c.l.b16 %v2457
      %v2509 = vpack.c.b16 %v2494, %v2493
      %v2510 = vpack.c.b16 %v2496, %v2495
      %v2511 = vpack.c.b16 %v2498, %v2497
      %v2512 = vpack.c.b16 %v2500, %v2499
      %v2513 = vpack.c.b16 %v2502, %v2501
      %v2514 = vpack.c.b16 %v2504, %v2503
      %v2515 = vpack.c.b16 %v2506, %v2505
      %v2516 = vpack.c.b16 %v2508, %v2507
      %2525 = vmatprep.subr.bf16.mxu0 0
      %2526 = vmatpush1.bf16.msra.mxu0 %v2516
      %2527 = vmatprep.subr.bf16.mxu0 0
      %2528 = vmatpush1.bf16.msra.mxu0 %v2515
      %2529 = vmatprep.subr.bf16.mxu0 0
      %2530 = vmatpush1.bf16.msra.mxu0 %v2514
      %2531 = vmatprep.subr.bf16.mxu0 0
      %2532 = vmatpush1.bf16.msra.mxu0 %v2513
      %2533 = vmatprep.subr.bf16.mxu0 0
      %2534 = vmatpush1.bf16.msra.mxu0 %v2512
      %2535 = vmatprep.subr.bf16.mxu0 0
      %2536 = vmatpush1.bf16.msra.mxu0 %v2511
      %2537 = vmatprep.subr.bf16.mxu0 0
      %2538 = vmatpush1.bf16.msra.mxu0 %v2510
      %2539 = vmatprep.subr.bf16.mxu0 0
      %2540 = vmatpush1.bf16.msra.mxu0 %v2509
      %2541 = vmatprep.subr.bf16.mxu0 0
      %2542 = vmatpush2.bf16.msra.mxu0 0
      %2543 = vmatprep.subr.bf16.mxu0 0
      %2544 = vmatpush2.bf16.msra.mxu0 0
      %2545 = vmatprep.subr.bf16.mxu0 0
      %2546 = vmatpush2.bf16.msra.mxu0 0
      %2547 = vmatprep.subr.bf16.mxu0 0
      %2548 = vmatpush2.bf16.msra.mxu0 0
      %2549 = vmatprep.subr.bf16.mxu0 0
      %2550 = vmatpush2.bf16.msra.mxu0 0
      %2551 = vmatprep.subr.bf16.mxu0 0
      %2552 = vmatpush2.bf16.msra.mxu0 0
      %2553 = vmatprep.subr.bf16.mxu0 0
      %2554 = vmatpush2.bf16.msra.mxu0 0
      %2555 = vmatprep.subr.bf16.mxu0 0
      %2556 = vmatpush2.bf16.msra.mxu0 0
      %2557 = vmatprep.mubr.bf16.mxu0 0
      %2558 = vmatmul.mubr.bf16.gmra.mxu0 %v2463
      %v2559 = vpop.f32.mrf.mxu0
      %v2560 = vadd.f32 0.0, %v2559
      %v2561 = vpop.f32.mrf.mxu0
      %v2562 = vpop.f32.mrf.mxu0
      %v2563 = vadd.f32 0.0, %v2562
      %v2564 = vpop.f32.mrf.mxu0
      %2565 = vmatprep.mubr.bf16.mxu0 0
      %2566 = vmatmul.mubr.bf16.gmra.mxu0 %v2465
      %v2567 = vpop.f32.mrf.mxu0
      %v2568 = vadd.f32 0.0, %v2567
      %v2569 = vpop.f32.mrf.mxu0
      %v2570 = vpop.f32.mrf.mxu0
      %v2571 = vadd.f32 0.0, %v2570
      %v2572 = vpop.f32.mrf.mxu0
      %2573 = vmatprep.mubr.bf16.mxu0 0
      %2574 = vmatmul.mubr.bf16.gmra.mxu0 %v2467
      %v2575 = vpop.f32.mrf.mxu0
      %v2576 = vadd.f32 0.0, %v2575
      %v2577 = vpop.f32.mrf.mxu0
      %v2578 = vpop.f32.mrf.mxu0
      %v2579 = vadd.f32 0.0, %v2578
      %v2580 = vpop.f32.mrf.mxu0
      %2581 = vmatprep.mubr.bf16.mxu0 0
      %2582 = vmatmul.mubr.bf16.gmra.mxu0 %v2469
      %v2583 = vpop.f32.mrf.mxu0
      %v2584 = vadd.f32 0.0, %v2583
      %v2585 = vpop.f32.mrf.mxu0
      %v2586 = vpop.f32.mrf.mxu0
      %v2587 = vadd.f32 0.0, %v2586
      %v2588 = vpop.f32.mrf.mxu0
      %2589 = vmatprep.mubr.bf16.mxu0 0
      %2590 = vmatmul.mubr.bf16.gmra.mxu0 %v2471
      %v2591 = vpop.f32.mrf.mxu0
      %v2592 = vadd.f32 0.0, %v2591
      %v2593 = vpop.f32.mrf.mxu0
      %v2594 = vpop.f32.mrf.mxu0
      %v2595 = vadd.f32 0.0, %v2594
      %v2596 = vpop.f32.mrf.mxu0
      %2597 = vdwg.mxu0
      %v2598 = vadd.f32 %v2402, %v2560
      %v2599 = vadd.f32 %v2405, %v2563
      %v2600 = vadd.f32 %v2410, %v2568
      %v2601 = vadd.f32 %v2413, %v2571
      %v2602 = vadd.f32 %v2418, %v2576
      %v2603 = vadd.f32 %v2421, %v2579
      %v2604 = vadd.f32 %v2426, %v2584
      %v2605 = vadd.f32 %v2429, %v2587
      %v2606 = vadd.f32 %v2434, %v2592
      %v2607 = vadd.f32 %v2437, %v2595
      %v2608 = vld [vmem:[%s324 + $0x4] sm:$0xe]
      %v2609 = vld [vmem:[%s324 + $0x8] sm:$0xf]
      %v2610 = vld [vmem:[%s324 + $0xc] sm:$0xf]
      %v2611 = vld [vmem:[%s324 + $0x10] sm:$0xf]
      %v2612 = vld [vmem:[%s324 + $0x14] sm:$0xf]
      %v2613 = vld [vmem:[%s324 + $0x18] sm:$0xf]
      %v2614 = vld [vmem:[%s324 + $0x1c] sm:$0xf]
      %v2615 = vld [vmem:[%s324 + $0x20] sm:$0xf]
      %v2616 = vld [vmem:[%s324 + $0x24] sm:$0xf]
      %v2617 = vld [vmem:[%s324 + $0x28] sm:$0xf]
      %v2618 = vld [vmem:[%s324 + $0x2c] sm:$0x1]
      %s2619 = scalar_lea.vmem %s3, 192
      %v2620 = vld [vmem:[%s2619] sm:$0xf]
      %v2621 = vld [vmem:[%s2619 + $0x4] sm:$0xf]
      %v2622 = vld [vmem:[%s2619 + $0x8] sm:$0xf]
      %v2623 = vld [vmem:[%s2619 + $0xc] sm:$0xf]
      %v2624 = vld [vmem:[%s2619 + $0x10] sm:$0xf]
      %v2625 = vld [vmem:[%s2619 + $0x14] sm:$0xf]
      %v2626 = vld [vmem:[%s2619 + $0x18] sm:$0xf]
      %v2627 = vld [vmem:[%s2619 + $0x1c] sm:$0xf]
      %v2628 = vld [vmem:[%s2619 + $0x20] sm:$0xf]
      %v2629 = vld [vmem:[%s2619 + $0x24] sm:$0xf]
      %v2630 = vld [vmem:[%s2619 + $0x28] sm:$0xf]
      %v2631 = vld [vmem:[%s2619 + $0x2c] sm:$0xf]
      %v2632 = vld [vmem:[%s2619 + $0x30] sm:$0xf]
      %v2633 = vld [vmem:[%s2619 + $0x34] sm:$0xf]
      %v2634 = vld [vmem:[%s2619 + $0x38] sm:$0xf]
      %v2635 = vld [vmem:[%s2619 + $0x3c] sm:$0xf]
      %v2647 = vunpack.c.l.b16 %v2608
      %v2648 = vunpack.c.l.b16 %v2609
      %v2649 = vunpack.c.l.b16 %v2610
      %v2650 = vunpack.c.l.b16 %v2611
      %v2651 = vunpack.c.l.b16 %v2612
      %v2652 = vunpack.c.l.b16 %v2613
      %v2653 = vunpack.c.l.b16 %v2614
      %v2654 = vunpack.c.l.b16 %v2615
      %v2655 = vunpack.c.l.b16 %v2616
      %v2656 = vunpack.c.l.b16 %v2617
      %v2657 = vunpack.c.l.b16 %v2618
      %v2658 = vpack.c.b16 %v2648, %v2647
      %v2659 = vpack.c.b16 %v2650, %v2649
      %v2660 = vpack.c.b16 %v2652, %v2651
      %v2661 = vpack.c.b16 %v2654, %v2653
      %v2662 = vpack.c.b16 %v2656, %v2655
      %v2663 = vpack.c.b16 %v2657, %v2657
      %v2664 = vrot.slane %v2658, 1
      %v2665 = vrot.slane %v2659, 1
      %v2666 = vsel %vm758, %v2664, %v2665
      %v2667 = vrot.slane %v2660, 1
      %v2668 = vsel %vm758, %v2665, %v2667
      %v2669 = vrot.slane %v2661, 1
      %v2670 = vsel %vm758, %v2667, %v2669
      %v2671 = vrot.slane %v2662, 1
      %v2672 = vsel %vm758, %v2669, %v2671
      %v2673 = vrot.slane %v2663, 1
      %v2674 = vsel %vm758, %v2671, %v2673
      %v2696 = vunpack.c.l.b16 %v2620
      %v2697 = vunpack.c.l.b16 %v2621
      %v2698 = vunpack.c.l.b16 %v2622
      %v2699 = vunpack.c.l.b16 %v2623
      %v2700 = vunpack.c.l.b16 %v2624
      %v2701 = vunpack.c.l.b16 %v2625
      %v2702 = vunpack.c.l.b16 %v2626
      %v2703 = vunpack.c.l.b16 %v2627
      %v2704 = vunpack.c.l.b16 %v2628
      %v2705 = vunpack.c.l.b16 %v2629
      %v2706 = vunpack.c.l.b16 %v2630
      %v2707 = vunpack.c.l.b16 %v2631
      %v2708 = vunpack.c.l.b16 %v2632
      %v2709 = vunpack.c.l.b16 %v2633
      %v2710 = vunpack.c.l.b16 %v2634
      %v2711 = vunpack.c.l.b16 %v2635
      %v2712 = vpack.c.b16 %v2697, %v2696
      %v2713 = vpack.c.b16 %v2699, %v2698
      %v2714 = vpack.c.b16 %v2701, %v2700
      %v2715 = vpack.c.b16 %v2703, %v2702
      %v2716 = vpack.c.b16 %v2705, %v2704
      %v2717 = vpack.c.b16 %v2707, %v2706
      %v2718 = vpack.c.b16 %v2709, %v2708
      %v2719 = vpack.c.b16 %v2711, %v2710
      %2728 = vmatprep.subr.bf16.mxu0 0
      %2729 = vmatpush1.bf16.msra.mxu0 %v2719
      %2730 = vmatprep.subr.bf16.mxu0 0
      %2731 = vmatpush1.bf16.msra.mxu0 %v2718
      %2732 = vmatprep.subr.bf16.mxu0 0
      %2733 = vmatpush1.bf16.msra.mxu0 %v2717
      %2734 = vmatprep.subr.bf16.mxu0 0
      %2735 = vmatpush1.bf16.msra.mxu0 %v2716
      %2736 = vmatprep.subr.bf16.mxu0 0
      %2737 = vmatpush1.bf16.msra.mxu0 %v2715
      %2738 = vmatprep.subr.bf16.mxu0 0
      %2739 = vmatpush1.bf16.msra.mxu0 %v2714
      %2740 = vmatprep.subr.bf16.mxu0 0
      %2741 = vmatpush1.bf16.msra.mxu0 %v2713
      %2742 = vmatprep.subr.bf16.mxu0 0
      %2743 = vmatpush1.bf16.msra.mxu0 %v2712
      %2744 = vmatprep.subr.bf16.mxu0 0
      %2745 = vmatpush2.bf16.msra.mxu0 0
      %2746 = vmatprep.subr.bf16.mxu0 0
      %2747 = vmatpush2.bf16.msra.mxu0 0
      %2748 = vmatprep.subr.bf16.mxu0 0
      %2749 = vmatpush2.bf16.msra.mxu0 0
      %2750 = vmatprep.subr.bf16.mxu0 0
      %2751 = vmatpush2.bf16.msra.mxu0 0
      %2752 = vmatprep.subr.bf16.mxu0 0
      %2753 = vmatpush2.bf16.msra.mxu0 0
      %2754 = vmatprep.subr.bf16.mxu0 0
      %2755 = vmatpush2.bf16.msra.mxu0 0
      %2756 = vmatprep.subr.bf16.mxu0 0
      %2757 = vmatpush2.bf16.msra.mxu0 0
      %2758 = vmatprep.subr.bf16.mxu0 0
      %2759 = vmatpush2.bf16.msra.mxu0 0
      %2760 = vmatprep.mubr.bf16.mxu0 0
      %2761 = vmatmul.mubr.bf16.gmra.mxu0 %v2666
      %v2762 = vpop.f32.mrf.mxu0
      %v2763 = vadd.f32 0.0, %v2762
      %v2764 = vpop.f32.mrf.mxu0
      %v2765 = vpop.f32.mrf.mxu0
      %v2766 = vadd.f32 0.0, %v2765
      %v2767 = vpop.f32.mrf.mxu0
      %2768 = vmatprep.mubr.bf16.mxu0 0
      %2769 = vmatmul.mubr.bf16.gmra.mxu0 %v2668
      %v2770 = vpop.f32.mrf.mxu0
      %v2771 = vadd.f32 0.0, %v2770
      %v2772 = vpop.f32.mrf.mxu0
      %v2773 = vpop.f32.mrf.mxu0
      %v2774 = vadd.f32 0.0, %v2773
      %v2775 = vpop.f32.mrf.mxu0
      %2776 = vmatprep.mubr.bf16.mxu0 0
      %2777 = vmatmul.mubr.bf16.gmra.mxu0 %v2670
      %v2778 = vpop.f32.mrf.mxu0
      %v2779 = vadd.f32 0.0, %v2778
      %v2780 = vpop.f32.mrf.mxu0
      %v2781 = vpop.f32.mrf.mxu0
      %v2782 = vadd.f32 0.0, %v2781
      %v2783 = vpop.f32.mrf.mxu0
      %2784 = vmatprep.mubr.bf16.mxu0 0
      %2785 = vmatmul.mubr.bf16.gmra.mxu0 %v2672
      %v2786 = vpop.f32.mrf.mxu0
      %v2787 = vadd.f32 0.0, %v2786
      %v2788 = vpop.f32.mrf.mxu0
      %v2789 = vpop.f32.mrf.mxu0
      %v2790 = vadd.f32 0.0, %v2789
      %v2791 = vpop.f32.mrf.mxu0
      %2792 = vmatprep.mubr.bf16.mxu0 0
      %2793 = vmatmul.mubr.bf16.gmra.mxu0 %v2674
      %v2794 = vpop.f32.mrf.mxu0
      %v2795 = vadd.f32 0.0, %v2794
      %v2796 = vpop.f32.mrf.mxu0
      %v2797 = vpop.f32.mrf.mxu0
      %v2798 = vadd.f32 0.0, %v2797
      %v2799 = vpop.f32.mrf.mxu0
      %2800 = vdwg.mxu0
      %v2801 = vadd.f32 %v2598, %v2763
      %v2802 = vadd.f32 %v2599, %v2766
      %v2803 = vadd.f32 %v2600, %v2771
      %v2804 = vadd.f32 %v2601, %v2774
      %v2805 = vadd.f32 %v2602, %v2779
      %v2806 = vadd.f32 %v2603, %v2782
      %v2807 = vadd.f32 %v2604, %v2787
      %v2808 = vadd.f32 %v2605, %v2790
      %v2809 = vadd.f32 %v2606, %v2795
      %v2810 = vadd.f32 %v2607, %v2798
      %v2811 = vld [vmem:[%s324 + $0x2c] sm:$0x3]
      %s2812 = scalar_lea.vmem %s3, 256
      %v2813 = vld [vmem:[%s2812] sm:$0xf]
      %v2814 = vld [vmem:[%s2812 + $0x4] sm:$0xf]
      %v2815 = vld [vmem:[%s2812 + $0x8] sm:$0xf]
      %v2816 = vld [vmem:[%s2812 + $0xc] sm:$0xf]
      %v2817 = vld [vmem:[%s2812 + $0x10] sm:$0xf]
      %v2818 = vld [vmem:[%s2812 + $0x14] sm:$0xf]
      %v2819 = vld [vmem:[%s2812 + $0x18] sm:$0xf]
      %v2820 = vld [vmem:[%s2812 + $0x1c] sm:$0xf]
      %v2821 = vld [vmem:[%s2812 + $0x20] sm:$0xf]
      %v2822 = vld [vmem:[%s2812 + $0x24] sm:$0xf]
      %v2823 = vld [vmem:[%s2812 + $0x28] sm:$0xf]
      %v2824 = vld [vmem:[%s2812 + $0x2c] sm:$0xf]
      %v2825 = vld [vmem:[%s2812 + $0x30] sm:$0xf]
      %v2826 = vld [vmem:[%s2812 + $0x34] sm:$0xf]
      %v2827 = vld [vmem:[%s2812 + $0x38] sm:$0xf]
      %v2828 = vld [vmem:[%s2812 + $0x3c] sm:$0xf]
      %v2830 = vunpack.c.l.b16 %v2811
      %v2831 = vpack.c.b16 %v2830, %v2830
      %v2833 = vshrl.u32 %v2658, 16
      %v2835 = vrot.slane %v2833, 1
      %v2836 = vshll.u32 %v2658, 16
      %v2838 = vrot.slane %v2836, 2
      %v2839 = vor.u32 %v2835, %v2838
      %v2841 = vshrl.u32 %v2659, 16
      %v2843 = vrot.slane %v2841, 1
      %v2844 = vshll.u32 %v2659, 16
      %v2846 = vrot.slane %v2844, 2
      %v2847 = vor.u32 %v2843, %v2846
      %v2848 = vsel %vm1130, %v2839, %v2847
      %v2850 = vshrl.u32 %v2660, 16
      %v2852 = vrot.slane %v2850, 1
      %v2853 = vshll.u32 %v2660, 16
      %v2855 = vrot.slane %v2853, 2
      %v2856 = vor.u32 %v2852, %v2855
      %v2857 = vsel %vm1130, %v2847, %v2856
      %v2859 = vshrl.u32 %v2661, 16
      %v2861 = vrot.slane %v2859, 1
      %v2862 = vshll.u32 %v2661, 16
      %v2864 = vrot.slane %v2862, 2
      %v2865 = vor.u32 %v2861, %v2864
      %v2866 = vsel %vm1130, %v2856, %v2865
      %v2868 = vshrl.u32 %v2662, 16
      %v2870 = vrot.slane %v2868, 1
      %v2871 = vshll.u32 %v2662, 16
      %v2873 = vrot.slane %v2871, 2
      %v2874 = vor.u32 %v2870, %v2873
      %v2875 = vsel %vm1130, %v2865, %v2874
      %v2877 = vshrl.u32 %v2831, 16
      %v2879 = vrot.slane %v2877, 1
      %v2880 = vshll.u32 %v2831, 16
      %v2882 = vrot.slane %v2880, 2
      %v2883 = vor.u32 %v2879, %v2882
      %v2884 = vsel %vm1130, %v2874, %v2883
      %v2906 = vunpack.c.l.b16 %v2813
      %v2907 = vunpack.c.l.b16 %v2814
      %v2908 = vunpack.c.l.b16 %v2815
      %v2909 = vunpack.c.l.b16 %v2816
      %v2910 = vunpack.c.l.b16 %v2817
      %v2911 = vunpack.c.l.b16 %v2818
      %v2912 = vunpack.c.l.b16 %v2819
      %v2913 = vunpack.c.l.b16 %v2820
      %v2914 = vunpack.c.l.b16 %v2821
      %v2915 = vunpack.c.l.b16 %v2822
      %v2916 = vunpack.c.l.b16 %v2823
      %v2917 = vunpack.c.l.b16 %v2824
      %v2918 = vunpack.c.l.b16 %v2825
      %v2919 = vunpack.c.l.b16 %v2826
      %v2920 = vunpack.c.l.b16 %v2827
      %v2921 = vunpack.c.l.b16 %v2828
      %v2922 = vpack.c.b16 %v2907, %v2906
      %v2923 = vpack.c.b16 %v2909, %v2908
      %v2924 = vpack.c.b16 %v2911, %v2910
      %v2925 = vpack.c.b16 %v2913, %v2912
      %v2926 = vpack.c.b16 %v2915, %v2914
      %v2927 = vpack.c.b16 %v2917, %v2916
      %v2928 = vpack.c.b16 %v2919, %v2918
      %v2929 = vpack.c.b16 %v2921, %v2920
      %2938 = vmatprep.subr.bf16.mxu0 0
      %2939 = vmatpush1.bf16.msra.mxu0 %v2929
      %2940 = vmatprep.subr.bf16.mxu0 0
      %2941 = vmatpush1.bf16.msra.mxu0 %v2928
      %2942 = vmatprep.subr.bf16.mxu0 0
      %2943 = vmatpush1.bf16.msra.mxu0 %v2927
      %2944 = vmatprep.subr.bf16.mxu0 0
      %2945 = vmatpush1.bf16.msra.mxu0 %v2926
      %2946 = vmatprep.subr.bf16.mxu0 0
      %2947 = vmatpush1.bf16.msra.mxu0 %v2925
      %2948 = vmatprep.subr.bf16.mxu0 0
      %2949 = vmatpush1.bf16.msra.mxu0 %v2924
      %2950 = vmatprep.subr.bf16.mxu0 0
      %2951 = vmatpush1.bf16.msra.mxu0 %v2923
      %2952 = vmatprep.subr.bf16.mxu0 0
      %2953 = vmatpush1.bf16.msra.mxu0 %v2922
      %2954 = vmatprep.subr.bf16.mxu0 0
      %2955 = vmatpush2.bf16.msra.mxu0 0
      %2956 = vmatprep.subr.bf16.mxu0 0
      %2957 = vmatpush2.bf16.msra.mxu0 0
      %2958 = vmatprep.subr.bf16.mxu0 0
      %2959 = vmatpush2.bf16.msra.mxu0 0
      %2960 = vmatprep.subr.bf16.mxu0 0
      %2961 = vmatpush2.bf16.msra.mxu0 0
      %2962 = vmatprep.subr.bf16.mxu0 0
      %2963 = vmatpush2.bf16.msra.mxu0 0
      %2964 = vmatprep.subr.bf16.mxu0 0
      %2965 = vmatpush2.bf16.msra.mxu0 0
      %2966 = vmatprep.subr.bf16.mxu0 0
      %2967 = vmatpush2.bf16.msra.mxu0 0
      %2968 = vmatprep.subr.bf16.mxu0 0
      %2969 = vmatpush2.bf16.msra.mxu0 0
      %2970 = vmatprep.mubr.bf16.mxu0 0
      %2971 = vmatmul.mubr.bf16.gmra.mxu0 %v2848
      %v2972 = vpop.f32.mrf.mxu0
      %v2973 = vadd.f32 0.0, %v2972
      %v2974 = vpop.f32.mrf.mxu0
      %v2975 = vpop.f32.mrf.mxu0
      %v2976 = vadd.f32 0.0, %v2975
      %v2977 = vpop.f32.mrf.mxu0
      %2978 = vmatprep.mubr.bf16.mxu0 0
      %2979 = vmatmul.mubr.bf16.gmra.mxu0 %v2857
      %v2980 = vpop.f32.mrf.mxu0
      %v2981 = vadd.f32 0.0, %v2980
      %v2982 = vpop.f32.mrf.mxu0
      %v2983 = vpop.f32.mrf.mxu0
      %v2984 = vadd.f32 0.0, %v2983
      %v2985 = vpop.f32.mrf.mxu0
      %2986 = vmatprep.mubr.bf16.mxu0 0
      %2987 = vmatmul.mubr.bf16.gmra.mxu0 %v2866
      %v2988 = vpop.f32.mrf.mxu0
      %v2989 = vadd.f32 0.0, %v2988
      %v2990 = vpop.f32.mrf.mxu0
      %v2991 = vpop.f32.mrf.mxu0
      %v2992 = vadd.f32 0.0, %v2991
      %v2993 = vpop.f32.mrf.mxu0
      %2994 = vmatprep.mubr.bf16.mxu0 0
      %2995 = vmatmul.mubr.bf16.gmra.mxu0 %v2875
      %v2996 = vpop.f32.mrf.mxu0
      %v2997 = vadd.f32 0.0, %v2996
      %v2998 = vpop.f32.mrf.mxu0
      %v2999 = vpop.f32.mrf.mxu0
      %v3000 = vadd.f32 0.0, %v2999
      %v3001 = vpop.f32.mrf.mxu0
      %3002 = vmatprep.mubr.bf16.mxu0 0
      %3003 = vmatmul.mubr.bf16.gmra.mxu0 %v2884
      %v3004 = vpop.f32.mrf.mxu0
      %v3005 = vadd.f32 0.0, %v3004
      %v3006 = vpop.f32.mrf.mxu0
      %v3007 = vpop.f32.mrf.mxu0
      %v3008 = vadd.f32 0.0, %v3007
      %v3009 = vpop.f32.mrf.mxu0
      %3010 = vdwg.mxu0
      %v3011 = vadd.f32 %v2801, %v2973
      %v3012 = vadd.f32 %v2802, %v2976
      %v3013 = vadd.f32 %v2803, %v2981
      %v3014 = vadd.f32 %v2804, %v2984
      %v3015 = vadd.f32 %v2805, %v2989
      %v3016 = vadd.f32 %v2806, %v2992
      %v3017 = vadd.f32 %v2807, %v2997
      %v3018 = vadd.f32 %v2808, %v3000
      %v3019 = vadd.f32 %v2809, %v3005
      %v3020 = vadd.f32 %v2810, %v3008
      %v3021 = vld [vmem:[%s324 + $0x4] sm:$0xc]
      %s3022 = scalar_lea.vmem %s3, 320
      %v3023 = vld [vmem:[%s3022] sm:$0xf]
      %v3024 = vld [vmem:[%s3022 + $0x4] sm:$0xf]
      %v3025 = vld [vmem:[%s3022 + $0x8] sm:$0xf]
      %v3026 = vld [vmem:[%s3022 + $0xc] sm:$0xf]
      %v3027 = vld [vmem:[%s3022 + $0x10] sm:$0xf]
      %v3028 = vld [vmem:[%s3022 + $0x14] sm:$0xf]
      %v3029 = vld [vmem:[%s3022 + $0x18] sm:$0xf]
      %v3030 = vld [vmem:[%s3022 + $0x1c] sm:$0xf]
      %v3031 = vld [vmem:[%s3022 + $0x20] sm:$0xf]
      %v3032 = vld [vmem:[%s3022 + $0x24] sm:$0xf]
      %v3033 = vld [vmem:[%s3022 + $0x28] sm:$0xf]
      %v3034 = vld [vmem:[%s3022 + $0x2c] sm:$0xf]
      %v3035 = vld [vmem:[%s3022 + $0x30] sm:$0xf]
      %v3036 = vld [vmem:[%s3022 + $0x34] sm:$0xf]
      %v3037 = vld [vmem:[%s3022 + $0x38] sm:$0xf]
      %v3038 = vld [vmem:[%s3022 + $0x3c] sm:$0xf]
      %v3040 = vunpack.c.l.b16 %v3021
      %v3041 = vpack.c.b16 %v2648, %v3040
      %v3042 = vrot.slane %v3041, 2
      %v3043 = vrot.slane %v2659, 2
      %v3044 = vsel %vm1341, %v3042, %v3043
      %v3045 = vrot.slane %v2660, 2
      %v3046 = vsel %vm1341, %v3043, %v3045
      %v3047 = vrot.slane %v2661, 2
      %v3048 = vsel %vm1341, %v3045, %v3047
      %v3049 = vrot.slane %v2662, 2
      %v3050 = vsel %vm1341, %v3047, %v3049
      %v3051 = vrot.slane %v2831, 2
      %v3052 = vsel %vm1341, %v3049, %v3051
      %v3074 = vunpack.c.l.b16 %v3023
      %v3075 = vunpack.c.l.b16 %v3024
      %v3076 = vunpack.c.l.b16 %v3025
      %v3077 = vunpack.c.l.b16 %v3026
      %v3078 = vunpack.c.l.b16 %v3027
      %v3079 = vunpack.c.l.b16 %v3028
      %v3080 = vunpack.c.l.b16 %v3029
      %v3081 = vunpack.c.l.b16 %v3030
      %v3082 = vunpack.c.l.b16 %v3031
      %v3083 = vunpack.c.l.b16 %v3032
      %v3084 = vunpack.c.l.b16 %v3033
      %v3085 = vunpack.c.l.b16 %v3034
      %v3086 = vunpack.c.l.b16 %v3035
      %v3087 = vunpack.c.l.b16 %v3036
      %v3088 = vunpack.c.l.b16 %v3037
      %v3089 = vunpack.c.l.b16 %v3038
      %v3090 = vpack.c.b16 %v3075, %v3074
      %v3091 = vpack.c.b16 %v3077, %v3076
      %v3092 = vpack.c.b16 %v3079, %v3078
      %v3093 = vpack.c.b16 %v3081, %v3080
      %v3094 = vpack.c.b16 %v3083, %v3082
      %v3095 = vpack.c.b16 %v3085, %v3084
      %v3096 = vpack.c.b16 %v3087, %v3086
      %v3097 = vpack.c.b16 %v3089, %v3088
      %3106 = vmatprep.subr.bf16.mxu0 0
      %3107 = vmatpush1.bf16.msra.mxu0 %v3097
      %3108 = vmatprep.subr.bf16.mxu0 0
      %3109 = vmatpush1.bf16.msra.mxu0 %v3096
      %3110 = vmatprep.subr.bf16.mxu0 0
      %3111 = vmatpush1.bf16.msra.mxu0 %v3095
      %3112 = vmatprep.subr.bf16.mxu0 0
      %3113 = vmatpush1.bf16.msra.mxu0 %v3094
      %3114 = vmatprep.subr.bf16.mxu0 0
      %3115 = vmatpush1.bf16.msra.mxu0 %v3093
      %3116 = vmatprep.subr.bf16.mxu0 0
      %3117 = vmatpush1.bf16.msra.mxu0 %v3092
      %3118 = vmatprep.subr.bf16.mxu0 0
      %3119 = vmatpush1.bf16.msra.mxu0 %v3091
      %3120 = vmatprep.subr.bf16.mxu0 0
      %3121 = vmatpush1.bf16.msra.mxu0 %v3090
      %3122 = vmatprep.subr.bf16.mxu0 0
      %3123 = vmatpush2.bf16.msra.mxu0 0
      %3124 = vmatprep.subr.bf16.mxu0 0
      %3125 = vmatpush2.bf16.msra.mxu0 0
      %3126 = vmatprep.subr.bf16.mxu0 0
      %3127 = vmatpush2.bf16.msra.mxu0 0
      %3128 = vmatprep.subr.bf16.mxu0 0
      %3129 = vmatpush2.bf16.msra.mxu0 0
      %3130 = vmatprep.subr.bf16.mxu0 0
      %3131 = vmatpush2.bf16.msra.mxu0 0
      %3132 = vmatprep.subr.bf16.mxu0 0
      %3133 = vmatpush2.bf16.msra.mxu0 0
      %3134 = vmatprep.subr.bf16.mxu0 0
      %3135 = vmatpush2.bf16.msra.mxu0 0
      %3136 = vmatprep.subr.bf16.mxu0 0
      %3137 = vmatpush2.bf16.msra.mxu0 0
      %3138 = vmatprep.mubr.bf16.mxu0 0
      %3139 = vmatmul.mubr.bf16.gmra.mxu0 %v3044
      %v3140 = vpop.f32.mrf.mxu0
      %v3141 = vadd.f32 0.0, %v3140
      %v3142 = vpop.f32.mrf.mxu0
      %v3143 = vpop.f32.mrf.mxu0
      %v3144 = vadd.f32 0.0, %v3143
      %v3145 = vpop.f32.mrf.mxu0
      %3146 = vmatprep.mubr.bf16.mxu0 0
      %3147 = vmatmul.mubr.bf16.gmra.mxu0 %v3046
      %v3148 = vpop.f32.mrf.mxu0
      %v3149 = vadd.f32 0.0, %v3148
      %v3150 = vpop.f32.mrf.mxu0
      %v3151 = vpop.f32.mrf.mxu0
      %v3152 = vadd.f32 0.0, %v3151
      %v3153 = vpop.f32.mrf.mxu0
      %3154 = vmatprep.mubr.bf16.mxu0 0
      %3155 = vmatmul.mubr.bf16.gmra.mxu0 %v3048
      %v3156 = vpop.f32.mrf.mxu0
      %v3157 = vadd.f32 0.0, %v3156
      %v3158 = vpop.f32.mrf.mxu0
      %v3159 = vpop.f32.mrf.mxu0
      %v3160 = vadd.f32 0.0, %v3159
      %v3161 = vpop.f32.mrf.mxu0
      %3162 = vmatprep.mubr.bf16.mxu0 0
      %3163 = vmatmul.mubr.bf16.gmra.mxu0 %v3050
      %v3164 = vpop.f32.mrf.mxu0
      %v3165 = vadd.f32 0.0, %v3164
      %v3166 = vpop.f32.mrf.mxu0
      %v3167 = vpop.f32.mrf.mxu0
      %v3168 = vadd.f32 0.0, %v3167
      %v3169 = vpop.f32.mrf.mxu0
      %3170 = vmatprep.mubr.bf16.mxu0 0
      %3171 = vmatmul.mubr.bf16.gmra.mxu0 %v3052
      %v3172 = vpop.f32.mrf.mxu0
      %v3173 = vadd.f32 0.0, %v3172
      %v3174 = vpop.f32.mrf.mxu0
      %v3175 = vpop.f32.mrf.mxu0
      %v3176 = vadd.f32 0.0, %v3175
      %v3177 = vpop.f32.mrf.mxu0
      %3178 = vdwg.mxu0
      %v3179 = vadd.f32 %v3011, %v3141
      %v3180 = vadd.f32 %v3012, %v3144
      %v3181 = vadd.f32 %v3013, %v3149
      %v3182 = vadd.f32 %v3014, %v3152
      %v3183 = vadd.f32 %v3015, %v3157
      %v3184 = vadd.f32 %v3016, %v3160
      %v3185 = vadd.f32 %v3017, %v3165
      %v3186 = vadd.f32 %v3018, %v3168
      %v3187 = vadd.f32 %v3019, %v3173
      %v3188 = vadd.f32 %v3020, %v3176
      %v3189 = vld [vmem:[%s324 + $0x8] sm:$0xc]
      %v3190 = vld [vmem:[%s324 + $0xc] sm:$0xf]
      %v3191 = vld [vmem:[%s324 + $0x10] sm:$0xf]
      %v3192 = vld [vmem:[%s324 + $0x14] sm:$0xf]
      %v3193 = vld [vmem:[%s324 + $0x18] sm:$0xf]
      %v3194 = vld [vmem:[%s324 + $0x1c] sm:$0xf]
      %v3195 = vld [vmem:[%s324 + $0x20] sm:$0xf]
      %v3196 = vld [vmem:[%s324 + $0x24] sm:$0xf]
      %v3197 = vld [vmem:[%s324 + $0x28] sm:$0xf]
      %v3198 = vld [vmem:[%s324 + $0x2c] sm:$0xf]
      %v3199 = vld [vmem:[%s324 + $0x30] sm:$0x3]
      %s3200 = scalar_lea.vmem %s3, 384
      %v3201 = vld [vmem:[%s3200] sm:$0xf]
      %v3202 = vld [vmem:[%s3200 + $0x4] sm:$0xf]
      %v3203 = vld [vmem:[%s3200 + $0x8] sm:$0xf]
      %v3204 = vld [vmem:[%s3200 + $0xc] sm:$0xf]
      %v3205 = vld [vmem:[%s3200 + $0x10] sm:$0xf]
      %v3206 = vld [vmem:[%s3200 + $0x14] sm:$0xf]
      %v3207 = vld [vmem:[%s3200 + $0x18] sm:$0xf]
      %v3208 = vld [vmem:[%s3200 + $0x1c] sm:$0xf]
      %v3209 = vld [vmem:[%s3200 + $0x20] sm:$0xf]
      %v3210 = vld [vmem:[%s3200 + $0x24] sm:$0xf]
      %v3211 = vld [vmem:[%s3200 + $0x28] sm:$0xf]
      %v3212 = vld [vmem:[%s3200 + $0x2c] sm:$0xf]
      %v3213 = vld [vmem:[%s3200 + $0x30] sm:$0xf]
      %v3214 = vld [vmem:[%s3200 + $0x34] sm:$0xf]
      %v3215 = vld [vmem:[%s3200 + $0x38] sm:$0xf]
      %v3216 = vld [vmem:[%s3200 + $0x3c] sm:$0xf]
      %v3228 = vunpack.c.l.b16 %v3189
      %v3229 = vunpack.c.l.b16 %v3190
      %v3230 = vunpack.c.l.b16 %v3191
      %v3231 = vunpack.c.l.b16 %v3192
      %v3232 = vunpack.c.l.b16 %v3193
      %v3233 = vunpack.c.l.b16 %v3194
      %v3234 = vunpack.c.l.b16 %v3195
      %v3235 = vunpack.c.l.b16 %v3196
      %v3236 = vunpack.c.l.b16 %v3197
      %v3237 = vunpack.c.l.b16 %v3198
      %v3238 = vunpack.c.l.b16 %v3199
      %v3239 = vpack.c.b16 %v3229, %v3228
      %v3240 = vpack.c.b16 %v3231, %v3230
      %v3241 = vpack.c.b16 %v3233, %v3232
      %v3242 = vpack.c.b16 %v3235, %v3234
      %v3243 = vpack.c.b16 %v3237, %v3236
      %v3244 = vpack.c.b16 %v3238, %v3238
      %v3245 = vrot.slane %v3239, 2
      %v3246 = vrot.slane %v3240, 2
      %v3247 = vsel %vm1341, %v3245, %v3246
      %v3248 = vrot.slane %v3241, 2
      %v3249 = vsel %vm1341, %v3246, %v3248
      %v3250 = vrot.slane %v3242, 2
      %v3251 = vsel %vm1341, %v3248, %v3250
      %v3252 = vrot.slane %v3243, 2
      %v3253 = vsel %vm1341, %v3250, %v3252
      %v3254 = vrot.slane %v3244, 2
      %v3255 = vsel %vm1341, %v3252, %v3254
      %v3277 = vunpack.c.l.b16 %v3201
      %v3278 = vunpack.c.l.b16 %v3202
      %v3279 = vunpack.c.l.b16 %v3203
      %v3280 = vunpack.c.l.b16 %v3204
      %v3281 = vunpack.c.l.b16 %v3205
      %v3282 = vunpack.c.l.b16 %v3206
      %v3283 = vunpack.c.l.b16 %v3207
      %v3284 = vunpack.c.l.b16 %v3208
      %v3285 = vunpack.c.l.b16 %v3209
      %v3286 = vunpack.c.l.b16 %v3210
      %v3287 = vunpack.c.l.b16 %v3211
      %v3288 = vunpack.c.l.b16 %v3212
      %v3289 = vunpack.c.l.b16 %v3213
      %v3290 = vunpack.c.l.b16 %v3214
      %v3291 = vunpack.c.l.b16 %v3215
      %v3292 = vunpack.c.l.b16 %v3216
      %v3293 = vpack.c.b16 %v3278, %v3277
      %v3294 = vpack.c.b16 %v3280, %v3279
      %v3295 = vpack.c.b16 %v3282, %v3281
      %v3296 = vpack.c.b16 %v3284, %v3283
      %v3297 = vpack.c.b16 %v3286, %v3285
      %v3298 = vpack.c.b16 %v3288, %v3287
      %v3299 = vpack.c.b16 %v3290, %v3289
      %v3300 = vpack.c.b16 %v3292, %v3291
      %3309 = vmatprep.subr.bf16.mxu0 0
      %3310 = vmatpush1.bf16.msra.mxu0 %v3300
      %3311 = vmatprep.subr.bf16.mxu0 0
      %3312 = vmatpush1.bf16.msra.mxu0 %v3299
      %3313 = vmatprep.subr.bf16.mxu0 0
      %3314 = vmatpush1.bf16.msra.mxu0 %v3298
      %3315 = vmatprep.subr.bf16.mxu0 0
      %3316 = vmatpush1.bf16.msra.mxu0 %v3297
      %3317 = vmatprep.subr.bf16.mxu0 0
      %3318 = vmatpush1.bf16.msra.mxu0 %v3296
      %3319 = vmatprep.subr.bf16.mxu0 0
      %3320 = vmatpush1.bf16.msra.mxu0 %v3295
      %3321 = vmatprep.subr.bf16.mxu0 0
      %3322 = vmatpush1.bf16.msra.mxu0 %v3294
      %3323 = vmatprep.subr.bf16.mxu0 0
      %3324 = vmatpush1.bf16.msra.mxu0 %v3293
      %3325 = vmatprep.subr.bf16.mxu0 0
      %3326 = vmatpush2.bf16.msra.mxu0 0
      %3327 = vmatprep.subr.bf16.mxu0 0
      %3328 = vmatpush2.bf16.msra.mxu0 0
      %3329 = vmatprep.subr.bf16.mxu0 0
      %3330 = vmatpush2.bf16.msra.mxu0 0
      %3331 = vmatprep.subr.bf16.mxu0 0
      %3332 = vmatpush2.bf16.msra.mxu0 0
      %3333 = vmatprep.subr.bf16.mxu0 0
      %3334 = vmatpush2.bf16.msra.mxu0 0
      %3335 = vmatprep.subr.bf16.mxu0 0
      %3336 = vmatpush2.bf16.msra.mxu0 0
      %3337 = vmatprep.subr.bf16.mxu0 0
      %3338 = vmatpush2.bf16.msra.mxu0 0
      %3339 = vmatprep.subr.bf16.mxu0 0
      %3340 = vmatpush2.bf16.msra.mxu0 0
      %3341 = vmatprep.mubr.bf16.mxu0 0
      %3342 = vmatmul.mubr.bf16.gmra.mxu0 %v3247
      %v3343 = vpop.f32.mrf.mxu0
      %v3344 = vadd.f32 0.0, %v3343
      %v3345 = vpop.f32.mrf.mxu0
      %v3346 = vpop.f32.mrf.mxu0
      %v3347 = vadd.f32 0.0, %v3346
      %v3348 = vpop.f32.mrf.mxu0
      %3349 = vmatprep.mubr.bf16.mxu0 0
      %3350 = vmatmul.mubr.bf16.gmra.mxu0 %v3249
      %v3351 = vpop.f32.mrf.mxu0
      %v3352 = vadd.f32 0.0, %v3351
      %v3353 = vpop.f32.mrf.mxu0
      %v3354 = vpop.f32.mrf.mxu0
      %v3355 = vadd.f32 0.0, %v3354
      %v3356 = vpop.f32.mrf.mxu0
      %3357 = vmatprep.mubr.bf16.mxu0 0
      %3358 = vmatmul.mubr.bf16.gmra.mxu0 %v3251
      %v3359 = vpop.f32.mrf.mxu0
      %v3360 = vadd.f32 0.0, %v3359
      %v3361 = vpop.f32.mrf.mxu0
      %v3362 = vpop.f32.mrf.mxu0
      %v3363 = vadd.f32 0.0, %v3362
      %v3364 = vpop.f32.mrf.mxu0
      %3365 = vmatprep.mubr.bf16.mxu0 0
      %3366 = vmatmul.mubr.bf16.gmra.mxu0 %v3253
      %v3367 = vpop.f32.mrf.mxu0
      %v3368 = vadd.f32 0.0, %v3367
      %v3369 = vpop.f32.mrf.mxu0
      %v3370 = vpop.f32.mrf.mxu0
      %v3371 = vadd.f32 0.0, %v3370
      %v3372 = vpop.f32.mrf.mxu0
      %3373 = vmatprep.mubr.bf16.mxu0 0
      %3374 = vmatmul.mubr.bf16.gmra.mxu0 %v3255
      %v3375 = vpop.f32.mrf.mxu0
      %v3376 = vadd.f32 0.0, %v3375
      %v3377 = vpop.f32.mrf.mxu0
      %v3378 = vpop.f32.mrf.mxu0
      %v3379 = vadd.f32 0.0, %v3378
      %v3380 = vpop.f32.mrf.mxu0
      %3381 = vdwg.mxu0
      %v3382 = vadd.f32 %v3179, %v3344
      %v3383 = vadd.f32 %v3180, %v3347
      %v3384 = vadd.f32 %v3181, %v3352
      %v3385 = vadd.f32 %v3182, %v3355
      %v3386 = vadd.f32 %v3183, %v3360
      %v3387 = vadd.f32 %v3184, %v3363
      %v3388 = vadd.f32 %v3185, %v3368
      %v3389 = vadd.f32 %v3186, %v3371
      %v3390 = vadd.f32 %v3187, %v3376
      %v3391 = vadd.f32 %v3188, %v3379
      %v3392 = vld [vmem:[%s324 + $0x30] sm:$0x7]
      %s3393 = scalar_lea.vmem %s3, 448
      %v3394 = vld [vmem:[%s3393] sm:$0xf]
      %v3395 = vld [vmem:[%s3393 + $0x4] sm:$0xf]
      %v3396 = vld [vmem:[%s3393 + $0x8] sm:$0xf]
      %v3397 = vld [vmem:[%s3393 + $0xc] sm:$0xf]
      %v3398 = vld [vmem:[%s3393 + $0x10] sm:$0xf]
      %v3399 = vld [vmem:[%s3393 + $0x14] sm:$0xf]
      %v3400 = vld [vmem:[%s3393 + $0x18] sm:$0xf]
      %v3401 = vld [vmem:[%s3393 + $0x1c] sm:$0xf]
      %v3402 = vld [vmem:[%s3393 + $0x20] sm:$0xf]
      %v3403 = vld [vmem:[%s3393 + $0x24] sm:$0xf]
      %v3404 = vld [vmem:[%s3393 + $0x28] sm:$0xf]
      %v3405 = vld [vmem:[%s3393 + $0x2c] sm:$0xf]
      %v3406 = vld [vmem:[%s3393 + $0x30] sm:$0xf]
      %v3407 = vld [vmem:[%s3393 + $0x34] sm:$0xf]
      %v3408 = vld [vmem:[%s3393 + $0x38] sm:$0xf]
      %v3409 = vld [vmem:[%s3393 + $0x3c] sm:$0xf]
      %v3411 = vunpack.c.l.b16 %v3392
      %v3412 = vpack.c.b16 %v3411, %v3411
      %v3414 = vshrl.u32 %v3239, 16
      %v3416 = vrot.slane %v3414, 2
      %v3417 = vshll.u32 %v3239, 16
      %v3419 = vrot.slane %v3417, 3
      %v3420 = vor.u32 %v3416, %v3419
      %v3422 = vshrl.u32 %v3240, 16
      %v3424 = vrot.slane %v3422, 2
      %v3425 = vshll.u32 %v3240, 16
      %v3427 = vrot.slane %v3425, 3
      %v3428 = vor.u32 %v3424, %v3427
      %v3429 = vsel %vm1713, %v3420, %v3428
      %v3431 = vshrl.u32 %v3241, 16
      %v3433 = vrot.slane %v3431, 2
      %v3434 = vshll.u32 %v3241, 16
      %v3436 = vrot.slane %v3434, 3
      %v3437 = vor.u32 %v3433, %v3436
      %v3438 = vsel %vm1713, %v3428, %v3437
      %v3440 = vshrl.u32 %v3242, 16
      %v3442 = vrot.slane %v3440, 2
      %v3443 = vshll.u32 %v3242, 16
      %v3445 = vrot.slane %v3443, 3
      %v3446 = vor.u32 %v3442, %v3445
      %v3447 = vsel %vm1713, %v3437, %v3446
      %v3449 = vshrl.u32 %v3243, 16
      %v3451 = vrot.slane %v3449, 2
      %v3452 = vshll.u32 %v3243, 16
      %v3454 = vrot.slane %v3452, 3
      %v3455 = vor.u32 %v3451, %v3454
      %v3456 = vsel %vm1713, %v3446, %v3455
      %v3458 = vshrl.u32 %v3412, 16
      %v3460 = vrot.slane %v3458, 2
      %v3461 = vshll.u32 %v3412, 16
      %v3463 = vrot.slane %v3461, 3
      %v3464 = vor.u32 %v3460, %v3463
      %v3465 = vsel %vm1713, %v3455, %v3464
      %v3487 = vunpack.c.l.b16 %v3394
      %v3488 = vunpack.c.l.b16 %v3395
      %v3489 = vunpack.c.l.b16 %v3396
      %v3490 = vunpack.c.l.b16 %v3397
      %v3491 = vunpack.c.l.b16 %v3398
      %v3492 = vunpack.c.l.b16 %v3399
      %v3493 = vunpack.c.l.b16 %v3400
      %v3494 = vunpack.c.l.b16 %v3401
      %v3495 = vunpack.c.l.b16 %v3402
      %v3496 = vunpack.c.l.b16 %v3403
      %v3497 = vunpack.c.l.b16 %v3404
      %v3498 = vunpack.c.l.b16 %v3405
      %v3499 = vunpack.c.l.b16 %v3406
      %v3500 = vunpack.c.l.b16 %v3407
      %v3501 = vunpack.c.l.b16 %v3408
      %v3502 = vunpack.c.l.b16 %v3409
      %v3503 = vpack.c.b16 %v3488, %v3487
      %v3504 = vpack.c.b16 %v3490, %v3489
      %v3505 = vpack.c.b16 %v3492, %v3491
      %v3506 = vpack.c.b16 %v3494, %v3493
      %v3507 = vpack.c.b16 %v3496, %v3495
      %v3508 = vpack.c.b16 %v3498, %v3497
      %v3509 = vpack.c.b16 %v3500, %v3499
      %v3510 = vpack.c.b16 %v3502, %v3501
      %3519 = vmatprep.subr.bf16.mxu0 0
      %3520 = vmatpush1.bf16.msra.mxu0 %v3510
      %3521 = vmatprep.subr.bf16.mxu0 0
      %3522 = vmatpush1.bf16.msra.mxu0 %v3509
      %3523 = vmatprep.subr.bf16.mxu0 0
      %3524 = vmatpush1.bf16.msra.mxu0 %v3508
      %3525 = vmatprep.subr.bf16.mxu0 0
      %3526 = vmatpush1.bf16.msra.mxu0 %v3507
      %3527 = vmatprep.subr.bf16.mxu0 0
      %3528 = vmatpush1.bf16.msra.mxu0 %v3506
      %3529 = vmatprep.subr.bf16.mxu0 0
      %3530 = vmatpush1.bf16.msra.mxu0 %v3505
      %3531 = vmatprep.subr.bf16.mxu0 0
      %3532 = vmatpush1.bf16.msra.mxu0 %v3504
      %3533 = vmatprep.subr.bf16.mxu0 0
      %3534 = vmatpush1.bf16.msra.mxu0 %v3503
      %3535 = vmatprep.subr.bf16.mxu0 0
      %3536 = vmatpush2.bf16.msra.mxu0 0
      %3537 = vmatprep.subr.bf16.mxu0 0
      %3538 = vmatpush2.bf16.msra.mxu0 0
      %3539 = vmatprep.subr.bf16.mxu0 0
      %3540 = vmatpush2.bf16.msra.mxu0 0
      %3541 = vmatprep.subr.bf16.mxu0 0
      %3542 = vmatpush2.bf16.msra.mxu0 0
      %3543 = vmatprep.subr.bf16.mxu0 0
      %3544 = vmatpush2.bf16.msra.mxu0 0
      %3545 = vmatprep.subr.bf16.mxu0 0
      %3546 = vmatpush2.bf16.msra.mxu0 0
      %3547 = vmatprep.subr.bf16.mxu0 0
      %3548 = vmatpush2.bf16.msra.mxu0 0
      %3549 = vmatprep.subr.bf16.mxu0 0
      %3550 = vmatpush2.bf16.msra.mxu0 0
      %3551 = vmatprep.mubr.bf16.mxu0 0
      %3552 = vmatmul.mubr.bf16.gmra.mxu0 %v3429
      %v3553 = vpop.f32.mrf.mxu0
      %v3554 = vadd.f32 0.0, %v3553
      %v3555 = vpop.f32.mrf.mxu0
      %v3556 = vpop.f32.mrf.mxu0
      %v3557 = vadd.f32 0.0, %v3556
      %v3558 = vpop.f32.mrf.mxu0
      %3559 = vmatprep.mubr.bf16.mxu0 0
      %3560 = vmatmul.mubr.bf16.gmra.mxu0 %v3438
      %v3561 = vpop.f32.mrf.mxu0
      %v3562 = vadd.f32 0.0, %v3561
      %v3563 = vpop.f32.mrf.mxu0
      %v3564 = vpop.f32.mrf.mxu0
      %v3565 = vadd.f32 0.0, %v3564
      %v3566 = vpop.f32.mrf.mxu0
      %3567 = vmatprep.mubr.bf16.mxu0 0
      %3568 = vmatmul.mubr.bf16.gmra.mxu0 %v3447
      %v3569 = vpop.f32.mrf.mxu0
      %v3570 = vadd.f32 0.0, %v3569
      %v3571 = vpop.f32.mrf.mxu0
      %v3572 = vpop.f32.mrf.mxu0
      %v3573 = vadd.f32 0.0, %v3572
      %v3574 = vpop.f32.mrf.mxu0
      %3575 = vmatprep.mubr.bf16.mxu0 0
      %3576 = vmatmul.mubr.bf16.gmra.mxu0 %v3456
      %v3577 = vpop.f32.mrf.mxu0
      %v3578 = vadd.f32 0.0, %v3577
      %v3579 = vpop.f32.mrf.mxu0
      %v3580 = vpop.f32.mrf.mxu0
      %v3581 = vadd.f32 0.0, %v3580
      %v3582 = vpop.f32.mrf.mxu0
      %3583 = vmatprep.mubr.bf16.mxu0 0
      %3584 = vmatmul.mubr.bf16.gmra.mxu0 %v3465
      %v3585 = vpop.f32.mrf.mxu0
      %v3586 = vadd.f32 0.0, %v3585
      %v3587 = vpop.f32.mrf.mxu0
      %v3588 = vpop.f32.mrf.mxu0
      %v3589 = vadd.f32 0.0, %v3588
      %v3590 = vpop.f32.mrf.mxu0
      %3591 = vdwg.mxu0
      %v3592 = vadd.f32 %v3382, %v3554
      %v3593 = vadd.f32 %v3383, %v3557
      %v3594 = vadd.f32 %v3384, %v3562
      %v3595 = vadd.f32 %v3385, %v3565
      %v3596 = vadd.f32 %v3386, %v3570
      %v3597 = vadd.f32 %v3387, %v3573
      %v3598 = vadd.f32 %v3388, %v3578
      %v3599 = vadd.f32 %v3389, %v3581
      %v3600 = vadd.f32 %v3390, %v3586
      %v3601 = vadd.f32 %v3391, %v3589
      %v3602 = vld [vmem:[%s324 + $0x8] sm:$0x8]
      %s3603 = scalar_lea.vmem %s3, 512
      %v3604 = vld [vmem:[%s3603] sm:$0xf]
      %v3605 = vld [vmem:[%s3603 + $0x4] sm:$0xf]
      %v3606 = vld [vmem:[%s3603 + $0x8] sm:$0xf]
      %v3607 = vld [vmem:[%s3603 + $0xc] sm:$0xf]
      %v3608 = vld [vmem:[%s3603 + $0x10] sm:$0xf]
      %v3609 = vld [vmem:[%s3603 + $0x14] sm:$0xf]
      %v3610 = vld [vmem:[%s3603 + $0x18] sm:$0xf]
      %v3611 = vld [vmem:[%s3603 + $0x1c] sm:$0xf]
      %v3612 = vld [vmem:[%s3603 + $0x20] sm:$0xf]
      %v3613 = vld [vmem:[%s3603 + $0x24] sm:$0xf]
      %v3614 = vld [vmem:[%s3603 + $0x28] sm:$0xf]
      %v3615 = vld [vmem:[%s3603 + $0x2c] sm:$0xf]
      %v3616 = vld [vmem:[%s3603 + $0x30] sm:$0xf]
      %v3617 = vld [vmem:[%s3603 + $0x34] sm:$0xf]
      %v3618 = vld [vmem:[%s3603 + $0x38] sm:$0xf]
      %v3619 = vld [vmem:[%s3603 + $0x3c] sm:$0xf]
      %v3621 = vunpack.c.l.b16 %v3602
      %v3622 = vpack.c.b16 %v3229, %v3621
      %v3623 = vrot.slane %v3622, 3
      %v3624 = vrot.slane %v3240, 3
      %v3625 = vsel %vm1924, %v3623, %v3624
      %v3626 = vrot.slane %v3241, 3
      %v3627 = vsel %vm1924, %v3624, %v3626
      %v3628 = vrot.slane %v3242, 3
      %v3629 = vsel %vm1924, %v3626, %v3628
      %v3630 = vrot.slane %v3243, 3
      %v3631 = vsel %vm1924, %v3628, %v3630
      %v3632 = vrot.slane %v3412, 3
      %v3633 = vsel %vm1924, %v3630, %v3632
      %v3655 = vunpack.c.l.b16 %v3604
      %v3656 = vunpack.c.l.b16 %v3605
      %v3657 = vunpack.c.l.b16 %v3606
      %v3658 = vunpack.c.l.b16 %v3607
      %v3659 = vunpack.c.l.b16 %v3608
      %v3660 = vunpack.c.l.b16 %v3609
      %v3661 = vunpack.c.l.b16 %v3610
      %v3662 = vunpack.c.l.b16 %v3611
      %v3663 = vunpack.c.l.b16 %v3612
      %v3664 = vunpack.c.l.b16 %v3613
      %v3665 = vunpack.c.l.b16 %v3614
      %v3666 = vunpack.c.l.b16 %v3615
      %v3667 = vunpack.c.l.b16 %v3616
      %v3668 = vunpack.c.l.b16 %v3617
      %v3669 = vunpack.c.l.b16 %v3618
      %v3670 = vunpack.c.l.b16 %v3619
      %v3671 = vpack.c.b16 %v3656, %v3655
      %v3672 = vpack.c.b16 %v3658, %v3657
      %v3673 = vpack.c.b16 %v3660, %v3659
      %v3674 = vpack.c.b16 %v3662, %v3661
      %v3675 = vpack.c.b16 %v3664, %v3663
      %v3676 = vpack.c.b16 %v3666, %v3665
      %v3677 = vpack.c.b16 %v3668, %v3667
      %v3678 = vpack.c.b16 %v3670, %v3669
      %3687 = vmatprep.subr.bf16.mxu0 0
      %3688 = vmatpush1.bf16.msra.mxu0 %v3678
      %3689 = vmatprep.subr.bf16.mxu0 0
      %3690 = vmatpush1.bf16.msra.mxu0 %v3677
      %3691 = vmatprep.subr.bf16.mxu0 0
      %3692 = vmatpush1.bf16.msra.mxu0 %v3676
      %3693 = vmatprep.subr.bf16.mxu0 0
      %3694 = vmatpush1.bf16.msra.mxu0 %v3675
      %3695 = vmatprep.subr.bf16.mxu0 0
      %3696 = vmatpush1.bf16.msra.mxu0 %v3674
      %3697 = vmatprep.subr.bf16.mxu0 0
      %3698 = vmatpush1.bf16.msra.mxu0 %v3673
      %3699 = vmatprep.subr.bf16.mxu0 0
      %3700 = vmatpush1.bf16.msra.mxu0 %v3672
      %3701 = vmatprep.subr.bf16.mxu0 0
      %3702 = vmatpush1.bf16.msra.mxu0 %v3671
      %3703 = vmatprep.subr.bf16.mxu0 0
      %3704 = vmatpush2.bf16.msra.mxu0 0
      %3705 = vmatprep.subr.bf16.mxu0 0
      %3706 = vmatpush2.bf16.msra.mxu0 0
      %3707 = vmatprep.subr.bf16.mxu0 0
      %3708 = vmatpush2.bf16.msra.mxu0 0
      %3709 = vmatprep.subr.bf16.mxu0 0
      %3710 = vmatpush2.bf16.msra.mxu0 0
      %3711 = vmatprep.subr.bf16.mxu0 0
      %3712 = vmatpush2.bf16.msra.mxu0 0
      %3713 = vmatprep.subr.bf16.mxu0 0
      %3714 = vmatpush2.bf16.msra.mxu0 0
      %3715 = vmatprep.subr.bf16.mxu0 0
      %3716 = vmatpush2.bf16.msra.mxu0 0
      %3717 = vmatprep.subr.bf16.mxu0 0
      %3718 = vmatpush2.bf16.msra.mxu0 0
      %3719 = vmatprep.mubr.bf16.mxu0 0
      %3720 = vmatmul.mubr.bf16.gmra.mxu0 %v3625
      %v3721 = vpop.f32.mrf.mxu0
      %v3722 = vadd.f32 0.0, %v3721
      %v3723 = vpop.f32.mrf.mxu0
      %v3724 = vpop.f32.mrf.mxu0
      %v3725 = vadd.f32 0.0, %v3724
      %v3726 = vpop.f32.mrf.mxu0
      %3727 = vmatprep.mubr.bf16.mxu0 0
      %3728 = vmatmul.mubr.bf16.gmra.mxu0 %v3627
      %v3729 = vpop.f32.mrf.mxu0
      %v3730 = vadd.f32 0.0, %v3729
      %v3731 = vpop.f32.mrf.mxu0
      %v3732 = vpop.f32.mrf.mxu0
      %v3733 = vadd.f32 0.0, %v3732
      %v3734 = vpop.f32.mrf.mxu0
      %3735 = vmatprep.mubr.bf16.mxu0 0
      %3736 = vmatmul.mubr.bf16.gmra.mxu0 %v3629
      %v3737 = vpop.f32.mrf.mxu0
      %v3738 = vadd.f32 0.0, %v3737
      %v3739 = vpop.f32.mrf.mxu0
      %v3740 = vpop.f32.mrf.mxu0
      %v3741 = vadd.f32 0.0, %v3740
      %v3742 = vpop.f32.mrf.mxu0
      %3743 = vmatprep.mubr.bf16.mxu0 0
      %3744 = vmatmul.mubr.bf16.gmra.mxu0 %v3631
      %v3745 = vpop.f32.mrf.mxu0
      %v3746 = vadd.f32 0.0, %v3745
      %v3747 = vpop.f32.mrf.mxu0
      %v3748 = vpop.f32.mrf.mxu0
      %v3749 = vadd.f32 0.0, %v3748
      %v3750 = vpop.f32.mrf.mxu0
      %3751 = vmatprep.mubr.bf16.mxu0 0
      %3752 = vmatmul.mubr.bf16.gmra.mxu0 %v3633
      %v3753 = vpop.f32.mrf.mxu0
      %v3754 = vadd.f32 0.0, %v3753
      %v3755 = vpop.f32.mrf.mxu0
      %v3756 = vpop.f32.mrf.mxu0
      %v3757 = vadd.f32 0.0, %v3756
      %v3758 = vpop.f32.mrf.mxu0
      %3759 = vdwg.mxu0
      %v3760 = vadd.f32 %v3592, %v3722
      %v3761 = vadd.f32 %v3593, %v3725
      %v3762 = vadd.f32 %v3594, %v3730
      %v3763 = vadd.f32 %v3595, %v3733
      %v3764 = vadd.f32 %v3596, %v3738
      %v3765 = vadd.f32 %v3597, %v3741
      %v3766 = vadd.f32 %v3598, %v3746
      %v3767 = vadd.f32 %v3599, %v3749
      %v3768 = vadd.f32 %v3600, %v3754
      %v3769 = vadd.f32 %v3601, %v3757
      %v3770 = vld [vmem:[%s340] sm:$0xf]
      %v3771 = vld [vmem:[%s340 + $0x4] sm:$0xf]
      %v3772 = vld [vmem:[%s340 + $0x8] sm:$0xf]
      %v3773 = vld [vmem:[%s340 + $0xc] sm:$0xf]
      %v3774 = vld [vmem:[%s340 + $0x10] sm:$0xf]
      %v3775 = vld [vmem:[%s340 + $0x14] sm:$0xf]
      %v3776 = vld [vmem:[%s340 + $0x18] sm:$0xf]
      %v3777 = vld [vmem:[%s340 + $0x1c] sm:$0xf]
      %v3778 = vld [vmem:[%s340 + $0x20] sm:$0xf]
      %v3779 = vld [vmem:[%s340 + $0x24] sm:$0xf]
      %s3780 = scalar_lea.vmem %s3, 1152
      %v3781 = vld [vmem:[%s3780] sm:$0xf]
      %v3782 = vld [vmem:[%s3780 + $0x4] sm:$0xf]
      %v3783 = vld [vmem:[%s3780 + $0x8] sm:$0xf]
      %v3784 = vld [vmem:[%s3780 + $0xc] sm:$0xf]
      %v3785 = vld [vmem:[%s3780 + $0x10] sm:$0xf]
      %v3786 = vld [vmem:[%s3780 + $0x14] sm:$0xf]
      %v3787 = vld [vmem:[%s3780 + $0x18] sm:$0xf]
      %v3788 = vld [vmem:[%s3780 + $0x1c] sm:$0xf]
      %v3789 = vld [vmem:[%s3780 + $0x20] sm:$0xf]
      %v3790 = vld [vmem:[%s3780 + $0x24] sm:$0xf]
      %v3791 = vld [vmem:[%s3780 + $0x28] sm:$0xf]
      %v3792 = vld [vmem:[%s3780 + $0x2c] sm:$0xf]
      %v3793 = vld [vmem:[%s3780 + $0x30] sm:$0xf]
      %v3794 = vld [vmem:[%s3780 + $0x34] sm:$0xf]
      %v3795 = vld [vmem:[%s3780 + $0x38] sm:$0xf]
      %v3796 = vld [vmem:[%s3780 + $0x3c] sm:$0xf]
      %v3797 = vld [vmem:[%s340 + $0x28] sm:$0x1]
      %s3798 = scalar_lea.vmem %s3, 1216
      %v3799 = vld [vmem:[%s3798] sm:$0xf]
      %v3800 = vld [vmem:[%s3798 + $0x4] sm:$0xf]
      %v3801 = vld [vmem:[%s3798 + $0x8] sm:$0xf]
      %v3802 = vld [vmem:[%s3798 + $0xc] sm:$0xf]
      %v3803 = vld [vmem:[%s3798 + $0x10] sm:$0xf]
      %v3804 = vld [vmem:[%s3798 + $0x14] sm:$0xf]
      %v3805 = vld [vmem:[%s3798 + $0x18] sm:$0xf]
      %v3806 = vld [vmem:[%s3798 + $0x1c] sm:$0xf]
      %v3807 = vld [vmem:[%s3798 + $0x20] sm:$0xf]
      %v3808 = vld [vmem:[%s3798 + $0x24] sm:$0xf]
      %v3809 = vld [vmem:[%s3798 + $0x28] sm:$0xf]
      %v3810 = vld [vmem:[%s3798 + $0x2c] sm:$0xf]
      %v3811 = vld [vmem:[%s3798 + $0x30] sm:$0xf]
      %v3812 = vld [vmem:[%s3798 + $0x34] sm:$0xf]
      %v3813 = vld [vmem:[%s3798 + $0x38] sm:$0xf]
      %v3814 = vld [vmem:[%s3798 + $0x3c] sm:$0xf]
      %v3826 = vunpack.c.l.b16 %v3770
      %v3827 = vunpack.c.l.b16 %v3771
      %v3828 = vunpack.c.l.b16 %v3772
      %v3829 = vunpack.c.l.b16 %v3773
      %v3830 = vunpack.c.l.b16 %v3774
      %v3831 = vunpack.c.l.b16 %v3775
      %v3832 = vunpack.c.l.b16 %v3776
      %v3833 = vunpack.c.l.b16 %v3777
      %v3834 = vunpack.c.l.b16 %v3778
      %v3835 = vunpack.c.l.b16 %v3779
      %v3836 = vunpack.c.l.b16 %v3797
      %v3837 = vpack.c.b16 %v3827, %v3826
      %v3838 = vpack.c.b16 %v3829, %v3828
      %v3839 = vpack.c.b16 %v3831, %v3830
      %v3840 = vpack.c.b16 %v3833, %v3832
      %v3841 = vpack.c.b16 %v3835, %v3834
      %v3842 = vpack.c.b16 %v3836, %v3836
      %v3844 = vshrl.u32 %v3837, 16
      %v3846 = vshll.u32 %v3837, 16
      %v3848 = vrot.slane %v3846, 1
      %v3849 = vor.u32 %v3844, %v3848
      %v3851 = vshll.u32 %v3838, 16
      %v3853 = vrot.slane %v3851, 1
      %v3854 = vsel %vm440, %v3849, %v3853
      %v3855 = vshrl.u32 %v3838, 16
      %v3857 = vor.u32 %v3855, %v3853
      %v3859 = vshll.u32 %v3839, 16
      %v3861 = vrot.slane %v3859, 1
      %v3862 = vsel %vm440, %v3857, %v3861
      %v3863 = vshrl.u32 %v3839, 16
      %v3865 = vor.u32 %v3863, %v3861
      %v3867 = vshll.u32 %v3840, 16
      %v3869 = vrot.slane %v3867, 1
      %v3870 = vsel %vm440, %v3865, %v3869
      %v3871 = vshrl.u32 %v3840, 16
      %v3873 = vor.u32 %v3871, %v3869
      %v3875 = vshll.u32 %v3841, 16
      %v3877 = vrot.slane %v3875, 1
      %v3878 = vsel %vm440, %v3873, %v3877
      %v3879 = vshrl.u32 %v3841, 16
      %v3881 = vor.u32 %v3879, %v3877
      %v3883 = vshll.u32 %v3842, 16
      %v3885 = vrot.slane %v3883, 1
      %v3886 = vsel %vm440, %v3881, %v3885
      %v3908 = vunpack.c.l.b16 %v3799
      %v3909 = vunpack.c.l.b16 %v3800
      %v3910 = vunpack.c.l.b16 %v3801
      %v3911 = vunpack.c.l.b16 %v3802
      %v3912 = vunpack.c.l.b16 %v3803
      %v3913 = vunpack.c.l.b16 %v3804
      %v3914 = vunpack.c.l.b16 %v3805
      %v3915 = vunpack.c.l.b16 %v3806
      %v3916 = vunpack.c.l.b16 %v3807
      %v3917 = vunpack.c.l.b16 %v3808
      %v3918 = vunpack.c.l.b16 %v3809
      %v3919 = vunpack.c.l.b16 %v3810
      %v3920 = vunpack.c.l.b16 %v3811
      %v3921 = vunpack.c.l.b16 %v3812
      %v3922 = vunpack.c.l.b16 %v3813
      %v3923 = vunpack.c.l.b16 %v3814
      %v3924 = vpack.c.b16 %v3909, %v3908
      %v3925 = vpack.c.b16 %v3911, %v3910
      %v3926 = vpack.c.b16 %v3913, %v3912
      %v3927 = vpack.c.b16 %v3915, %v3914
      %v3928 = vpack.c.b16 %v3917, %v3916
      %v3929 = vpack.c.b16 %v3919, %v3918
      %v3930 = vpack.c.b16 %v3921, %v3920
      %v3931 = vpack.c.b16 %v3923, %v3922
      %3940 = vmatprep.subr.bf16.mxu0 0
      %3941 = vmatpush1.bf16.msra.mxu0 %v3931
      %3942 = vmatprep.subr.bf16.mxu0 0
      %3943 = vmatpush1.bf16.msra.mxu0 %v3930
      %3944 = vmatprep.subr.bf16.mxu0 0
      %3945 = vmatpush1.bf16.msra.mxu0 %v3929
      %3946 = vmatprep.subr.bf16.mxu0 0
      %3947 = vmatpush1.bf16.msra.mxu0 %v3928
      %3948 = vmatprep.subr.bf16.mxu0 0
      %3949 = vmatpush1.bf16.msra.mxu0 %v3927
      %3950 = vmatprep.subr.bf16.mxu0 0
      %3951 = vmatpush1.bf16.msra.mxu0 %v3926
      %3952 = vmatprep.subr.bf16.mxu0 0
      %3953 = vmatpush1.bf16.msra.mxu0 %v3925
      %3954 = vmatprep.subr.bf16.mxu0 0
      %3955 = vmatpush1.bf16.msra.mxu0 %v3924
      %3956 = vmatprep.subr.bf16.mxu0 0
      %3957 = vmatpush2.bf16.msra.mxu0 0
      %3958 = vmatprep.subr.bf16.mxu0 0
      %3959 = vmatpush2.bf16.msra.mxu0 0
      %3960 = vmatprep.subr.bf16.mxu0 0
      %3961 = vmatpush2.bf16.msra.mxu0 0
      %3962 = vmatprep.subr.bf16.mxu0 0
      %3963 = vmatpush2.bf16.msra.mxu0 0
      %3964 = vmatprep.subr.bf16.mxu0 0
      %3965 = vmatpush2.bf16.msra.mxu0 0
      %3966 = vmatprep.subr.bf16.mxu0 0
      %3967 = vmatpush2.bf16.msra.mxu0 0
      %3968 = vmatprep.subr.bf16.mxu0 0
      %3969 = vmatpush2.bf16.msra.mxu0 0
      %3970 = vmatprep.subr.bf16.mxu0 0
      %3971 = vmatpush2.bf16.msra.mxu0 0
      %3972 = vmatprep.mubr.bf16.mxu0 0
      %3973 = vmatmul.mubr.bf16.gmra.mxu0 %v3854
      %v3974 = vpop.f32.mrf.mxu0
      %v3975 = vadd.f32 0.0, %v3974
      %v3976 = vpop.f32.mrf.mxu0
      %v3977 = vpop.f32.mrf.mxu0
      %v3978 = vadd.f32 0.0, %v3977
      %v3979 = vpop.f32.mrf.mxu0
      %3980 = vmatprep.mubr.bf16.mxu0 0
      %3981 = vmatmul.mubr.bf16.gmra.mxu0 %v3862
      %v3982 = vpop.f32.mrf.mxu0
      %v3983 = vadd.f32 0.0, %v3982
      %v3984 = vpop.f32.mrf.mxu0
      %v3985 = vpop.f32.mrf.mxu0
      %v3986 = vadd.f32 0.0, %v3985
      %v3987 = vpop.f32.mrf.mxu0
      %3988 = vmatprep.mubr.bf16.mxu0 0
      %3989 = vmatmul.mubr.bf16.gmra.mxu0 %v3870
      %v3990 = vpop.f32.mrf.mxu0
      %v3991 = vadd.f32 0.0, %v3990
      %v3992 = vpop.f32.mrf.mxu0
      %v3993 = vpop.f32.mrf.mxu0
      %v3994 = vadd.f32 0.0, %v3993
      %v3995 = vpop.f32.mrf.mxu0
      %3996 = vmatprep.mubr.bf16.mxu0 0
      %3997 = vmatmul.mubr.bf16.gmra.mxu0 %v3878
      %v3998 = vpop.f32.mrf.mxu0
      %v3999 = vadd.f32 0.0, %v3998
      %v4000 = vpop.f32.mrf.mxu0
      %v4001 = vpop.f32.mrf.mxu0
      %v4002 = vadd.f32 0.0, %v4001
      %v4003 = vpop.f32.mrf.mxu0
      %4004 = vmatprep.mubr.bf16.mxu0 0
      %4005 = vmatmul.mubr.bf16.gmra.mxu0 %v3886
      %v4006 = vpop.f32.mrf.mxu0
      %v4007 = vadd.f32 0.0, %v4006
      %v4008 = vpop.f32.mrf.mxu0
      %v4009 = vpop.f32.mrf.mxu0
      %v4010 = vadd.f32 0.0, %v4009
      %v4011 = vpop.f32.mrf.mxu0
      %4012 = vdwg.mxu0
      %v4034 = vunpack.c.l.b16 %v3781
      %v4035 = vunpack.c.l.b16 %v3782
      %v4036 = vunpack.c.l.b16 %v3783
      %v4037 = vunpack.c.l.b16 %v3784
      %v4038 = vunpack.c.l.b16 %v3785
      %v4039 = vunpack.c.l.b16 %v3786
      %v4040 = vunpack.c.l.b16 %v3787
      %v4041 = vunpack.c.l.b16 %v3788
      %v4042 = vunpack.c.l.b16 %v3789
      %v4043 = vunpack.c.l.b16 %v3790
      %v4044 = vunpack.c.l.b16 %v3791
      %v4045 = vunpack.c.l.b16 %v3792
      %v4046 = vunpack.c.l.b16 %v3793
      %v4047 = vunpack.c.l.b16 %v3794
      %v4048 = vunpack.c.l.b16 %v3795
      %v4049 = vunpack.c.l.b16 %v3796
      %v4050 = vpack.c.b16 %v4035, %v4034
      %v4051 = vpack.c.b16 %v4037, %v4036
      %v4052 = vpack.c.b16 %v4039, %v4038
      %v4053 = vpack.c.b16 %v4041, %v4040
      %v4054 = vpack.c.b16 %v4043, %v4042
      %v4055 = vpack.c.b16 %v4045, %v4044
      %v4056 = vpack.c.b16 %v4047, %v4046
      %v4057 = vpack.c.b16 %v4049, %v4048
      %4066 = vmatprep.subr.bf16.mxu0 0
      %4067 = vmatpush1.bf16.msra.mxu0 %v4057
      %4068 = vmatprep.subr.bf16.mxu0 0
      %4069 = vmatpush1.bf16.msra.mxu0 %v4056
      %4070 = vmatprep.subr.bf16.mxu0 0
      %4071 = vmatpush1.bf16.msra.mxu0 %v4055
      %4072 = vmatprep.subr.bf16.mxu0 0
      %4073 = vmatpush1.bf16.msra.mxu0 %v4054
      %4074 = vmatprep.subr.bf16.mxu0 0
      %4075 = vmatpush1.bf16.msra.mxu0 %v4053
      %4076 = vmatprep.subr.bf16.mxu0 0
      %4077 = vmatpush1.bf16.msra.mxu0 %v4052
      %4078 = vmatprep.subr.bf16.mxu0 0
      %4079 = vmatpush1.bf16.msra.mxu0 %v4051
      %4080 = vmatprep.subr.bf16.mxu0 0
      %4081 = vmatpush1.bf16.msra.mxu0 %v4050
      %4082 = vmatprep.subr.bf16.mxu0 0
      %4083 = vmatpush2.bf16.msra.mxu0 0
      %4084 = vmatprep.subr.bf16.mxu0 0
      %4085 = vmatpush2.bf16.msra.mxu0 0
      %4086 = vmatprep.subr.bf16.mxu0 0
      %4087 = vmatpush2.bf16.msra.mxu0 0
      %4088 = vmatprep.subr.bf16.mxu0 0
      %4089 = vmatpush2.bf16.msra.mxu0 0
      %4090 = vmatprep.subr.bf16.mxu0 0
      %4091 = vmatpush2.bf16.msra.mxu0 0
      %4092 = vmatprep.subr.bf16.mxu0 0
      %4093 = vmatpush2.bf16.msra.mxu0 0
      %4094 = vmatprep.subr.bf16.mxu0 0
      %4095 = vmatpush2.bf16.msra.mxu0 0
      %4096 = vmatprep.subr.bf16.mxu0 0
      %4097 = vmatpush2.bf16.msra.mxu0 0
      %4098 = vmatprep.mubr.bf16.mxu0 0
      %4099 = vmatmul.mubr.bf16.gmra.mxu0 %v3837
      %v4100 = vpop.f32.mrf.mxu0
      %v4101 = vadd.f32 %v3975, %v4100
      %v4102 = vpop.f32.mrf.mxu0
      %v4103 = vpop.f32.mrf.mxu0
      %v4104 = vadd.f32 %v3978, %v4103
      %v4105 = vpop.f32.mrf.mxu0
      %4106 = vmatprep.mubr.bf16.mxu0 0
      %4107 = vmatmul.mubr.bf16.gmra.mxu0 %v3838
      %v4108 = vpop.f32.mrf.mxu0
      %v4109 = vadd.f32 %v3983, %v4108
      %v4110 = vpop.f32.mrf.mxu0
      %v4111 = vpop.f32.mrf.mxu0
      %v4112 = vadd.f32 %v3986, %v4111
      %v4113 = vpop.f32.mrf.mxu0
      %4114 = vmatprep.mubr.bf16.mxu0 0
      %4115 = vmatmul.mubr.bf16.gmra.mxu0 %v3839
      %v4116 = vpop.f32.mrf.mxu0
      %v4117 = vadd.f32 %v3991, %v4116
      %v4118 = vpop.f32.mrf.mxu0
      %v4119 = vpop.f32.mrf.mxu0
      %v4120 = vadd.f32 %v3994, %v4119
      %v4121 = vpop.f32.mrf.mxu0
      %4122 = vmatprep.mubr.bf16.mxu0 0
      %4123 = vmatmul.mubr.bf16.gmra.mxu0 %v3840
      %v4124 = vpop.f32.mrf.mxu0
      %v4125 = vadd.f32 %v3999, %v4124
      %v4126 = vpop.f32.mrf.mxu0
      %v4127 = vpop.f32.mrf.mxu0
      %v4128 = vadd.f32 %v4002, %v4127
      %v4129 = vpop.f32.mrf.mxu0
      %4130 = vmatprep.mubr.bf16.mxu0 0
      %4131 = vmatmul.mubr.bf16.gmra.mxu0 %v3841
      %v4132 = vpop.f32.mrf.mxu0
      %v4133 = vadd.f32 %v4007, %v4132
      %v4134 = vpop.f32.mrf.mxu0
      %v4135 = vpop.f32.mrf.mxu0
      %v4136 = vadd.f32 %v4010, %v4135
      %v4137 = vpop.f32.mrf.mxu0
      %4138 = vdwg.mxu0
      %v4139 = vld [vmem:[%s340] sm:$0xe]
      %s4140 = scalar_lea.vmem %s3, 1280
      %v4141 = vld [vmem:[%s4140] sm:$0xf]
      %v4142 = vld [vmem:[%s4140 + $0x4] sm:$0xf]
      %v4143 = vld [vmem:[%s4140 + $0x8] sm:$0xf]
      %v4144 = vld [vmem:[%s4140 + $0xc] sm:$0xf]
      %v4145 = vld [vmem:[%s4140 + $0x10] sm:$0xf]
      %v4146 = vld [vmem:[%s4140 + $0x14] sm:$0xf]
      %v4147 = vld [vmem:[%s4140 + $0x18] sm:$0xf]
      %v4148 = vld [vmem:[%s4140 + $0x1c] sm:$0xf]
      %v4149 = vld [vmem:[%s4140 + $0x20] sm:$0xf]
      %v4150 = vld [vmem:[%s4140 + $0x24] sm:$0xf]
      %v4151 = vld [vmem:[%s4140 + $0x28] sm:$0xf]
      %v4152 = vld [vmem:[%s4140 + $0x2c] sm:$0xf]
      %v4153 = vld [vmem:[%s4140 + $0x30] sm:$0xf]
      %v4154 = vld [vmem:[%s4140 + $0x34] sm:$0xf]
      %v4155 = vld [vmem:[%s4140 + $0x38] sm:$0xf]
      %v4156 = vld [vmem:[%s4140 + $0x3c] sm:$0xf]
      %v4158 = vunpack.c.l.b16 %v4139
      %v4159 = vpack.c.b16 %v3827, %v4158
      %v4160 = vrot.slane %v4159, 1
      %v4161 = vrot.slane %v3838, 1
      %v4162 = vsel %vm758, %v4160, %v4161
      %v4163 = vrot.slane %v3839, 1
      %v4164 = vsel %vm758, %v4161, %v4163
      %v4165 = vrot.slane %v3840, 1
      %v4166 = vsel %vm758, %v4163, %v4165
      %v4167 = vrot.slane %v3841, 1
      %v4168 = vsel %vm758, %v4165, %v4167
      %v4169 = vrot.slane %v3842, 1
      %v4170 = vsel %vm758, %v4167, %v4169
      %v4192 = vunpack.c.l.b16 %v4141
      %v4193 = vunpack.c.l.b16 %v4142
      %v4194 = vunpack.c.l.b16 %v4143
      %v4195 = vunpack.c.l.b16 %v4144
      %v4196 = vunpack.c.l.b16 %v4145
      %v4197 = vunpack.c.l.b16 %v4146
      %v4198 = vunpack.c.l.b16 %v4147
      %v4199 = vunpack.c.l.b16 %v4148
      %v4200 = vunpack.c.l.b16 %v4149
      %v4201 = vunpack.c.l.b16 %v4150
      %v4202 = vunpack.c.l.b16 %v4151
      %v4203 = vunpack.c.l.b16 %v4152
      %v4204 = vunpack.c.l.b16 %v4153
      %v4205 = vunpack.c.l.b16 %v4154
      %v4206 = vunpack.c.l.b16 %v4155
      %v4207 = vunpack.c.l.b16 %v4156
      %v4208 = vpack.c.b16 %v4193, %v4192
      %v4209 = vpack.c.b16 %v4195, %v4194
      %v4210 = vpack.c.b16 %v4197, %v4196
      %v4211 = vpack.c.b16 %v4199, %v4198
      %v4212 = vpack.c.b16 %v4201, %v4200
      %v4213 = vpack.c.b16 %v4203, %v4202
      %v4214 = vpack.c.b16 %v4205, %v4204
      %v4215 = vpack.c.b16 %v4207, %v4206
      %4224 = vmatprep.subr.bf16.mxu0 0
      %4225 = vmatpush1.bf16.msra.mxu0 %v4215
      %4226 = vmatprep.subr.bf16.mxu0 0
      %4227 = vmatpush1.bf16.msra.mxu0 %v4214
      %4228 = vmatprep.subr.bf16.mxu0 0
      %4229 = vmatpush1.bf16.msra.mxu0 %v4213
      %4230 = vmatprep.subr.bf16.mxu0 0
      %4231 = vmatpush1.bf16.msra.mxu0 %v4212
      %4232 = vmatprep.subr.bf16.mxu0 0
      %4233 = vmatpush1.bf16.msra.mxu0 %v4211
      %4234 = vmatprep.subr.bf16.mxu0 0
      %4235 = vmatpush1.bf16.msra.mxu0 %v4210
      %4236 = vmatprep.subr.bf16.mxu0 0
      %4237 = vmatpush1.bf16.msra.mxu0 %v4209
      %4238 = vmatprep.subr.bf16.mxu0 0
      %4239 = vmatpush1.bf16.msra.mxu0 %v4208
      %4240 = vmatprep.subr.bf16.mxu0 0
      %4241 = vmatpush2.bf16.msra.mxu0 0
      %4242 = vmatprep.subr.bf16.mxu0 0
      %4243 = vmatpush2.bf16.msra.mxu0 0
      %4244 = vmatprep.subr.bf16.mxu0 0
      %4245 = vmatpush2.bf16.msra.mxu0 0
      %4246 = vmatprep.subr.bf16.mxu0 0
      %4247 = vmatpush2.bf16.msra.mxu0 0
      %4248 = vmatprep.subr.bf16.mxu0 0
      %4249 = vmatpush2.bf16.msra.mxu0 0
      %4250 = vmatprep.subr.bf16.mxu0 0
      %4251 = vmatpush2.bf16.msra.mxu0 0
      %4252 = vmatprep.subr.bf16.mxu0 0
      %4253 = vmatpush2.bf16.msra.mxu0 0
      %4254 = vmatprep.subr.bf16.mxu0 0
      %4255 = vmatpush2.bf16.msra.mxu0 0
      %4256 = vmatprep.mubr.bf16.mxu0 0
      %4257 = vmatmul.mubr.bf16.gmra.mxu0 %v4162
      %v4258 = vpop.f32.mrf.mxu0
      %v4259 = vadd.f32 0.0, %v4258
      %v4260 = vpop.f32.mrf.mxu0
      %v4261 = vpop.f32.mrf.mxu0
      %v4262 = vadd.f32 0.0, %v4261
      %v4263 = vpop.f32.mrf.mxu0
      %4264 = vmatprep.mubr.bf16.mxu0 0
      %4265 = vmatmul.mubr.bf16.gmra.mxu0 %v4164
      %v4266 = vpop.f32.mrf.mxu0
      %v4267 = vadd.f32 0.0, %v4266
      %v4268 = vpop.f32.mrf.mxu0
      %v4269 = vpop.f32.mrf.mxu0
      %v4270 = vadd.f32 0.0, %v4269
      %v4271 = vpop.f32.mrf.mxu0
      %4272 = vmatprep.mubr.bf16.mxu0 0
      %4273 = vmatmul.mubr.bf16.gmra.mxu0 %v4166
      %v4274 = vpop.f32.mrf.mxu0
      %v4275 = vadd.f32 0.0, %v4274
      %v4276 = vpop.f32.mrf.mxu0
      %v4277 = vpop.f32.mrf.mxu0
      %v4278 = vadd.f32 0.0, %v4277
      %v4279 = vpop.f32.mrf.mxu0
      %4280 = vmatprep.mubr.bf16.mxu0 0
      %4281 = vmatmul.mubr.bf16.gmra.mxu0 %v4168
      %v4282 = vpop.f32.mrf.mxu0
      %v4283 = vadd.f32 0.0, %v4282
      %v4284 = vpop.f32.mrf.mxu0
      %v4285 = vpop.f32.mrf.mxu0
      %v4286 = vadd.f32 0.0, %v4285
      %v4287 = vpop.f32.mrf.mxu0
      %4288 = vmatprep.mubr.bf16.mxu0 0
      %4289 = vmatmul.mubr.bf16.gmra.mxu0 %v4170
      %v4290 = vpop.f32.mrf.mxu0
      %v4291 = vadd.f32 0.0, %v4290
      %v4292 = vpop.f32.mrf.mxu0
      %v4293 = vpop.f32.mrf.mxu0
      %v4294 = vadd.f32 0.0, %v4293
      %v4295 = vpop.f32.mrf.mxu0
      %4296 = vdwg.mxu0
      %v4297 = vadd.f32 %v4101, %v4259
      %v4298 = vadd.f32 %v4104, %v4262
      %v4299 = vadd.f32 %v4109, %v4267
      %v4300 = vadd.f32 %v4112, %v4270
      %v4301 = vadd.f32 %v4117, %v4275
      %v4302 = vadd.f32 %v4120, %v4278
      %v4303 = vadd.f32 %v4125, %v4283
      %v4304 = vadd.f32 %v4128, %v4286
      %v4305 = vadd.f32 %v4133, %v4291
      %v4306 = vadd.f32 %v4136, %v4294
      %v4307 = vld [vmem:[%s340 + $0x4] sm:$0xe]
      %v4308 = vld [vmem:[%s340 + $0x8] sm:$0xf]
      %v4309 = vld [vmem:[%s340 + $0xc] sm:$0xf]
      %v4310 = vld [vmem:[%s340 + $0x10] sm:$0xf]
      %v4311 = vld [vmem:[%s340 + $0x14] sm:$0xf]
      %v4312 = vld [vmem:[%s340 + $0x18] sm:$0xf]
      %v4313 = vld [vmem:[%s340 + $0x1c] sm:$0xf]
      %v4314 = vld [vmem:[%s340 + $0x20] sm:$0xf]
      %v4315 = vld [vmem:[%s340 + $0x24] sm:$0xf]
      %v4316 = vld [vmem:[%s340 + $0x28] sm:$0xf]
      %v4317 = vld [vmem:[%s340 + $0x2c] sm:$0x1]
      %s4318 = scalar_lea.vmem %s3, 1344
      %v4319 = vld [vmem:[%s4318] sm:$0xf]
      %v4320 = vld [vmem:[%s4318 + $0x4] sm:$0xf]
      %v4321 = vld [vmem:[%s4318 + $0x8] sm:$0xf]
      %v4322 = vld [vmem:[%s4318 + $0xc] sm:$0xf]
      %v4323 = vld [vmem:[%s4318 + $0x10] sm:$0xf]
      %v4324 = vld [vmem:[%s4318 + $0x14] sm:$0xf]
      %v4325 = vld [vmem:[%s4318 + $0x18] sm:$0xf]
      %v4326 = vld [vmem:[%s4318 + $0x1c] sm:$0xf]
      %v4327 = vld [vmem:[%s4318 + $0x20] sm:$0xf]
      %v4328 = vld [vmem:[%s4318 + $0x24] sm:$0xf]
      %v4329 = vld [vmem:[%s4318 + $0x28] sm:$0xf]
      %v4330 = vld [vmem:[%s4318 + $0x2c] sm:$0xf]
      %v4331 = vld [vmem:[%s4318 + $0x30] sm:$0xf]
      %v4332 = vld [vmem:[%s4318 + $0x34] sm:$0xf]
      %v4333 = vld [vmem:[%s4318 + $0x38] sm:$0xf]
      %v4334 = vld [vmem:[%s4318 + $0x3c] sm:$0xf]
      %v4346 = vunpack.c.l.b16 %v4307
      %v4347 = vunpack.c.l.b16 %v4308
      %v4348 = vunpack.c.l.b16 %v4309
      %v4349 = vunpack.c.l.b16 %v4310
      %v4350 = vunpack.c.l.b16 %v4311
      %v4351 = vunpack.c.l.b16 %v4312
      %v4352 = vunpack.c.l.b16 %v4313
      %v4353 = vunpack.c.l.b16 %v4314
      %v4354 = vunpack.c.l.b16 %v4315
      %v4355 = vunpack.c.l.b16 %v4316
      %v4356 = vunpack.c.l.b16 %v4317
      %v4357 = vpack.c.b16 %v4347, %v4346
      %v4358 = vpack.c.b16 %v4349, %v4348
      %v4359 = vpack.c.b16 %v4351, %v4350
      %v4360 = vpack.c.b16 %v4353, %v4352
      %v4361 = vpack.c.b16 %v4355, %v4354
      %v4362 = vpack.c.b16 %v4356, %v4356
      %v4363 = vrot.slane %v4357, 1
      %v4364 = vrot.slane %v4358, 1
      %v4365 = vsel %vm758, %v4363, %v4364
      %v4366 = vrot.slane %v4359, 1
      %v4367 = vsel %vm758, %v4364, %v4366
      %v4368 = vrot.slane %v4360, 1
      %v4369 = vsel %vm758, %v4366, %v4368
      %v4370 = vrot.slane %v4361, 1
      %v4371 = vsel %vm758, %v4368, %v4370
      %v4372 = vrot.slane %v4362, 1
      %v4373 = vsel %vm758, %v4370, %v4372
      %v4395 = vunpack.c.l.b16 %v4319
      %v4396 = vunpack.c.l.b16 %v4320
      %v4397 = vunpack.c.l.b16 %v4321
      %v4398 = vunpack.c.l.b16 %v4322
      %v4399 = vunpack.c.l.b16 %v4323
      %v4400 = vunpack.c.l.b16 %v4324
      %v4401 = vunpack.c.l.b16 %v4325
      %v4402 = vunpack.c.l.b16 %v4326
      %v4403 = vunpack.c.l.b16 %v4327
      %v4404 = vunpack.c.l.b16 %v4328
      %v4405 = vunpack.c.l.b16 %v4329
      %v4406 = vunpack.c.l.b16 %v4330
      %v4407 = vunpack.c.l.b16 %v4331
      %v4408 = vunpack.c.l.b16 %v4332
      %v4409 = vunpack.c.l.b16 %v4333
      %v4410 = vunpack.c.l.b16 %v4334
      %v4411 = vpack.c.b16 %v4396, %v4395
      %v4412 = vpack.c.b16 %v4398, %v4397
      %v4413 = vpack.c.b16 %v4400, %v4399
      %v4414 = vpack.c.b16 %v4402, %v4401
      %v4415 = vpack.c.b16 %v4404, %v4403
      %v4416 = vpack.c.b16 %v4406, %v4405
      %v4417 = vpack.c.b16 %v4408, %v4407
      %v4418 = vpack.c.b16 %v4410, %v4409
      %4427 = vmatprep.subr.bf16.mxu0 0
      %4428 = vmatpush1.bf16.msra.mxu0 %v4418
      %4429 = vmatprep.subr.bf16.mxu0 0
      %4430 = vmatpush1.bf16.msra.mxu0 %v4417
      %4431 = vmatprep.subr.bf16.mxu0 0
      %4432 = vmatpush1.bf16.msra.mxu0 %v4416
      %4433 = vmatprep.subr.bf16.mxu0 0
      %4434 = vmatpush1.bf16.msra.mxu0 %v4415
      %4435 = vmatprep.subr.bf16.mxu0 0
      %4436 = vmatpush1.bf16.msra.mxu0 %v4414
      %4437 = vmatprep.subr.bf16.mxu0 0
      %4438 = vmatpush1.bf16.msra.mxu0 %v4413
      %4439 = vmatprep.subr.bf16.mxu0 0
      %4440 = vmatpush1.bf16.msra.mxu0 %v4412
      %4441 = vmatprep.subr.bf16.mxu0 0
      %4442 = vmatpush1.bf16.msra.mxu0 %v4411
      %4443 = vmatprep.subr.bf16.mxu0 0
      %4444 = vmatpush2.bf16.msra.mxu0 0
      %4445 = vmatprep.subr.bf16.mxu0 0
      %4446 = vmatpush2.bf16.msra.mxu0 0
      %4447 = vmatprep.subr.bf16.mxu0 0
      %4448 = vmatpush2.bf16.msra.mxu0 0
      %4449 = vmatprep.subr.bf16.mxu0 0
      %4450 = vmatpush2.bf16.msra.mxu0 0
      %4451 = vmatprep.subr.bf16.mxu0 0
      %4452 = vmatpush2.bf16.msra.mxu0 0
      %4453 = vmatprep.subr.bf16.mxu0 0
      %4454 = vmatpush2.bf16.msra.mxu0 0
      %4455 = vmatprep.subr.bf16.mxu0 0
      %4456 = vmatpush2.bf16.msra.mxu0 0
      %4457 = vmatprep.subr.bf16.mxu0 0
      %4458 = vmatpush2.bf16.msra.mxu0 0
      %4459 = vmatprep.mubr.bf16.mxu0 0
      %4460 = vmatmul.mubr.bf16.gmra.mxu0 %v4365
      %v4461 = vpop.f32.mrf.mxu0
      %v4462 = vadd.f32 0.0, %v4461
      %v4463 = vpop.f32.mrf.mxu0
      %v4464 = vpop.f32.mrf.mxu0
      %v4465 = vadd.f32 0.0, %v4464
      %v4466 = vpop.f32.mrf.mxu0
      %4467 = vmatprep.mubr.bf16.mxu0 0
      %4468 = vmatmul.mubr.bf16.gmra.mxu0 %v4367
      %v4469 = vpop.f32.mrf.mxu0
      %v4470 = vadd.f32 0.0, %v4469
      %v4471 = vpop.f32.mrf.mxu0
      %v4472 = vpop.f32.mrf.mxu0
      %v4473 = vadd.f32 0.0, %v4472
      %v4474 = vpop.f32.mrf.mxu0
      %4475 = vmatprep.mubr.bf16.mxu0 0
      %4476 = vmatmul.mubr.bf16.gmra.mxu0 %v4369
      %v4477 = vpop.f32.mrf.mxu0
      %v4478 = vadd.f32 0.0, %v4477
      %v4479 = vpop.f32.mrf.mxu0
      %v4480 = vpop.f32.mrf.mxu0
      %v4481 = vadd.f32 0.0, %v4480
      %v4482 = vpop.f32.mrf.mxu0
      %4483 = vmatprep.mubr.bf16.mxu0 0
      %4484 = vmatmul.mubr.bf16.gmra.mxu0 %v4371
      %v4485 = vpop.f32.mrf.mxu0
      %v4486 = vadd.f32 0.0, %v4485
      %v4487 = vpop.f32.mrf.mxu0
      %v4488 = vpop.f32.mrf.mxu0
      %v4489 = vadd.f32 0.0, %v4488
      %v4490 = vpop.f32.mrf.mxu0
      %4491 = vmatprep.mubr.bf16.mxu0 0
      %4492 = vmatmul.mubr.bf16.gmra.mxu0 %v4373
      %v4493 = vpop.f32.mrf.mxu0
      %v4494 = vadd.f32 0.0, %v4493
      %v4495 = vpop.f32.mrf.mxu0
      %v4496 = vpop.f32.mrf.mxu0
      %v4497 = vadd.f32 0.0, %v4496
      %v4498 = vpop.f32.mrf.mxu0
      %4499 = vdwg.mxu0
      %v4500 = vadd.f32 %v4297, %v4462
      %v4501 = vadd.f32 %v4298, %v4465
      %v4502 = vadd.f32 %v4299, %v4470
      %v4503 = vadd.f32 %v4300, %v4473
      %v4504 = vadd.f32 %v4301, %v4478
      %v4505 = vadd.f32 %v4302, %v4481
      %v4506 = vadd.f32 %v4303, %v4486
      %v4507 = vadd.f32 %v4304, %v4489
      %v4508 = vadd.f32 %v4305, %v4494
      %v4509 = vadd.f32 %v4306, %v4497
      %v4510 = vld [vmem:[%s340 + $0x2c] sm:$0x3]
      %s4511 = scalar_lea.vmem %s3, 1408
      %v4512 = vld [vmem:[%s4511] sm:$0xf]
      %v4513 = vld [vmem:[%s4511 + $0x4] sm:$0xf]
      %v4514 = vld [vmem:[%s4511 + $0x8] sm:$0xf]
      %v4515 = vld [vmem:[%s4511 + $0xc] sm:$0xf]
      %v4516 = vld [vmem:[%s4511 + $0x10] sm:$0xf]
      %v4517 = vld [vmem:[%s4511 + $0x14] sm:$0xf]
      %v4518 = vld [vmem:[%s4511 + $0x18] sm:$0xf]
      %v4519 = vld [vmem:[%s4511 + $0x1c] sm:$0xf]
      %v4520 = vld [vmem:[%s4511 + $0x20] sm:$0xf]
      %v4521 = vld [vmem:[%s4511 + $0x24] sm:$0xf]
      %v4522 = vld [vmem:[%s4511 + $0x28] sm:$0xf]
      %v4523 = vld [vmem:[%s4511 + $0x2c] sm:$0xf]
      %v4524 = vld [vmem:[%s4511 + $0x30] sm:$0xf]
      %v4525 = vld [vmem:[%s4511 + $0x34] sm:$0xf]
      %v4526 = vld [vmem:[%s4511 + $0x38] sm:$0xf]
      %v4527 = vld [vmem:[%s4511 + $0x3c] sm:$0xf]
      %v4529 = vunpack.c.l.b16 %v4510
      %v4530 = vpack.c.b16 %v4529, %v4529
      %v4532 = vshrl.u32 %v4357, 16
      %v4534 = vrot.slane %v4532, 1
      %v4535 = vshll.u32 %v4357, 16
      %v4537 = vrot.slane %v4535, 2
      %v4538 = vor.u32 %v4534, %v4537
      %v4540 = vshrl.u32 %v4358, 16
      %v4542 = vrot.slane %v4540, 1
      %v4543 = vshll.u32 %v4358, 16
      %v4545 = vrot.slane %v4543, 2
      %v4546 = vor.u32 %v4542, %v4545
      %v4547 = vsel %vm1130, %v4538, %v4546
      %v4549 = vshrl.u32 %v4359, 16
      %v4551 = vrot.slane %v4549, 1
      %v4552 = vshll.u32 %v4359, 16
      %v4554 = vrot.slane %v4552, 2
      %v4555 = vor.u32 %v4551, %v4554
      %v4556 = vsel %vm1130, %v4546, %v4555
      %v4558 = vshrl.u32 %v4360, 16
      %v4560 = vrot.slane %v4558, 1
      %v4561 = vshll.u32 %v4360, 16
      %v4563 = vrot.slane %v4561, 2
      %v4564 = vor.u32 %v4560, %v4563
      %v4565 = vsel %vm1130, %v4555, %v4564
      %v4567 = vshrl.u32 %v4361, 16
      %v4569 = vrot.slane %v4567, 1
      %v4570 = vshll.u32 %v4361, 16
      %v4572 = vrot.slane %v4570, 2
      %v4573 = vor.u32 %v4569, %v4572
      %v4574 = vsel %vm1130, %v4564, %v4573
      %v4576 = vshrl.u32 %v4530, 16
      %v4578 = vrot.slane %v4576, 1
      %v4579 = vshll.u32 %v4530, 16
      %v4581 = vrot.slane %v4579, 2
      %v4582 = vor.u32 %v4578, %v4581
      %v4583 = vsel %vm1130, %v4573, %v4582
      %v4605 = vunpack.c.l.b16 %v4512
      %v4606 = vunpack.c.l.b16 %v4513
      %v4607 = vunpack.c.l.b16 %v4514
      %v4608 = vunpack.c.l.b16 %v4515
      %v4609 = vunpack.c.l.b16 %v4516
      %v4610 = vunpack.c.l.b16 %v4517
      %v4611 = vunpack.c.l.b16 %v4518
      %v4612 = vunpack.c.l.b16 %v4519
      %v4613 = vunpack.c.l.b16 %v4520
      %v4614 = vunpack.c.l.b16 %v4521
      %v4615 = vunpack.c.l.b16 %v4522
      %v4616 = vunpack.c.l.b16 %v4523
      %v4617 = vunpack.c.l.b16 %v4524
      %v4618 = vunpack.c.l.b16 %v4525
      %v4619 = vunpack.c.l.b16 %v4526
      %v4620 = vunpack.c.l.b16 %v4527
      %v4621 = vpack.c.b16 %v4606, %v4605
      %v4622 = vpack.c.b16 %v4608, %v4607
      %v4623 = vpack.c.b16 %v4610, %v4609
      %v4624 = vpack.c.b16 %v4612, %v4611
      %v4625 = vpack.c.b16 %v4614, %v4613
      %v4626 = vpack.c.b16 %v4616, %v4615
      %v4627 = vpack.c.b16 %v4618, %v4617
      %v4628 = vpack.c.b16 %v4620, %v4619
      %4637 = vmatprep.subr.bf16.mxu0 0
      %4638 = vmatpush1.bf16.msra.mxu0 %v4628
      %4639 = vmatprep.subr.bf16.mxu0 0
      %4640 = vmatpush1.bf16.msra.mxu0 %v4627
      %4641 = vmatprep.subr.bf16.mxu0 0
      %4642 = vmatpush1.bf16.msra.mxu0 %v4626
      %4643 = vmatprep.subr.bf16.mxu0 0
      %4644 = vmatpush1.bf16.msra.mxu0 %v4625
      %4645 = vmatprep.subr.bf16.mxu0 0
      %4646 = vmatpush1.bf16.msra.mxu0 %v4624
      %4647 = vmatprep.subr.bf16.mxu0 0
      %4648 = vmatpush1.bf16.msra.mxu0 %v4623
      %4649 = vmatprep.subr.bf16.mxu0 0
      %4650 = vmatpush1.bf16.msra.mxu0 %v4622
      %4651 = vmatprep.subr.bf16.mxu0 0
      %4652 = vmatpush1.bf16.msra.mxu0 %v4621
      %4653 = vmatprep.subr.bf16.mxu0 0
      %4654 = vmatpush2.bf16.msra.mxu0 0
      %4655 = vmatprep.subr.bf16.mxu0 0
      %4656 = vmatpush2.bf16.msra.mxu0 0
      %4657 = vmatprep.subr.bf16.mxu0 0
      %4658 = vmatpush2.bf16.msra.mxu0 0
      %4659 = vmatprep.subr.bf16.mxu0 0
      %4660 = vmatpush2.bf16.msra.mxu0 0
      %4661 = vmatprep.subr.bf16.mxu0 0
      %4662 = vmatpush2.bf16.msra.mxu0 0
      %4663 = vmatprep.subr.bf16.mxu0 0
      %4664 = vmatpush2.bf16.msra.mxu0 0
      %4665 = vmatprep.subr.bf16.mxu0 0
      %4666 = vmatpush2.bf16.msra.mxu0 0
      %4667 = vmatprep.subr.bf16.mxu0 0
      %4668 = vmatpush2.bf16.msra.mxu0 0
      %4669 = vmatprep.mubr.bf16.mxu0 0
      %4670 = vmatmul.mubr.bf16.gmra.mxu0 %v4547
      %v4671 = vpop.f32.mrf.mxu0
      %v4672 = vadd.f32 0.0, %v4671
      %v4673 = vpop.f32.mrf.mxu0
      %v4674 = vpop.f32.mrf.mxu0
      %v4675 = vadd.f32 0.0, %v4674
      %v4676 = vpop.f32.mrf.mxu0
      %4677 = vmatprep.mubr.bf16.mxu0 0
      %4678 = vmatmul.mubr.bf16.gmra.mxu0 %v4556
      %v4679 = vpop.f32.mrf.mxu0
      %v4680 = vadd.f32 0.0, %v4679
      %v4681 = vpop.f32.mrf.mxu0
      %v4682 = vpop.f32.mrf.mxu0
      %v4683 = vadd.f32 0.0, %v4682
      %v4684 = vpop.f32.mrf.mxu0
      %4685 = vmatprep.mubr.bf16.mxu0 0
      %4686 = vmatmul.mubr.bf16.gmra.mxu0 %v4565
      %v4687 = vpop.f32.mrf.mxu0
      %v4688 = vadd.f32 0.0, %v4687
      %v4689 = vpop.f32.mrf.mxu0
      %v4690 = vpop.f32.mrf.mxu0
      %v4691 = vadd.f32 0.0, %v4690
      %v4692 = vpop.f32.mrf.mxu0
      %4693 = vmatprep.mubr.bf16.mxu0 0
      %4694 = vmatmul.mubr.bf16.gmra.mxu0 %v4574
      %v4695 = vpop.f32.mrf.mxu0
      %v4696 = vadd.f32 0.0, %v4695
      %v4697 = vpop.f32.mrf.mxu0
      %v4698 = vpop.f32.mrf.mxu0
      %v4699 = vadd.f32 0.0, %v4698
      %v4700 = vpop.f32.mrf.mxu0
      %4701 = vmatprep.mubr.bf16.mxu0 0
      %4702 = vmatmul.mubr.bf16.gmra.mxu0 %v4583
      %v4703 = vpop.f32.mrf.mxu0
      %v4704 = vadd.f32 0.0, %v4703
      %v4705 = vpop.f32.mrf.mxu0
      %v4706 = vpop.f32.mrf.mxu0
      %v4707 = vadd.f32 0.0, %v4706
      %v4708 = vpop.f32.mrf.mxu0
      %4709 = vdwg.mxu0
      %v4710 = vadd.f32 %v4500, %v4672
      %v4711 = vadd.f32 %v4501, %v4675
      %v4712 = vadd.f32 %v4502, %v4680
      %v4713 = vadd.f32 %v4503, %v4683
      %v4714 = vadd.f32 %v4504, %v4688
      %v4715 = vadd.f32 %v4505, %v4691
      %v4716 = vadd.f32 %v4506, %v4696
      %v4717 = vadd.f32 %v4507, %v4699
      %v4718 = vadd.f32 %v4508, %v4704
      %v4719 = vadd.f32 %v4509, %v4707
      %v4720 = vld [vmem:[%s340 + $0x4] sm:$0xc]
      %s4721 = scalar_lea.vmem %s3, 1472
      %v4722 = vld [vmem:[%s4721] sm:$0xf]
      %v4723 = vld [vmem:[%s4721 + $0x4] sm:$0xf]
      %v4724 = vld [vmem:[%s4721 + $0x8] sm:$0xf]
      %v4725 = vld [vmem:[%s4721 + $0xc] sm:$0xf]
      %v4726 = vld [vmem:[%s4721 + $0x10] sm:$0xf]
      %v4727 = vld [vmem:[%s4721 + $0x14] sm:$0xf]
      %v4728 = vld [vmem:[%s4721 + $0x18] sm:$0xf]
      %v4729 = vld [vmem:[%s4721 + $0x1c] sm:$0xf]
      %v4730 = vld [vmem:[%s4721 + $0x20] sm:$0xf]
      %v4731 = vld [vmem:[%s4721 + $0x24] sm:$0xf]
      %v4732 = vld [vmem:[%s4721 + $0x28] sm:$0xf]
      %v4733 = vld [vmem:[%s4721 + $0x2c] sm:$0xf]
      %v4734 = vld [vmem:[%s4721 + $0x30] sm:$0xf]
      %v4735 = vld [vmem:[%s4721 + $0x34] sm:$0xf]
      %v4736 = vld [vmem:[%s4721 + $0x38] sm:$0xf]
      %v4737 = vld [vmem:[%s4721 + $0x3c] sm:$0xf]
      %v4739 = vunpack.c.l.b16 %v4720
      %v4740 = vpack.c.b16 %v4347, %v4739
      %v4741 = vrot.slane %v4740, 2
      %v4742 = vrot.slane %v4358, 2
      %v4743 = vsel %vm1341, %v4741, %v4742
      %v4744 = vrot.slane %v4359, 2
      %v4745 = vsel %vm1341, %v4742, %v4744
      %v4746 = vrot.slane %v4360, 2
      %v4747 = vsel %vm1341, %v4744, %v4746
      %v4748 = vrot.slane %v4361, 2
      %v4749 = vsel %vm1341, %v4746, %v4748
      %v4750 = vrot.slane %v4530, 2
      %v4751 = vsel %vm1341, %v4748, %v4750
      %v4773 = vunpack.c.l.b16 %v4722
      %v4774 = vunpack.c.l.b16 %v4723
      %v4775 = vunpack.c.l.b16 %v4724
      %v4776 = vunpack.c.l.b16 %v4725
      %v4777 = vunpack.c.l.b16 %v4726
      %v4778 = vunpack.c.l.b16 %v4727
      %v4779 = vunpack.c.l.b16 %v4728
      %v4780 = vunpack.c.l.b16 %v4729
      %v4781 = vunpack.c.l.b16 %v4730
      %v4782 = vunpack.c.l.b16 %v4731
      %v4783 = vunpack.c.l.b16 %v4732
      %v4784 = vunpack.c.l.b16 %v4733
      %v4785 = vunpack.c.l.b16 %v4734
      %v4786 = vunpack.c.l.b16 %v4735
      %v4787 = vunpack.c.l.b16 %v4736
      %v4788 = vunpack.c.l.b16 %v4737
      %v4789 = vpack.c.b16 %v4774, %v4773
      %v4790 = vpack.c.b16 %v4776, %v4775
      %v4791 = vpack.c.b16 %v4778, %v4777
      %v4792 = vpack.c.b16 %v4780, %v4779
      %v4793 = vpack.c.b16 %v4782, %v4781
      %v4794 = vpack.c.b16 %v4784, %v4783
      %v4795 = vpack.c.b16 %v4786, %v4785
      %v4796 = vpack.c.b16 %v4788, %v4787
      %4805 = vmatprep.subr.bf16.mxu0 0
      %4806 = vmatpush1.bf16.msra.mxu0 %v4796
      %4807 = vmatprep.subr.bf16.mxu0 0
      %4808 = vmatpush1.bf16.msra.mxu0 %v4795
      %4809 = vmatprep.subr.bf16.mxu0 0
      %4810 = vmatpush1.bf16.msra.mxu0 %v4794
      %4811 = vmatprep.subr.bf16.mxu0 0
      %4812 = vmatpush1.bf16.msra.mxu0 %v4793
      %4813 = vmatprep.subr.bf16.mxu0 0
      %4814 = vmatpush1.bf16.msra.mxu0 %v4792
      %4815 = vmatprep.subr.bf16.mxu0 0
      %4816 = vmatpush1.bf16.msra.mxu0 %v4791
      %4817 = vmatprep.subr.bf16.mxu0 0
      %4818 = vmatpush1.bf16.msra.mxu0 %v4790
      %4819 = vmatprep.subr.bf16.mxu0 0
      %4820 = vmatpush1.bf16.msra.mxu0 %v4789
      %4821 = vmatprep.subr.bf16.mxu0 0
      %4822 = vmatpush2.bf16.msra.mxu0 0
      %4823 = vmatprep.subr.bf16.mxu0 0
      %4824 = vmatpush2.bf16.msra.mxu0 0
      %4825 = vmatprep.subr.bf16.mxu0 0
      %4826 = vmatpush2.bf16.msra.mxu0 0
      %4827 = vmatprep.subr.bf16.mxu0 0
      %4828 = vmatpush2.bf16.msra.mxu0 0
      %4829 = vmatprep.subr.bf16.mxu0 0
      %4830 = vmatpush2.bf16.msra.mxu0 0
      %4831 = vmatprep.subr.bf16.mxu0 0
      %4832 = vmatpush2.bf16.msra.mxu0 0
      %4833 = vmatprep.subr.bf16.mxu0 0
      %4834 = vmatpush2.bf16.msra.mxu0 0
      %4835 = vmatprep.subr.bf16.mxu0 0
      %4836 = vmatpush2.bf16.msra.mxu0 0
      %4837 = vmatprep.mubr.bf16.mxu0 0
      %4838 = vmatmul.mubr.bf16.gmra.mxu0 %v4743
      %v4839 = vpop.f32.mrf.mxu0
      %v4840 = vadd.f32 0.0, %v4839
      %v4841 = vpop.f32.mrf.mxu0
      %v4842 = vpop.f32.mrf.mxu0
      %v4843 = vadd.f32 0.0, %v4842
      %v4844 = vpop.f32.mrf.mxu0
      %4845 = vmatprep.mubr.bf16.mxu0 0
      %4846 = vmatmul.mubr.bf16.gmra.mxu0 %v4745
      %v4847 = vpop.f32.mrf.mxu0
      %v4848 = vadd.f32 0.0, %v4847
      %v4849 = vpop.f32.mrf.mxu0
      %v4850 = vpop.f32.mrf.mxu0
      %v4851 = vadd.f32 0.0, %v4850
      %v4852 = vpop.f32.mrf.mxu0
      %4853 = vmatprep.mubr.bf16.mxu0 0
      %4854 = vmatmul.mubr.bf16.gmra.mxu0 %v4747
      %v4855 = vpop.f32.mrf.mxu0
      %v4856 = vadd.f32 0.0, %v4855
      %v4857 = vpop.f32.mrf.mxu0
      %v4858 = vpop.f32.mrf.mxu0
      %v4859 = vadd.f32 0.0, %v4858
      %v4860 = vpop.f32.mrf.mxu0
      %4861 = vmatprep.mubr.bf16.mxu0 0
      %4862 = vmatmul.mubr.bf16.gmra.mxu0 %v4749
      %v4863 = vpop.f32.mrf.mxu0
      %v4864 = vadd.f32 0.0, %v4863
      %v4865 = vpop.f32.mrf.mxu0
      %v4866 = vpop.f32.mrf.mxu0
      %v4867 = vadd.f32 0.0, %v4866
      %v4868 = vpop.f32.mrf.mxu0
      %4869 = vmatprep.mubr.bf16.mxu0 0
      %4870 = vmatmul.mubr.bf16.gmra.mxu0 %v4751
      %v4871 = vpop.f32.mrf.mxu0
      %v4872 = vadd.f32 0.0, %v4871
      %v4873 = vpop.f32.mrf.mxu0
      %v4874 = vpop.f32.mrf.mxu0
      %v4875 = vadd.f32 0.0, %v4874
      %v4876 = vpop.f32.mrf.mxu0
      %4877 = vdwg.mxu0
      %v4878 = vadd.f32 %v4710, %v4840
      %v4879 = vadd.f32 %v4711, %v4843
      %v4880 = vadd.f32 %v4712, %v4848
      %v4881 = vadd.f32 %v4713, %v4851
      %v4882 = vadd.f32 %v4714, %v4856
      %v4883 = vadd.f32 %v4715, %v4859
      %v4884 = vadd.f32 %v4716, %v4864
      %v4885 = vadd.f32 %v4717, %v4867
      %v4886 = vadd.f32 %v4718, %v4872
      %v4887 = vadd.f32 %v4719, %v4875
      %v4888 = vld [vmem:[%s340 + $0x8] sm:$0xc]
      %v4889 = vld [vmem:[%s340 + $0xc] sm:$0xf]
      %v4890 = vld [vmem:[%s340 + $0x10] sm:$0xf]
      %v4891 = vld [vmem:[%s340 + $0x14] sm:$0xf]
      %v4892 = vld [vmem:[%s340 + $0x18] sm:$0xf]
      %v4893 = vld [vmem:[%s340 + $0x1c] sm:$0xf]
      %v4894 = vld [vmem:[%s340 + $0x20] sm:$0xf]
      %v4895 = vld [vmem:[%s340 + $0x24] sm:$0xf]
      %v4896 = vld [vmem:[%s340 + $0x28] sm:$0xf]
      %v4897 = vld [vmem:[%s340 + $0x2c] sm:$0xf]
      %v4898 = vld [vmem:[%s340 + $0x30] sm:$0x3]
      %s4899 = scalar_lea.vmem %s3, 1536
      %v4900 = vld [vmem:[%s4899] sm:$0xf]
      %v4901 = vld [vmem:[%s4899 + $0x4] sm:$0xf]
      %v4902 = vld [vmem:[%s4899 + $0x8] sm:$0xf]
      %v4903 = vld [vmem:[%s4899 + $0xc] sm:$0xf]
      %v4904 = vld [vmem:[%s4899 + $0x10] sm:$0xf]
      %v4905 = vld [vmem:[%s4899 + $0x14] sm:$0xf]
      %v4906 = vld [vmem:[%s4899 + $0x18] sm:$0xf]
      %v4907 = vld [vmem:[%s4899 + $0x1c] sm:$0xf]
      %v4908 = vld [vmem:[%s4899 + $0x20] sm:$0xf]
      %v4909 = vld [vmem:[%s4899 + $0x24] sm:$0xf]
      %v4910 = vld [vmem:[%s4899 + $0x28] sm:$0xf]
      %v4911 = vld [vmem:[%s4899 + $0x2c] sm:$0xf]
      %v4912 = vld [vmem:[%s4899 + $0x30] sm:$0xf]
      %v4913 = vld [vmem:[%s4899 + $0x34] sm:$0xf]
      %v4914 = vld [vmem:[%s4899 + $0x38] sm:$0xf]
      %v4915 = vld [vmem:[%s4899 + $0x3c] sm:$0xf]
      %v4927 = vunpack.c.l.b16 %v4888
      %v4928 = vunpack.c.l.b16 %v4889
      %v4929 = vunpack.c.l.b16 %v4890
      %v4930 = vunpack.c.l.b16 %v4891
      %v4931 = vunpack.c.l.b16 %v4892
      %v4932 = vunpack.c.l.b16 %v4893
      %v4933 = vunpack.c.l.b16 %v4894
      %v4934 = vunpack.c.l.b16 %v4895
      %v4935 = vunpack.c.l.b16 %v4896
      %v4936 = vunpack.c.l.b16 %v4897
      %v4937 = vunpack.c.l.b16 %v4898
      %v4938 = vpack.c.b16 %v4928, %v4927
      %v4939 = vpack.c.b16 %v4930, %v4929
      %v4940 = vpack.c.b16 %v4932, %v4931
      %v4941 = vpack.c.b16 %v4934, %v4933
      %v4942 = vpack.c.b16 %v4936, %v4935
      %v4943 = vpack.c.b16 %v4937, %v4937
      %v4944 = vrot.slane %v4938, 2
      %v4945 = vrot.slane %v4939, 2
      %v4946 = vsel %vm1341, %v4944, %v4945
      %v4947 = vrot.slane %v4940, 2
      %v4948 = vsel %vm1341, %v4945, %v4947
      %v4949 = vrot.slane %v4941, 2
      %v4950 = vsel %vm1341, %v4947, %v4949
      %v4951 = vrot.slane %v4942, 2
      %v4952 = vsel %vm1341, %v4949, %v4951
      %v4953 = vrot.slane %v4943, 2
      %v4954 = vsel %vm1341, %v4951, %v4953
      %v4976 = vunpack.c.l.b16 %v4900
      %v4977 = vunpack.c.l.b16 %v4901
      %v4978 = vunpack.c.l.b16 %v4902
      %v4979 = vunpack.c.l.b16 %v4903
      %v4980 = vunpack.c.l.b16 %v4904
      %v4981 = vunpack.c.l.b16 %v4905
      %v4982 = vunpack.c.l.b16 %v4906
      %v4983 = vunpack.c.l.b16 %v4907
      %v4984 = vunpack.c.l.b16 %v4908
      %v4985 = vunpack.c.l.b16 %v4909
      %v4986 = vunpack.c.l.b16 %v4910
      %v4987 = vunpack.c.l.b16 %v4911
      %v4988 = vunpack.c.l.b16 %v4912
      %v4989 = vunpack.c.l.b16 %v4913
      %v4990 = vunpack.c.l.b16 %v4914
      %v4991 = vunpack.c.l.b16 %v4915
      %v4992 = vpack.c.b16 %v4977, %v4976
      %v4993 = vpack.c.b16 %v4979, %v4978
      %v4994 = vpack.c.b16 %v4981, %v4980
      %v4995 = vpack.c.b16 %v4983, %v4982
      %v4996 = vpack.c.b16 %v4985, %v4984
      %v4997 = vpack.c.b16 %v4987, %v4986
      %v4998 = vpack.c.b16 %v4989, %v4988
      %v4999 = vpack.c.b16 %v4991, %v4990
      %5008 = vmatprep.subr.bf16.mxu0 0
      %5009 = vmatpush1.bf16.msra.mxu0 %v4999
      %5010 = vmatprep.subr.bf16.mxu0 0
      %5011 = vmatpush1.bf16.msra.mxu0 %v4998
      %5012 = vmatprep.subr.bf16.mxu0 0
      %5013 = vmatpush1.bf16.msra.mxu0 %v4997
      %5014 = vmatprep.subr.bf16.mxu0 0
      %5015 = vmatpush1.bf16.msra.mxu0 %v4996
      %5016 = vmatprep.subr.bf16.mxu0 0
      %5017 = vmatpush1.bf16.msra.mxu0 %v4995
      %5018 = vmatprep.subr.bf16.mxu0 0
      %5019 = vmatpush1.bf16.msra.mxu0 %v4994
      %5020 = vmatprep.subr.bf16.mxu0 0
      %5021 = vmatpush1.bf16.msra.mxu0 %v4993
      %5022 = vmatprep.subr.bf16.mxu0 0
      %5023 = vmatpush1.bf16.msra.mxu0 %v4992
      %5024 = vmatprep.subr.bf16.mxu0 0
      %5025 = vmatpush2.bf16.msra.mxu0 0
      %5026 = vmatprep.subr.bf16.mxu0 0
      %5027 = vmatpush2.bf16.msra.mxu0 0
      %5028 = vmatprep.subr.bf16.mxu0 0
      %5029 = vmatpush2.bf16.msra.mxu0 0
      %5030 = vmatprep.subr.bf16.mxu0 0
      %5031 = vmatpush2.bf16.msra.mxu0 0
      %5032 = vmatprep.subr.bf16.mxu0 0
      %5033 = vmatpush2.bf16.msra.mxu0 0
      %5034 = vmatprep.subr.bf16.mxu0 0
      %5035 = vmatpush2.bf16.msra.mxu0 0
      %5036 = vmatprep.subr.bf16.mxu0 0
      %5037 = vmatpush2.bf16.msra.mxu0 0
      %5038 = vmatprep.subr.bf16.mxu0 0
      %5039 = vmatpush2.bf16.msra.mxu0 0
      %5040 = vmatprep.mubr.bf16.mxu0 0
      %5041 = vmatmul.mubr.bf16.gmra.mxu0 %v4946
      %v5042 = vpop.f32.mrf.mxu0
      %v5043 = vadd.f32 0.0, %v5042
      %v5044 = vpop.f32.mrf.mxu0
      %v5045 = vpop.f32.mrf.mxu0
      %v5046 = vadd.f32 0.0, %v5045
      %v5047 = vpop.f32.mrf.mxu0
      %5048 = vmatprep.mubr.bf16.mxu0 0
      %5049 = vmatmul.mubr.bf16.gmra.mxu0 %v4948
      %v5050 = vpop.f32.mrf.mxu0
      %v5051 = vadd.f32 0.0, %v5050
      %v5052 = vpop.f32.mrf.mxu0
      %v5053 = vpop.f32.mrf.mxu0
      %v5054 = vadd.f32 0.0, %v5053
      %v5055 = vpop.f32.mrf.mxu0
      %5056 = vmatprep.mubr.bf16.mxu0 0
      %5057 = vmatmul.mubr.bf16.gmra.mxu0 %v4950
      %v5058 = vpop.f32.mrf.mxu0
      %v5059 = vadd.f32 0.0, %v5058
      %v5060 = vpop.f32.mrf.mxu0
      %v5061 = vpop.f32.mrf.mxu0
      %v5062 = vadd.f32 0.0, %v5061
      %v5063 = vpop.f32.mrf.mxu0
      %5064 = vmatprep.mubr.bf16.mxu0 0
      %5065 = vmatmul.mubr.bf16.gmra.mxu0 %v4952
      %v5066 = vpop.f32.mrf.mxu0
      %v5067 = vadd.f32 0.0, %v5066
      %v5068 = vpop.f32.mrf.mxu0
      %v5069 = vpop.f32.mrf.mxu0
      %v5070 = vadd.f32 0.0, %v5069
      %v5071 = vpop.f32.mrf.mxu0
      %5072 = vmatprep.mubr.bf16.mxu0 0
      %5073 = vmatmul.mubr.bf16.gmra.mxu0 %v4954
      %v5074 = vpop.f32.mrf.mxu0
      %v5075 = vadd.f32 0.0, %v5074
      %v5076 = vpop.f32.mrf.mxu0
      %v5077 = vpop.f32.mrf.mxu0
      %v5078 = vadd.f32 0.0, %v5077
      %v5079 = vpop.f32.mrf.mxu0
      %5080 = vdwg.mxu0
      %v5081 = vadd.f32 %v4878, %v5043
      %v5082 = vadd.f32 %v4879, %v5046
      %v5083 = vadd.f32 %v4880, %v5051
      %v5084 = vadd.f32 %v4881, %v5054
      %v5085 = vadd.f32 %v4882, %v5059
      %v5086 = vadd.f32 %v4883, %v5062
      %v5087 = vadd.f32 %v4884, %v5067
      %v5088 = vadd.f32 %v4885, %v5070
      %v5089 = vadd.f32 %v4886, %v5075
      %v5090 = vadd.f32 %v4887, %v5078
      %v5091 = vld [vmem:[%s340 + $0x30] sm:$0x7]
      %s5092 = scalar_lea.vmem %s3, 1600
      %v5093 = vld [vmem:[%s5092] sm:$0xf]
      %v5094 = vld [vmem:[%s5092 + $0x4] sm:$0xf]
      %v5095 = vld [vmem:[%s5092 + $0x8] sm:$0xf]
      %v5096 = vld [vmem:[%s5092 + $0xc] sm:$0xf]
      %v5097 = vld [vmem:[%s5092 + $0x10] sm:$0xf]
      %v5098 = vld [vmem:[%s5092 + $0x14] sm:$0xf]
      %v5099 = vld [vmem:[%s5092 + $0x18] sm:$0xf]
      %v5100 = vld [vmem:[%s5092 + $0x1c] sm:$0xf]
      %v5101 = vld [vmem:[%s5092 + $0x20] sm:$0xf]
      %v5102 = vld [vmem:[%s5092 + $0x24] sm:$0xf]
      %v5103 = vld [vmem:[%s5092 + $0x28] sm:$0xf]
      %v5104 = vld [vmem:[%s5092 + $0x2c] sm:$0xf]
      %v5105 = vld [vmem:[%s5092 + $0x30] sm:$0xf]
      %v5106 = vld [vmem:[%s5092 + $0x34] sm:$0xf]
      %v5107 = vld [vmem:[%s5092 + $0x38] sm:$0xf]
      %v5108 = vld [vmem:[%s5092 + $0x3c] sm:$0xf]
      %v5110 = vunpack.c.l.b16 %v5091
      %v5111 = vpack.c.b16 %v5110, %v5110
      %v5113 = vshrl.u32 %v4938, 16
      %v5115 = vrot.slane %v5113, 2
      %v5116 = vshll.u32 %v4938, 16
      %v5118 = vrot.slane %v5116, 3
      %v5119 = vor.u32 %v5115, %v5118
      %v5121 = vshrl.u32 %v4939, 16
      %v5123 = vrot.slane %v5121, 2
      %v5124 = vshll.u32 %v4939, 16
      %v5126 = vrot.slane %v5124, 3
      %v5127 = vor.u32 %v5123, %v5126
      %v5128 = vsel %vm1713, %v5119, %v5127
      %v5130 = vshrl.u32 %v4940, 16
      %v5132 = vrot.slane %v5130, 2
      %v5133 = vshll.u32 %v4940, 16
      %v5135 = vrot.slane %v5133, 3
      %v5136 = vor.u32 %v5132, %v5135
      %v5137 = vsel %vm1713, %v5127, %v5136
      %v5139 = vshrl.u32 %v4941, 16
      %v5141 = vrot.slane %v5139, 2
      %v5142 = vshll.u32 %v4941, 16
      %v5144 = vrot.slane %v5142, 3
      %v5145 = vor.u32 %v5141, %v5144
      %v5146 = vsel %vm1713, %v5136, %v5145
      %v5148 = vshrl.u32 %v4942, 16
      %v5150 = vrot.slane %v5148, 2
      %v5151 = vshll.u32 %v4942, 16
      %v5153 = vrot.slane %v5151, 3
      %v5154 = vor.u32 %v5150, %v5153
      %v5155 = vsel %vm1713, %v5145, %v5154
      %v5157 = vshrl.u32 %v5111, 16
      %v5159 = vrot.slane %v5157, 2
      %v5160 = vshll.u32 %v5111, 16
      %v5162 = vrot.slane %v5160, 3
      %v5163 = vor.u32 %v5159, %v5162
      %v5164 = vsel %vm1713, %v5154, %v5163
      %v5186 = vunpack.c.l.b16 %v5093
      %v5187 = vunpack.c.l.b16 %v5094
      %v5188 = vunpack.c.l.b16 %v5095
      %v5189 = vunpack.c.l.b16 %v5096
      %v5190 = vunpack.c.l.b16 %v5097
      %v5191 = vunpack.c.l.b16 %v5098
      %v5192 = vunpack.c.l.b16 %v5099
      %v5193 = vunpack.c.l.b16 %v5100
      %v5194 = vunpack.c.l.b16 %v5101
      %v5195 = vunpack.c.l.b16 %v5102
      %v5196 = vunpack.c.l.b16 %v5103
      %v5197 = vunpack.c.l.b16 %v5104
      %v5198 = vunpack.c.l.b16 %v5105
      %v5199 = vunpack.c.l.b16 %v5106
      %v5200 = vunpack.c.l.b16 %v5107
      %v5201 = vunpack.c.l.b16 %v5108
      %v5202 = vpack.c.b16 %v5187, %v5186
      %v5203 = vpack.c.b16 %v5189, %v5188
      %v5204 = vpack.c.b16 %v5191, %v5190
      %v5205 = vpack.c.b16 %v5193, %v5192
      %v5206 = vpack.c.b16 %v5195, %v5194
      %v5207 = vpack.c.b16 %v5197, %v5196
      %v5208 = vpack.c.b16 %v5199, %v5198
      %v5209 = vpack.c.b16 %v5201, %v5200
      %5218 = vmatprep.subr.bf16.mxu0 0
      %5219 = vmatpush1.bf16.msra.mxu0 %v5209
      %5220 = vmatprep.subr.bf16.mxu0 0
      %5221 = vmatpush1.bf16.msra.mxu0 %v5208
      %5222 = vmatprep.subr.bf16.mxu0 0
      %5223 = vmatpush1.bf16.msra.mxu0 %v5207
      %5224 = vmatprep.subr.bf16.mxu0 0
      %5225 = vmatpush1.bf16.msra.mxu0 %v5206
      %5226 = vmatprep.subr.bf16.mxu0 0
      %5227 = vmatpush1.bf16.msra.mxu0 %v5205
      %5228 = vmatprep.subr.bf16.mxu0 0
      %5229 = vmatpush1.bf16.msra.mxu0 %v5204
      %5230 = vmatprep.subr.bf16.mxu0 0
      %5231 = vmatpush1.bf16.msra.mxu0 %v5203
      %5232 = vmatprep.subr.bf16.mxu0 0
      %5233 = vmatpush1.bf16.msra.mxu0 %v5202
      %5234 = vmatprep.subr.bf16.mxu0 0
      %5235 = vmatpush2.bf16.msra.mxu0 0
      %5236 = vmatprep.subr.bf16.mxu0 0
      %5237 = vmatpush2.bf16.msra.mxu0 0
      %5238 = vmatprep.subr.bf16.mxu0 0
      %5239 = vmatpush2.bf16.msra.mxu0 0
      %5240 = vmatprep.subr.bf16.mxu0 0
      %5241 = vmatpush2.bf16.msra.mxu0 0
      %5242 = vmatprep.subr.bf16.mxu0 0
      %5243 = vmatpush2.bf16.msra.mxu0 0
      %5244 = vmatprep.subr.bf16.mxu0 0
      %5245 = vmatpush2.bf16.msra.mxu0 0
      %5246 = vmatprep.subr.bf16.mxu0 0
      %5247 = vmatpush2.bf16.msra.mxu0 0
      %5248 = vmatprep.subr.bf16.mxu0 0
      %5249 = vmatpush2.bf16.msra.mxu0 0
      %5250 = vmatprep.mubr.bf16.mxu0 0
      %5251 = vmatmul.mubr.bf16.gmra.mxu0 %v5128
      %v5252 = vpop.f32.mrf.mxu0
      %v5253 = vadd.f32 0.0, %v5252
      %v5254 = vpop.f32.mrf.mxu0
      %v5255 = vpop.f32.mrf.mxu0
      %v5256 = vadd.f32 0.0, %v5255
      %v5257 = vpop.f32.mrf.mxu0
      %5258 = vmatprep.mubr.bf16.mxu0 0
      %5259 = vmatmul.mubr.bf16.gmra.mxu0 %v5137
      %v5260 = vpop.f32.mrf.mxu0
      %v5261 = vadd.f32 0.0, %v5260
      %v5262 = vpop.f32.mrf.mxu0
      %v5263 = vpop.f32.mrf.mxu0
      %v5264 = vadd.f32 0.0, %v5263
      %v5265 = vpop.f32.mrf.mxu0
      %5266 = vmatprep.mubr.bf16.mxu0 0
      %5267 = vmatmul.mubr.bf16.gmra.mxu0 %v5146
      %v5268 = vpop.f32.mrf.mxu0
      %v5269 = vadd.f32 0.0, %v5268
      %v5270 = vpop.f32.mrf.mxu0
      %v5271 = vpop.f32.mrf.mxu0
      %v5272 = vadd.f32 0.0, %v5271
      %v5273 = vpop.f32.mrf.mxu0
      %5274 = vmatprep.mubr.bf16.mxu0 0
      %5275 = vmatmul.mubr.bf16.gmra.mxu0 %v5155
      %v5276 = vpop.f32.mrf.mxu0
      %v5277 = vadd.f32 0.0, %v5276
      %v5278 = vpop.f32.mrf.mxu0
      %v5279 = vpop.f32.mrf.mxu0
      %v5280 = vadd.f32 0.0, %v5279
      %v5281 = vpop.f32.mrf.mxu0
      %5282 = vmatprep.mubr.bf16.mxu0 0
      %5283 = vmatmul.mubr.bf16.gmra.mxu0 %v5164
      %v5284 = vpop.f32.mrf.mxu0
      %v5285 = vadd.f32 0.0, %v5284
      %v5286 = vpop.f32.mrf.mxu0
      %v5287 = vpop.f32.mrf.mxu0
      %v5288 = vadd.f32 0.0, %v5287
      %v5289 = vpop.f32.mrf.mxu0
      %5290 = vdwg.mxu0
      %v5291 = vadd.f32 %v5081, %v5253
      %v5292 = vadd.f32 %v5082, %v5256
      %v5293 = vadd.f32 %v5083, %v5261
      %v5294 = vadd.f32 %v5084, %v5264
      %v5295 = vadd.f32 %v5085, %v5269
      %v5296 = vadd.f32 %v5086, %v5272
      %v5297 = vadd.f32 %v5087, %v5277
      %v5298 = vadd.f32 %v5088, %v5280
      %v5299 = vadd.f32 %v5089, %v5285
      %v5300 = vadd.f32 %v5090, %v5288
      %v5301 = vld [vmem:[%s340 + $0x8] sm:$0x8]
      %s5302 = scalar_lea.vmem %s3, 1664
      %v5303 = vld [vmem:[%s5302] sm:$0xf]
      %v5304 = vld [vmem:[%s5302 + $0x4] sm:$0xf]
      %v5305 = vld [vmem:[%s5302 + $0x8] sm:$0xf]
      %v5306 = vld [vmem:[%s5302 + $0xc] sm:$0xf]
      %v5307 = vld [vmem:[%s5302 + $0x10] sm:$0xf]
      %v5308 = vld [vmem:[%s5302 + $0x14] sm:$0xf]
      %v5309 = vld [vmem:[%s5302 + $0x18] sm:$0xf]
      %v5310 = vld [vmem:[%s5302 + $0x1c] sm:$0xf]
      %v5311 = vld [vmem:[%s5302 + $0x20] sm:$0xf]
      %v5312 = vld [vmem:[%s5302 + $0x24] sm:$0xf]
      %v5313 = vld [vmem:[%s5302 + $0x28] sm:$0xf]
      %v5314 = vld [vmem:[%s5302 + $0x2c] sm:$0xf]
      %v5315 = vld [vmem:[%s5302 + $0x30] sm:$0xf]
      %v5316 = vld [vmem:[%s5302 + $0x34] sm:$0xf]
      %v5317 = vld [vmem:[%s5302 + $0x38] sm:$0xf]
      %v5318 = vld [vmem:[%s5302 + $0x3c] sm:$0xf]
      %v5320 = vunpack.c.l.b16 %v5301
      %v5321 = vpack.c.b16 %v4928, %v5320
      %v5322 = vrot.slane %v5321, 3
      %v5323 = vrot.slane %v4939, 3
      %v5324 = vsel %vm1924, %v5322, %v5323
      %v5325 = vrot.slane %v4940, 3
      %v5326 = vsel %vm1924, %v5323, %v5325
      %v5327 = vrot.slane %v4941, 3
      %v5328 = vsel %vm1924, %v5325, %v5327
      %v5329 = vrot.slane %v4942, 3
      %v5330 = vsel %vm1924, %v5327, %v5329
      %v5331 = vrot.slane %v5111, 3
      %v5332 = vsel %vm1924, %v5329, %v5331
      %v5354 = vunpack.c.l.b16 %v5303
      %v5355 = vunpack.c.l.b16 %v5304
      %v5356 = vunpack.c.l.b16 %v5305
      %v5357 = vunpack.c.l.b16 %v5306
      %v5358 = vunpack.c.l.b16 %v5307
      %v5359 = vunpack.c.l.b16 %v5308
      %v5360 = vunpack.c.l.b16 %v5309
      %v5361 = vunpack.c.l.b16 %v5310
      %v5362 = vunpack.c.l.b16 %v5311
      %v5363 = vunpack.c.l.b16 %v5312
      %v5364 = vunpack.c.l.b16 %v5313
      %v5365 = vunpack.c.l.b16 %v5314
      %v5366 = vunpack.c.l.b16 %v5315
      %v5367 = vunpack.c.l.b16 %v5316
      %v5368 = vunpack.c.l.b16 %v5317
      %v5369 = vunpack.c.l.b16 %v5318
      %v5370 = vpack.c.b16 %v5355, %v5354
      %v5371 = vpack.c.b16 %v5357, %v5356
      %v5372 = vpack.c.b16 %v5359, %v5358
      %v5373 = vpack.c.b16 %v5361, %v5360
      %v5374 = vpack.c.b16 %v5363, %v5362
      %v5375 = vpack.c.b16 %v5365, %v5364
      %v5376 = vpack.c.b16 %v5367, %v5366
      %v5377 = vpack.c.b16 %v5369, %v5368
      %5386 = vmatprep.subr.bf16.mxu0 0
      %5387 = vmatpush1.bf16.msra.mxu0 %v5377
      %5388 = vmatprep.subr.bf16.mxu0 0
      %5389 = vmatpush1.bf16.msra.mxu0 %v5376
      %5390 = vmatprep.subr.bf16.mxu0 0
      %5391 = vmatpush1.bf16.msra.mxu0 %v5375
      %5392 = vmatprep.subr.bf16.mxu0 0
      %5393 = vmatpush1.bf16.msra.mxu0 %v5374
      %5394 = vmatprep.subr.bf16.mxu0 0
      %5395 = vmatpush1.bf16.msra.mxu0 %v5373
      %5396 = vmatprep.subr.bf16.mxu0 0
      %5397 = vmatpush1.bf16.msra.mxu0 %v5372
      %5398 = vmatprep.subr.bf16.mxu0 0
      %5399 = vmatpush1.bf16.msra.mxu0 %v5371
      %5400 = vmatprep.subr.bf16.mxu0 0
      %5401 = vmatpush1.bf16.msra.mxu0 %v5370
      %5402 = vmatprep.subr.bf16.mxu0 0
      %5403 = vmatpush2.bf16.msra.mxu0 0
      %5404 = vmatprep.subr.bf16.mxu0 0
      %5405 = vmatpush2.bf16.msra.mxu0 0
      %5406 = vmatprep.subr.bf16.mxu0 0
      %5407 = vmatpush2.bf16.msra.mxu0 0
      %5408 = vmatprep.subr.bf16.mxu0 0
      %5409 = vmatpush2.bf16.msra.mxu0 0
      %5410 = vmatprep.subr.bf16.mxu0 0
      %5411 = vmatpush2.bf16.msra.mxu0 0
      %5412 = vmatprep.subr.bf16.mxu0 0
      %5413 = vmatpush2.bf16.msra.mxu0 0
      %5414 = vmatprep.subr.bf16.mxu0 0
      %5415 = vmatpush2.bf16.msra.mxu0 0
      %5416 = vmatprep.subr.bf16.mxu0 0
      %5417 = vmatpush2.bf16.msra.mxu0 0
      %5418 = vmatprep.mubr.bf16.mxu0 0
      %5419 = vmatmul.mubr.bf16.gmra.mxu0 %v5324
      %v5420 = vpop.f32.mrf.mxu0
      %v5421 = vadd.f32 0.0, %v5420
      %v5422 = vpop.f32.mrf.mxu0
      %v5423 = vpop.f32.mrf.mxu0
      %v5424 = vadd.f32 0.0, %v5423
      %v5425 = vpop.f32.mrf.mxu0
      %5426 = vmatprep.mubr.bf16.mxu0 0
      %5427 = vmatmul.mubr.bf16.gmra.mxu0 %v5326
      %v5428 = vpop.f32.mrf.mxu0
      %v5429 = vadd.f32 0.0, %v5428
      %v5430 = vpop.f32.mrf.mxu0
      %v5431 = vpop.f32.mrf.mxu0
      %v5432 = vadd.f32 0.0, %v5431
      %v5433 = vpop.f32.mrf.mxu0
      %5434 = vmatprep.mubr.bf16.mxu0 0
      %5435 = vmatmul.mubr.bf16.gmra.mxu0 %v5328
      %v5436 = vpop.f32.mrf.mxu0
      %v5437 = vadd.f32 0.0, %v5436
      %v5438 = vpop.f32.mrf.mxu0
      %v5439 = vpop.f32.mrf.mxu0
      %v5440 = vadd.f32 0.0, %v5439
      %v5441 = vpop.f32.mrf.mxu0
      %5442 = vmatprep.mubr.bf16.mxu0 0
      %5443 = vmatmul.mubr.bf16.gmra.mxu0 %v5330
      %v5444 = vpop.f32.mrf.mxu0
      %v5445 = vadd.f32 0.0, %v5444
      %v5446 = vpop.f32.mrf.mxu0
      %v5447 = vpop.f32.mrf.mxu0
      %v5448 = vadd.f32 0.0, %v5447
      %v5449 = vpop.f32.mrf.mxu0
      %5450 = vmatprep.mubr.bf16.mxu0 0
      %5451 = vmatmul.mubr.bf16.gmra.mxu0 %v5332
      %v5452 = vpop.f32.mrf.mxu0
      %v5453 = vadd.f32 0.0, %v5452
      %v5454 = vpop.f32.mrf.mxu0
      %v5455 = vpop.f32.mrf.mxu0
      %v5456 = vadd.f32 0.0, %v5455
      %v5457 = vpop.f32.mrf.mxu0
      %5458 = vdwg.mxu0
      %v5459 = vadd.f32 %v5291, %v5421
      %v5460 = vadd.f32 %v5292, %v5424
      %v5461 = vadd.f32 %v5293, %v5429
      %v5462 = vadd.f32 %v5294, %v5432
      %v5463 = vadd.f32 %v5295, %v5437
      %v5464 = vadd.f32 %v5296, %v5440
      %v5465 = vadd.f32 %v5297, %v5445
      %v5466 = vadd.f32 %v5298, %v5448
      %v5467 = vadd.f32 %v5299, %v5453
      %v5468 = vadd.f32 %v5300, %v5456
      %p5469 = scmp.eq.s32.totalorder %s366, 0
      %s5470 = scalar_select %p5469, 1, 0
      %v5471 = vstv %s5470
      %vm5472 = vcmp.eq.s32.totalorder %v5471, 1
      %v5473 = vsel %vm5472, 0.0, %v3760
      %v5474 = vsel %vm5472, 0.0, %v3761
      %v5475 = vsel %vm5472, 0.0, %v3762
      %v5476 = vsel %vm5472, 0.0, %v3763
      %v5477 = vsel %vm5472, 0.0, %v3764
      %v5478 = vsel %vm5472, 0.0, %v3765
      %v5479 = vsel %vm5472, 0.0, %v3766
      %v5480 = vsel %vm5472, 0.0, %v3767
      %v5481 = vsel %vm5472, 0.0, %v3768
      %v5482 = vsel %vm5472, 0.0, %v3769
      %v5483 = vadd.f32 %v2062, %v5473
      %v5484 = vadd.f32 %v2063, %v5474
      %v5485 = vadd.f32 %v2064, %v5475
      %v5486 = vadd.f32 %v2065, %v5476
      %v5487 = vadd.f32 %v2066, %v5477
      %v5488 = vadd.f32 %v2067, %v5478
      %v5489 = vadd.f32 %v2068, %v5479
      %v5490 = vadd.f32 %v2069, %v5480
      %v5491 = vadd.f32 %v2070, %v5481
      %v5492 = vadd.f32 %v2071, %v5482
      %p5493 = scmp.eq.s32.totalorder %s366, 7
      %s5494 = scalar_select %p5493, 1, 0
      %v5495 = vstv %s5494
      %vm5496 = vcmp.eq.s32.totalorder %v5495, 1
      %v5497 = vsel %vm5496, 0.0, %v5459
      %v5498 = vsel %vm5496, 0.0, %v5460
      %v5499 = vsel %vm5496, 0.0, %v5461
      %v5500 = vsel %vm5496, 0.0, %v5462
      %v5501 = vsel %vm5496, 0.0, %v5463
      %v5502 = vsel %vm5496, 0.0, %v5464
      %v5503 = vsel %vm5496, 0.0, %v5465
      %v5504 = vsel %vm5496, 0.0, %v5466
      %v5505 = vsel %vm5496, 0.0, %v5467
      %v5506 = vsel %vm5496, 0.0, %v5468
      %v5507 = vadd.f32 %v5483, %v5497
      %v5508 = vadd.f32 %v5484, %v5498
      %v5509 = vadd.f32 %v5485, %v5499
      %v5510 = vadd.f32 %v5486, %v5500
      %v5511 = vadd.f32 %v5487, %v5501
      %v5512 = vadd.f32 %v5488, %v5502
      %v5513 = vadd.f32 %v5489, %v5503
      %v5514 = vadd.f32 %v5490, %v5504
      %v5515 = vadd.f32 %v5491, %v5505
      %v5516 = vadd.f32 %v5492, %v5506
      %v5517 = vld [vmem:[%s4] sm:$0x1]
      %v5519 = vlaneseq
      %v5520 = vshrl.u32 %v5519, 7
      %v5521 = vsub.s32 0, %v5520
      %v5522 = vrot.slane %v5517, %v5521
      %v5524 = vadd.f32 %v5507, %v5522
      %v5525 = vadd.f32 %v5508, %v5522
      %v5526 = vadd.f32 %v5509, %v5522
      %v5527 = vadd.f32 %v5510, %v5522
      %v5528 = vadd.f32 %v5511, %v5522
      %v5529 = vadd.f32 %v5512, %v5522
      %v5530 = vadd.f32 %v5513, %v5522
      %v5531 = vadd.f32 %v5514, %v5522
      %v5532 = vadd.f32 %v5515, %v5522
      %v5533 = vadd.f32 %v5516, %v5522
      %v5534 = vld [vmem:[%s348 + $0x4] sm:$0xe]
      %v5535 = vld [vmem:[%s348 + $0x8] sm:$0xf]
      %v5536 = vld [vmem:[%s348 + $0xc] sm:$0xf]
      %v5537 = vld [vmem:[%s348 + $0x10] sm:$0xf]
      %v5538 = vld [vmem:[%s348 + $0x14] sm:$0xf]
      %v5539 = vld [vmem:[%s348 + $0x18] sm:$0xf]
      %v5540 = vld [vmem:[%s348 + $0x1c] sm:$0xf]
      %v5541 = vld [vmem:[%s348 + $0x20] sm:$0xf]
      %v5542 = vld [vmem:[%s348 + $0x24] sm:$0xf]
      %v5543 = vld [vmem:[%s348 + $0x28] sm:$0xf]
      %v5544 = vld [vmem:[%s348 + $0x2c] sm:$0x3]
      %v5545 = vunpack.c.l.bf16 %v5534
      %v5546 = vunpack.c.l.bf16 %v5535
      %v5547 = vunpack.c.l.bf16 %v5536
      %v5548 = vunpack.c.l.bf16 %v5537
      %v5549 = vunpack.c.l.bf16 %v5538
      %v5550 = vunpack.c.l.bf16 %v5539
      %v5551 = vunpack.c.l.bf16 %v5540
      %v5552 = vunpack.c.l.bf16 %v5541
      %v5553 = vunpack.c.l.bf16 %v5542
      %v5554 = vunpack.c.l.bf16 %v5543
      %v5555 = vunpack.c.l.bf16 %v5544
      %vm5567 = vcmask 1044480
      %v5568 = vrot.slane %v5545, 3
      %v5569 = vrot.slane %v5546, 3
      %v5570 = vsel %vm5567, %v5568, %v5569
      %v5571 = vrot.slane %v5547, 3
      %v5572 = vsel %vm5567, %v5569, %v5571
      %v5573 = vrot.slane %v5548, 3
      %v5574 = vsel %vm5567, %v5571, %v5573
      %v5575 = vrot.slane %v5549, 3
      %v5576 = vsel %vm5567, %v5573, %v5575
      %v5577 = vrot.slane %v5550, 3
      %v5578 = vsel %vm5567, %v5575, %v5577
      %v5579 = vrot.slane %v5551, 3
      %v5580 = vsel %vm5567, %v5577, %v5579
      %v5581 = vrot.slane %v5552, 3
      %v5582 = vsel %vm5567, %v5579, %v5581
      %v5583 = vrot.slane %v5553, 3
      %v5584 = vsel %vm5567, %v5581, %v5583
      %v5585 = vrot.slane %v5554, 3
      %v5586 = vsel %vm5567, %v5583, %v5585
      %v5587 = vrot.slane %v5555, 3
      %v5588 = vsel %vm5567, %v5585, %v5587
      %v5599 = vadd.f32 %v5524, %v5570
      %v5600 = vadd.f32 %v5525, %v5572
      %v5601 = vadd.f32 %v5526, %v5574
      %v5602 = vadd.f32 %v5527, %v5576
      %v5603 = vadd.f32 %v5528, %v5578
      %v5604 = vadd.f32 %v5529, %v5580
      %v5605 = vadd.f32 %v5530, %v5582
      %v5606 = vadd.f32 %v5531, %v5584
      %v5607 = vadd.f32 %v5532, %v5586
      %v5608 = vadd.f32 %v5533, %v5588
      %v5609 = vmax.f32 %v5599, 0.0
      %v5610 = vmax.f32 %v5600, 0.0
      %v5611 = vmax.f32 %v5601, 0.0
      %v5612 = vmax.f32 %v5602, 0.0
      %v5613 = vmax.f32 %v5603, 0.0
      %v5614 = vmax.f32 %v5604, 0.0
      %v5615 = vmax.f32 %v5605, 0.0
      %v5616 = vmax.f32 %v5606, 0.0
      %v5617 = vmax.f32 %v5607, 0.0
      %v5618 = vmax.f32 %v5608, 0.0
      %v5619 = vpack.c.bf16 %v5610, %v5609
      %v5620 = vpack.c.bf16 %v5612, %v5611
      %v5621 = vpack.c.bf16 %v5614, %v5613
      %v5622 = vpack.c.bf16 %v5616, %v5615
      %v5623 = vpack.c.bf16 %v5618, %v5617
      %v5629 = vunpack.c.l.b16 %v5619
      %v5630 = vunpack.c.h.b16 %v5619
      %v5631 = vunpack.c.l.b16 %v5620
      %v5632 = vunpack.c.h.b16 %v5620
      %v5633 = vunpack.c.l.b16 %v5621
      %v5634 = vunpack.c.h.b16 %v5621
      %v5635 = vunpack.c.l.b16 %v5622
      %v5636 = vunpack.c.h.b16 %v5622
      %v5637 = vunpack.c.l.b16 %v5623
      %v5638 = vunpack.c.h.b16 %v5623
      %v5639 = vpack.c.b16 %v5629, %v5629
      %v5640 = vpack.c.b16 %v5630, %v5630
      %v5641 = vpack.c.b16 %v5631, %v5631
      %v5642 = vpack.c.b16 %v5632, %v5632
      %v5643 = vpack.c.b16 %v5633, %v5633
      %v5644 = vpack.c.b16 %v5634, %v5634
      %v5645 = vpack.c.b16 %v5635, %v5635
      %v5646 = vpack.c.b16 %v5636, %v5636
      %v5647 = vpack.c.b16 %v5637, %v5637
      %v5648 = vpack.c.b16 %v5638, %v5638
      %5659 = vst [vmem:[%s353] sm:$0xf] %v5639
      %5660 = vst [vmem:[%s353 + $0x4] sm:$0xf] %v5640
      %5661 = vst [vmem:[%s353 + $0x8] sm:$0xf] %v5641
      %5662 = vst [vmem:[%s353 + $0xc] sm:$0xf] %v5642
      %5663 = vst [vmem:[%s353 + $0x10] sm:$0xf] %v5643
      %5664 = vst [vmem:[%s353 + $0x14] sm:$0xf] %v5644
      %5665 = vst [vmem:[%s353 + $0x18] sm:$0xf] %v5645
      %5666 = vst [vmem:[%s353 + $0x1c] sm:$0xf] %v5646
      %5667 = vst [vmem:[%s353 + $0x20] sm:$0xf] %v5647
      %5668 = vst [vmem:[%s353 + $0x24] sm:$0xf] %v5648
      %p5669 = scmp.lt.s32.totalorder %s17, 15
      %s5670 = scalar_select %p5669, %s17, 15
      %s5671 = smul.addr %s5670, 10
      %s5672 = smul.addr %s5671, 4
      %s5673 = scalar_lea.vmem %s6, %s5672
      // Predicated region
      $region45: #{basic_block_forward.3} parent=43 // pred_check
        %p5674 = pneg %p193
      $region46: #{basic_block_forward.3} parent=43 // pred_check_branch
        %5676 = sbr.rel (%p5674) target = $region48
      $region47: #{basic_block_forward.3} parent=43 // pred_region
        _
      $region48: #{basic_block_forward.3} parent=43 // pred_fallthru
        _
    $region44: #{basic_block_forward.3} parent=5 // pred_fallthru
      _
    %p5677 = scmp.le.s32.totalorder 2, %s12
    // Predicated region
    $region49: #{basic_block_forward.3} parent=5 // pred_check
      %p5678 = pneg %p5677
    $region50: #{basic_block_forward.3} parent=5 // pred_check_branch
      %5680 = sbr.rel (%p5678) target = $region52
    $region51: #{basic_block_forward.3} parent=5 // pred_region
      %s5681 = ssub.s32 %s12, 2
      // Predicated region
      $region53: #{basic_block_forward.3} parent=51 // pred_check
        %p5682 = pneg %p199
      $region54: #{basic_block_forward.3} parent=51 // pred_check_branch
        %5684 = sbr.rel (%p5682) target = $region56
      $region55: #{basic_block_forward.3} parent=51 // pred_region
        %p5685 = scmp.lt.s32.totalorder %s18, 15
        %s5686 = scalar_select %p5685, %s18, 15
        %s5687 = smul.addr %s5686, 10
        %s5688 = smul.addr %s5687, 4
        %s5689 = scalar_lea.vmem %s6, %s5688
      $region56: #{basic_block_forward.3} parent=51 // pred_fallthru
        _
    $region52: #{basic_block_forward.3} parent=5 // pred_fallthru
      _
  $region6: #{basic_block_forward.3} parent=0 // loop_footer
    %s16 = sadd.s32 1, %s12
  $region7: #{basic_block_forward.3} parent=0 // loop_footer_branch
    %11 = sbr.rel target = $region3
  $region8: #{basic_block_forward.3} parent=0 // loop_exit
    _

// kernel: basic_block_forward.2
$region0: #{basic_block_forward.2}
  #allocation0 [shape = 'u32[]', space=smem, size = 0x4, offset = 0x4, fixed_abs, tag = 'smem constant byte address 0x4 - core index']
  #allocation1 [shape = 'u32[144,128]{1,0:T(1,128)}', space=vmem, size = 0x12000, scoped, tag = 'internal scratch']
  %s0 = inlined_call_operand.vmem [shape: bf16[16,110,128], index: 0, kind: input, shape index: {}, may-alias: {0,1,2}]
  %s1 = inlined_call_operand.vmem [shape: bf16[16,110,128], index: 1, kind: input, shape index: {}, may-alias: {0,1,2}]
  %s2 = inlined_call_operand.vmem [shape: bf16[16,110,128], index: 2, kind: input, shape index: {}, may-alias: {0,1,2}]
  %s3 = inlined_call_operand.vmem [shape: bf16[27,128,128], index: 3, kind: input, shape index: {}]
  %s4 = inlined_call_operand.vmem [shape: f32[1,128], index: 4, kind: input, shape index: {}]
  %s5 = inlined_call_operand.vmem [shape: f32[80,1], index: 5, kind: input, shape index: {}]
  %s6 = inlined_call_operand.vmem [shape: bf16[16,110,128], index: 6, kind: output, shape index: {}]
  %s7 = sld [smem:[#allocation0]]
  $region57: #{basic_block_forward.2} parent=0
    _
  %s9 = ssub.s32 1, %s7
  %s10 = scalar_select 0, %s9, %s7
  loop: start=0, step=1, limit=18
  $region2: #{basic_block_forward.2} parent=0 // loop_pre_header
    _
  $region3: #{basic_block_forward.2} parent=0 // loop_header
    %s12 = sphi 0, %s16
    %p13 = scmp.ge.s32.totalorder %s12, 18
    %s28 = sphi 0, %s30
    %s31 = sphi 0, %s28
    %s32 = sphi 0, %s31
    %s48 = sphi 0, %s32
    %s54 = sphi 0, %s56
    %s57 = sphi 0, %s54
    %s58 = sphi 0, %s57
    %s74 = sphi 0, %s58
    %s86 = sphi 0, %s88
    %s89 = sphi 0, %s86
    %s90 = sphi 0, %s89
    %s106 = sphi 0, %s90
    %s110 = sphi 0, %s110
    %s112 = sphi 0, %s110
    %s113 = sphi 0, %s112
    %s127 = sphi 0, %s113
    %s131 = sphi 0, %s131
    %s133 = sphi 0, %s131
    %s134 = sphi 0, %s133
    %s148 = sphi 0, %s134
    %s152 = sphi 0, %s152
    %s154 = sphi 0, %s152
    %s155 = sphi 0, %s154
    %s169 = sphi 0, %s155
    %s175 = sphi 0, %s177
    %s178 = sphi 0, %s175
    %s179 = sphi 0, %s178
    %s195 = sphi 0, %s179
  $region4: #{basic_block_forward.2} parent=0 // loop_header_branch
    %15 = sbr.rel (%p13) target = $region8
  $region5: #{basic_block_forward.2} parent=0 // loop_body
    %s17 = ssub.s32 %s12, 1
    %s18 = ssub.s32 %s12, 2
    %s19 = sadd.s32 %s12, 1
    %s20 = ssub.s32 %s12, 1
    %p21 = scmp.gt.s32.totalorder %s20, 0
    %s22 = scalar_select %p21, %s20, 0
    %s23 = ssub.s32 %s19, 1
    %p24 = scmp.gt.s32.totalorder %s23, 0
    %s25 = scalar_select %p24, %s23, 0
    %s26 = ssub.s32 %s22, %s25
    %p27 = scmp.eq.s32.totalorder %s26, 0
    %s29 = sadd.s32 %s28, 1
    %s30 = scalar_select %p27, %s28, %s29
    %p33 = pneg %p27
    %p34 = scmp.eq.s32.totalorder %s12, 15
    %p35 = por %p33, %p34
    %p36 = scmp.ne.s32.totalorder %s28, %s31
    %p37 = scmp.eq.s32.totalorder %s12, 0
    %p38 = por %p36, %p37
    %p39 = scmp.ne.s32.totalorder %s28, %s31
    %p40 = scmp.eq.s32.totalorder %s17, 15
    %p41 = por %p39, %p40
    %p42 = scmp.ne.s32.totalorder %s31, %s32
    %p43 = scmp.eq.s32.totalorder %s17, 0
    %p44 = por %p42, %p43
    %p45 = scmp.ne.s32.totalorder %s31, %s32
    %p46 = scmp.eq.s32.totalorder %s18, 15
    %p47 = por %p45, %p46
    %p49 = scmp.ne.s32.totalorder %s32, %s48
    %p50 = scmp.eq.s32.totalorder %s18, 0
    %p51 = por %p49, %p50
    %s52 = ssub.s32 %s12, %s19
    %p53 = scmp.eq.s32.totalorder %s52, 0
    %s55 = sadd.s32 %s54, 1
    %s56 = scalar_select %p53, %s54, %s55
    %p59 = pneg %p53
    %p60 = scmp.eq.s32.totalorder %s12, 15
    %p61 = por %p59, %p60
    %p62 = scmp.ne.s32.totalorder %s54, %s57
    %p63 = scmp.eq.s32.totalorder %s12, 0
    %p64 = por %p62, %p63
    %p65 = scmp.ne.s32.totalorder %s54, %s57
    %p66 = scmp.eq.s32.totalorder %s17, 15
    %p67 = por %p65, %p66
    %p68 = scmp.ne.s32.totalorder %s57, %s58
    %p69 = scmp.eq.s32.totalorder %s17, 0
    %p70 = por %p68, %p69
    %p71 = scmp.ne.s32.totalorder %s57, %s58
    %p72 = scmp.eq.s32.totalorder %s18, 15
    %p73 = por %p71, %p72
    %p75 = scmp.ne.s32.totalorder %s58, %s74
    %p76 = scmp.eq.s32.totalorder %s18, 0
    %p77 = por %p75, %p76
    %s78 = sadd.s32 %s12, 1
    %p79 = scmp.lt.s32.totalorder %s78, 15
    %s80 = scalar_select %p79, %s78, 15
    %s81 = sadd.s32 %s19, 1
    %p82 = scmp.lt.s32.totalorder %s81, 15
    %s83 = scalar_select %p82, %s81, 15
    %s84 = ssub.s32 %s80, %s83
    %p85 = scmp.eq.s32.totalorder %s84, 0
    %s87 = sadd.s32 %s86, 1
    %s88 = scalar_select %p85, %s86, %s87
    %p91 = pneg %p85
    %p92 = scmp.eq.s32.totalorder %s12, 15
    %p93 = por %p91, %p92
    %p94 = scmp.ne.s32.totalorder %s86, %s89
    %p95 = scmp.eq.s32.totalorder %s12, 0
    %p96 = por %p94, %p95
    %p97 = scmp.ne.s32.totalorder %s86, %s89
    %p98 = scmp.eq.s32.totalorder %s17, 15
    %p99 = por %p97, %p98
    %p100 = scmp.ne.s32.totalorder %s89, %s90
    %p101 = scmp.eq.s32.totalorder %s17, 0
    %p102 = por %p100, %p101
    %p103 = scmp.ne.s32.totalorder %s89, %s90
    %p104 = scmp.eq.s32.totalorder %s18, 15
    %p105 = por %p103, %p104
    %p107 = scmp.ne.s32.totalorder %s90, %s106
    %p108 = scmp.eq.s32.totalorder %s18, 0
    %p109 = por %p107, %p108
    %s111 = sadd.s32 %s110, 1
    %p114 = scmp.eq.s32.totalorder %s12, 15
    %p115 = scmp.ne.s32.totalorder %s110, %s112
    %p116 = scmp.eq.s32.totalorder %s12, 0
    %p117 = por %p115, %p116
    %p118 = scmp.ne.s32.totalorder %s110, %s112
    %p119 = scmp.eq.s32.totalorder %s17, 15
    %p120 = por %p118, %p119
    %p121 = scmp.ne.s32.totalorder %s112, %s113
    %p122 = scmp.eq.s32.totalorder %s17, 0
    %p123 = por %p121, %p122
    %p124 = scmp.ne.s32.totalorder %s112, %s113
    %p125 = scmp.eq.s32.totalorder %s18, 15
    %p126 = por %p124, %p125
    %p128 = scmp.ne.s32.totalorder %s113, %s127
    %p129 = scmp.eq.s32.totalorder %s18, 0
    %p130 = por %p128, %p129
    %s132 = sadd.s32 %s131, 1
    %p135 = scmp.eq.s32.totalorder %s12, 15
    %p136 = scmp.ne.s32.totalorder %s131, %s133
    %p137 = scmp.eq.s32.totalorder %s12, 0
    %p138 = por %p136, %p137
    %p139 = scmp.ne.s32.totalorder %s131, %s133
    %p140 = scmp.eq.s32.totalorder %s17, 15
    %p141 = por %p139, %p140
    %p142 = scmp.ne.s32.totalorder %s133, %s134
    %p143 = scmp.eq.s32.totalorder %s17, 0
    %p144 = por %p142, %p143
    %p145 = scmp.ne.s32.totalorder %s133, %s134
    %p146 = scmp.eq.s32.totalorder %s18, 15
    %p147 = por %p145, %p146
    %p149 = scmp.ne.s32.totalorder %s134, %s148
    %p150 = scmp.eq.s32.totalorder %s18, 0
    %p151 = por %p149, %p150
    %s153 = sadd.s32 %s152, 1
    %p156 = scmp.eq.s32.totalorder %s12, 15
    %p157 = scmp.ne.s32.totalorder %s152, %s154
    %p158 = scmp.eq.s32.totalorder %s12, 0
    %p159 = por %p157, %p158
    %p160 = scmp.ne.s32.totalorder %s152, %s154
    %p161 = scmp.eq.s32.totalorder %s17, 15
    %p162 = por %p160, %p161
    %p163 = scmp.ne.s32.totalorder %s154, %s155
    %p164 = scmp.eq.s32.totalorder %s17, 0
    %p165 = por %p163, %p164
    %p166 = scmp.ne.s32.totalorder %s154, %s155
    %p167 = scmp.eq.s32.totalorder %s18, 15
    %p168 = por %p166, %p167
    %p170 = scmp.ne.s32.totalorder %s155, %s169
    %p171 = scmp.eq.s32.totalorder %s18, 0
    %p172 = por %p170, %p171
    %s173 = ssub.s32 %s12, %s19
    %p174 = scmp.eq.s32.totalorder %s173, 0
    %s176 = sadd.s32 %s175, 1
    %s177 = scalar_select %p174, %s175, %s176
    %p180 = pneg %p174
    %p181 = scmp.eq.s32.totalorder %s12, 15
    %p182 = por %p180, %p181
    %p183 = scmp.ne.s32.totalorder %s175, %s178
    %p184 = scmp.eq.s32.totalorder %s12, 0
    %p185 = por %p183, %p184
    %p186 = scmp.ne.s32.totalorder %s175, %s178
    %p187 = scmp.eq.s32.totalorder %s17, 15
    %p188 = por %p186, %p187
    %p189 = scmp.ne.s32.totalorder %s178, %s179
    %p190 = scmp.eq.s32.totalorder %s17, 0
    %p191 = por %p189, %p190
    %p192 = scmp.ne.s32.totalorder %s178, %s179
    %p193 = scmp.eq.s32.totalorder %s18, 15
    %p194 = por %p192, %p193
    %p196 = scmp.ne.s32.totalorder %s179, %s195
    %p197 = scmp.eq.s32.totalorder %s18, 0
    %p198 = por %p196, %p197
    %p199 = scmp.le.s32.totalorder 1, %s12
    %p200 = scmp.lt.s32.totalorder %s12, 17
    %p201 = pnand %p199, %p200
    %p202 = pneg %p201
    // Predicated region
    $region9: #{basic_block_forward.2} parent=5 // pred_check
      _
    $region10: #{basic_block_forward.2} parent=5 // pred_check_branch
      %204 = sbr.rel (%p201) target = $region12
    $region11: #{basic_block_forward.2} parent=5 // pred_region
      %s205 = ssub.s32 %s12, 1
      // Predicated region
      $region13: #{basic_block_forward.2} parent=11 // pred_check
        %p206 = pneg %p123
      $region14: #{basic_block_forward.2} parent=11 // pred_check_branch
        %208 = sbr.rel (%p206) target = $region16
      $region15: #{basic_block_forward.2} parent=11 // pred_region
        _
      $region16: #{basic_block_forward.2} parent=11 // pred_fallthru
        _
      // Predicated region
      $region17: #{basic_block_forward.2} parent=11 // pred_check
        %p209 = pneg %p144
      $region18: #{basic_block_forward.2} parent=11 // pred_check_branch
        %211 = sbr.rel (%p209) target = $region20
      $region19: #{basic_block_forward.2} parent=11 // pred_region
        _
      $region20: #{basic_block_forward.2} parent=11 // pred_fallthru
        _
      // Predicated region
      $region21: #{basic_block_forward.2} parent=11 // pred_check
        %p212 = pneg %p165
      $region22: #{basic_block_forward.2} parent=11 // pred_check_branch
        %214 = sbr.rel (%p212) target = $region24
      $region23: #{basic_block_forward.2} parent=11 // pred_region
        _
      $region24: #{basic_block_forward.2} parent=11 // pred_fallthru
        _
    $region12: #{basic_block_forward.2} parent=5 // pred_fallthru
      _
    %p215 = scmp.lt.s32.totalorder %s12, 16
    // Predicated region
    $region25: #{basic_block_forward.2} parent=5 // pred_check
      %p216 = pneg %p215
    $region26: #{basic_block_forward.2} parent=5 // pred_check_branch
      %218 = sbr.rel (%p216) target = $region28
    $region27: #{basic_block_forward.2} parent=5 // pred_region
      // Predicated region
      $region29: #{basic_block_forward.2} parent=27 // pred_check
        %p219 = pneg %p38
      $region30: #{basic_block_forward.2} parent=27 // pred_check_branch
        %221 = sbr.rel (%p219) target = $region32
      $region31: #{basic_block_forward.2} parent=27 // pred_region
        %s222 = ssub.s32 %s12, 1
        %p223 = scmp.gt.s32.totalorder %s222, 0
        %s224 = scalar_select %p223, %s222, 0
        %p225 = scmp.lt.s32.totalorder %s224, 15
        %s226 = scalar_select %p225, %s224, 15
        %s227 = smul.addr %s226, 14
        %s228 = smul.addr %s227, 4
        %s229 = scalar_lea.vmem %s0, %s228
        %s230 = ssub.s32 %s12, 1
        %p231 = scmp.gt.s32.totalorder %s230, 0
        %s232 = scalar_select %p231, %s230, 0
      $region32: #{basic_block_forward.2} parent=27 // pred_fallthru
        _
      // Predicated region
      $region33: #{basic_block_forward.2} parent=27 // pred_check
        %p233 = pneg %p64
      $region34: #{basic_block_forward.2} parent=27 // pred_check_branch
        %235 = sbr.rel (%p233) target = $region36
      $region35: #{basic_block_forward.2} parent=27 // pred_region
        %p236 = scmp.lt.s32.totalorder %s12, 15
        %s237 = scalar_select %p236, %s12, 15
        %s238 = smul.addr %s237, 14
        %s239 = smul.addr %s238, 4
        %s240 = scalar_lea.vmem %s1, %s239
      $region36: #{basic_block_forward.2} parent=27 // pred_fallthru
        _
      // Predicated region
      $region37: #{basic_block_forward.2} parent=27 // pred_check
        %p241 = pneg %p96
      $region38: #{basic_block_forward.2} parent=27 // pred_check_branch
        %243 = sbr.rel (%p241) target = $region40
      $region39: #{basic_block_forward.2} parent=27 // pred_region
        %s244 = sadd.s32 %s12, 1
        %p245 = scmp.lt.s32.totalorder %s244, 15
        %s246 = scalar_select %p245, %s244, 15
        %p247 = scmp.lt.s32.totalorder %s246, 15
        %s248 = scalar_select %p247, %s246, 15
        %s249 = smul.addr %s248, 14
        %s250 = smul.addr %s249, 4
        %s251 = scalar_lea.vmem %s2, %s250
        %s252 = sadd.s32 %s12, 1
        %p253 = scmp.lt.s32.totalorder %s252, 15
        %s254 = scalar_select %p253, %s252, 15
      $region40: #{basic_block_forward.2} parent=27 // pred_fallthru
        _
    $region28: #{basic_block_forward.2} parent=5 // pred_fallthru
      _
    %p255 = scmp.le.s32.totalorder 1, %s12
    %p256 = scmp.lt.s32.totalorder %s12, 17
    %p257 = pnand %p255, %p256
    %p258 = pneg %p257
    // Predicated region
    $region41: #{basic_block_forward.2} parent=5 // pred_check
      _
    $region42: #{basic_block_forward.2} parent=5 // pred_check_branch
      %260 = sbr.rel (%p257) target = $region44
    $region43: #{basic_block_forward.2} parent=5 // pred_region
      %s261 = ssub.s32 %s12, 1
      %s262 = ssub.s32 %s17, 1
      %p263 = scmp.gt.s32.totalorder %s262, 0
      %s264 = scalar_select %p263, %s262, 0
      %p265 = scmp.lt.s32.totalorder %s264, 15
      %s266 = scalar_select %p265, %s264, 15
      %s267 = smul.addr %s266, 14
      %s268 = smul.addr %s267, 4
      %s269 = scalar_lea.vmem %s0, %s268
      %p270 = pneg %p44
      %p271 = pneg %p41
      %p272 = scmp.lt.s32.totalorder %s17, 15
      %s273 = scalar_select %p272, %s17, 15
      %s274 = smul.addr %s273, 14
      %s275 = smul.addr %s274, 4
      %s276 = scalar_lea.vmem %s1, %s275
      %p277 = pneg %p70
      %p278 = pneg %p67
      %s279 = sadd.s32 %s17, 1
      %p280 = scmp.lt.s32.totalorder %s279, 15
      %s281 = scalar_select %p280, %s279, 15
      %p282 = scmp.lt.s32.totalorder %s281, 15
      %s283 = scalar_select %p282, %s281, 15
      %s284 = smul.addr %s283, 14
      %s285 = smul.addr %s284, 4
      %s286 = scalar_lea.vmem %s2, %s285
      %p287 = pneg %p102
      %p288 = pneg %p99
      %p289 = pneg %p123
      %p290 = pneg %p120
      %p291 = pneg %p144
      %p292 = pneg %p141
      %p293 = pneg %p165
      %p294 = pneg %p162
      %p295 = pneg %p191
      %p296 = pneg %p188
      %p297 = scmp.lt.s32.totalorder %s17, 15
      %s298 = scalar_select %p297, %s17, 15
      %s299 = smul.addr %s298, 14
      %s300 = smul.addr %s299, 4
      %s301 = scalar_lea.vmem %s6, %s300
      %s302 = ssub.s32 %s17, 1
      %p303 = scmp.gt.s32.totalorder %s302, 0
      %s304 = scalar_select %p303, %s302, 0
      %p305 = scmp.lt.s32.totalorder %s304, 15
      %s306 = scalar_select %p305, %s304, 15
      %s307 = smul.addr %s306, 14
      %s308 = smul.addr %s307, 4
      %s309 = scalar_lea.vmem %s0, %s308
      %s310 = ssub.s32 %s17, 1
      %p311 = scmp.gt.s32.totalorder %s310, 0
      %s312 = scalar_select %p311, %s310, 0
      %p313 = scmp.lt.s32.totalorder %s17, 15
      %s314 = scalar_select %p313, %s17, 15
      %s315 = smul.addr %s314, 14
      %s316 = smul.addr %s315, 4
      %s317 = scalar_lea.vmem %s1, %s316
      %s318 = sadd.s32 %s17, 1
      %p319 = scmp.lt.s32.totalorder %s318, 15
      %s320 = scalar_select %p319, %s318, 15
      %p321 = scmp.lt.s32.totalorder %s320, 15
      %s322 = scalar_select %p321, %s320, 15
      %s323 = smul.addr %s322, 14
      %s324 = smul.addr %s323, 4
      %s325 = scalar_lea.vmem %s2, %s324
      %s326 = sadd.s32 %s17, 1
      %p327 = scmp.lt.s32.totalorder %s326, 15
      %s328 = scalar_select %p327, %s326, 15
      %p329 = scmp.lt.s32.totalorder %s17, 15
      %s330 = scalar_select %p329, %s17, 15
      %s331 = smul.addr %s330, 14
      %s332 = smul.addr %s331, 4
      %s333 = scalar_lea.vmem %s6, %s332
      %p335 = scmp.lt.s32.totalorder %s17, 0
      %s336 = ssub.s32 0, %s17
      %s337 = scalar_select %p335, %s336, %s17
      %s338 = sand.u32 %s337, 7
      %s339 = ssub.s32 0, %s338
      %s340 = scalar_select %p335, %s339, %s338
      %p341 = scmp.ne.s32.totalorder %s340, 0
      %p342 = scmp.lt.s32.totalorder %s340, 0
      %p343 = pnand %p342, %p341
      %p344 = pneg %p343
      %s345 = sadd.s32 %s340, 8
      %s346 = scalar_select %p344, %s345, %s340
      %v347 = vld [vmem:[%s317] sm:$0xf]
      %v348 = vld [vmem:[%s317 + $0x4] sm:$0xf]
      %v349 = vld [vmem:[%s317 + $0x8] sm:$0xf]
      %v350 = vld [vmem:[%s317 + $0xc] sm:$0xf]
      %v351 = vld [vmem:[%s317 + $0x10] sm:$0xf]
      %v352 = vld [vmem:[%s317 + $0x14] sm:$0xf]
      %v353 = vld [vmem:[%s317 + $0x18] sm:$0xf]
      %v354 = vld [vmem:[%s317 + $0x1c] sm:$0xf]
      %v355 = vld [vmem:[%s317 + $0x20] sm:$0xf]
      %v356 = vld [vmem:[%s317 + $0x24] sm:$0xf]
      %s357 = scalar_lea.vmem %s3, 576
      %v358 = vld [vmem:[%s357] sm:$0xf]
      %v359 = vld [vmem:[%s357 + $0x4] sm:$0xf]
      %v360 = vld [vmem:[%s357 + $0x8] sm:$0xf]
      %v361 = vld [vmem:[%s357 + $0xc] sm:$0xf]
      %v362 = vld [vmem:[%s357 + $0x10] sm:$0xf]
      %v363 = vld [vmem:[%s357 + $0x14] sm:$0xf]
      %v364 = vld [vmem:[%s357 + $0x18] sm:$0xf]
      %v365 = vld [vmem:[%s357 + $0x1c] sm:$0xf]
      %v366 = vld [vmem:[%s357 + $0x20] sm:$0xf]
      %v367 = vld [vmem:[%s357 + $0x24] sm:$0xf]
      %v368 = vld [vmem:[%s357 + $0x28] sm:$0xf]
      %v369 = vld [vmem:[%s357 + $0x2c] sm:$0xf]
      %v370 = vld [vmem:[%s357 + $0x30] sm:$0xf]
      %v371 = vld [vmem:[%s357 + $0x34] sm:$0xf]
      %v372 = vld [vmem:[%s357 + $0x38] sm:$0xf]
      %v373 = vld [vmem:[%s357 + $0x3c] sm:$0xf]
      %v374 = vld [vmem:[%s317 + $0x28] sm:$0x1]
      %s375 = scalar_lea.vmem %s3, 640
      %v376 = vld [vmem:[%s375] sm:$0xf]
      %v377 = vld [vmem:[%s375 + $0x4] sm:$0xf]
      %v378 = vld [vmem:[%s375 + $0x8] sm:$0xf]
      %v379 = vld [vmem:[%s375 + $0xc] sm:$0xf]
      %v380 = vld [vmem:[%s375 + $0x10] sm:$0xf]
      %v381 = vld [vmem:[%s375 + $0x14] sm:$0xf]
      %v382 = vld [vmem:[%s375 + $0x18] sm:$0xf]
      %v383 = vld [vmem:[%s375 + $0x1c] sm:$0xf]
      %v384 = vld [vmem:[%s375 + $0x20] sm:$0xf]
      %v385 = vld [vmem:[%s375 + $0x24] sm:$0xf]
      %v386 = vld [vmem:[%s375 + $0x28] sm:$0xf]
      %v387 = vld [vmem:[%s375 + $0x2c] sm:$0xf]
      %v388 = vld [vmem:[%s375 + $0x30] sm:$0xf]
      %v389 = vld [vmem:[%s375 + $0x34] sm:$0xf]
      %v390 = vld [vmem:[%s375 + $0x38] sm:$0xf]
      %v391 = vld [vmem:[%s375 + $0x3c] sm:$0xf]
      %v403 = vunpack.c.l.b16 %v347
      %v404 = vunpack.c.l.b16 %v348
      %v405 = vunpack.c.l.b16 %v349
      %v406 = vunpack.c.l.b16 %v350
      %v407 = vunpack.c.l.b16 %v351
      %v408 = vunpack.c.l.b16 %v352
      %v409 = vunpack.c.l.b16 %v353
      %v410 = vunpack.c.l.b16 %v354
      %v411 = vunpack.c.l.b16 %v355
      %v412 = vunpack.c.l.b16 %v356
      %v413 = vunpack.c.l.b16 %v374
      %v414 = vpack.c.b16 %v404, %v403
      %v415 = vpack.c.b16 %v406, %v405
      %v416 = vpack.c.b16 %v408, %v407
      %v417 = vpack.c.b16 %v410, %v409
      %v418 = vpack.c.b16 %v412, %v411
      %v419 = vpack.c.b16 %v413, %v413
      %vm420 = vsmask.f32 7424
      %v422 = vshrl.u32 %v414, 16
      %v424 = vshll.u32 %v414, 16
      %v426 = vrot.slane %v424, 1
      %v427 = vor.u32 %v422, %v426
      %v429 = vshll.u32 %v415, 16
      %v431 = vrot.slane %v429, 1
      %v432 = vsel %vm420, %v427, %v431
      %v433 = vshrl.u32 %v415, 16
      %v435 = vor.u32 %v433, %v431
      %v437 = vshll.u32 %v416, 16
      %v439 = vrot.slane %v437, 1
      %v440 = vsel %vm420, %v435, %v439
      %v441 = vshrl.u32 %v416, 16
      %v443 = vor.u32 %v441, %v439
      %v445 = vshll.u32 %v417, 16
      %v447 = vrot.slane %v445, 1
      %v448 = vsel %vm420, %v443, %v447
      %v449 = vshrl.u32 %v417, 16
      %v451 = vor.u32 %v449, %v447
      %v453 = vshll.u32 %v418, 16
      %v455 = vrot.slane %v453, 1
      %v456 = vsel %vm420, %v451, %v455
      %v457 = vshrl.u32 %v418, 16
      %v459 = vor.u32 %v457, %v455
      %v461 = vshll.u32 %v419, 16
      %v463 = vrot.slane %v461, 1
      %v464 = vsel %vm420, %v459, %v463
      %v486 = vunpack.c.l.b16 %v376
      %v487 = vunpack.c.l.b16 %v377
      %v488 = vunpack.c.l.b16 %v378
      %v489 = vunpack.c.l.b16 %v379
      %v490 = vunpack.c.l.b16 %v380
      %v491 = vunpack.c.l.b16 %v381
      %v492 = vunpack.c.l.b16 %v382
      %v493 = vunpack.c.l.b16 %v383
      %v494 = vunpack.c.l.b16 %v384
      %v495 = vunpack.c.l.b16 %v385
      %v496 = vunpack.c.l.b16 %v386
      %v497 = vunpack.c.l.b16 %v387
      %v498 = vunpack.c.l.b16 %v388
      %v499 = vunpack.c.l.b16 %v389
      %v500 = vunpack.c.l.b16 %v390
      %v501 = vunpack.c.l.b16 %v391
      %v502 = vpack.c.b16 %v487, %v486
      %v503 = vpack.c.b16 %v489, %v488
      %v504 = vpack.c.b16 %v491, %v490
      %v505 = vpack.c.b16 %v493, %v492
      %v506 = vpack.c.b16 %v495, %v494
      %v507 = vpack.c.b16 %v497, %v496
      %v508 = vpack.c.b16 %v499, %v498
      %v509 = vpack.c.b16 %v501, %v500
      %518 = vmatprep.subr.bf16.mxu0 0
      %519 = vmatpush1.bf16.msra.mxu0 %v509
      %520 = vmatprep.subr.bf16.mxu0 0
      %521 = vmatpush1.bf16.msra.mxu0 %v508
      %522 = vmatprep.subr.bf16.mxu0 0
      %523 = vmatpush1.bf16.msra.mxu0 %v507
      %524 = vmatprep.subr.bf16.mxu0 0
      %525 = vmatpush1.bf16.msra.mxu0 %v506
      %526 = vmatprep.subr.bf16.mxu0 0
      %527 = vmatpush1.bf16.msra.mxu0 %v505
      %528 = vmatprep.subr.bf16.mxu0 0
      %529 = vmatpush1.bf16.msra.mxu0 %v504
      %530 = vmatprep.subr.bf16.mxu0 0
      %531 = vmatpush1.bf16.msra.mxu0 %v503
      %532 = vmatprep.subr.bf16.mxu0 0
      %533 = vmatpush1.bf16.msra.mxu0 %v502
      %534 = vmatprep.subr.bf16.mxu0 0
      %535 = vmatpush2.bf16.msra.mxu0 0
      %536 = vmatprep.subr.bf16.mxu0 0
      %537 = vmatpush2.bf16.msra.mxu0 0
      %538 = vmatprep.subr.bf16.mxu0 0
      %539 = vmatpush2.bf16.msra.mxu0 0
      %540 = vmatprep.subr.bf16.mxu0 0
      %541 = vmatpush2.bf16.msra.mxu0 0
      %542 = vmatprep.subr.bf16.mxu0 0
      %543 = vmatpush2.bf16.msra.mxu0 0
      %544 = vmatprep.subr.bf16.mxu0 0
      %545 = vmatpush2.bf16.msra.mxu0 0
      %546 = vmatprep.subr.bf16.mxu0 0
      %547 = vmatpush2.bf16.msra.mxu0 0
      %548 = vmatprep.subr.bf16.mxu0 0
      %549 = vmatpush2.bf16.msra.mxu0 0
      %550 = vmatprep.mubr.bf16.mxu0 0
      %551 = vmatmul.mubr.bf16.gmra.mxu0 %v432
      %v552 = vpop.f32.mrf.mxu0
      %v553 = vadd.f32 0.0, %v552
      %v554 = vpop.f32.mrf.mxu0
      %v555 = vpop.f32.mrf.mxu0
      %v556 = vadd.f32 0.0, %v555
      %v557 = vpop.f32.mrf.mxu0
      %558 = vmatprep.mubr.bf16.mxu0 0
      %559 = vmatmul.mubr.bf16.gmra.mxu0 %v440
      %v560 = vpop.f32.mrf.mxu0
      %v561 = vadd.f32 0.0, %v560
      %v562 = vpop.f32.mrf.mxu0
      %v563 = vpop.f32.mrf.mxu0
      %v564 = vadd.f32 0.0, %v563
      %v565 = vpop.f32.mrf.mxu0
      %566 = vmatprep.mubr.bf16.mxu0 0
      %567 = vmatmul.mubr.bf16.gmra.mxu0 %v448
      %v568 = vpop.f32.mrf.mxu0
      %v569 = vadd.f32 0.0, %v568
      %v570 = vpop.f32.mrf.mxu0
      %v571 = vpop.f32.mrf.mxu0
      %v572 = vadd.f32 0.0, %v571
      %v573 = vpop.f32.mrf.mxu0
      %574 = vmatprep.mubr.bf16.mxu0 0
      %575 = vmatmul.mubr.bf16.gmra.mxu0 %v456
      %v576 = vpop.f32.mrf.mxu0
      %v577 = vadd.f32 0.0, %v576
      %v578 = vpop.f32.mrf.mxu0
      %v579 = vpop.f32.mrf.mxu0
      %v580 = vadd.f32 0.0, %v579
      %v581 = vpop.f32.mrf.mxu0
      %582 = vmatprep.mubr.bf16.mxu0 0
      %583 = vmatmul.mubr.bf16.gmra.mxu0 %v464
      %v584 = vpop.f32.mrf.mxu0
      %v585 = vadd.f32 0.0, %v584
      %v586 = vpop.f32.mrf.mxu0
      %v587 = vpop.f32.mrf.mxu0
      %v588 = vadd.f32 0.0, %v587
      %v589 = vpop.f32.mrf.mxu0
      %590 = vdwg.mxu0
      %v612 = vunpack.c.l.b16 %v358
      %v613 = vunpack.c.l.b16 %v359
      %v614 = vunpack.c.l.b16 %v360
      %v615 = vunpack.c.l.b16 %v361
      %v616 = vunpack.c.l.b16 %v362
      %v617 = vunpack.c.l.b16 %v363
      %v618 = vunpack.c.l.b16 %v364
      %v619 = vunpack.c.l.b16 %v365
      %v620 = vunpack.c.l.b16 %v366
      %v621 = vunpack.c.l.b16 %v367
      %v622 = vunpack.c.l.b16 %v368
      %v623 = vunpack.c.l.b16 %v369
      %v624 = vunpack.c.l.b16 %v370
      %v625 = vunpack.c.l.b16 %v371
      %v626 = vunpack.c.l.b16 %v372
      %v627 = vunpack.c.l.b16 %v373
      %v628 = vpack.c.b16 %v613, %v612
      %v629 = vpack.c.b16 %v615, %v614
      %v630 = vpack.c.b16 %v617, %v616
      %v631 = vpack.c.b16 %v619, %v618
      %v632 = vpack.c.b16 %v621, %v620
      %v633 = vpack.c.b16 %v623, %v622
      %v634 = vpack.c.b16 %v625, %v624
      %v635 = vpack.c.b16 %v627, %v626
      %644 = vmatprep.subr.bf16.mxu0 0
      %645 = vmatpush1.bf16.msra.mxu0 %v635
      %646 = vmatprep.subr.bf16.mxu0 0
      %647 = vmatpush1.bf16.msra.mxu0 %v634
      %648 = vmatprep.subr.bf16.mxu0 0
      %649 = vmatpush1.bf16.msra.mxu0 %v633
      %650 = vmatprep.subr.bf16.mxu0 0
      %651 = vmatpush1.bf16.msra.mxu0 %v632
      %652 = vmatprep.subr.bf16.mxu0 0
      %653 = vmatpush1.bf16.msra.mxu0 %v631
      %654 = vmatprep.subr.bf16.mxu0 0
      %655 = vmatpush1.bf16.msra.mxu0 %v630
      %656 = vmatprep.subr.bf16.mxu0 0
      %657 = vmatpush1.bf16.msra.mxu0 %v629
      %658 = vmatprep.subr.bf16.mxu0 0
      %659 = vmatpush1.bf16.msra.mxu0 %v628
      %660 = vmatprep.subr.bf16.mxu0 0
      %661 = vmatpush2.bf16.msra.mxu0 0
      %662 = vmatprep.subr.bf16.mxu0 0
      %663 = vmatpush2.bf16.msra.mxu0 0
      %664 = vmatprep.subr.bf16.mxu0 0
      %665 = vmatpush2.bf16.msra.mxu0 0
      %666 = vmatprep.subr.bf16.mxu0 0
      %667 = vmatpush2.bf16.msra.mxu0 0
      %668 = vmatprep.subr.bf16.mxu0 0
      %669 = vmatpush2.bf16.msra.mxu0 0
      %670 = vmatprep.subr.bf16.mxu0 0
      %671 = vmatpush2.bf16.msra.mxu0 0
      %672 = vmatprep.subr.bf16.mxu0 0
      %673 = vmatpush2.bf16.msra.mxu0 0
      %674 = vmatprep.subr.bf16.mxu0 0
      %675 = vmatpush2.bf16.msra.mxu0 0
      %676 = vmatprep.mubr.bf16.mxu0 0
      %677 = vmatmul.mubr.bf16.gmra.mxu0 %v414
      %v678 = vpop.f32.mrf.mxu0
      %v679 = vadd.f32 %v553, %v678
      %v680 = vpop.f32.mrf.mxu0
      %v681 = vpop.f32.mrf.mxu0
      %v682 = vadd.f32 %v556, %v681
      %v683 = vpop.f32.mrf.mxu0
      %684 = vmatprep.mubr.bf16.mxu0 0
      %685 = vmatmul.mubr.bf16.gmra.mxu0 %v415
      %v686 = vpop.f32.mrf.mxu0
      %v687 = vadd.f32 %v561, %v686
      %v688 = vpop.f32.mrf.mxu0
      %v689 = vpop.f32.mrf.mxu0
      %v690 = vadd.f32 %v564, %v689
      %v691 = vpop.f32.mrf.mxu0
      %692 = vmatprep.mubr.bf16.mxu0 0
      %693 = vmatmul.mubr.bf16.gmra.mxu0 %v416
      %v694 = vpop.f32.mrf.mxu0
      %v695 = vadd.f32 %v569, %v694
      %v696 = vpop.f32.mrf.mxu0
      %v697 = vpop.f32.mrf.mxu0
      %v698 = vadd.f32 %v572, %v697
      %v699 = vpop.f32.mrf.mxu0
      %700 = vmatprep.mubr.bf16.mxu0 0
      %701 = vmatmul.mubr.bf16.gmra.mxu0 %v417
      %v702 = vpop.f32.mrf.mxu0
      %v703 = vadd.f32 %v577, %v702
      %v704 = vpop.f32.mrf.mxu0
      %v705 = vpop.f32.mrf.mxu0
      %v706 = vadd.f32 %v580, %v705
      %v707 = vpop.f32.mrf.mxu0
      %708 = vmatprep.mubr.bf16.mxu0 0
      %709 = vmatmul.mubr.bf16.gmra.mxu0 %v418
      %v710 = vpop.f32.mrf.mxu0
      %v711 = vadd.f32 %v585, %v710
      %v712 = vpop.f32.mrf.mxu0
      %v713 = vpop.f32.mrf.mxu0
      %v714 = vadd.f32 %v588, %v713
      %v715 = vpop.f32.mrf.mxu0
      %716 = vdwg.mxu0
      %v717 = vld [vmem:[%s317] sm:$0xe]
      %s718 = scalar_lea.vmem %s3, 704
      %v719 = vld [vmem:[%s718] sm:$0xf]
      %v720 = vld [vmem:[%s718 + $0x4] sm:$0xf]
      %v721 = vld [vmem:[%s718 + $0x8] sm:$0xf]
      %v722 = vld [vmem:[%s718 + $0xc] sm:$0xf]
      %v723 = vld [vmem:[%s718 + $0x10] sm:$0xf]
      %v724 = vld [vmem:[%s718 + $0x14] sm:$0xf]
      %v725 = vld [vmem:[%s718 + $0x18] sm:$0xf]
      %v726 = vld [vmem:[%s718 + $0x1c] sm:$0xf]
      %v727 = vld [vmem:[%s718 + $0x20] sm:$0xf]
      %v728 = vld [vmem:[%s718 + $0x24] sm:$0xf]
      %v729 = vld [vmem:[%s718 + $0x28] sm:$0xf]
      %v730 = vld [vmem:[%s718 + $0x2c] sm:$0xf]
      %v731 = vld [vmem:[%s718 + $0x30] sm:$0xf]
      %v732 = vld [vmem:[%s718 + $0x34] sm:$0xf]
      %v733 = vld [vmem:[%s718 + $0x38] sm:$0xf]
      %v734 = vld [vmem:[%s718 + $0x3c] sm:$0xf]
      %v736 = vunpack.c.l.b16 %v717
      %v737 = vpack.c.b16 %v404, %v736
      %vm738 = vcmask 1046528
      %v739 = vrot.slane %v737, 1
      %v740 = vrot.slane %v415, 1
      %v741 = vsel %vm738, %v739, %v740
      %v742 = vrot.slane %v416, 1
      %v743 = vsel %vm738, %v740, %v742
      %v744 = vrot.slane %v417, 1
      %v745 = vsel %vm738, %v742, %v744
      %v746 = vrot.slane %v418, 1
      %v747 = vsel %vm738, %v744, %v746
      %v748 = vrot.slane %v419, 1
      %v749 = vsel %vm738, %v746, %v748
      %v771 = vunpack.c.l.b16 %v719
      %v772 = vunpack.c.l.b16 %v720
      %v773 = vunpack.c.l.b16 %v721
      %v774 = vunpack.c.l.b16 %v722
      %v775 = vunpack.c.l.b16 %v723
      %v776 = vunpack.c.l.b16 %v724
      %v777 = vunpack.c.l.b16 %v725
      %v778 = vunpack.c.l.b16 %v726
      %v779 = vunpack.c.l.b16 %v727
      %v780 = vunpack.c.l.b16 %v728
      %v781 = vunpack.c.l.b16 %v729
      %v782 = vunpack.c.l.b16 %v730
      %v783 = vunpack.c.l.b16 %v731
      %v784 = vunpack.c.l.b16 %v732
      %v785 = vunpack.c.l.b16 %v733
      %v786 = vunpack.c.l.b16 %v734
      %v787 = vpack.c.b16 %v772, %v771
      %v788 = vpack.c.b16 %v774, %v773
      %v789 = vpack.c.b16 %v776, %v775
      %v790 = vpack.c.b16 %v778, %v777
      %v791 = vpack.c.b16 %v780, %v779
      %v792 = vpack.c.b16 %v782, %v781
      %v793 = vpack.c.b16 %v784, %v783
      %v794 = vpack.c.b16 %v786, %v785
      %803 = vmatprep.subr.bf16.mxu0 0
      %804 = vmatpush1.bf16.msra.mxu0 %v794
      %805 = vmatprep.subr.bf16.mxu0 0
      %806 = vmatpush1.bf16.msra.mxu0 %v793
      %807 = vmatprep.subr.bf16.mxu0 0
      %808 = vmatpush1.bf16.msra.mxu0 %v792
      %809 = vmatprep.subr.bf16.mxu0 0
      %810 = vmatpush1.bf16.msra.mxu0 %v791
      %811 = vmatprep.subr.bf16.mxu0 0
      %812 = vmatpush1.bf16.msra.mxu0 %v790
      %813 = vmatprep.subr.bf16.mxu0 0
      %814 = vmatpush1.bf16.msra.mxu0 %v789
      %815 = vmatprep.subr.bf16.mxu0 0
      %816 = vmatpush1.bf16.msra.mxu0 %v788
      %817 = vmatprep.subr.bf16.mxu0 0
      %818 = vmatpush1.bf16.msra.mxu0 %v787
      %819 = vmatprep.subr.bf16.mxu0 0
      %820 = vmatpush2.bf16.msra.mxu0 0
      %821 = vmatprep.subr.bf16.mxu0 0
      %822 = vmatpush2.bf16.msra.mxu0 0
      %823 = vmatprep.subr.bf16.mxu0 0
      %824 = vmatpush2.bf16.msra.mxu0 0
      %825 = vmatprep.subr.bf16.mxu0 0
      %826 = vmatpush2.bf16.msra.mxu0 0
      %827 = vmatprep.subr.bf16.mxu0 0
      %828 = vmatpush2.bf16.msra.mxu0 0
      %829 = vmatprep.subr.bf16.mxu0 0
      %830 = vmatpush2.bf16.msra.mxu0 0
      %831 = vmatprep.subr.bf16.mxu0 0
      %832 = vmatpush2.bf16.msra.mxu0 0
      %833 = vmatprep.subr.bf16.mxu0 0
      %834 = vmatpush2.bf16.msra.mxu0 0
      %835 = vmatprep.mubr.bf16.mxu0 0
      %836 = vmatmul.mubr.bf16.gmra.mxu0 %v741
      %v837 = vpop.f32.mrf.mxu0
      %v838 = vadd.f32 0.0, %v837
      %v839 = vpop.f32.mrf.mxu0
      %v840 = vpop.f32.mrf.mxu0
      %v841 = vadd.f32 0.0, %v840
      %v842 = vpop.f32.mrf.mxu0
      %843 = vmatprep.mubr.bf16.mxu0 0
      %844 = vmatmul.mubr.bf16.gmra.mxu0 %v743
      %v845 = vpop.f32.mrf.mxu0
      %v846 = vadd.f32 0.0, %v845
      %v847 = vpop.f32.mrf.mxu0
      %v848 = vpop.f32.mrf.mxu0
      %v849 = vadd.f32 0.0, %v848
      %v850 = vpop.f32.mrf.mxu0
      %851 = vmatprep.mubr.bf16.mxu0 0
      %852 = vmatmul.mubr.bf16.gmra.mxu0 %v745
      %v853 = vpop.f32.mrf.mxu0
      %v854 = vadd.f32 0.0, %v853
      %v855 = vpop.f32.mrf.mxu0
      %v856 = vpop.f32.mrf.mxu0
      %v857 = vadd.f32 0.0, %v856
      %v858 = vpop.f32.mrf.mxu0
      %859 = vmatprep.mubr.bf16.mxu0 0
      %860 = vmatmul.mubr.bf16.gmra.mxu0 %v747
      %v861 = vpop.f32.mrf.mxu0
      %v862 = vadd.f32 0.0, %v861
      %v863 = vpop.f32.mrf.mxu0
      %v864 = vpop.f32.mrf.mxu0
      %v865 = vadd.f32 0.0, %v864
      %v866 = vpop.f32.mrf.mxu0
      %867 = vmatprep.mubr.bf16.mxu0 0
      %868 = vmatmul.mubr.bf16.gmra.mxu0 %v749
      %v869 = vpop.f32.mrf.mxu0
      %v870 = vadd.f32 0.0, %v869
      %v871 = vpop.f32.mrf.mxu0
      %v872 = vpop.f32.mrf.mxu0
      %v873 = vadd.f32 0.0, %v872
      %v874 = vpop.f32.mrf.mxu0
      %875 = vdwg.mxu0
      %v876 = vadd.f32 %v679, %v838
      %v877 = vadd.f32 %v682, %v841
      %v878 = vadd.f32 %v687, %v846
      %v879 = vadd.f32 %v690, %v849
      %v880 = vadd.f32 %v695, %v854
      %v881 = vadd.f32 %v698, %v857
      %v882 = vadd.f32 %v703, %v862
      %v883 = vadd.f32 %v706, %v865
      %v884 = vadd.f32 %v711, %v870
      %v885 = vadd.f32 %v714, %v873
      %v886 = vld [vmem:[%s317 + $0x4] sm:$0xe]
      %v887 = vld [vmem:[%s317 + $0x8] sm:$0xf]
      %v888 = vld [vmem:[%s317 + $0xc] sm:$0xf]
      %v889 = vld [vmem:[%s317 + $0x10] sm:$0xf]
      %v890 = vld [vmem:[%s317 + $0x14] sm:$0xf]
      %v891 = vld [vmem:[%s317 + $0x18] sm:$0xf]
      %v892 = vld [vmem:[%s317 + $0x1c] sm:$0xf]
      %v893 = vld [vmem:[%s317 + $0x20] sm:$0xf]
      %v894 = vld [vmem:[%s317 + $0x24] sm:$0xf]
      %v895 = vld [vmem:[%s317 + $0x28] sm:$0xf]
      %v896 = vld [vmem:[%s317 + $0x2c] sm:$0x1]
      %s897 = scalar_lea.vmem %s3, 768
      %v898 = vld [vmem:[%s897] sm:$0xf]
      %v899 = vld [vmem:[%s897 + $0x4] sm:$0xf]
      %v900 = vld [vmem:[%s897 + $0x8] sm:$0xf]
      %v901 = vld [vmem:[%s897 + $0xc] sm:$0xf]
      %v902 = vld [vmem:[%s897 + $0x10] sm:$0xf]
      %v903 = vld [vmem:[%s897 + $0x14] sm:$0xf]
      %v904 = vld [vmem:[%s897 + $0x18] sm:$0xf]
      %v905 = vld [vmem:[%s897 + $0x1c] sm:$0xf]
      %v906 = vld [vmem:[%s897 + $0x20] sm:$0xf]
      %v907 = vld [vmem:[%s897 + $0x24] sm:$0xf]
      %v908 = vld [vmem:[%s897 + $0x28] sm:$0xf]
      %v909 = vld [vmem:[%s897 + $0x2c] sm:$0xf]
      %v910 = vld [vmem:[%s897 + $0x30] sm:$0xf]
      %v911 = vld [vmem:[%s897 + $0x34] sm:$0xf]
      %v912 = vld [vmem:[%s897 + $0x38] sm:$0xf]
      %v913 = vld [vmem:[%s897 + $0x3c] sm:$0xf]
      %v925 = vunpack.c.l.b16 %v886
      %v926 = vunpack.c.l.b16 %v887
      %v927 = vunpack.c.l.b16 %v888
      %v928 = vunpack.c.l.b16 %v889
      %v929 = vunpack.c.l.b16 %v890
      %v930 = vunpack.c.l.b16 %v891
      %v931 = vunpack.c.l.b16 %v892
      %v932 = vunpack.c.l.b16 %v893
      %v933 = vunpack.c.l.b16 %v894
      %v934 = vunpack.c.l.b16 %v895
      %v935 = vunpack.c.l.b16 %v896
      %v936 = vpack.c.b16 %v926, %v925
      %v937 = vpack.c.b16 %v928, %v927
      %v938 = vpack.c.b16 %v930, %v929
      %v939 = vpack.c.b16 %v932, %v931
      %v940 = vpack.c.b16 %v934, %v933
      %v941 = vpack.c.b16 %v935, %v935
      %v942 = vrot.slane %v936, 1
      %v943 = vrot.slane %v937, 1
      %v944 = vsel %vm738, %v942, %v943
      %v945 = vrot.slane %v938, 1
      %v946 = vsel %vm738, %v943, %v945
      %v947 = vrot.slane %v939, 1
      %v948 = vsel %vm738, %v945, %v947
      %v949 = vrot.slane %v940, 1
      %v950 = vsel %vm738, %v947, %v949
      %v951 = vrot.slane %v941, 1
      %v952 = vsel %vm738, %v949, %v951
      %v974 = vunpack.c.l.b16 %v898
      %v975 = vunpack.c.l.b16 %v899
      %v976 = vunpack.c.l.b16 %v900
      %v977 = vunpack.c.l.b16 %v901
      %v978 = vunpack.c.l.b16 %v902
      %v979 = vunpack.c.l.b16 %v903
      %v980 = vunpack.c.l.b16 %v904
      %v981 = vunpack.c.l.b16 %v905
      %v982 = vunpack.c.l.b16 %v906
      %v983 = vunpack.c.l.b16 %v907
      %v984 = vunpack.c.l.b16 %v908
      %v985 = vunpack.c.l.b16 %v909
      %v986 = vunpack.c.l.b16 %v910
      %v987 = vunpack.c.l.b16 %v911
      %v988 = vunpack.c.l.b16 %v912
      %v989 = vunpack.c.l.b16 %v913
      %v990 = vpack.c.b16 %v975, %v974
      %v991 = vpack.c.b16 %v977, %v976
      %v992 = vpack.c.b16 %v979, %v978
      %v993 = vpack.c.b16 %v981, %v980
      %v994 = vpack.c.b16 %v983, %v982
      %v995 = vpack.c.b16 %v985, %v984
      %v996 = vpack.c.b16 %v987, %v986
      %v997 = vpack.c.b16 %v989, %v988
      %1006 = vmatprep.subr.bf16.mxu0 0
      %1007 = vmatpush1.bf16.msra.mxu0 %v997
      %1008 = vmatprep.subr.bf16.mxu0 0
      %1009 = vmatpush1.bf16.msra.mxu0 %v996
      %1010 = vmatprep.subr.bf16.mxu0 0
      %1011 = vmatpush1.bf16.msra.mxu0 %v995
      %1012 = vmatprep.subr.bf16.mxu0 0
      %1013 = vmatpush1.bf16.msra.mxu0 %v994
      %1014 = vmatprep.subr.bf16.mxu0 0
      %1015 = vmatpush1.bf16.msra.mxu0 %v993
      %1016 = vmatprep.subr.bf16.mxu0 0
      %1017 = vmatpush1.bf16.msra.mxu0 %v992
      %1018 = vmatprep.subr.bf16.mxu0 0
      %1019 = vmatpush1.bf16.msra.mxu0 %v991
      %1020 = vmatprep.subr.bf16.mxu0 0
      %1021 = vmatpush1.bf16.msra.mxu0 %v990
      %1022 = vmatprep.subr.bf16.mxu0 0
      %1023 = vmatpush2.bf16.msra.mxu0 0
      %1024 = vmatprep.subr.bf16.mxu0 0
      %1025 = vmatpush2.bf16.msra.mxu0 0
      %1026 = vmatprep.subr.bf16.mxu0 0
      %1027 = vmatpush2.bf16.msra.mxu0 0
      %1028 = vmatprep.subr.bf16.mxu0 0
      %1029 = vmatpush2.bf16.msra.mxu0 0
      %1030 = vmatprep.subr.bf16.mxu0 0
      %1031 = vmatpush2.bf16.msra.mxu0 0
      %1032 = vmatprep.subr.bf16.mxu0 0
      %1033 = vmatpush2.bf16.msra.mxu0 0
      %1034 = vmatprep.subr.bf16.mxu0 0
      %1035 = vmatpush2.bf16.msra.mxu0 0
      %1036 = vmatprep.subr.bf16.mxu0 0
      %1037 = vmatpush2.bf16.msra.mxu0 0
      %1038 = vmatprep.mubr.bf16.mxu0 0
      %1039 = vmatmul.mubr.bf16.gmra.mxu0 %v944
      %v1040 = vpop.f32.mrf.mxu0
      %v1041 = vadd.f32 0.0, %v1040
      %v1042 = vpop.f32.mrf.mxu0
      %v1043 = vpop.f32.mrf.mxu0
      %v1044 = vadd.f32 0.0, %v1043
      %v1045 = vpop.f32.mrf.mxu0
      %1046 = vmatprep.mubr.bf16.mxu0 0
      %1047 = vmatmul.mubr.bf16.gmra.mxu0 %v946
      %v1048 = vpop.f32.mrf.mxu0
      %v1049 = vadd.f32 0.0, %v1048
      %v1050 = vpop.f32.mrf.mxu0
      %v1051 = vpop.f32.mrf.mxu0
      %v1052 = vadd.f32 0.0, %v1051
      %v1053 = vpop.f32.mrf.mxu0
      %1054 = vmatprep.mubr.bf16.mxu0 0
      %1055 = vmatmul.mubr.bf16.gmra.mxu0 %v948
      %v1056 = vpop.f32.mrf.mxu0
      %v1057 = vadd.f32 0.0, %v1056
      %v1058 = vpop.f32.mrf.mxu0
      %v1059 = vpop.f32.mrf.mxu0
      %v1060 = vadd.f32 0.0, %v1059
      %v1061 = vpop.f32.mrf.mxu0
      %1062 = vmatprep.mubr.bf16.mxu0 0
      %1063 = vmatmul.mubr.bf16.gmra.mxu0 %v950
      %v1064 = vpop.f32.mrf.mxu0
      %v1065 = vadd.f32 0.0, %v1064
      %v1066 = vpop.f32.mrf.mxu0
      %v1067 = vpop.f32.mrf.mxu0
      %v1068 = vadd.f32 0.0, %v1067
      %v1069 = vpop.f32.mrf.mxu0
      %1070 = vmatprep.mubr.bf16.mxu0 0
      %1071 = vmatmul.mubr.bf16.gmra.mxu0 %v952
      %v1072 = vpop.f32.mrf.mxu0
      %v1073 = vadd.f32 0.0, %v1072
      %v1074 = vpop.f32.mrf.mxu0
      %v1075 = vpop.f32.mrf.mxu0
      %v1076 = vadd.f32 0.0, %v1075
      %v1077 = vpop.f32.mrf.mxu0
      %1078 = vdwg.mxu0
      %v1079 = vadd.f32 %v876, %v1041
      %v1080 = vadd.f32 %v877, %v1044
      %v1081 = vadd.f32 %v878, %v1049
      %v1082 = vadd.f32 %v879, %v1052
      %v1083 = vadd.f32 %v880, %v1057
      %v1084 = vadd.f32 %v881, %v1060
      %v1085 = vadd.f32 %v882, %v1065
      %v1086 = vadd.f32 %v883, %v1068
      %v1087 = vadd.f32 %v884, %v1073
      %v1088 = vadd.f32 %v885, %v1076
      %v1089 = vld [vmem:[%s317 + $0x2c] sm:$0x3]
      %s1090 = scalar_lea.vmem %s3, 832
      %v1091 = vld [vmem:[%s1090] sm:$0xf]
      %v1092 = vld [vmem:[%s1090 + $0x4] sm:$0xf]
      %v1093 = vld [vmem:[%s1090 + $0x8] sm:$0xf]
      %v1094 = vld [vmem:[%s1090 + $0xc] sm:$0xf]
      %v1095 = vld [vmem:[%s1090 + $0x10] sm:$0xf]
      %v1096 = vld [vmem:[%s1090 + $0x14] sm:$0xf]
      %v1097 = vld [vmem:[%s1090 + $0x18] sm:$0xf]
      %v1098 = vld [vmem:[%s1090 + $0x1c] sm:$0xf]
      %v1099 = vld [vmem:[%s1090 + $0x20] sm:$0xf]
      %v1100 = vld [vmem:[%s1090 + $0x24] sm:$0xf]
      %v1101 = vld [vmem:[%s1090 + $0x28] sm:$0xf]
      %v1102 = vld [vmem:[%s1090 + $0x2c] sm:$0xf]
      %v1103 = vld [vmem:[%s1090 + $0x30] sm:$0xf]
      %v1104 = vld [vmem:[%s1090 + $0x34] sm:$0xf]
      %v1105 = vld [vmem:[%s1090 + $0x38] sm:$0xf]
      %v1106 = vld [vmem:[%s1090 + $0x3c] sm:$0xf]
      %v1108 = vunpack.c.l.b16 %v1089
      %v1109 = vpack.c.b16 %v1108, %v1108
      %vm1110 = vsmask.f32 6400
      %v1112 = vshrl.u32 %v936, 16
      %v1114 = vrot.slane %v1112, 1
      %v1115 = vshll.u32 %v936, 16
      %v1117 = vrot.slane %v1115, 2
      %v1118 = vor.u32 %v1114, %v1117
      %v1120 = vshrl.u32 %v937, 16
      %v1122 = vrot.slane %v1120, 1
      %v1123 = vshll.u32 %v937, 16
      %v1125 = vrot.slane %v1123, 2
      %v1126 = vor.u32 %v1122, %v1125
      %v1127 = vsel %vm1110, %v1118, %v1126
      %v1129 = vshrl.u32 %v938, 16
      %v1131 = vrot.slane %v1129, 1
      %v1132 = vshll.u32 %v938, 16
      %v1134 = vrot.slane %v1132, 2
      %v1135 = vor.u32 %v1131, %v1134
      %v1136 = vsel %vm1110, %v1126, %v1135
      %v1138 = vshrl.u32 %v939, 16
      %v1140 = vrot.slane %v1138, 1
      %v1141 = vshll.u32 %v939, 16
      %v1143 = vrot.slane %v1141, 2
      %v1144 = vor.u32 %v1140, %v1143
      %v1145 = vsel %vm1110, %v1135, %v1144
      %v1147 = vshrl.u32 %v940, 16
      %v1149 = vrot.slane %v1147, 1
      %v1150 = vshll.u32 %v940, 16
      %v1152 = vrot.slane %v1150, 2
      %v1153 = vor.u32 %v1149, %v1152
      %v1154 = vsel %vm1110, %v1144, %v1153
      %v1156 = vshrl.u32 %v1109, 16
      %v1158 = vrot.slane %v1156, 1
      %v1159 = vshll.u32 %v1109, 16
      %v1161 = vrot.slane %v1159, 2
      %v1162 = vor.u32 %v1158, %v1161
      %v1163 = vsel %vm1110, %v1153, %v1162
      %v1185 = vunpack.c.l.b16 %v1091
      %v1186 = vunpack.c.l.b16 %v1092
      %v1187 = vunpack.c.l.b16 %v1093
      %v1188 = vunpack.c.l.b16 %v1094
      %v1189 = vunpack.c.l.b16 %v1095
      %v1190 = vunpack.c.l.b16 %v1096
      %v1191 = vunpack.c.l.b16 %v1097
      %v1192 = vunpack.c.l.b16 %v1098
      %v1193 = vunpack.c.l.b16 %v1099
      %v1194 = vunpack.c.l.b16 %v1100
      %v1195 = vunpack.c.l.b16 %v1101
      %v1196 = vunpack.c.l.b16 %v1102
      %v1197 = vunpack.c.l.b16 %v1103
      %v1198 = vunpack.c.l.b16 %v1104
      %v1199 = vunpack.c.l.b16 %v1105
      %v1200 = vunpack.c.l.b16 %v1106
      %v1201 = vpack.c.b16 %v1186, %v1185
      %v1202 = vpack.c.b16 %v1188, %v1187
      %v1203 = vpack.c.b16 %v1190, %v1189
      %v1204 = vpack.c.b16 %v1192, %v1191
      %v1205 = vpack.c.b16 %v1194, %v1193
      %v1206 = vpack.c.b16 %v1196, %v1195
      %v1207 = vpack.c.b16 %v1198, %v1197
      %v1208 = vpack.c.b16 %v1200, %v1199
      %1217 = vmatprep.subr.bf16.mxu0 0
      %1218 = vmatpush1.bf16.msra.mxu0 %v1208
      %1219 = vmatprep.subr.bf16.mxu0 0
      %1220 = vmatpush1.bf16.msra.mxu0 %v1207
      %1221 = vmatprep.subr.bf16.mxu0 0
      %1222 = vmatpush1.bf16.msra.mxu0 %v1206
      %1223 = vmatprep.subr.bf16.mxu0 0
      %1224 = vmatpush1.bf16.msra.mxu0 %v1205
      %1225 = vmatprep.subr.bf16.mxu0 0
      %1226 = vmatpush1.bf16.msra.mxu0 %v1204
      %1227 = vmatprep.subr.bf16.mxu0 0
      %1228 = vmatpush1.bf16.msra.mxu0 %v1203
      %1229 = vmatprep.subr.bf16.mxu0 0
      %1230 = vmatpush1.bf16.msra.mxu0 %v1202
      %1231 = vmatprep.subr.bf16.mxu0 0
      %1232 = vmatpush1.bf16.msra.mxu0 %v1201
      %1233 = vmatprep.subr.bf16.mxu0 0
      %1234 = vmatpush2.bf16.msra.mxu0 0
      %1235 = vmatprep.subr.bf16.mxu0 0
      %1236 = vmatpush2.bf16.msra.mxu0 0
      %1237 = vmatprep.subr.bf16.mxu0 0
      %1238 = vmatpush2.bf16.msra.mxu0 0
      %1239 = vmatprep.subr.bf16.mxu0 0
      %1240 = vmatpush2.bf16.msra.mxu0 0
      %1241 = vmatprep.subr.bf16.mxu0 0
      %1242 = vmatpush2.bf16.msra.mxu0 0
      %1243 = vmatprep.subr.bf16.mxu0 0
      %1244 = vmatpush2.bf16.msra.mxu0 0
      %1245 = vmatprep.subr.bf16.mxu0 0
      %1246 = vmatpush2.bf16.msra.mxu0 0
      %1247 = vmatprep.subr.bf16.mxu0 0
      %1248 = vmatpush2.bf16.msra.mxu0 0
      %1249 = vmatprep.mubr.bf16.mxu0 0
      %1250 = vmatmul.mubr.bf16.gmra.mxu0 %v1127
      %v1251 = vpop.f32.mrf.mxu0
      %v1252 = vadd.f32 0.0, %v1251
      %v1253 = vpop.f32.mrf.mxu0
      %v1254 = vpop.f32.mrf.mxu0
      %v1255 = vadd.f32 0.0, %v1254
      %v1256 = vpop.f32.mrf.mxu0
      %1257 = vmatprep.mubr.bf16.mxu0 0
      %1258 = vmatmul.mubr.bf16.gmra.mxu0 %v1136
      %v1259 = vpop.f32.mrf.mxu0
      %v1260 = vadd.f32 0.0, %v1259
      %v1261 = vpop.f32.mrf.mxu0
      %v1262 = vpop.f32.mrf.mxu0
      %v1263 = vadd.f32 0.0, %v1262
      %v1264 = vpop.f32.mrf.mxu0
      %1265 = vmatprep.mubr.bf16.mxu0 0
      %1266 = vmatmul.mubr.bf16.gmra.mxu0 %v1145
      %v1267 = vpop.f32.mrf.mxu0
      %v1268 = vadd.f32 0.0, %v1267
      %v1269 = vpop.f32.mrf.mxu0
      %v1270 = vpop.f32.mrf.mxu0
      %v1271 = vadd.f32 0.0, %v1270
      %v1272 = vpop.f32.mrf.mxu0
      %1273 = vmatprep.mubr.bf16.mxu0 0
      %1274 = vmatmul.mubr.bf16.gmra.mxu0 %v1154
      %v1275 = vpop.f32.mrf.mxu0
      %v1276 = vadd.f32 0.0, %v1275
      %v1277 = vpop.f32.mrf.mxu0
      %v1278 = vpop.f32.mrf.mxu0
      %v1279 = vadd.f32 0.0, %v1278
      %v1280 = vpop.f32.mrf.mxu0
      %1281 = vmatprep.mubr.bf16.mxu0 0
      %1282 = vmatmul.mubr.bf16.gmra.mxu0 %v1163
      %v1283 = vpop.f32.mrf.mxu0
      %v1284 = vadd.f32 0.0, %v1283
      %v1285 = vpop.f32.mrf.mxu0
      %v1286 = vpop.f32.mrf.mxu0
      %v1287 = vadd.f32 0.0, %v1286
      %v1288 = vpop.f32.mrf.mxu0
      %1289 = vdwg.mxu0
      %v1290 = vadd.f32 %v1079, %v1252
      %v1291 = vadd.f32 %v1080, %v1255
      %v1292 = vadd.f32 %v1081, %v1260
      %v1293 = vadd.f32 %v1082, %v1263
      %v1294 = vadd.f32 %v1083, %v1268
      %v1295 = vadd.f32 %v1084, %v1271
      %v1296 = vadd.f32 %v1085, %v1276
      %v1297 = vadd.f32 %v1086, %v1279
      %v1298 = vadd.f32 %v1087, %v1284
      %v1299 = vadd.f32 %v1088, %v1287
      %v1300 = vld [vmem:[%s317 + $0x4] sm:$0xc]
      %s1301 = scalar_lea.vmem %s3, 896
      %v1302 = vld [vmem:[%s1301] sm:$0xf]
      %v1303 = vld [vmem:[%s1301 + $0x4] sm:$0xf]
      %v1304 = vld [vmem:[%s1301 + $0x8] sm:$0xf]
      %v1305 = vld [vmem:[%s1301 + $0xc] sm:$0xf]
      %v1306 = vld [vmem:[%s1301 + $0x10] sm:$0xf]
      %v1307 = vld [vmem:[%s1301 + $0x14] sm:$0xf]
      %v1308 = vld [vmem:[%s1301 + $0x18] sm:$0xf]
      %v1309 = vld [vmem:[%s1301 + $0x1c] sm:$0xf]
      %v1310 = vld [vmem:[%s1301 + $0x20] sm:$0xf]
      %v1311 = vld [vmem:[%s1301 + $0x24] sm:$0xf]
      %v1312 = vld [vmem:[%s1301 + $0x28] sm:$0xf]
      %v1313 = vld [vmem:[%s1301 + $0x2c] sm:$0xf]
      %v1314 = vld [vmem:[%s1301 + $0x30] sm:$0xf]
      %v1315 = vld [vmem:[%s1301 + $0x34] sm:$0xf]
      %v1316 = vld [vmem:[%s1301 + $0x38] sm:$0xf]
      %v1317 = vld [vmem:[%s1301 + $0x3c] sm:$0xf]
      %v1319 = vunpack.c.l.b16 %v1300
      %v1320 = vpack.c.b16 %v926, %v1319
      %vm1321 = vcmask 1045504
      %v1322 = vrot.slane %v1320, 2
      %v1323 = vrot.slane %v937, 2
      %v1324 = vsel %vm1321, %v1322, %v1323
      %v1325 = vrot.slane %v938, 2
      %v1326 = vsel %vm1321, %v1323, %v1325
      %v1327 = vrot.slane %v939, 2
      %v1328 = vsel %vm1321, %v1325, %v1327
      %v1329 = vrot.slane %v940, 2
      %v1330 = vsel %vm1321, %v1327, %v1329
      %v1331 = vrot.slane %v1109, 2
      %v1332 = vsel %vm1321, %v1329, %v1331
      %v1354 = vunpack.c.l.b16 %v1302
      %v1355 = vunpack.c.l.b16 %v1303
      %v1356 = vunpack.c.l.b16 %v1304
      %v1357 = vunpack.c.l.b16 %v1305
      %v1358 = vunpack.c.l.b16 %v1306
      %v1359 = vunpack.c.l.b16 %v1307
      %v1360 = vunpack.c.l.b16 %v1308
      %v1361 = vunpack.c.l.b16 %v1309
      %v1362 = vunpack.c.l.b16 %v1310
      %v1363 = vunpack.c.l.b16 %v1311
      %v1364 = vunpack.c.l.b16 %v1312
      %v1365 = vunpack.c.l.b16 %v1313
      %v1366 = vunpack.c.l.b16 %v1314
      %v1367 = vunpack.c.l.b16 %v1315
      %v1368 = vunpack.c.l.b16 %v1316
      %v1369 = vunpack.c.l.b16 %v1317
      %v1370 = vpack.c.b16 %v1355, %v1354
      %v1371 = vpack.c.b16 %v1357, %v1356
      %v1372 = vpack.c.b16 %v1359, %v1358
      %v1373 = vpack.c.b16 %v1361, %v1360
      %v1374 = vpack.c.b16 %v1363, %v1362
      %v1375 = vpack.c.b16 %v1365, %v1364
      %v1376 = vpack.c.b16 %v1367, %v1366
      %v1377 = vpack.c.b16 %v1369, %v1368
      %1386 = vmatprep.subr.bf16.mxu0 0
      %1387 = vmatpush1.bf16.msra.mxu0 %v1377
      %1388 = vmatprep.subr.bf16.mxu0 0
      %1389 = vmatpush1.bf16.msra.mxu0 %v1376
      %1390 = vmatprep.subr.bf16.mxu0 0
      %1391 = vmatpush1.bf16.msra.mxu0 %v1375
      %1392 = vmatprep.subr.bf16.mxu0 0
      %1393 = vmatpush1.bf16.msra.mxu0 %v1374
      %1394 = vmatprep.subr.bf16.mxu0 0
      %1395 = vmatpush1.bf16.msra.mxu0 %v1373
      %1396 = vmatprep.subr.bf16.mxu0 0
      %1397 = vmatpush1.bf16.msra.mxu0 %v1372
      %1398 = vmatprep.subr.bf16.mxu0 0
      %1399 = vmatpush1.bf16.msra.mxu0 %v1371
      %1400 = vmatprep.subr.bf16.mxu0 0
      %1401 = vmatpush1.bf16.msra.mxu0 %v1370
      %1402 = vmatprep.subr.bf16.mxu0 0
      %1403 = vmatpush2.bf16.msra.mxu0 0
      %1404 = vmatprep.subr.bf16.mxu0 0
      %1405 = vmatpush2.bf16.msra.mxu0 0
      %1406 = vmatprep.subr.bf16.mxu0 0
      %1407 = vmatpush2.bf16.msra.mxu0 0
      %1408 = vmatprep.subr.bf16.mxu0 0
      %1409 = vmatpush2.bf16.msra.mxu0 0
      %1410 = vmatprep.subr.bf16.mxu0 0
      %1411 = vmatpush2.bf16.msra.mxu0 0
      %1412 = vmatprep.subr.bf16.mxu0 0
      %1413 = vmatpush2.bf16.msra.mxu0 0
      %1414 = vmatprep.subr.bf16.mxu0 0
      %1415 = vmatpush2.bf16.msra.mxu0 0
      %1416 = vmatprep.subr.bf16.mxu0 0
      %1417 = vmatpush2.bf16.msra.mxu0 0
      %1418 = vmatprep.mubr.bf16.mxu0 0
      %1419 = vmatmul.mubr.bf16.gmra.mxu0 %v1324
      %v1420 = vpop.f32.mrf.mxu0
      %v1421 = vadd.f32 0.0, %v1420
      %v1422 = vpop.f32.mrf.mxu0
      %v1423 = vpop.f32.mrf.mxu0
      %v1424 = vadd.f32 0.0, %v1423
      %v1425 = vpop.f32.mrf.mxu0
      %1426 = vmatprep.mubr.bf16.mxu0 0
      %1427 = vmatmul.mubr.bf16.gmra.mxu0 %v1326
      %v1428 = vpop.f32.mrf.mxu0
      %v1429 = vadd.f32 0.0, %v1428
      %v1430 = vpop.f32.mrf.mxu0
      %v1431 = vpop.f32.mrf.mxu0
      %v1432 = vadd.f32 0.0, %v1431
      %v1433 = vpop.f32.mrf.mxu0
      %1434 = vmatprep.mubr.bf16.mxu0 0
      %1435 = vmatmul.mubr.bf16.gmra.mxu0 %v1328
      %v1436 = vpop.f32.mrf.mxu0
      %v1437 = vadd.f32 0.0, %v1436
      %v1438 = vpop.f32.mrf.mxu0
      %v1439 = vpop.f32.mrf.mxu0
      %v1440 = vadd.f32 0.0, %v1439
      %v1441 = vpop.f32.mrf.mxu0
      %1442 = vmatprep.mubr.bf16.mxu0 0
      %1443 = vmatmul.mubr.bf16.gmra.mxu0 %v1330
      %v1444 = vpop.f32.mrf.mxu0
      %v1445 = vadd.f32 0.0, %v1444
      %v1446 = vpop.f32.mrf.mxu0
      %v1447 = vpop.f32.mrf.mxu0
      %v1448 = vadd.f32 0.0, %v1447
      %v1449 = vpop.f32.mrf.mxu0
      %1450 = vmatprep.mubr.bf16.mxu0 0
      %1451 = vmatmul.mubr.bf16.gmra.mxu0 %v1332
      %v1452 = vpop.f32.mrf.mxu0
      %v1453 = vadd.f32 0.0, %v1452
      %v1454 = vpop.f32.mrf.mxu0
      %v1455 = vpop.f32.mrf.mxu0
      %v1456 = vadd.f32 0.0, %v1455
      %v1457 = vpop.f32.mrf.mxu0
      %1458 = vdwg.mxu0
      %v1459 = vadd.f32 %v1290, %v1421
      %v1460 = vadd.f32 %v1291, %v1424
      %v1461 = vadd.f32 %v1292, %v1429
      %v1462 = vadd.f32 %v1293, %v1432
      %v1463 = vadd.f32 %v1294, %v1437
      %v1464 = vadd.f32 %v1295, %v1440
      %v1465 = vadd.f32 %v1296, %v1445
      %v1466 = vadd.f32 %v1297, %v1448
      %v1467 = vadd.f32 %v1298, %v1453
      %v1468 = vadd.f32 %v1299, %v1456
      %v1469 = vld [vmem:[%s317 + $0x8] sm:$0xc]
      %v1470 = vld [vmem:[%s317 + $0xc] sm:$0xf]
      %v1471 = vld [vmem:[%s317 + $0x10] sm:$0xf]
      %v1472 = vld [vmem:[%s317 + $0x14] sm:$0xf]
      %v1473 = vld [vmem:[%s317 + $0x18] sm:$0xf]
      %v1474 = vld [vmem:[%s317 + $0x1c] sm:$0xf]
      %v1475 = vld [vmem:[%s317 + $0x20] sm:$0xf]
      %v1476 = vld [vmem:[%s317 + $0x24] sm:$0xf]
      %v1477 = vld [vmem:[%s317 + $0x28] sm:$0xf]
      %v1478 = vld [vmem:[%s317 + $0x2c] sm:$0xf]
      %v1479 = vld [vmem:[%s317 + $0x30] sm:$0x3]
      %s1480 = scalar_lea.vmem %s3, 960
      %v1481 = vld [vmem:[%s1480] sm:$0xf]
      %v1482 = vld [vmem:[%s1480 + $0x4] sm:$0xf]
      %v1483 = vld [vmem:[%s1480 + $0x8] sm:$0xf]
      %v1484 = vld [vmem:[%s1480 + $0xc] sm:$0xf]
      %v1485 = vld [vmem:[%s1480 + $0x10] sm:$0xf]
      %v1486 = vld [vmem:[%s1480 + $0x14] sm:$0xf]
      %v1487 = vld [vmem:[%s1480 + $0x18] sm:$0xf]
      %v1488 = vld [vmem:[%s1480 + $0x1c] sm:$0xf]
      %v1489 = vld [vmem:[%s1480 + $0x20] sm:$0xf]
      %v1490 = vld [vmem:[%s1480 + $0x24] sm:$0xf]
      %v1491 = vld [vmem:[%s1480 + $0x28] sm:$0xf]
      %v1492 = vld [vmem:[%s1480 + $0x2c] sm:$0xf]
      %v1493 = vld [vmem:[%s1480 + $0x30] sm:$0xf]
      %v1494 = vld [vmem:[%s1480 + $0x34] sm:$0xf]
      %v1495 = vld [vmem:[%s1480 + $0x38] sm:$0xf]
      %v1496 = vld [vmem:[%s1480 + $0x3c] sm:$0xf]
      %v1508 = vunpack.c.l.b16 %v1469
      %v1509 = vunpack.c.l.b16 %v1470
      %v1510 = vunpack.c.l.b16 %v1471
      %v1511 = vunpack.c.l.b16 %v1472
      %v1512 = vunpack.c.l.b16 %v1473
      %v1513 = vunpack.c.l.b16 %v1474
      %v1514 = vunpack.c.l.b16 %v1475
      %v1515 = vunpack.c.l.b16 %v1476
      %v1516 = vunpack.c.l.b16 %v1477
      %v1517 = vunpack.c.l.b16 %v1478
      %v1518 = vunpack.c.l.b16 %v1479
      %v1519 = vpack.c.b16 %v1509, %v1508
      %v1520 = vpack.c.b16 %v1511, %v1510
      %v1521 = vpack.c.b16 %v1513, %v1512
      %v1522 = vpack.c.b16 %v1515, %v1514
      %v1523 = vpack.c.b16 %v1517, %v1516
      %v1524 = vpack.c.b16 %v1518, %v1518
      %v1525 = vrot.slane %v1519, 2
      %v1526 = vrot.slane %v1520, 2
      %v1527 = vsel %vm1321, %v1525, %v1526
      %v1528 = vrot.slane %v1521, 2
      %v1529 = vsel %vm1321, %v1526, %v1528
      %v1530 = vrot.slane %v1522, 2
      %v1531 = vsel %vm1321, %v1528, %v1530
      %v1532 = vrot.slane %v1523, 2
      %v1533 = vsel %vm1321, %v1530, %v1532
      %v1534 = vrot.slane %v1524, 2
      %v1535 = vsel %vm1321, %v1532, %v1534
      %v1557 = vunpack.c.l.b16 %v1481
      %v1558 = vunpack.c.l.b16 %v1482
      %v1559 = vunpack.c.l.b16 %v1483
      %v1560 = vunpack.c.l.b16 %v1484
      %v1561 = vunpack.c.l.b16 %v1485
      %v1562 = vunpack.c.l.b16 %v1486
      %v1563 = vunpack.c.l.b16 %v1487
      %v1564 = vunpack.c.l.b16 %v1488
      %v1565 = vunpack.c.l.b16 %v1489
      %v1566 = vunpack.c.l.b16 %v1490
      %v1567 = vunpack.c.l.b16 %v1491
      %v1568 = vunpack.c.l.b16 %v1492
      %v1569 = vunpack.c.l.b16 %v1493
      %v1570 = vunpack.c.l.b16 %v1494
      %v1571 = vunpack.c.l.b16 %v1495
      %v1572 = vunpack.c.l.b16 %v1496
      %v1573 = vpack.c.b16 %v1558, %v1557
      %v1574 = vpack.c.b16 %v1560, %v1559
      %v1575 = vpack.c.b16 %v1562, %v1561
      %v1576 = vpack.c.b16 %v1564, %v1563
      %v1577 = vpack.c.b16 %v1566, %v1565
      %v1578 = vpack.c.b16 %v1568, %v1567
      %v1579 = vpack.c.b16 %v1570, %v1569
      %v1580 = vpack.c.b16 %v1572, %v1571
      %1589 = vmatprep.subr.bf16.mxu0 0
      %1590 = vmatpush1.bf16.msra.mxu0 %v1580
      %1591 = vmatprep.subr.bf16.mxu0 0
      %1592 = vmatpush1.bf16.msra.mxu0 %v1579
      %1593 = vmatprep.subr.bf16.mxu0 0
      %1594 = vmatpush1.bf16.msra.mxu0 %v1578
      %1595 = vmatprep.subr.bf16.mxu0 0
      %1596 = vmatpush1.bf16.msra.mxu0 %v1577
      %1597 = vmatprep.subr.bf16.mxu0 0
      %1598 = vmatpush1.bf16.msra.mxu0 %v1576
      %1599 = vmatprep.subr.bf16.mxu0 0
      %1600 = vmatpush1.bf16.msra.mxu0 %v1575
      %1601 = vmatprep.subr.bf16.mxu0 0
      %1602 = vmatpush1.bf16.msra.mxu0 %v1574
      %1603 = vmatprep.subr.bf16.mxu0 0
      %1604 = vmatpush1.bf16.msra.mxu0 %v1573
      %1605 = vmatprep.subr.bf16.mxu0 0
      %1606 = vmatpush2.bf16.msra.mxu0 0
      %1607 = vmatprep.subr.bf16.mxu0 0
      %1608 = vmatpush2.bf16.msra.mxu0 0
      %1609 = vmatprep.subr.bf16.mxu0 0
      %1610 = vmatpush2.bf16.msra.mxu0 0
      %1611 = vmatprep.subr.bf16.mxu0 0
      %1612 = vmatpush2.bf16.msra.mxu0 0
      %1613 = vmatprep.subr.bf16.mxu0 0
      %1614 = vmatpush2.bf16.msra.mxu0 0
      %1615 = vmatprep.subr.bf16.mxu0 0
      %1616 = vmatpush2.bf16.msra.mxu0 0
      %1617 = vmatprep.subr.bf16.mxu0 0
      %1618 = vmatpush2.bf16.msra.mxu0 0
      %1619 = vmatprep.subr.bf16.mxu0 0
      %1620 = vmatpush2.bf16.msra.mxu0 0
      %1621 = vmatprep.mubr.bf16.mxu0 0
      %1622 = vmatmul.mubr.bf16.gmra.mxu0 %v1527
      %v1623 = vpop.f32.mrf.mxu0
      %v1624 = vadd.f32 0.0, %v1623
      %v1625 = vpop.f32.mrf.mxu0
      %v1626 = vpop.f32.mrf.mxu0
      %v1627 = vadd.f32 0.0, %v1626
      %v1628 = vpop.f32.mrf.mxu0
      %1629 = vmatprep.mubr.bf16.mxu0 0
      %1630 = vmatmul.mubr.bf16.gmra.mxu0 %v1529
      %v1631 = vpop.f32.mrf.mxu0
      %v1632 = vadd.f32 0.0, %v1631
      %v1633 = vpop.f32.mrf.mxu0
      %v1634 = vpop.f32.mrf.mxu0
      %v1635 = vadd.f32 0.0, %v1634
      %v1636 = vpop.f32.mrf.mxu0
      %1637 = vmatprep.mubr.bf16.mxu0 0
      %1638 = vmatmul.mubr.bf16.gmra.mxu0 %v1531
      %v1639 = vpop.f32.mrf.mxu0
      %v1640 = vadd.f32 0.0, %v1639
      %v1641 = vpop.f32.mrf.mxu0
      %v1642 = vpop.f32.mrf.mxu0
      %v1643 = vadd.f32 0.0, %v1642
      %v1644 = vpop.f32.mrf.mxu0
      %1645 = vmatprep.mubr.bf16.mxu0 0
      %1646 = vmatmul.mubr.bf16.gmra.mxu0 %v1533
      %v1647 = vpop.f32.mrf.mxu0
      %v1648 = vadd.f32 0.0, %v1647
      %v1649 = vpop.f32.mrf.mxu0
      %v1650 = vpop.f32.mrf.mxu0
      %v1651 = vadd.f32 0.0, %v1650
      %v1652 = vpop.f32.mrf.mxu0
      %1653 = vmatprep.mubr.bf16.mxu0 0
      %1654 = vmatmul.mubr.bf16.gmra.mxu0 %v1535
      %v1655 = vpop.f32.mrf.mxu0
      %v1656 = vadd.f32 0.0, %v1655
      %v1657 = vpop.f32.mrf.mxu0
      %v1658 = vpop.f32.mrf.mxu0
      %v1659 = vadd.f32 0.0, %v1658
      %v1660 = vpop.f32.mrf.mxu0
      %1661 = vdwg.mxu0
      %v1662 = vadd.f32 %v1459, %v1624
      %v1663 = vadd.f32 %v1460, %v1627
      %v1664 = vadd.f32 %v1461, %v1632
      %v1665 = vadd.f32 %v1462, %v1635
      %v1666 = vadd.f32 %v1463, %v1640
      %v1667 = vadd.f32 %v1464, %v1643
      %v1668 = vadd.f32 %v1465, %v1648
      %v1669 = vadd.f32 %v1466, %v1651
      %v1670 = vadd.f32 %v1467, %v1656
      %v1671 = vadd.f32 %v1468, %v1659
      %v1672 = vld [vmem:[%s317 + $0x30] sm:$0x7]
      %s1673 = scalar_lea.vmem %s3, 1024
      %v1674 = vld [vmem:[%s1673] sm:$0xf]
      %v1675 = vld [vmem:[%s1673 + $0x4] sm:$0xf]
      %v1676 = vld [vmem:[%s1673 + $0x8] sm:$0xf]
      %v1677 = vld [vmem:[%s1673 + $0xc] sm:$0xf]
      %v1678 = vld [vmem:[%s1673 + $0x10] sm:$0xf]
      %v1679 = vld [vmem:[%s1673 + $0x14] sm:$0xf]
      %v1680 = vld [vmem:[%s1673 + $0x18] sm:$0xf]
      %v1681 = vld [vmem:[%s1673 + $0x1c] sm:$0xf]
      %v1682 = vld [vmem:[%s1673 + $0x20] sm:$0xf]
      %v1683 = vld [vmem:[%s1673 + $0x24] sm:$0xf]
      %v1684 = vld [vmem:[%s1673 + $0x28] sm:$0xf]
      %v1685 = vld [vmem:[%s1673 + $0x2c] sm:$0xf]
      %v1686 = vld [vmem:[%s1673 + $0x30] sm:$0xf]
      %v1687 = vld [vmem:[%s1673 + $0x34] sm:$0xf]
      %v1688 = vld [vmem:[%s1673 + $0x38] sm:$0xf]
      %v1689 = vld [vmem:[%s1673 + $0x3c] sm:$0xf]
      %v1691 = vunpack.c.l.b16 %v1672
      %v1692 = vpack.c.b16 %v1691, %v1691
      %vm1693 = vsmask.f32 5376
      %v1695 = vshrl.u32 %v1519, 16
      %v1697 = vrot.slane %v1695, 2
      %v1698 = vshll.u32 %v1519, 16
      %v1700 = vrot.slane %v1698, 3
      %v1701 = vor.u32 %v1697, %v1700
      %v1703 = vshrl.u32 %v1520, 16
      %v1705 = vrot.slane %v1703, 2
      %v1706 = vshll.u32 %v1520, 16
      %v1708 = vrot.slane %v1706, 3
      %v1709 = vor.u32 %v1705, %v1708
      %v1710 = vsel %vm1693, %v1701, %v1709
      %v1712 = vshrl.u32 %v1521, 16
      %v1714 = vrot.slane %v1712, 2
      %v1715 = vshll.u32 %v1521, 16
      %v1717 = vrot.slane %v1715, 3
      %v1718 = vor.u32 %v1714, %v1717
      %v1719 = vsel %vm1693, %v1709, %v1718
      %v1721 = vshrl.u32 %v1522, 16
      %v1723 = vrot.slane %v1721, 2
      %v1724 = vshll.u32 %v1522, 16
      %v1726 = vrot.slane %v1724, 3
      %v1727 = vor.u32 %v1723, %v1726
      %v1728 = vsel %vm1693, %v1718, %v1727
      %v1730 = vshrl.u32 %v1523, 16
      %v1732 = vrot.slane %v1730, 2
      %v1733 = vshll.u32 %v1523, 16
      %v1735 = vrot.slane %v1733, 3
      %v1736 = vor.u32 %v1732, %v1735
      %v1737 = vsel %vm1693, %v1727, %v1736
      %v1739 = vshrl.u32 %v1692, 16
      %v1741 = vrot.slane %v1739, 2
      %v1742 = vshll.u32 %v1692, 16
      %v1744 = vrot.slane %v1742, 3
      %v1745 = vor.u32 %v1741, %v1744
      %v1746 = vsel %vm1693, %v1736, %v1745
      %v1768 = vunpack.c.l.b16 %v1674
      %v1769 = vunpack.c.l.b16 %v1675
      %v1770 = vunpack.c.l.b16 %v1676
      %v1771 = vunpack.c.l.b16 %v1677
      %v1772 = vunpack.c.l.b16 %v1678
      %v1773 = vunpack.c.l.b16 %v1679
      %v1774 = vunpack.c.l.b16 %v1680
      %v1775 = vunpack.c.l.b16 %v1681
      %v1776 = vunpack.c.l.b16 %v1682
      %v1777 = vunpack.c.l.b16 %v1683
      %v1778 = vunpack.c.l.b16 %v1684
      %v1779 = vunpack.c.l.b16 %v1685
      %v1780 = vunpack.c.l.b16 %v1686
      %v1781 = vunpack.c.l.b16 %v1687
      %v1782 = vunpack.c.l.b16 %v1688
      %v1783 = vunpack.c.l.b16 %v1689
      %v1784 = vpack.c.b16 %v1769, %v1768
      %v1785 = vpack.c.b16 %v1771, %v1770
      %v1786 = vpack.c.b16 %v1773, %v1772
      %v1787 = vpack.c.b16 %v1775, %v1774
      %v1788 = vpack.c.b16 %v1777, %v1776
      %v1789 = vpack.c.b16 %v1779, %v1778
      %v1790 = vpack.c.b16 %v1781, %v1780
      %v1791 = vpack.c.b16 %v1783, %v1782
      %1800 = vmatprep.subr.bf16.mxu0 0
      %1801 = vmatpush1.bf16.msra.mxu0 %v1791
      %1802 = vmatprep.subr.bf16.mxu0 0
      %1803 = vmatpush1.bf16.msra.mxu0 %v1790
      %1804 = vmatprep.subr.bf16.mxu0 0
      %1805 = vmatpush1.bf16.msra.mxu0 %v1789
      %1806 = vmatprep.subr.bf16.mxu0 0
      %1807 = vmatpush1.bf16.msra.mxu0 %v1788
      %1808 = vmatprep.subr.bf16.mxu0 0
      %1809 = vmatpush1.bf16.msra.mxu0 %v1787
      %1810 = vmatprep.subr.bf16.mxu0 0
      %1811 = vmatpush1.bf16.msra.mxu0 %v1786
      %1812 = vmatprep.subr.bf16.mxu0 0
      %1813 = vmatpush1.bf16.msra.mxu0 %v1785
      %1814 = vmatprep.subr.bf16.mxu0 0
      %1815 = vmatpush1.bf16.msra.mxu0 %v1784
      %1816 = vmatprep.subr.bf16.mxu0 0
      %1817 = vmatpush2.bf16.msra.mxu0 0
      %1818 = vmatprep.subr.bf16.mxu0 0
      %1819 = vmatpush2.bf16.msra.mxu0 0
      %1820 = vmatprep.subr.bf16.mxu0 0
      %1821 = vmatpush2.bf16.msra.mxu0 0
      %1822 = vmatprep.subr.bf16.mxu0 0
      %1823 = vmatpush2.bf16.msra.mxu0 0
      %1824 = vmatprep.subr.bf16.mxu0 0
      %1825 = vmatpush2.bf16.msra.mxu0 0
      %1826 = vmatprep.subr.bf16.mxu0 0
      %1827 = vmatpush2.bf16.msra.mxu0 0
      %1828 = vmatprep.subr.bf16.mxu0 0
      %1829 = vmatpush2.bf16.msra.mxu0 0
      %1830 = vmatprep.subr.bf16.mxu0 0
      %1831 = vmatpush2.bf16.msra.mxu0 0
      %1832 = vmatprep.mubr.bf16.mxu0 0
      %1833 = vmatmul.mubr.bf16.gmra.mxu0 %v1710
      %v1834 = vpop.f32.mrf.mxu0
      %v1835 = vadd.f32 0.0, %v1834
      %v1836 = vpop.f32.mrf.mxu0
      %v1837 = vpop.f32.mrf.mxu0
      %v1838 = vadd.f32 0.0, %v1837
      %v1839 = vpop.f32.mrf.mxu0
      %1840 = vmatprep.mubr.bf16.mxu0 0
      %1841 = vmatmul.mubr.bf16.gmra.mxu0 %v1719
      %v1842 = vpop.f32.mrf.mxu0
      %v1843 = vadd.f32 0.0, %v1842
      %v1844 = vpop.f32.mrf.mxu0
      %v1845 = vpop.f32.mrf.mxu0
      %v1846 = vadd.f32 0.0, %v1845
      %v1847 = vpop.f32.mrf.mxu0
      %1848 = vmatprep.mubr.bf16.mxu0 0
      %1849 = vmatmul.mubr.bf16.gmra.mxu0 %v1728
      %v1850 = vpop.f32.mrf.mxu0
      %v1851 = vadd.f32 0.0, %v1850
      %v1852 = vpop.f32.mrf.mxu0
      %v1853 = vpop.f32.mrf.mxu0
      %v1854 = vadd.f32 0.0, %v1853
      %v1855 = vpop.f32.mrf.mxu0
      %1856 = vmatprep.mubr.bf16.mxu0 0
      %1857 = vmatmul.mubr.bf16.gmra.mxu0 %v1737
      %v1858 = vpop.f32.mrf.mxu0
      %v1859 = vadd.f32 0.0, %v1858
      %v1860 = vpop.f32.mrf.mxu0
      %v1861 = vpop.f32.mrf.mxu0
      %v1862 = vadd.f32 0.0, %v1861
      %v1863 = vpop.f32.mrf.mxu0
      %1864 = vmatprep.mubr.bf16.mxu0 0
      %1865 = vmatmul.mubr.bf16.gmra.mxu0 %v1746
      %v1866 = vpop.f32.mrf.mxu0
      %v1867 = vadd.f32 0.0, %v1866
      %v1868 = vpop.f32.mrf.mxu0
      %v1869 = vpop.f32.mrf.mxu0
      %v1870 = vadd.f32 0.0, %v1869
      %v1871 = vpop.f32.mrf.mxu0
      %1872 = vdwg.mxu0
      %v1873 = vadd.f32 %v1662, %v1835
      %v1874 = vadd.f32 %v1663, %v1838
      %v1875 = vadd.f32 %v1664, %v1843
      %v1876 = vadd.f32 %v1665, %v1846
      %v1877 = vadd.f32 %v1666, %v1851
      %v1878 = vadd.f32 %v1667, %v1854
      %v1879 = vadd.f32 %v1668, %v1859
      %v1880 = vadd.f32 %v1669, %v1862
      %v1881 = vadd.f32 %v1670, %v1867
      %v1882 = vadd.f32 %v1671, %v1870
      %v1883 = vld [vmem:[%s317 + $0x8] sm:$0x8]
      %s1884 = scalar_lea.vmem %s3, 1088
      %v1885 = vld [vmem:[%s1884] sm:$0xf]
      %v1886 = vld [vmem:[%s1884 + $0x4] sm:$0xf]
      %v1887 = vld [vmem:[%s1884 + $0x8] sm:$0xf]
      %v1888 = vld [vmem:[%s1884 + $0xc] sm:$0xf]
      %v1889 = vld [vmem:[%s1884 + $0x10] sm:$0xf]
      %v1890 = vld [vmem:[%s1884 + $0x14] sm:$0xf]
      %v1891 = vld [vmem:[%s1884 + $0x18] sm:$0xf]
      %v1892 = vld [vmem:[%s1884 + $0x1c] sm:$0xf]
      %v1893 = vld [vmem:[%s1884 + $0x20] sm:$0xf]
      %v1894 = vld [vmem:[%s1884 + $0x24] sm:$0xf]
      %v1895 = vld [vmem:[%s1884 + $0x28] sm:$0xf]
      %v1896 = vld [vmem:[%s1884 + $0x2c] sm:$0xf]
      %v1897 = vld [vmem:[%s1884 + $0x30] sm:$0xf]
      %v1898 = vld [vmem:[%s1884 + $0x34] sm:$0xf]
      %v1899 = vld [vmem:[%s1884 + $0x38] sm:$0xf]
      %v1900 = vld [vmem:[%s1884 + $0x3c] sm:$0xf]
      %v1902 = vunpack.c.l.b16 %v1883
      %v1903 = vpack.c.b16 %v1509, %v1902
      %vm1904 = vcmask 1044480
      %v1905 = vrot.slane %v1903, 3
      %v1906 = vrot.slane %v1520, 3
      %v1907 = vsel %vm1904, %v1905, %v1906
      %v1908 = vrot.slane %v1521, 3
      %v1909 = vsel %vm1904, %v1906, %v1908
      %v1910 = vrot.slane %v1522, 3
      %v1911 = vsel %vm1904, %v1908, %v1910
      %v1912 = vrot.slane %v1523, 3
      %v1913 = vsel %vm1904, %v1910, %v1912
      %v1914 = vrot.slane %v1692, 3
      %v1915 = vsel %vm1904, %v1912, %v1914
      %v1937 = vunpack.c.l.b16 %v1885
      %v1938 = vunpack.c.l.b16 %v1886
      %v1939 = vunpack.c.l.b16 %v1887
      %v1940 = vunpack.c.l.b16 %v1888
      %v1941 = vunpack.c.l.b16 %v1889
      %v1942 = vunpack.c.l.b16 %v1890
      %v1943 = vunpack.c.l.b16 %v1891
      %v1944 = vunpack.c.l.b16 %v1892
      %v1945 = vunpack.c.l.b16 %v1893
      %v1946 = vunpack.c.l.b16 %v1894
      %v1947 = vunpack.c.l.b16 %v1895
      %v1948 = vunpack.c.l.b16 %v1896
      %v1949 = vunpack.c.l.b16 %v1897
      %v1950 = vunpack.c.l.b16 %v1898
      %v1951 = vunpack.c.l.b16 %v1899
      %v1952 = vunpack.c.l.b16 %v1900
      %v1953 = vpack.c.b16 %v1938, %v1937
      %v1954 = vpack.c.b16 %v1940, %v1939
      %v1955 = vpack.c.b16 %v1942, %v1941
      %v1956 = vpack.c.b16 %v1944, %v1943
      %v1957 = vpack.c.b16 %v1946, %v1945
      %v1958 = vpack.c.b16 %v1948, %v1947
      %v1959 = vpack.c.b16 %v1950, %v1949
      %v1960 = vpack.c.b16 %v1952, %v1951
      %1969 = vmatprep.subr.bf16.mxu0 0
      %1970 = vmatpush1.bf16.msra.mxu0 %v1960
      %1971 = vmatprep.subr.bf16.mxu0 0
      %1972 = vmatpush1.bf16.msra.mxu0 %v1959
      %1973 = vmatprep.subr.bf16.mxu0 0
      %1974 = vmatpush1.bf16.msra.mxu0 %v1958
      %1975 = vmatprep.subr.bf16.mxu0 0
      %1976 = vmatpush1.bf16.msra.mxu0 %v1957
      %1977 = vmatprep.subr.bf16.mxu0 0
      %1978 = vmatpush1.bf16.msra.mxu0 %v1956
      %1979 = vmatprep.subr.bf16.mxu0 0
      %1980 = vmatpush1.bf16.msra.mxu0 %v1955
      %1981 = vmatprep.subr.bf16.mxu0 0
      %1982 = vmatpush1.bf16.msra.mxu0 %v1954
      %1983 = vmatprep.subr.bf16.mxu0 0
      %1984 = vmatpush1.bf16.msra.mxu0 %v1953
      %1985 = vmatprep.subr.bf16.mxu0 0
      %1986 = vmatpush2.bf16.msra.mxu0 0
      %1987 = vmatprep.subr.bf16.mxu0 0
      %1988 = vmatpush2.bf16.msra.mxu0 0
      %1989 = vmatprep.subr.bf16.mxu0 0
      %1990 = vmatpush2.bf16.msra.mxu0 0
      %1991 = vmatprep.subr.bf16.mxu0 0
      %1992 = vmatpush2.bf16.msra.mxu0 0
      %1993 = vmatprep.subr.bf16.mxu0 0
      %1994 = vmatpush2.bf16.msra.mxu0 0
      %1995 = vmatprep.subr.bf16.mxu0 0
      %1996 = vmatpush2.bf16.msra.mxu0 0
      %1997 = vmatprep.subr.bf16.mxu0 0
      %1998 = vmatpush2.bf16.msra.mxu0 0
      %1999 = vmatprep.subr.bf16.mxu0 0
      %2000 = vmatpush2.bf16.msra.mxu0 0
      %2001 = vmatprep.mubr.bf16.mxu0 0
      %2002 = vmatmul.mubr.bf16.gmra.mxu0 %v1907
      %v2003 = vpop.f32.mrf.mxu0
      %v2004 = vadd.f32 0.0, %v2003
      %v2005 = vpop.f32.mrf.mxu0
      %v2006 = vpop.f32.mrf.mxu0
      %v2007 = vadd.f32 0.0, %v2006
      %v2008 = vpop.f32.mrf.mxu0
      %2009 = vmatprep.mubr.bf16.mxu0 0
      %2010 = vmatmul.mubr.bf16.gmra.mxu0 %v1909
      %v2011 = vpop.f32.mrf.mxu0
      %v2012 = vadd.f32 0.0, %v2011
      %v2013 = vpop.f32.mrf.mxu0
      %v2014 = vpop.f32.mrf.mxu0
      %v2015 = vadd.f32 0.0, %v2014
      %v2016 = vpop.f32.mrf.mxu0
      %2017 = vmatprep.mubr.bf16.mxu0 0
      %2018 = vmatmul.mubr.bf16.gmra.mxu0 %v1911
      %v2019 = vpop.f32.mrf.mxu0
      %v2020 = vadd.f32 0.0, %v2019
      %v2021 = vpop.f32.mrf.mxu0
      %v2022 = vpop.f32.mrf.mxu0
      %v2023 = vadd.f32 0.0, %v2022
      %v2024 = vpop.f32.mrf.mxu0
      %2025 = vmatprep.mubr.bf16.mxu0 0
      %2026 = vmatmul.mubr.bf16.gmra.mxu0 %v1913
      %v2027 = vpop.f32.mrf.mxu0
      %v2028 = vadd.f32 0.0, %v2027
      %v2029 = vpop.f32.mrf.mxu0
      %v2030 = vpop.f32.mrf.mxu0
      %v2031 = vadd.f32 0.0, %v2030
      %v2032 = vpop.f32.mrf.mxu0
      %2033 = vmatprep.mubr.bf16.mxu0 0
      %2034 = vmatmul.mubr.bf16.gmra.mxu0 %v1915
      %v2035 = vpop.f32.mrf.mxu0
      %v2036 = vadd.f32 0.0, %v2035
      %v2037 = vpop.f32.mrf.mxu0
      %v2038 = vpop.f32.mrf.mxu0
      %v2039 = vadd.f32 0.0, %v2038
      %v2040 = vpop.f32.mrf.mxu0
      %2041 = vdwg.mxu0
      %v2042 = vadd.f32 %v1873, %v2004
      %v2043 = vadd.f32 %v1874, %v2007
      %v2044 = vadd.f32 %v1875, %v2012
      %v2045 = vadd.f32 %v1876, %v2015
      %v2046 = vadd.f32 %v1877, %v2020
      %v2047 = vadd.f32 %v1878, %v2023
      %v2048 = vadd.f32 %v1879, %v2028
      %v2049 = vadd.f32 %v1880, %v2031
      %v2050 = vadd.f32 %v1881, %v2036
      %v2051 = vadd.f32 %v1882, %v2039
      %v2052 = vld [vmem:[%s309] sm:$0xf]
      %v2053 = vld [vmem:[%s309 + $0x4] sm:$0xf]
      %v2054 = vld [vmem:[%s309 + $0x8] sm:$0xf]
      %v2055 = vld [vmem:[%s309 + $0xc] sm:$0xf]
      %v2056 = vld [vmem:[%s309 + $0x10] sm:$0xf]
      %v2057 = vld [vmem:[%s309 + $0x14] sm:$0xf]
      %v2058 = vld [vmem:[%s309 + $0x18] sm:$0xf]
      %v2059 = vld [vmem:[%s309 + $0x1c] sm:$0xf]
      %v2060 = vld [vmem:[%s309 + $0x20] sm:$0xf]
      %v2061 = vld [vmem:[%s309 + $0x24] sm:$0xf]
      %v2062 = vld [vmem:[%s3] sm:$0xf]
      %v2063 = vld [vmem:[%s3 + $0x4] sm:$0xf]
      %v2064 = vld [vmem:[%s3 + $0x8] sm:$0xf]
      %v2065 = vld [vmem:[%s3 + $0xc] sm:$0xf]
      %v2066 = vld [vmem:[%s3 + $0x10] sm:$0xf]
      %v2067 = vld [vmem:[%s3 + $0x14] sm:$0xf]
      %v2068 = vld [vmem:[%s3 + $0x18] sm:$0xf]
      %v2069 = vld [vmem:[%s3 + $0x1c] sm:$0xf]
      %v2070 = vld [vmem:[%s3 + $0x20] sm:$0xf]
      %v2071 = vld [vmem:[%s3 + $0x24] sm:$0xf]
      %v2072 = vld [vmem:[%s3 + $0x28] sm:$0xf]
      %v2073 = vld [vmem:[%s3 + $0x2c] sm:$0xf]
      %v2074 = vld [vmem:[%s3 + $0x30] sm:$0xf]
      %v2075 = vld [vmem:[%s3 + $0x34] sm:$0xf]
      %v2076 = vld [vmem:[%s3 + $0x38] sm:$0xf]
      %v2077 = vld [vmem:[%s3 + $0x3c] sm:$0xf]
      %v2078 = vld [vmem:[%s309 + $0x28] sm:$0x1]
      %s2079 = scalar_lea.vmem %s3, 64
      %v2080 = vld [vmem:[%s2079] sm:$0xf]
      %v2081 = vld [vmem:[%s2079 + $0x4] sm:$0xf]
      %v2082 = vld [vmem:[%s2079 + $0x8] sm:$0xf]
      %v2083 = vld [vmem:[%s2079 + $0xc] sm:$0xf]
      %v2084 = vld [vmem:[%s2079 + $0x10] sm:$0xf]
      %v2085 = vld [vmem:[%s2079 + $0x14] sm:$0xf]
      %v2086 = vld [vmem:[%s2079 + $0x18] sm:$0xf]
      %v2087 = vld [vmem:[%s2079 + $0x1c] sm:$0xf]
      %v2088 = vld [vmem:[%s2079 + $0x20] sm:$0xf]
      %v2089 = vld [vmem:[%s2079 + $0x24] sm:$0xf]
      %v2090 = vld [vmem:[%s2079 + $0x28] sm:$0xf]
      %v2091 = vld [vmem:[%s2079 + $0x2c] sm:$0xf]
      %v2092 = vld [vmem:[%s2079 + $0x30] sm:$0xf]
      %v2093 = vld [vmem:[%s2079 + $0x34] sm:$0xf]
      %v2094 = vld [vmem:[%s2079 + $0x38] sm:$0xf]
      %v2095 = vld [vmem:[%s2079 + $0x3c] sm:$0xf]
      %v2107 = vunpack.c.l.b16 %v2052
      %v2108 = vunpack.c.l.b16 %v2053
      %v2109 = vunpack.c.l.b16 %v2054
      %v2110 = vunpack.c.l.b16 %v2055
      %v2111 = vunpack.c.l.b16 %v2056
      %v2112 = vunpack.c.l.b16 %v2057
      %v2113 = vunpack.c.l.b16 %v2058
      %v2114 = vunpack.c.l.b16 %v2059
      %v2115 = vunpack.c.l.b16 %v2060
      %v2116 = vunpack.c.l.b16 %v2061
      %v2117 = vunpack.c.l.b16 %v2078
      %v2118 = vpack.c.b16 %v2108, %v2107
      %v2119 = vpack.c.b16 %v2110, %v2109
      %v2120 = vpack.c.b16 %v2112, %v2111
      %v2121 = vpack.c.b16 %v2114, %v2113
      %v2122 = vpack.c.b16 %v2116, %v2115
      %v2123 = vpack.c.b16 %v2117, %v2117
      %v2125 = vshrl.u32 %v2118, 16
      %v2127 = vshll.u32 %v2118, 16
      %v2129 = vrot.slane %v2127, 1
      %v2130 = vor.u32 %v2125, %v2129
      %v2132 = vshll.u32 %v2119, 16
      %v2134 = vrot.slane %v2132, 1
      %v2135 = vsel %vm420, %v2130, %v2134
      %v2136 = vshrl.u32 %v2119, 16
      %v2138 = vor.u32 %v2136, %v2134
      %v2140 = vshll.u32 %v2120, 16
      %v2142 = vrot.slane %v2140, 1
      %v2143 = vsel %vm420, %v2138, %v2142
      %v2144 = vshrl.u32 %v2120, 16
      %v2146 = vor.u32 %v2144, %v2142
      %v2148 = vshll.u32 %v2121, 16
      %v2150 = vrot.slane %v2148, 1
      %v2151 = vsel %vm420, %v2146, %v2150
      %v2152 = vshrl.u32 %v2121, 16
      %v2154 = vor.u32 %v2152, %v2150
      %v2156 = vshll.u32 %v2122, 16
      %v2158 = vrot.slane %v2156, 1
      %v2159 = vsel %vm420, %v2154, %v2158
      %v2160 = vshrl.u32 %v2122, 16
      %v2162 = vor.u32 %v2160, %v2158
      %v2164 = vshll.u32 %v2123, 16
      %v2166 = vrot.slane %v2164, 1
      %v2167 = vsel %vm420, %v2162, %v2166
      %v2189 = vunpack.c.l.b16 %v2080
      %v2190 = vunpack.c.l.b16 %v2081
      %v2191 = vunpack.c.l.b16 %v2082
      %v2192 = vunpack.c.l.b16 %v2083
      %v2193 = vunpack.c.l.b16 %v2084
      %v2194 = vunpack.c.l.b16 %v2085
      %v2195 = vunpack.c.l.b16 %v2086
      %v2196 = vunpack.c.l.b16 %v2087
      %v2197 = vunpack.c.l.b16 %v2088
      %v2198 = vunpack.c.l.b16 %v2089
      %v2199 = vunpack.c.l.b16 %v2090
      %v2200 = vunpack.c.l.b16 %v2091
      %v2201 = vunpack.c.l.b16 %v2092
      %v2202 = vunpack.c.l.b16 %v2093
      %v2203 = vunpack.c.l.b16 %v2094
      %v2204 = vunpack.c.l.b16 %v2095
      %v2205 = vpack.c.b16 %v2190, %v2189
      %v2206 = vpack.c.b16 %v2192, %v2191
      %v2207 = vpack.c.b16 %v2194, %v2193
      %v2208 = vpack.c.b16 %v2196, %v2195
      %v2209 = vpack.c.b16 %v2198, %v2197
      %v2210 = vpack.c.b16 %v2200, %v2199
      %v2211 = vpack.c.b16 %v2202, %v2201
      %v2212 = vpack.c.b16 %v2204, %v2203
      %2221 = vmatprep.subr.bf16.mxu0 0
      %2222 = vmatpush1.bf16.msra.mxu0 %v2212
      %2223 = vmatprep.subr.bf16.mxu0 0
      %2224 = vmatpush1.bf16.msra.mxu0 %v2211
      %2225 = vmatprep.subr.bf16.mxu0 0
      %2226 = vmatpush1.bf16.msra.mxu0 %v2210
      %2227 = vmatprep.subr.bf16.mxu0 0
      %2228 = vmatpush1.bf16.msra.mxu0 %v2209
      %2229 = vmatprep.subr.bf16.mxu0 0
      %2230 = vmatpush1.bf16.msra.mxu0 %v2208
      %2231 = vmatprep.subr.bf16.mxu0 0
      %2232 = vmatpush1.bf16.msra.mxu0 %v2207
      %2233 = vmatprep.subr.bf16.mxu0 0
      %2234 = vmatpush1.bf16.msra.mxu0 %v2206
      %2235 = vmatprep.subr.bf16.mxu0 0
      %2236 = vmatpush1.bf16.msra.mxu0 %v2205
      %2237 = vmatprep.subr.bf16.mxu0 0
      %2238 = vmatpush2.bf16.msra.mxu0 0
      %2239 = vmatprep.subr.bf16.mxu0 0
      %2240 = vmatpush2.bf16.msra.mxu0 0
      %2241 = vmatprep.subr.bf16.mxu0 0
      %2242 = vmatpush2.bf16.msra.mxu0 0
      %2243 = vmatprep.subr.bf16.mxu0 0
      %2244 = vmatpush2.bf16.msra.mxu0 0
      %2245 = vmatprep.subr.bf16.mxu0 0
      %2246 = vmatpush2.bf16.msra.mxu0 0
      %2247 = vmatprep.subr.bf16.mxu0 0
      %2248 = vmatpush2.bf16.msra.mxu0 0
      %2249 = vmatprep.subr.bf16.mxu0 0
      %2250 = vmatpush2.bf16.msra.mxu0 0
      %2251 = vmatprep.subr.bf16.mxu0 0
      %2252 = vmatpush2.bf16.msra.mxu0 0
      %2253 = vmatprep.mubr.bf16.mxu0 0
      %2254 = vmatmul.mubr.bf16.gmra.mxu0 %v2135
      %v2255 = vpop.f32.mrf.mxu0
      %v2256 = vadd.f32 0.0, %v2255
      %v2257 = vpop.f32.mrf.mxu0
      %v2258 = vpop.f32.mrf.mxu0
      %v2259 = vadd.f32 0.0, %v2258
      %v2260 = vpop.f32.mrf.mxu0
      %2261 = vmatprep.mubr.bf16.mxu0 0
      %2262 = vmatmul.mubr.bf16.gmra.mxu0 %v2143
      %v2263 = vpop.f32.mrf.mxu0
      %v2264 = vadd.f32 0.0, %v2263
      %v2265 = vpop.f32.mrf.mxu0
      %v2266 = vpop.f32.mrf.mxu0
      %v2267 = vadd.f32 0.0, %v2266
      %v2268 = vpop.f32.mrf.mxu0
      %2269 = vmatprep.mubr.bf16.mxu0 0
      %2270 = vmatmul.mubr.bf16.gmra.mxu0 %v2151
      %v2271 = vpop.f32.mrf.mxu0
      %v2272 = vadd.f32 0.0, %v2271
      %v2273 = vpop.f32.mrf.mxu0
      %v2274 = vpop.f32.mrf.mxu0
      %v2275 = vadd.f32 0.0, %v2274
      %v2276 = vpop.f32.mrf.mxu0
      %2277 = vmatprep.mubr.bf16.mxu0 0
      %2278 = vmatmul.mubr.bf16.gmra.mxu0 %v2159
      %v2279 = vpop.f32.mrf.mxu0
      %v2280 = vadd.f32 0.0, %v2279
      %v2281 = vpop.f32.mrf.mxu0
      %v2282 = vpop.f32.mrf.mxu0
      %v2283 = vadd.f32 0.0, %v2282
      %v2284 = vpop.f32.mrf.mxu0
      %2285 = vmatprep.mubr.bf16.mxu0 0
      %2286 = vmatmul.mubr.bf16.gmra.mxu0 %v2167
      %v2287 = vpop.f32.mrf.mxu0
      %v2288 = vadd.f32 0.0, %v2287
      %v2289 = vpop.f32.mrf.mxu0
      %v2290 = vpop.f32.mrf.mxu0
      %v2291 = vadd.f32 0.0, %v2290
      %v2292 = vpop.f32.mrf.mxu0
      %2293 = vdwg.mxu0
      %v2315 = vunpack.c.l.b16 %v2062
      %v2316 = vunpack.c.l.b16 %v2063
      %v2317 = vunpack.c.l.b16 %v2064
      %v2318 = vunpack.c.l.b16 %v2065
      %v2319 = vunpack.c.l.b16 %v2066
      %v2320 = vunpack.c.l.b16 %v2067
      %v2321 = vunpack.c.l.b16 %v2068
      %v2322 = vunpack.c.l.b16 %v2069
      %v2323 = vunpack.c.l.b16 %v2070
      %v2324 = vunpack.c.l.b16 %v2071
      %v2325 = vunpack.c.l.b16 %v2072
      %v2326 = vunpack.c.l.b16 %v2073
      %v2327 = vunpack.c.l.b16 %v2074
      %v2328 = vunpack.c.l.b16 %v2075
      %v2329 = vunpack.c.l.b16 %v2076
      %v2330 = vunpack.c.l.b16 %v2077
      %v2331 = vpack.c.b16 %v2316, %v2315
      %v2332 = vpack.c.b16 %v2318, %v2317
      %v2333 = vpack.c.b16 %v2320, %v2319
      %v2334 = vpack.c.b16 %v2322, %v2321
      %v2335 = vpack.c.b16 %v2324, %v2323
      %v2336 = vpack.c.b16 %v2326, %v2325
      %v2337 = vpack.c.b16 %v2328, %v2327
      %v2338 = vpack.c.b16 %v2330, %v2329
      %2347 = vmatprep.subr.bf16.mxu0 0
      %2348 = vmatpush1.bf16.msra.mxu0 %v2338
      %2349 = vmatprep.subr.bf16.mxu0 0
      %2350 = vmatpush1.bf16.msra.mxu0 %v2337
      %2351 = vmatprep.subr.bf16.mxu0 0
      %2352 = vmatpush1.bf16.msra.mxu0 %v2336
      %2353 = vmatprep.subr.bf16.mxu0 0
      %2354 = vmatpush1.bf16.msra.mxu0 %v2335
      %2355 = vmatprep.subr.bf16.mxu0 0
      %2356 = vmatpush1.bf16.msra.mxu0 %v2334
      %2357 = vmatprep.subr.bf16.mxu0 0
      %2358 = vmatpush1.bf16.msra.mxu0 %v2333
      %2359 = vmatprep.subr.bf16.mxu0 0
      %2360 = vmatpush1.bf16.msra.mxu0 %v2332
      %2361 = vmatprep.subr.bf16.mxu0 0
      %2362 = vmatpush1.bf16.msra.mxu0 %v2331
      %2363 = vmatprep.subr.bf16.mxu0 0
      %2364 = vmatpush2.bf16.msra.mxu0 0
      %2365 = vmatprep.subr.bf16.mxu0 0
      %2366 = vmatpush2.bf16.msra.mxu0 0
      %2367 = vmatprep.subr.bf16.mxu0 0
      %2368 = vmatpush2.bf16.msra.mxu0 0
      %2369 = vmatprep.subr.bf16.mxu0 0
      %2370 = vmatpush2.bf16.msra.mxu0 0
      %2371 = vmatprep.subr.bf16.mxu0 0
      %2372 = vmatpush2.bf16.msra.mxu0 0
      %2373 = vmatprep.subr.bf16.mxu0 0
      %2374 = vmatpush2.bf16.msra.mxu0 0
      %2375 = vmatprep.subr.bf16.mxu0 0
      %2376 = vmatpush2.bf16.msra.mxu0 0
      %2377 = vmatprep.subr.bf16.mxu0 0
      %2378 = vmatpush2.bf16.msra.mxu0 0
      %2379 = vmatprep.mubr.bf16.mxu0 0
      %2380 = vmatmul.mubr.bf16.gmra.mxu0 %v2118
      %v2381 = vpop.f32.mrf.mxu0
      %v2382 = vadd.f32 %v2256, %v2381
      %v2383 = vpop.f32.mrf.mxu0
      %v2384 = vpop.f32.mrf.mxu0
      %v2385 = vadd.f32 %v2259, %v2384
      %v2386 = vpop.f32.mrf.mxu0
      %2387 = vmatprep.mubr.bf16.mxu0 0
      %2388 = vmatmul.mubr.bf16.gmra.mxu0 %v2119
      %v2389 = vpop.f32.mrf.mxu0
      %v2390 = vadd.f32 %v2264, %v2389
      %v2391 = vpop.f32.mrf.mxu0
      %v2392 = vpop.f32.mrf.mxu0
      %v2393 = vadd.f32 %v2267, %v2392
      %v2394 = vpop.f32.mrf.mxu0
      %2395 = vmatprep.mubr.bf16.mxu0 0
      %2396 = vmatmul.mubr.bf16.gmra.mxu0 %v2120
      %v2397 = vpop.f32.mrf.mxu0
      %v2398 = vadd.f32 %v2272, %v2397
      %v2399 = vpop.f32.mrf.mxu0
      %v2400 = vpop.f32.mrf.mxu0
      %v2401 = vadd.f32 %v2275, %v2400
      %v2402 = vpop.f32.mrf.mxu0
      %2403 = vmatprep.mubr.bf16.mxu0 0
      %2404 = vmatmul.mubr.bf16.gmra.mxu0 %v2121
      %v2405 = vpop.f32.mrf.mxu0
      %v2406 = vadd.f32 %v2280, %v2405
      %v2407 = vpop.f32.mrf.mxu0
      %v2408 = vpop.f32.mrf.mxu0
      %v2409 = vadd.f32 %v2283, %v2408
      %v2410 = vpop.f32.mrf.mxu0
      %2411 = vmatprep.mubr.bf16.mxu0 0
      %2412 = vmatmul.mubr.bf16.gmra.mxu0 %v2122
      %v2413 = vpop.f32.mrf.mxu0
      %v2414 = vadd.f32 %v2288, %v2413
      %v2415 = vpop.f32.mrf.mxu0
      %v2416 = vpop.f32.mrf.mxu0
      %v2417 = vadd.f32 %v2291, %v2416
      %v2418 = vpop.f32.mrf.mxu0
      %2419 = vdwg.mxu0
      %v2420 = vld [vmem:[%s309] sm:$0xe]
      %s2421 = scalar_lea.vmem %s3, 128
      %v2422 = vld [vmem:[%s2421] sm:$0xf]
      %v2423 = vld [vmem:[%s2421 + $0x4] sm:$0xf]
      %v2424 = vld [vmem:[%s2421 + $0x8] sm:$0xf]
      %v2425 = vld [vmem:[%s2421 + $0xc] sm:$0xf]
      %v2426 = vld [vmem:[%s2421 + $0x10] sm:$0xf]
      %v2427 = vld [vmem:[%s2421 + $0x14] sm:$0xf]
      %v2428 = vld [vmem:[%s2421 + $0x18] sm:$0xf]
      %v2429 = vld [vmem:[%s2421 + $0x1c] sm:$0xf]
      %v2430 = vld [vmem:[%s2421 + $0x20] sm:$0xf]
      %v2431 = vld [vmem:[%s2421 + $0x24] sm:$0xf]
      %v2432 = vld [vmem:[%s2421 + $0x28] sm:$0xf]
      %v2433 = vld [vmem:[%s2421 + $0x2c] sm:$0xf]
      %v2434 = vld [vmem:[%s2421 + $0x30] sm:$0xf]
      %v2435 = vld [vmem:[%s2421 + $0x34] sm:$0xf]
      %v2436 = vld [vmem:[%s2421 + $0x38] sm:$0xf]
      %v2437 = vld [vmem:[%s2421 + $0x3c] sm:$0xf]
      %v2439 = vunpack.c.l.b16 %v2420
      %v2440 = vpack.c.b16 %v2108, %v2439
      %v2441 = vrot.slane %v2440, 1
      %v2442 = vrot.slane %v2119, 1
      %v2443 = vsel %vm738, %v2441, %v2442
      %v2444 = vrot.slane %v2120, 1
      %v2445 = vsel %vm738, %v2442, %v2444
      %v2446 = vrot.slane %v2121, 1
      %v2447 = vsel %vm738, %v2444, %v2446
      %v2448 = vrot.slane %v2122, 1
      %v2449 = vsel %vm738, %v2446, %v2448
      %v2450 = vrot.slane %v2123, 1
      %v2451 = vsel %vm738, %v2448, %v2450
      %v2473 = vunpack.c.l.b16 %v2422
      %v2474 = vunpack.c.l.b16 %v2423
      %v2475 = vunpack.c.l.b16 %v2424
      %v2476 = vunpack.c.l.b16 %v2425
      %v2477 = vunpack.c.l.b16 %v2426
      %v2478 = vunpack.c.l.b16 %v2427
      %v2479 = vunpack.c.l.b16 %v2428
      %v2480 = vunpack.c.l.b16 %v2429
      %v2481 = vunpack.c.l.b16 %v2430
      %v2482 = vunpack.c.l.b16 %v2431
      %v2483 = vunpack.c.l.b16 %v2432
      %v2484 = vunpack.c.l.b16 %v2433
      %v2485 = vunpack.c.l.b16 %v2434
      %v2486 = vunpack.c.l.b16 %v2435
      %v2487 = vunpack.c.l.b16 %v2436
      %v2488 = vunpack.c.l.b16 %v2437
      %v2489 = vpack.c.b16 %v2474, %v2473
      %v2490 = vpack.c.b16 %v2476, %v2475
      %v2491 = vpack.c.b16 %v2478, %v2477
      %v2492 = vpack.c.b16 %v2480, %v2479
      %v2493 = vpack.c.b16 %v2482, %v2481
      %v2494 = vpack.c.b16 %v2484, %v2483
      %v2495 = vpack.c.b16 %v2486, %v2485
      %v2496 = vpack.c.b16 %v2488, %v2487
      %2505 = vmatprep.subr.bf16.mxu0 0
      %2506 = vmatpush1.bf16.msra.mxu0 %v2496
      %2507 = vmatprep.subr.bf16.mxu0 0
      %2508 = vmatpush1.bf16.msra.mxu0 %v2495
      %2509 = vmatprep.subr.bf16.mxu0 0
      %2510 = vmatpush1.bf16.msra.mxu0 %v2494
      %2511 = vmatprep.subr.bf16.mxu0 0
      %2512 = vmatpush1.bf16.msra.mxu0 %v2493
      %2513 = vmatprep.subr.bf16.mxu0 0
      %2514 = vmatpush1.bf16.msra.mxu0 %v2492
      %2515 = vmatprep.subr.bf16.mxu0 0
      %2516 = vmatpush1.bf16.msra.mxu0 %v2491
      %2517 = vmatprep.subr.bf16.mxu0 0
      %2518 = vmatpush1.bf16.msra.mxu0 %v2490
      %2519 = vmatprep.subr.bf16.mxu0 0
      %2520 = vmatpush1.bf16.msra.mxu0 %v2489
      %2521 = vmatprep.subr.bf16.mxu0 0
      %2522 = vmatpush2.bf16.msra.mxu0 0
      %2523 = vmatprep.subr.bf16.mxu0 0
      %2524 = vmatpush2.bf16.msra.mxu0 0
      %2525 = vmatprep.subr.bf16.mxu0 0
      %2526 = vmatpush2.bf16.msra.mxu0 0
      %2527 = vmatprep.subr.bf16.mxu0 0
      %2528 = vmatpush2.bf16.msra.mxu0 0
      %2529 = vmatprep.subr.bf16.mxu0 0
      %2530 = vmatpush2.bf16.msra.mxu0 0
      %2531 = vmatprep.subr.bf16.mxu0 0
      %2532 = vmatpush2.bf16.msra.mxu0 0
      %2533 = vmatprep.subr.bf16.mxu0 0
      %2534 = vmatpush2.bf16.msra.mxu0 0
      %2535 = vmatprep.subr.bf16.mxu0 0
      %2536 = vmatpush2.bf16.msra.mxu0 0
      %2537 = vmatprep.mubr.bf16.mxu0 0
      %2538 = vmatmul.mubr.bf16.gmra.mxu0 %v2443
      %v2539 = vpop.f32.mrf.mxu0
      %v2540 = vadd.f32 0.0, %v2539
      %v2541 = vpop.f32.mrf.mxu0
      %v2542 = vpop.f32.mrf.mxu0
      %v2543 = vadd.f32 0.0, %v2542
      %v2544 = vpop.f32.mrf.mxu0
      %2545 = vmatprep.mubr.bf16.mxu0 0
      %2546 = vmatmul.mubr.bf16.gmra.mxu0 %v2445
      %v2547 = vpop.f32.mrf.mxu0
      %v2548 = vadd.f32 0.0, %v2547
      %v2549 = vpop.f32.mrf.mxu0
      %v2550 = vpop.f32.mrf.mxu0
      %v2551 = vadd.f32 0.0, %v2550
      %v2552 = vpop.f32.mrf.mxu0
      %2553 = vmatprep.mubr.bf16.mxu0 0
      %2554 = vmatmul.mubr.bf16.gmra.mxu0 %v2447
      %v2555 = vpop.f32.mrf.mxu0
      %v2556 = vadd.f32 0.0, %v2555
      %v2557 = vpop.f32.mrf.mxu0
      %v2558 = vpop.f32.mrf.mxu0
      %v2559 = vadd.f32 0.0, %v2558
      %v2560 = vpop.f32.mrf.mxu0
      %2561 = vmatprep.mubr.bf16.mxu0 0
      %2562 = vmatmul.mubr.bf16.gmra.mxu0 %v2449
      %v2563 = vpop.f32.mrf.mxu0
      %v2564 = vadd.f32 0.0, %v2563
      %v2565 = vpop.f32.mrf.mxu0
      %v2566 = vpop.f32.mrf.mxu0
      %v2567 = vadd.f32 0.0, %v2566
      %v2568 = vpop.f32.mrf.mxu0
      %2569 = vmatprep.mubr.bf16.mxu0 0
      %2570 = vmatmul.mubr.bf16.gmra.mxu0 %v2451
      %v2571 = vpop.f32.mrf.mxu0
      %v2572 = vadd.f32 0.0, %v2571
      %v2573 = vpop.f32.mrf.mxu0
      %v2574 = vpop.f32.mrf.mxu0
      %v2575 = vadd.f32 0.0, %v2574
      %v2576 = vpop.f32.mrf.mxu0
      %2577 = vdwg.mxu0
      %v2578 = vadd.f32 %v2382, %v2540
      %v2579 = vadd.f32 %v2385, %v2543
      %v2580 = vadd.f32 %v2390, %v2548
      %v2581 = vadd.f32 %v2393, %v2551
      %v2582 = vadd.f32 %v2398, %v2556
      %v2583 = vadd.f32 %v2401, %v2559
      %v2584 = vadd.f32 %v2406, %v2564
      %v2585 = vadd.f32 %v2409, %v2567
      %v2586 = vadd.f32 %v2414, %v2572
      %v2587 = vadd.f32 %v2417, %v2575
      %v2588 = vld [vmem:[%s309 + $0x4] sm:$0xe]
      %v2589 = vld [vmem:[%s309 + $0x8] sm:$0xf]
      %v2590 = vld [vmem:[%s309 + $0xc] sm:$0xf]
      %v2591 = vld [vmem:[%s309 + $0x10] sm:$0xf]
      %v2592 = vld [vmem:[%s309 + $0x14] sm:$0xf]
      %v2593 = vld [vmem:[%s309 + $0x18] sm:$0xf]
      %v2594 = vld [vmem:[%s309 + $0x1c] sm:$0xf]
      %v2595 = vld [vmem:[%s309 + $0x20] sm:$0xf]
      %v2596 = vld [vmem:[%s309 + $0x24] sm:$0xf]
      %v2597 = vld [vmem:[%s309 + $0x28] sm:$0xf]
      %v2598 = vld [vmem:[%s309 + $0x2c] sm:$0x1]
      %s2599 = scalar_lea.vmem %s3, 192
      %v2600 = vld [vmem:[%s2599] sm:$0xf]
      %v2601 = vld [vmem:[%s2599 + $0x4] sm:$0xf]
      %v2602 = vld [vmem:[%s2599 + $0x8] sm:$0xf]
      %v2603 = vld [vmem:[%s2599 + $0xc] sm:$0xf]
      %v2604 = vld [vmem:[%s2599 + $0x10] sm:$0xf]
      %v2605 = vld [vmem:[%s2599 + $0x14] sm:$0xf]
      %v2606 = vld [vmem:[%s2599 + $0x18] sm:$0xf]
      %v2607 = vld [vmem:[%s2599 + $0x1c] sm:$0xf]
      %v2608 = vld [vmem:[%s2599 + $0x20] sm:$0xf]
      %v2609 = vld [vmem:[%s2599 + $0x24] sm:$0xf]
      %v2610 = vld [vmem:[%s2599 + $0x28] sm:$0xf]
      %v2611 = vld [vmem:[%s2599 + $0x2c] sm:$0xf]
      %v2612 = vld [vmem:[%s2599 + $0x30] sm:$0xf]
      %v2613 = vld [vmem:[%s2599 + $0x34] sm:$0xf]
      %v2614 = vld [vmem:[%s2599 + $0x38] sm:$0xf]
      %v2615 = vld [vmem:[%s2599 + $0x3c] sm:$0xf]
      %v2627 = vunpack.c.l.b16 %v2588
      %v2628 = vunpack.c.l.b16 %v2589
      %v2629 = vunpack.c.l.b16 %v2590
      %v2630 = vunpack.c.l.b16 %v2591
      %v2631 = vunpack.c.l.b16 %v2592
      %v2632 = vunpack.c.l.b16 %v2593
      %v2633 = vunpack.c.l.b16 %v2594
      %v2634 = vunpack.c.l.b16 %v2595
      %v2635 = vunpack.c.l.b16 %v2596
      %v2636 = vunpack.c.l.b16 %v2597
      %v2637 = vunpack.c.l.b16 %v2598
      %v2638 = vpack.c.b16 %v2628, %v2627
      %v2639 = vpack.c.b16 %v2630, %v2629
      %v2640 = vpack.c.b16 %v2632, %v2631
      %v2641 = vpack.c.b16 %v2634, %v2633
      %v2642 = vpack.c.b16 %v2636, %v2635
      %v2643 = vpack.c.b16 %v2637, %v2637
      %v2644 = vrot.slane %v2638, 1
      %v2645 = vrot.slane %v2639, 1
      %v2646 = vsel %vm738, %v2644, %v2645
      %v2647 = vrot.slane %v2640, 1
      %v2648 = vsel %vm738, %v2645, %v2647
      %v2649 = vrot.slane %v2641, 1
      %v2650 = vsel %vm738, %v2647, %v2649
      %v2651 = vrot.slane %v2642, 1
      %v2652 = vsel %vm738, %v2649, %v2651
      %v2653 = vrot.slane %v2643, 1
      %v2654 = vsel %vm738, %v2651, %v2653
      %v2676 = vunpack.c.l.b16 %v2600
      %v2677 = vunpack.c.l.b16 %v2601
      %v2678 = vunpack.c.l.b16 %v2602
      %v2679 = vunpack.c.l.b16 %v2603
      %v2680 = vunpack.c.l.b16 %v2604
      %v2681 = vunpack.c.l.b16 %v2605
      %v2682 = vunpack.c.l.b16 %v2606
      %v2683 = vunpack.c.l.b16 %v2607
      %v2684 = vunpack.c.l.b16 %v2608
      %v2685 = vunpack.c.l.b16 %v2609
      %v2686 = vunpack.c.l.b16 %v2610
      %v2687 = vunpack.c.l.b16 %v2611
      %v2688 = vunpack.c.l.b16 %v2612
      %v2689 = vunpack.c.l.b16 %v2613
      %v2690 = vunpack.c.l.b16 %v2614
      %v2691 = vunpack.c.l.b16 %v2615
      %v2692 = vpack.c.b16 %v2677, %v2676
      %v2693 = vpack.c.b16 %v2679, %v2678
      %v2694 = vpack.c.b16 %v2681, %v2680
      %v2695 = vpack.c.b16 %v2683, %v2682
      %v2696 = vpack.c.b16 %v2685, %v2684
      %v2697 = vpack.c.b16 %v2687, %v2686
      %v2698 = vpack.c.b16 %v2689, %v2688
      %v2699 = vpack.c.b16 %v2691, %v2690
      %2708 = vmatprep.subr.bf16.mxu0 0
      %2709 = vmatpush1.bf16.msra.mxu0 %v2699
      %2710 = vmatprep.subr.bf16.mxu0 0
      %2711 = vmatpush1.bf16.msra.mxu0 %v2698
      %2712 = vmatprep.subr.bf16.mxu0 0
      %2713 = vmatpush1.bf16.msra.mxu0 %v2697
      %2714 = vmatprep.subr.bf16.mxu0 0
      %2715 = vmatpush1.bf16.msra.mxu0 %v2696
      %2716 = vmatprep.subr.bf16.mxu0 0
      %2717 = vmatpush1.bf16.msra.mxu0 %v2695
      %2718 = vmatprep.subr.bf16.mxu0 0
      %2719 = vmatpush1.bf16.msra.mxu0 %v2694
      %2720 = vmatprep.subr.bf16.mxu0 0
      %2721 = vmatpush1.bf16.msra.mxu0 %v2693
      %2722 = vmatprep.subr.bf16.mxu0 0
      %2723 = vmatpush1.bf16.msra.mxu0 %v2692
      %2724 = vmatprep.subr.bf16.mxu0 0
      %2725 = vmatpush2.bf16.msra.mxu0 0
      %2726 = vmatprep.subr.bf16.mxu0 0
      %2727 = vmatpush2.bf16.msra.mxu0 0
      %2728 = vmatprep.subr.bf16.mxu0 0
      %2729 = vmatpush2.bf16.msra.mxu0 0
      %2730 = vmatprep.subr.bf16.mxu0 0
      %2731 = vmatpush2.bf16.msra.mxu0 0
      %2732 = vmatprep.subr.bf16.mxu0 0
      %2733 = vmatpush2.bf16.msra.mxu0 0
      %2734 = vmatprep.subr.bf16.mxu0 0
      %2735 = vmatpush2.bf16.msra.mxu0 0
      %2736 = vmatprep.subr.bf16.mxu0 0
      %2737 = vmatpush2.bf16.msra.mxu0 0
      %2738 = vmatprep.subr.bf16.mxu0 0
      %2739 = vmatpush2.bf16.msra.mxu0 0
      %2740 = vmatprep.mubr.bf16.mxu0 0
      %2741 = vmatmul.mubr.bf16.gmra.mxu0 %v2646
      %v2742 = vpop.f32.mrf.mxu0
      %v2743 = vadd.f32 0.0, %v2742
      %v2744 = vpop.f32.mrf.mxu0
      %v2745 = vpop.f32.mrf.mxu0
      %v2746 = vadd.f32 0.0, %v2745
      %v2747 = vpop.f32.mrf.mxu0
      %2748 = vmatprep.mubr.bf16.mxu0 0
      %2749 = vmatmul.mubr.bf16.gmra.mxu0 %v2648
      %v2750 = vpop.f32.mrf.mxu0
      %v2751 = vadd.f32 0.0, %v2750
      %v2752 = vpop.f32.mrf.mxu0
      %v2753 = vpop.f32.mrf.mxu0
      %v2754 = vadd.f32 0.0, %v2753
      %v2755 = vpop.f32.mrf.mxu0
      %2756 = vmatprep.mubr.bf16.mxu0 0
      %2757 = vmatmul.mubr.bf16.gmra.mxu0 %v2650
      %v2758 = vpop.f32.mrf.mxu0
      %v2759 = vadd.f32 0.0, %v2758
      %v2760 = vpop.f32.mrf.mxu0
      %v2761 = vpop.f32.mrf.mxu0
      %v2762 = vadd.f32 0.0, %v2761
      %v2763 = vpop.f32.mrf.mxu0
      %2764 = vmatprep.mubr.bf16.mxu0 0
      %2765 = vmatmul.mubr.bf16.gmra.mxu0 %v2652
      %v2766 = vpop.f32.mrf.mxu0
      %v2767 = vadd.f32 0.0, %v2766
      %v2768 = vpop.f32.mrf.mxu0
      %v2769 = vpop.f32.mrf.mxu0
      %v2770 = vadd.f32 0.0, %v2769
      %v2771 = vpop.f32.mrf.mxu0
      %2772 = vmatprep.mubr.bf16.mxu0 0
      %2773 = vmatmul.mubr.bf16.gmra.mxu0 %v2654
      %v2774 = vpop.f32.mrf.mxu0
      %v2775 = vadd.f32 0.0, %v2774
      %v2776 = vpop.f32.mrf.mxu0
      %v2777 = vpop.f32.mrf.mxu0
      %v2778 = vadd.f32 0.0, %v2777
      %v2779 = vpop.f32.mrf.mxu0
      %2780 = vdwg.mxu0
      %v2781 = vadd.f32 %v2578, %v2743
      %v2782 = vadd.f32 %v2579, %v2746
      %v2783 = vadd.f32 %v2580, %v2751
      %v2784 = vadd.f32 %v2581, %v2754
      %v2785 = vadd.f32 %v2582, %v2759
      %v2786 = vadd.f32 %v2583, %v2762
      %v2787 = vadd.f32 %v2584, %v2767
      %v2788 = vadd.f32 %v2585, %v2770
      %v2789 = vadd.f32 %v2586, %v2775
      %v2790 = vadd.f32 %v2587, %v2778
      %v2791 = vld [vmem:[%s309 + $0x2c] sm:$0x3]
      %s2792 = scalar_lea.vmem %s3, 256
      %v2793 = vld [vmem:[%s2792] sm:$0xf]
      %v2794 = vld [vmem:[%s2792 + $0x4] sm:$0xf]
      %v2795 = vld [vmem:[%s2792 + $0x8] sm:$0xf]
      %v2796 = vld [vmem:[%s2792 + $0xc] sm:$0xf]
      %v2797 = vld [vmem:[%s2792 + $0x10] sm:$0xf]
      %v2798 = vld [vmem:[%s2792 + $0x14] sm:$0xf]
      %v2799 = vld [vmem:[%s2792 + $0x18] sm:$0xf]
      %v2800 = vld [vmem:[%s2792 + $0x1c] sm:$0xf]
      %v2801 = vld [vmem:[%s2792 + $0x20] sm:$0xf]
      %v2802 = vld [vmem:[%s2792 + $0x24] sm:$0xf]
      %v2803 = vld [vmem:[%s2792 + $0x28] sm:$0xf]
      %v2804 = vld [vmem:[%s2792 + $0x2c] sm:$0xf]
      %v2805 = vld [vmem:[%s2792 + $0x30] sm:$0xf]
      %v2806 = vld [vmem:[%s2792 + $0x34] sm:$0xf]
      %v2807 = vld [vmem:[%s2792 + $0x38] sm:$0xf]
      %v2808 = vld [vmem:[%s2792 + $0x3c] sm:$0xf]
      %v2810 = vunpack.c.l.b16 %v2791
      %v2811 = vpack.c.b16 %v2810, %v2810
      %v2813 = vshrl.u32 %v2638, 16
      %v2815 = vrot.slane %v2813, 1
      %v2816 = vshll.u32 %v2638, 16
      %v2818 = vrot.slane %v2816, 2
      %v2819 = vor.u32 %v2815, %v2818
      %v2821 = vshrl.u32 %v2639, 16
      %v2823 = vrot.slane %v2821, 1
      %v2824 = vshll.u32 %v2639, 16
      %v2826 = vrot.slane %v2824, 2
      %v2827 = vor.u32 %v2823, %v2826
      %v2828 = vsel %vm1110, %v2819, %v2827
      %v2830 = vshrl.u32 %v2640, 16
      %v2832 = vrot.slane %v2830, 1
      %v2833 = vshll.u32 %v2640, 16
      %v2835 = vrot.slane %v2833, 2
      %v2836 = vor.u32 %v2832, %v2835
      %v2837 = vsel %vm1110, %v2827, %v2836
      %v2839 = vshrl.u32 %v2641, 16
      %v2841 = vrot.slane %v2839, 1
      %v2842 = vshll.u32 %v2641, 16
      %v2844 = vrot.slane %v2842, 2
      %v2845 = vor.u32 %v2841, %v2844
      %v2846 = vsel %vm1110, %v2836, %v2845
      %v2848 = vshrl.u32 %v2642, 16
      %v2850 = vrot.slane %v2848, 1
      %v2851 = vshll.u32 %v2642, 16
      %v2853 = vrot.slane %v2851, 2
      %v2854 = vor.u32 %v2850, %v2853
      %v2855 = vsel %vm1110, %v2845, %v2854
      %v2857 = vshrl.u32 %v2811, 16
      %v2859 = vrot.slane %v2857, 1
      %v2860 = vshll.u32 %v2811, 16
      %v2862 = vrot.slane %v2860, 2
      %v2863 = vor.u32 %v2859, %v2862
      %v2864 = vsel %vm1110, %v2854, %v2863
      %v2886 = vunpack.c.l.b16 %v2793
      %v2887 = vunpack.c.l.b16 %v2794
      %v2888 = vunpack.c.l.b16 %v2795
      %v2889 = vunpack.c.l.b16 %v2796
      %v2890 = vunpack.c.l.b16 %v2797
      %v2891 = vunpack.c.l.b16 %v2798
      %v2892 = vunpack.c.l.b16 %v2799
      %v2893 = vunpack.c.l.b16 %v2800
      %v2894 = vunpack.c.l.b16 %v2801
      %v2895 = vunpack.c.l.b16 %v2802
      %v2896 = vunpack.c.l.b16 %v2803
      %v2897 = vunpack.c.l.b16 %v2804
      %v2898 = vunpack.c.l.b16 %v2805
      %v2899 = vunpack.c.l.b16 %v2806
      %v2900 = vunpack.c.l.b16 %v2807
      %v2901 = vunpack.c.l.b16 %v2808
      %v2902 = vpack.c.b16 %v2887, %v2886
      %v2903 = vpack.c.b16 %v2889, %v2888
      %v2904 = vpack.c.b16 %v2891, %v2890
      %v2905 = vpack.c.b16 %v2893, %v2892
      %v2906 = vpack.c.b16 %v2895, %v2894
      %v2907 = vpack.c.b16 %v2897, %v2896
      %v2908 = vpack.c.b16 %v2899, %v2898
      %v2909 = vpack.c.b16 %v2901, %v2900
      %2918 = vmatprep.subr.bf16.mxu0 0
      %2919 = vmatpush1.bf16.msra.mxu0 %v2909
      %2920 = vmatprep.subr.bf16.mxu0 0
      %2921 = vmatpush1.bf16.msra.mxu0 %v2908
      %2922 = vmatprep.subr.bf16.mxu0 0
      %2923 = vmatpush1.bf16.msra.mxu0 %v2907
      %2924 = vmatprep.subr.bf16.mxu0 0
      %2925 = vmatpush1.bf16.msra.mxu0 %v2906
      %2926 = vmatprep.subr.bf16.mxu0 0
      %2927 = vmatpush1.bf16.msra.mxu0 %v2905
      %2928 = vmatprep.subr.bf16.mxu0 0
      %2929 = vmatpush1.bf16.msra.mxu0 %v2904
      %2930 = vmatprep.subr.bf16.mxu0 0
      %2931 = vmatpush1.bf16.msra.mxu0 %v2903
      %2932 = vmatprep.subr.bf16.mxu0 0
      %2933 = vmatpush1.bf16.msra.mxu0 %v2902
      %2934 = vmatprep.subr.bf16.mxu0 0
      %2935 = vmatpush2.bf16.msra.mxu0 0
      %2936 = vmatprep.subr.bf16.mxu0 0
      %2937 = vmatpush2.bf16.msra.mxu0 0
      %2938 = vmatprep.subr.bf16.mxu0 0
      %2939 = vmatpush2.bf16.msra.mxu0 0
      %2940 = vmatprep.subr.bf16.mxu0 0
      %2941 = vmatpush2.bf16.msra.mxu0 0
      %2942 = vmatprep.subr.bf16.mxu0 0
      %2943 = vmatpush2.bf16.msra.mxu0 0
      %2944 = vmatprep.subr.bf16.mxu0 0
      %2945 = vmatpush2.bf16.msra.mxu0 0
      %2946 = vmatprep.subr.bf16.mxu0 0
      %2947 = vmatpush2.bf16.msra.mxu0 0
      %2948 = vmatprep.subr.bf16.mxu0 0
      %2949 = vmatpush2.bf16.msra.mxu0 0
      %2950 = vmatprep.mubr.bf16.mxu0 0
      %2951 = vmatmul.mubr.bf16.gmra.mxu0 %v2828
      %v2952 = vpop.f32.mrf.mxu0
      %v2953 = vadd.f32 0.0, %v2952
      %v2954 = vpop.f32.mrf.mxu0
      %v2955 = vpop.f32.mrf.mxu0
      %v2956 = vadd.f32 0.0, %v2955
      %v2957 = vpop.f32.mrf.mxu0
      %2958 = vmatprep.mubr.bf16.mxu0 0
      %2959 = vmatmul.mubr.bf16.gmra.mxu0 %v2837
      %v2960 = vpop.f32.mrf.mxu0
      %v2961 = vadd.f32 0.0, %v2960
      %v2962 = vpop.f32.mrf.mxu0
      %v2963 = vpop.f32.mrf.mxu0
      %v2964 = vadd.f32 0.0, %v2963
      %v2965 = vpop.f32.mrf.mxu0
      %2966 = vmatprep.mubr.bf16.mxu0 0
      %2967 = vmatmul.mubr.bf16.gmra.mxu0 %v2846
      %v2968 = vpop.f32.mrf.mxu0
      %v2969 = vadd.f32 0.0, %v2968
      %v2970 = vpop.f32.mrf.mxu0
      %v2971 = vpop.f32.mrf.mxu0
      %v2972 = vadd.f32 0.0, %v2971
      %v2973 = vpop.f32.mrf.mxu0
      %2974 = vmatprep.mubr.bf16.mxu0 0
      %2975 = vmatmul.mubr.bf16.gmra.mxu0 %v2855
      %v2976 = vpop.f32.mrf.mxu0
      %v2977 = vadd.f32 0.0, %v2976
      %v2978 = vpop.f32.mrf.mxu0
      %v2979 = vpop.f32.mrf.mxu0
      %v2980 = vadd.f32 0.0, %v2979
      %v2981 = vpop.f32.mrf.mxu0
      %2982 = vmatprep.mubr.bf16.mxu0 0
      %2983 = vmatmul.mubr.bf16.gmra.mxu0 %v2864
      %v2984 = vpop.f32.mrf.mxu0
      %v2985 = vadd.f32 0.0, %v2984
      %v2986 = vpop.f32.mrf.mxu0
      %v2987 = vpop.f32.mrf.mxu0
      %v2988 = vadd.f32 0.0, %v2987
      %v2989 = vpop.f32.mrf.mxu0
      %2990 = vdwg.mxu0
      %v2991 = vadd.f32 %v2781, %v2953
      %v2992 = vadd.f32 %v2782, %v2956
      %v2993 = vadd.f32 %v2783, %v2961
      %v2994 = vadd.f32 %v2784, %v2964
      %v2995 = vadd.f32 %v2785, %v2969
      %v2996 = vadd.f32 %v2786, %v2972
      %v2997 = vadd.f32 %v2787, %v2977
      %v2998 = vadd.f32 %v2788, %v2980
      %v2999 = vadd.f32 %v2789, %v2985
      %v3000 = vadd.f32 %v2790, %v2988
      %v3001 = vld [vmem:[%s309 + $0x4] sm:$0xc]
      %s3002 = scalar_lea.vmem %s3, 320
      %v3003 = vld [vmem:[%s3002] sm:$0xf]
      %v3004 = vld [vmem:[%s3002 + $0x4] sm:$0xf]
      %v3005 = vld [vmem:[%s3002 + $0x8] sm:$0xf]
      %v3006 = vld [vmem:[%s3002 + $0xc] sm:$0xf]
      %v3007 = vld [vmem:[%s3002 + $0x10] sm:$0xf]
      %v3008 = vld [vmem:[%s3002 + $0x14] sm:$0xf]
      %v3009 = vld [vmem:[%s3002 + $0x18] sm:$0xf]
      %v3010 = vld [vmem:[%s3002 + $0x1c] sm:$0xf]
      %v3011 = vld [vmem:[%s3002 + $0x20] sm:$0xf]
      %v3012 = vld [vmem:[%s3002 + $0x24] sm:$0xf]
      %v3013 = vld [vmem:[%s3002 + $0x28] sm:$0xf]
      %v3014 = vld [vmem:[%s3002 + $0x2c] sm:$0xf]
      %v3015 = vld [vmem:[%s3002 + $0x30] sm:$0xf]
      %v3016 = vld [vmem:[%s3002 + $0x34] sm:$0xf]
      %v3017 = vld [vmem:[%s3002 + $0x38] sm:$0xf]
      %v3018 = vld [vmem:[%s3002 + $0x3c] sm:$0xf]
      %v3020 = vunpack.c.l.b16 %v3001
      %v3021 = vpack.c.b16 %v2628, %v3020
      %v3022 = vrot.slane %v3021, 2
      %v3023 = vrot.slane %v2639, 2
      %v3024 = vsel %vm1321, %v3022, %v3023
      %v3025 = vrot.slane %v2640, 2
      %v3026 = vsel %vm1321, %v3023, %v3025
      %v3027 = vrot.slane %v2641, 2
      %v3028 = vsel %vm1321, %v3025, %v3027
      %v3029 = vrot.slane %v2642, 2
      %v3030 = vsel %vm1321, %v3027, %v3029
      %v3031 = vrot.slane %v2811, 2
      %v3032 = vsel %vm1321, %v3029, %v3031
      %v3054 = vunpack.c.l.b16 %v3003
      %v3055 = vunpack.c.l.b16 %v3004
      %v3056 = vunpack.c.l.b16 %v3005
      %v3057 = vunpack.c.l.b16 %v3006
      %v3058 = vunpack.c.l.b16 %v3007
      %v3059 = vunpack.c.l.b16 %v3008
      %v3060 = vunpack.c.l.b16 %v3009
      %v3061 = vunpack.c.l.b16 %v3010
      %v3062 = vunpack.c.l.b16 %v3011
      %v3063 = vunpack.c.l.b16 %v3012
      %v3064 = vunpack.c.l.b16 %v3013
      %v3065 = vunpack.c.l.b16 %v3014
      %v3066 = vunpack.c.l.b16 %v3015
      %v3067 = vunpack.c.l.b16 %v3016
      %v3068 = vunpack.c.l.b16 %v3017
      %v3069 = vunpack.c.l.b16 %v3018
      %v3070 = vpack.c.b16 %v3055, %v3054
      %v3071 = vpack.c.b16 %v3057, %v3056
      %v3072 = vpack.c.b16 %v3059, %v3058
      %v3073 = vpack.c.b16 %v3061, %v3060
      %v3074 = vpack.c.b16 %v3063, %v3062
      %v3075 = vpack.c.b16 %v3065, %v3064
      %v3076 = vpack.c.b16 %v3067, %v3066
      %v3077 = vpack.c.b16 %v3069, %v3068
      %3086 = vmatprep.subr.bf16.mxu0 0
      %3087 = vmatpush1.bf16.msra.mxu0 %v3077
      %3088 = vmatprep.subr.bf16.mxu0 0
      %3089 = vmatpush1.bf16.msra.mxu0 %v3076
      %3090 = vmatprep.subr.bf16.mxu0 0
      %3091 = vmatpush1.bf16.msra.mxu0 %v3075
      %3092 = vmatprep.subr.bf16.mxu0 0
      %3093 = vmatpush1.bf16.msra.mxu0 %v3074
      %3094 = vmatprep.subr.bf16.mxu0 0
      %3095 = vmatpush1.bf16.msra.mxu0 %v3073
      %3096 = vmatprep.subr.bf16.mxu0 0
      %3097 = vmatpush1.bf16.msra.mxu0 %v3072
      %3098 = vmatprep.subr.bf16.mxu0 0
      %3099 = vmatpush1.bf16.msra.mxu0 %v3071
      %3100 = vmatprep.subr.bf16.mxu0 0
      %3101 = vmatpush1.bf16.msra.mxu0 %v3070
      %3102 = vmatprep.subr.bf16.mxu0 0
      %3103 = vmatpush2.bf16.msra.mxu0 0
      %3104 = vmatprep.subr.bf16.mxu0 0
      %3105 = vmatpush2.bf16.msra.mxu0 0
      %3106 = vmatprep.subr.bf16.mxu0 0
      %3107 = vmatpush2.bf16.msra.mxu0 0
      %3108 = vmatprep.subr.bf16.mxu0 0
      %3109 = vmatpush2.bf16.msra.mxu0 0
      %3110 = vmatprep.subr.bf16.mxu0 0
      %3111 = vmatpush2.bf16.msra.mxu0 0
      %3112 = vmatprep.subr.bf16.mxu0 0
      %3113 = vmatpush2.bf16.msra.mxu0 0
      %3114 = vmatprep.subr.bf16.mxu0 0
      %3115 = vmatpush2.bf16.msra.mxu0 0
      %3116 = vmatprep.subr.bf16.mxu0 0
      %3117 = vmatpush2.bf16.msra.mxu0 0
      %3118 = vmatprep.mubr.bf16.mxu0 0
      %3119 = vmatmul.mubr.bf16.gmra.mxu0 %v3024
      %v3120 = vpop.f32.mrf.mxu0
      %v3121 = vadd.f32 0.0, %v3120
      %v3122 = vpop.f32.mrf.mxu0
      %v3123 = vpop.f32.mrf.mxu0
      %v3124 = vadd.f32 0.0, %v3123
      %v3125 = vpop.f32.mrf.mxu0
      %3126 = vmatprep.mubr.bf16.mxu0 0
      %3127 = vmatmul.mubr.bf16.gmra.mxu0 %v3026
      %v3128 = vpop.f32.mrf.mxu0
      %v3129 = vadd.f32 0.0, %v3128
      %v3130 = vpop.f32.mrf.mxu0
      %v3131 = vpop.f32.mrf.mxu0
      %v3132 = vadd.f32 0.0, %v3131
      %v3133 = vpop.f32.mrf.mxu0
      %3134 = vmatprep.mubr.bf16.mxu0 0
      %3135 = vmatmul.mubr.bf16.gmra.mxu0 %v3028
      %v3136 = vpop.f32.mrf.mxu0
      %v3137 = vadd.f32 0.0, %v3136
      %v3138 = vpop.f32.mrf.mxu0
      %v3139 = vpop.f32.mrf.mxu0
      %v3140 = vadd.f32 0.0, %v3139
      %v3141 = vpop.f32.mrf.mxu0
      %3142 = vmatprep.mubr.bf16.mxu0 0
      %3143 = vmatmul.mubr.bf16.gmra.mxu0 %v3030
      %v3144 = vpop.f32.mrf.mxu0
      %v3145 = vadd.f32 0.0, %v3144
      %v3146 = vpop.f32.mrf.mxu0
      %v3147 = vpop.f32.mrf.mxu0
      %v3148 = vadd.f32 0.0, %v3147
      %v3149 = vpop.f32.mrf.mxu0
      %3150 = vmatprep.mubr.bf16.mxu0 0
      %3151 = vmatmul.mubr.bf16.gmra.mxu0 %v3032
      %v3152 = vpop.f32.mrf.mxu0
      %v3153 = vadd.f32 0.0, %v3152
      %v3154 = vpop.f32.mrf.mxu0
      %v3155 = vpop.f32.mrf.mxu0
      %v3156 = vadd.f32 0.0, %v3155
      %v3157 = vpop.f32.mrf.mxu0
      %3158 = vdwg.mxu0
      %v3159 = vadd.f32 %v2991, %v3121
      %v3160 = vadd.f32 %v2992, %v3124
      %v3161 = vadd.f32 %v2993, %v3129
      %v3162 = vadd.f32 %v2994, %v3132
      %v3163 = vadd.f32 %v2995, %v3137
      %v3164 = vadd.f32 %v2996, %v3140
      %v3165 = vadd.f32 %v2997, %v3145
      %v3166 = vadd.f32 %v2998, %v3148
      %v3167 = vadd.f32 %v2999, %v3153
      %v3168 = vadd.f32 %v3000, %v3156
      %v3169 = vld [vmem:[%s309 + $0x8] sm:$0xc]
      %v3170 = vld [vmem:[%s309 + $0xc] sm:$0xf]
      %v3171 = vld [vmem:[%s309 + $0x10] sm:$0xf]
      %v3172 = vld [vmem:[%s309 + $0x14] sm:$0xf]
      %v3173 = vld [vmem:[%s309 + $0x18] sm:$0xf]
      %v3174 = vld [vmem:[%s309 + $0x1c] sm:$0xf]
      %v3175 = vld [vmem:[%s309 + $0x20] sm:$0xf]
      %v3176 = vld [vmem:[%s309 + $0x24] sm:$0xf]
      %v3177 = vld [vmem:[%s309 + $0x28] sm:$0xf]
      %v3178 = vld [vmem:[%s309 + $0x2c] sm:$0xf]
      %v3179 = vld [vmem:[%s309 + $0x30] sm:$0x3]
      %s3180 = scalar_lea.vmem %s3, 384
      %v3181 = vld [vmem:[%s3180] sm:$0xf]
      %v3182 = vld [vmem:[%s3180 + $0x4] sm:$0xf]
      %v3183 = vld [vmem:[%s3180 + $0x8] sm:$0xf]
      %v3184 = vld [vmem:[%s3180 + $0xc] sm:$0xf]
      %v3185 = vld [vmem:[%s3180 + $0x10] sm:$0xf]
      %v3186 = vld [vmem:[%s3180 + $0x14] sm:$0xf]
      %v3187 = vld [vmem:[%s3180 + $0x18] sm:$0xf]
      %v3188 = vld [vmem:[%s3180 + $0x1c] sm:$0xf]
      %v3189 = vld [vmem:[%s3180 + $0x20] sm:$0xf]
      %v3190 = vld [vmem:[%s3180 + $0x24] sm:$0xf]
      %v3191 = vld [vmem:[%s3180 + $0x28] sm:$0xf]
      %v3192 = vld [vmem:[%s3180 + $0x2c] sm:$0xf]
      %v3193 = vld [vmem:[%s3180 + $0x30] sm:$0xf]
      %v3194 = vld [vmem:[%s3180 + $0x34] sm:$0xf]
      %v3195 = vld [vmem:[%s3180 + $0x38] sm:$0xf]
      %v3196 = vld [vmem:[%s3180 + $0x3c] sm:$0xf]
      %v3208 = vunpack.c.l.b16 %v3169
      %v3209 = vunpack.c.l.b16 %v3170
      %v3210 = vunpack.c.l.b16 %v3171
      %v3211 = vunpack.c.l.b16 %v3172
      %v3212 = vunpack.c.l.b16 %v3173
      %v3213 = vunpack.c.l.b16 %v3174
      %v3214 = vunpack.c.l.b16 %v3175
      %v3215 = vunpack.c.l.b16 %v3176
      %v3216 = vunpack.c.l.b16 %v3177
      %v3217 = vunpack.c.l.b16 %v3178
      %v3218 = vunpack.c.l.b16 %v3179
      %v3219 = vpack.c.b16 %v3209, %v3208
      %v3220 = vpack.c.b16 %v3211, %v3210
      %v3221 = vpack.c.b16 %v3213, %v3212
      %v3222 = vpack.c.b16 %v3215, %v3214
      %v3223 = vpack.c.b16 %v3217, %v3216
      %v3224 = vpack.c.b16 %v3218, %v3218
      %v3225 = vrot.slane %v3219, 2
      %v3226 = vrot.slane %v3220, 2
      %v3227 = vsel %vm1321, %v3225, %v3226
      %v3228 = vrot.slane %v3221, 2
      %v3229 = vsel %vm1321, %v3226, %v3228
      %v3230 = vrot.slane %v3222, 2
      %v3231 = vsel %vm1321, %v3228, %v3230
      %v3232 = vrot.slane %v3223, 2
      %v3233 = vsel %vm1321, %v3230, %v3232
      %v3234 = vrot.slane %v3224, 2
      %v3235 = vsel %vm1321, %v3232, %v3234
      %v3257 = vunpack.c.l.b16 %v3181
      %v3258 = vunpack.c.l.b16 %v3182
      %v3259 = vunpack.c.l.b16 %v3183
      %v3260 = vunpack.c.l.b16 %v3184
      %v3261 = vunpack.c.l.b16 %v3185
      %v3262 = vunpack.c.l.b16 %v3186
      %v3263 = vunpack.c.l.b16 %v3187
      %v3264 = vunpack.c.l.b16 %v3188
      %v3265 = vunpack.c.l.b16 %v3189
      %v3266 = vunpack.c.l.b16 %v3190
      %v3267 = vunpack.c.l.b16 %v3191
      %v3268 = vunpack.c.l.b16 %v3192
      %v3269 = vunpack.c.l.b16 %v3193
      %v3270 = vunpack.c.l.b16 %v3194
      %v3271 = vunpack.c.l.b16 %v3195
      %v3272 = vunpack.c.l.b16 %v3196
      %v3273 = vpack.c.b16 %v3258, %v3257
      %v3274 = vpack.c.b16 %v3260, %v3259
      %v3275 = vpack.c.b16 %v3262, %v3261
      %v3276 = vpack.c.b16 %v3264, %v3263
      %v3277 = vpack.c.b16 %v3266, %v3265
      %v3278 = vpack.c.b16 %v3268, %v3267
      %v3279 = vpack.c.b16 %v3270, %v3269
      %v3280 = vpack.c.b16 %v3272, %v3271
      %3289 = vmatprep.subr.bf16.mxu0 0
      %3290 = vmatpush1.bf16.msra.mxu0 %v3280
      %3291 = vmatprep.subr.bf16.mxu0 0
      %3292 = vmatpush1.bf16.msra.mxu0 %v3279
      %3293 = vmatprep.subr.bf16.mxu0 0
      %3294 = vmatpush1.bf16.msra.mxu0 %v3278
      %3295 = vmatprep.subr.bf16.mxu0 0
      %3296 = vmatpush1.bf16.msra.mxu0 %v3277
      %3297 = vmatprep.subr.bf16.mxu0 0
      %3298 = vmatpush1.bf16.msra.mxu0 %v3276
      %3299 = vmatprep.subr.bf16.mxu0 0
      %3300 = vmatpush1.bf16.msra.mxu0 %v3275
      %3301 = vmatprep.subr.bf16.mxu0 0
      %3302 = vmatpush1.bf16.msra.mxu0 %v3274
      %3303 = vmatprep.subr.bf16.mxu0 0
      %3304 = vmatpush1.bf16.msra.mxu0 %v3273
      %3305 = vmatprep.subr.bf16.mxu0 0
      %3306 = vmatpush2.bf16.msra.mxu0 0
      %3307 = vmatprep.subr.bf16.mxu0 0
      %3308 = vmatpush2.bf16.msra.mxu0 0
      %3309 = vmatprep.subr.bf16.mxu0 0
      %3310 = vmatpush2.bf16.msra.mxu0 0
      %3311 = vmatprep.subr.bf16.mxu0 0
      %3312 = vmatpush2.bf16.msra.mxu0 0
      %3313 = vmatprep.subr.bf16.mxu0 0
      %3314 = vmatpush2.bf16.msra.mxu0 0
      %3315 = vmatprep.subr.bf16.mxu0 0
      %3316 = vmatpush2.bf16.msra.mxu0 0
      %3317 = vmatprep.subr.bf16.mxu0 0
      %3318 = vmatpush2.bf16.msra.mxu0 0
      %3319 = vmatprep.subr.bf16.mxu0 0
      %3320 = vmatpush2.bf16.msra.mxu0 0
      %3321 = vmatprep.mubr.bf16.mxu0 0
      %3322 = vmatmul.mubr.bf16.gmra.mxu0 %v3227
      %v3323 = vpop.f32.mrf.mxu0
      %v3324 = vadd.f32 0.0, %v3323
      %v3325 = vpop.f32.mrf.mxu0
      %v3326 = vpop.f32.mrf.mxu0
      %v3327 = vadd.f32 0.0, %v3326
      %v3328 = vpop.f32.mrf.mxu0
      %3329 = vmatprep.mubr.bf16.mxu0 0
      %3330 = vmatmul.mubr.bf16.gmra.mxu0 %v3229
      %v3331 = vpop.f32.mrf.mxu0
      %v3332 = vadd.f32 0.0, %v3331
      %v3333 = vpop.f32.mrf.mxu0
      %v3334 = vpop.f32.mrf.mxu0
      %v3335 = vadd.f32 0.0, %v3334
      %v3336 = vpop.f32.mrf.mxu0
      %3337 = vmatprep.mubr.bf16.mxu0 0
      %3338 = vmatmul.mubr.bf16.gmra.mxu0 %v3231
      %v3339 = vpop.f32.mrf.mxu0
      %v3340 = vadd.f32 0.0, %v3339
      %v3341 = vpop.f32.mrf.mxu0
      %v3342 = vpop.f32.mrf.mxu0
      %v3343 = vadd.f32 0.0, %v3342
      %v3344 = vpop.f32.mrf.mxu0
      %3345 = vmatprep.mubr.bf16.mxu0 0
      %3346 = vmatmul.mubr.bf16.gmra.mxu0 %v3233
      %v3347 = vpop.f32.mrf.mxu0
      %v3348 = vadd.f32 0.0, %v3347
      %v3349 = vpop.f32.mrf.mxu0
      %v3350 = vpop.f32.mrf.mxu0
      %v3351 = vadd.f32 0.0, %v3350
      %v3352 = vpop.f32.mrf.mxu0
      %3353 = vmatprep.mubr.bf16.mxu0 0
      %3354 = vmatmul.mubr.bf16.gmra.mxu0 %v3235
      %v3355 = vpop.f32.mrf.mxu0
      %v3356 = vadd.f32 0.0, %v3355
      %v3357 = vpop.f32.mrf.mxu0
      %v3358 = vpop.f32.mrf.mxu0
      %v3359 = vadd.f32 0.0, %v3358
      %v3360 = vpop.f32.mrf.mxu0
      %3361 = vdwg.mxu0
      %v3362 = vadd.f32 %v3159, %v3324
      %v3363 = vadd.f32 %v3160, %v3327
      %v3364 = vadd.f32 %v3161, %v3332
      %v3365 = vadd.f32 %v3162, %v3335
      %v3366 = vadd.f32 %v3163, %v3340
      %v3367 = vadd.f32 %v3164, %v3343
      %v3368 = vadd.f32 %v3165, %v3348
      %v3369 = vadd.f32 %v3166, %v3351
      %v3370 = vadd.f32 %v3167, %v3356
      %v3371 = vadd.f32 %v3168, %v3359
      %v3372 = vld [vmem:[%s309 + $0x30] sm:$0x7]
      %s3373 = scalar_lea.vmem %s3, 448
      %v3374 = vld [vmem:[%s3373] sm:$0xf]
      %v3375 = vld [vmem:[%s3373 + $0x4] sm:$0xf]
      %v3376 = vld [vmem:[%s3373 + $0x8] sm:$0xf]
      %v3377 = vld [vmem:[%s3373 + $0xc] sm:$0xf]
      %v3378 = vld [vmem:[%s3373 + $0x10] sm:$0xf]
      %v3379 = vld [vmem:[%s3373 + $0x14] sm:$0xf]
      %v3380 = vld [vmem:[%s3373 + $0x18] sm:$0xf]
      %v3381 = vld [vmem:[%s3373 + $0x1c] sm:$0xf]
      %v3382 = vld [vmem:[%s3373 + $0x20] sm:$0xf]
      %v3383 = vld [vmem:[%s3373 + $0x24] sm:$0xf]
      %v3384 = vld [vmem:[%s3373 + $0x28] sm:$0xf]
      %v3385 = vld [vmem:[%s3373 + $0x2c] sm:$0xf]
      %v3386 = vld [vmem:[%s3373 + $0x30] sm:$0xf]
      %v3387 = vld [vmem:[%s3373 + $0x34] sm:$0xf]
      %v3388 = vld [vmem:[%s3373 + $0x38] sm:$0xf]
      %v3389 = vld [vmem:[%s3373 + $0x3c] sm:$0xf]
      %v3391 = vunpack.c.l.b16 %v3372
      %v3392 = vpack.c.b16 %v3391, %v3391
      %v3394 = vshrl.u32 %v3219, 16
      %v3396 = vrot.slane %v3394, 2
      %v3397 = vshll.u32 %v3219, 16
      %v3399 = vrot.slane %v3397, 3
      %v3400 = vor.u32 %v3396, %v3399
      %v3402 = vshrl.u32 %v3220, 16
      %v3404 = vrot.slane %v3402, 2
      %v3405 = vshll.u32 %v3220, 16
      %v3407 = vrot.slane %v3405, 3
      %v3408 = vor.u32 %v3404, %v3407
      %v3409 = vsel %vm1693, %v3400, %v3408
      %v3411 = vshrl.u32 %v3221, 16
      %v3413 = vrot.slane %v3411, 2
      %v3414 = vshll.u32 %v3221, 16
      %v3416 = vrot.slane %v3414, 3
      %v3417 = vor.u32 %v3413, %v3416
      %v3418 = vsel %vm1693, %v3408, %v3417
      %v3420 = vshrl.u32 %v3222, 16
      %v3422 = vrot.slane %v3420, 2
      %v3423 = vshll.u32 %v3222, 16
      %v3425 = vrot.slane %v3423, 3
      %v3426 = vor.u32 %v3422, %v3425
      %v3427 = vsel %vm1693, %v3417, %v3426
      %v3429 = vshrl.u32 %v3223, 16
      %v3431 = vrot.slane %v3429, 2
      %v3432 = vshll.u32 %v3223, 16
      %v3434 = vrot.slane %v3432, 3
      %v3435 = vor.u32 %v3431, %v3434
      %v3436 = vsel %vm1693, %v3426, %v3435
      %v3438 = vshrl.u32 %v3392, 16
      %v3440 = vrot.slane %v3438, 2
      %v3441 = vshll.u32 %v3392, 16
      %v3443 = vrot.slane %v3441, 3
      %v3444 = vor.u32 %v3440, %v3443
      %v3445 = vsel %vm1693, %v3435, %v3444
      %v3467 = vunpack.c.l.b16 %v3374
      %v3468 = vunpack.c.l.b16 %v3375
      %v3469 = vunpack.c.l.b16 %v3376
      %v3470 = vunpack.c.l.b16 %v3377
      %v3471 = vunpack.c.l.b16 %v3378
      %v3472 = vunpack.c.l.b16 %v3379
      %v3473 = vunpack.c.l.b16 %v3380
      %v3474 = vunpack.c.l.b16 %v3381
      %v3475 = vunpack.c.l.b16 %v3382
      %v3476 = vunpack.c.l.b16 %v3383
      %v3477 = vunpack.c.l.b16 %v3384
      %v3478 = vunpack.c.l.b16 %v3385
      %v3479 = vunpack.c.l.b16 %v3386
      %v3480 = vunpack.c.l.b16 %v3387
      %v3481 = vunpack.c.l.b16 %v3388
      %v3482 = vunpack.c.l.b16 %v3389
      %v3483 = vpack.c.b16 %v3468, %v3467
      %v3484 = vpack.c.b16 %v3470, %v3469
      %v3485 = vpack.c.b16 %v3472, %v3471
      %v3486 = vpack.c.b16 %v3474, %v3473
      %v3487 = vpack.c.b16 %v3476, %v3475
      %v3488 = vpack.c.b16 %v3478, %v3477
      %v3489 = vpack.c.b16 %v3480, %v3479
      %v3490 = vpack.c.b16 %v3482, %v3481
      %3499 = vmatprep.subr.bf16.mxu0 0
      %3500 = vmatpush1.bf16.msra.mxu0 %v3490
      %3501 = vmatprep.subr.bf16.mxu0 0
      %3502 = vmatpush1.bf16.msra.mxu0 %v3489
      %3503 = vmatprep.subr.bf16.mxu0 0
      %3504 = vmatpush1.bf16.msra.mxu0 %v3488
      %3505 = vmatprep.subr.bf16.mxu0 0
      %3506 = vmatpush1.bf16.msra.mxu0 %v3487
      %3507 = vmatprep.subr.bf16.mxu0 0
      %3508 = vmatpush1.bf16.msra.mxu0 %v3486
      %3509 = vmatprep.subr.bf16.mxu0 0
      %3510 = vmatpush1.bf16.msra.mxu0 %v3485
      %3511 = vmatprep.subr.bf16.mxu0 0
      %3512 = vmatpush1.bf16.msra.mxu0 %v3484
      %3513 = vmatprep.subr.bf16.mxu0 0
      %3514 = vmatpush1.bf16.msra.mxu0 %v3483
      %3515 = vmatprep.subr.bf16.mxu0 0
      %3516 = vmatpush2.bf16.msra.mxu0 0
      %3517 = vmatprep.subr.bf16.mxu0 0
      %3518 = vmatpush2.bf16.msra.mxu0 0
      %3519 = vmatprep.subr.bf16.mxu0 0
      %3520 = vmatpush2.bf16.msra.mxu0 0
      %3521 = vmatprep.subr.bf16.mxu0 0
      %3522 = vmatpush2.bf16.msra.mxu0 0
      %3523 = vmatprep.subr.bf16.mxu0 0
      %3524 = vmatpush2.bf16.msra.mxu0 0
      %3525 = vmatprep.subr.bf16.mxu0 0
      %3526 = vmatpush2.bf16.msra.mxu0 0
      %3527 = vmatprep.subr.bf16.mxu0 0
      %3528 = vmatpush2.bf16.msra.mxu0 0
      %3529 = vmatprep.subr.bf16.mxu0 0
      %3530 = vmatpush2.bf16.msra.mxu0 0
      %3531 = vmatprep.mubr.bf16.mxu0 0
      %3532 = vmatmul.mubr.bf16.gmra.mxu0 %v3409
      %v3533 = vpop.f32.mrf.mxu0
      %v3534 = vadd.f32 0.0, %v3533
      %v3535 = vpop.f32.mrf.mxu0
      %v3536 = vpop.f32.mrf.mxu0
      %v3537 = vadd.f32 0.0, %v3536
      %v3538 = vpop.f32.mrf.mxu0
      %3539 = vmatprep.mubr.bf16.mxu0 0
      %3540 = vmatmul.mubr.bf16.gmra.mxu0 %v3418
      %v3541 = vpop.f32.mrf.mxu0
      %v3542 = vadd.f32 0.0, %v3541
      %v3543 = vpop.f32.mrf.mxu0
      %v3544 = vpop.f32.mrf.mxu0
      %v3545 = vadd.f32 0.0, %v3544
      %v3546 = vpop.f32.mrf.mxu0
      %3547 = vmatprep.mubr.bf16.mxu0 0
      %3548 = vmatmul.mubr.bf16.gmra.mxu0 %v3427
      %v3549 = vpop.f32.mrf.mxu0
      %v3550 = vadd.f32 0.0, %v3549
      %v3551 = vpop.f32.mrf.mxu0
      %v3552 = vpop.f32.mrf.mxu0
      %v3553 = vadd.f32 0.0, %v3552
      %v3554 = vpop.f32.mrf.mxu0
      %3555 = vmatprep.mubr.bf16.mxu0 0
      %3556 = vmatmul.mubr.bf16.gmra.mxu0 %v3436
      %v3557 = vpop.f32.mrf.mxu0
      %v3558 = vadd.f32 0.0, %v3557
      %v3559 = vpop.f32.mrf.mxu0
      %v3560 = vpop.f32.mrf.mxu0
      %v3561 = vadd.f32 0.0, %v3560
      %v3562 = vpop.f32.mrf.mxu0
      %3563 = vmatprep.mubr.bf16.mxu0 0
      %3564 = vmatmul.mubr.bf16.gmra.mxu0 %v3445
      %v3565 = vpop.f32.mrf.mxu0
      %v3566 = vadd.f32 0.0, %v3565
      %v3567 = vpop.f32.mrf.mxu0
      %v3568 = vpop.f32.mrf.mxu0
      %v3569 = vadd.f32 0.0, %v3568
      %v3570 = vpop.f32.mrf.mxu0
      %3571 = vdwg.mxu0
      %v3572 = vadd.f32 %v3362, %v3534
      %v3573 = vadd.f32 %v3363, %v3537
      %v3574 = vadd.f32 %v3364, %v3542
      %v3575 = vadd.f32 %v3365, %v3545
      %v3576 = vadd.f32 %v3366, %v3550
      %v3577 = vadd.f32 %v3367, %v3553
      %v3578 = vadd.f32 %v3368, %v3558
      %v3579 = vadd.f32 %v3369, %v3561
      %v3580 = vadd.f32 %v3370, %v3566
      %v3581 = vadd.f32 %v3371, %v3569
      %v3582 = vld [vmem:[%s309 + $0x8] sm:$0x8]
      %s3583 = scalar_lea.vmem %s3, 512
      %v3584 = vld [vmem:[%s3583] sm:$0xf]
      %v3585 = vld [vmem:[%s3583 + $0x4] sm:$0xf]
      %v3586 = vld [vmem:[%s3583 + $0x8] sm:$0xf]
      %v3587 = vld [vmem:[%s3583 + $0xc] sm:$0xf]
      %v3588 = vld [vmem:[%s3583 + $0x10] sm:$0xf]
      %v3589 = vld [vmem:[%s3583 + $0x14] sm:$0xf]
      %v3590 = vld [vmem:[%s3583 + $0x18] sm:$0xf]
      %v3591 = vld [vmem:[%s3583 + $0x1c] sm:$0xf]
      %v3592 = vld [vmem:[%s3583 + $0x20] sm:$0xf]
      %v3593 = vld [vmem:[%s3583 + $0x24] sm:$0xf]
      %v3594 = vld [vmem:[%s3583 + $0x28] sm:$0xf]
      %v3595 = vld [vmem:[%s3583 + $0x2c] sm:$0xf]
      %v3596 = vld [vmem:[%s3583 + $0x30] sm:$0xf]
      %v3597 = vld [vmem:[%s3583 + $0x34] sm:$0xf]
      %v3598 = vld [vmem:[%s3583 + $0x38] sm:$0xf]
      %v3599 = vld [vmem:[%s3583 + $0x3c] sm:$0xf]
      %v3601 = vunpack.c.l.b16 %v3582
      %v3602 = vpack.c.b16 %v3209, %v3601
      %v3603 = vrot.slane %v3602, 3
      %v3604 = vrot.slane %v3220, 3
      %v3605 = vsel %vm1904, %v3603, %v3604
      %v3606 = vrot.slane %v3221, 3
      %v3607 = vsel %vm1904, %v3604, %v3606
      %v3608 = vrot.slane %v3222, 3
      %v3609 = vsel %vm1904, %v3606, %v3608
      %v3610 = vrot.slane %v3223, 3
      %v3611 = vsel %vm1904, %v3608, %v3610
      %v3612 = vrot.slane %v3392, 3
      %v3613 = vsel %vm1904, %v3610, %v3612
      %v3635 = vunpack.c.l.b16 %v3584
      %v3636 = vunpack.c.l.b16 %v3585
      %v3637 = vunpack.c.l.b16 %v3586
      %v3638 = vunpack.c.l.b16 %v3587
      %v3639 = vunpack.c.l.b16 %v3588
      %v3640 = vunpack.c.l.b16 %v3589
      %v3641 = vunpack.c.l.b16 %v3590
      %v3642 = vunpack.c.l.b16 %v3591
      %v3643 = vunpack.c.l.b16 %v3592
      %v3644 = vunpack.c.l.b16 %v3593
      %v3645 = vunpack.c.l.b16 %v3594
      %v3646 = vunpack.c.l.b16 %v3595
      %v3647 = vunpack.c.l.b16 %v3596
      %v3648 = vunpack.c.l.b16 %v3597
      %v3649 = vunpack.c.l.b16 %v3598
      %v3650 = vunpack.c.l.b16 %v3599
      %v3651 = vpack.c.b16 %v3636, %v3635
      %v3652 = vpack.c.b16 %v3638, %v3637
      %v3653 = vpack.c.b16 %v3640, %v3639
      %v3654 = vpack.c.b16 %v3642, %v3641
      %v3655 = vpack.c.b16 %v3644, %v3643
      %v3656 = vpack.c.b16 %v3646, %v3645
      %v3657 = vpack.c.b16 %v3648, %v3647
      %v3658 = vpack.c.b16 %v3650, %v3649
      %3667 = vmatprep.subr.bf16.mxu0 0
      %3668 = vmatpush1.bf16.msra.mxu0 %v3658
      %3669 = vmatprep.subr.bf16.mxu0 0
      %3670 = vmatpush1.bf16.msra.mxu0 %v3657
      %3671 = vmatprep.subr.bf16.mxu0 0
      %3672 = vmatpush1.bf16.msra.mxu0 %v3656
      %3673 = vmatprep.subr.bf16.mxu0 0
      %3674 = vmatpush1.bf16.msra.mxu0 %v3655
      %3675 = vmatprep.subr.bf16.mxu0 0
      %3676 = vmatpush1.bf16.msra.mxu0 %v3654
      %3677 = vmatprep.subr.bf16.mxu0 0
      %3678 = vmatpush1.bf16.msra.mxu0 %v3653
      %3679 = vmatprep.subr.bf16.mxu0 0
      %3680 = vmatpush1.bf16.msra.mxu0 %v3652
      %3681 = vmatprep.subr.bf16.mxu0 0
      %3682 = vmatpush1.bf16.msra.mxu0 %v3651
      %3683 = vmatprep.subr.bf16.mxu0 0
      %3684 = vmatpush2.bf16.msra.mxu0 0
      %3685 = vmatprep.subr.bf16.mxu0 0
      %3686 = vmatpush2.bf16.msra.mxu0 0
      %3687 = vmatprep.subr.bf16.mxu0 0
      %3688 = vmatpush2.bf16.msra.mxu0 0
      %3689 = vmatprep.subr.bf16.mxu0 0
      %3690 = vmatpush2.bf16.msra.mxu0 0
      %3691 = vmatprep.subr.bf16.mxu0 0
      %3692 = vmatpush2.bf16.msra.mxu0 0
      %3693 = vmatprep.subr.bf16.mxu0 0
      %3694 = vmatpush2.bf16.msra.mxu0 0
      %3695 = vmatprep.subr.bf16.mxu0 0
      %3696 = vmatpush2.bf16.msra.mxu0 0
      %3697 = vmatprep.subr.bf16.mxu0 0
      %3698 = vmatpush2.bf16.msra.mxu0 0
      %3699 = vmatprep.mubr.bf16.mxu0 0
      %3700 = vmatmul.mubr.bf16.gmra.mxu0 %v3605
      %v3701 = vpop.f32.mrf.mxu0
      %v3702 = vadd.f32 0.0, %v3701
      %v3703 = vpop.f32.mrf.mxu0
      %v3704 = vpop.f32.mrf.mxu0
      %v3705 = vadd.f32 0.0, %v3704
      %v3706 = vpop.f32.mrf.mxu0
      %3707 = vmatprep.mubr.bf16.mxu0 0
      %3708 = vmatmul.mubr.bf16.gmra.mxu0 %v3607
      %v3709 = vpop.f32.mrf.mxu0
      %v3710 = vadd.f32 0.0, %v3709
      %v3711 = vpop.f32.mrf.mxu0
      %v3712 = vpop.f32.mrf.mxu0
      %v3713 = vadd.f32 0.0, %v3712
      %v3714 = vpop.f32.mrf.mxu0
      %3715 = vmatprep.mubr.bf16.mxu0 0
      %3716 = vmatmul.mubr.bf16.gmra.mxu0 %v3609
      %v3717 = vpop.f32.mrf.mxu0
      %v3718 = vadd.f32 0.0, %v3717
      %v3719 = vpop.f32.mrf.mxu0
      %v3720 = vpop.f32.mrf.mxu0
      %v3721 = vadd.f32 0.0, %v3720
      %v3722 = vpop.f32.mrf.mxu0
      %3723 = vmatprep.mubr.bf16.mxu0 0
      %3724 = vmatmul.mubr.bf16.gmra.mxu0 %v3611
      %v3725 = vpop.f32.mrf.mxu0
      %v3726 = vadd.f32 0.0, %v3725
      %v3727 = vpop.f32.mrf.mxu0
      %v3728 = vpop.f32.mrf.mxu0
      %v3729 = vadd.f32 0.0, %v3728
      %v3730 = vpop.f32.mrf.mxu0
      %3731 = vmatprep.mubr.bf16.mxu0 0
      %3732 = vmatmul.mubr.bf16.gmra.mxu0 %v3613
      %v3733 = vpop.f32.mrf.mxu0
      %v3734 = vadd.f32 0.0, %v3733
      %v3735 = vpop.f32.mrf.mxu0
      %v3736 = vpop.f32.mrf.mxu0
      %v3737 = vadd.f32 0.0, %v3736
      %v3738 = vpop.f32.mrf.mxu0
      %3739 = vdwg.mxu0
      %v3740 = vadd.f32 %v3572, %v3702
      %v3741 = vadd.f32 %v3573, %v3705
      %v3742 = vadd.f32 %v3574, %v3710
      %v3743 = vadd.f32 %v3575, %v3713
      %v3744 = vadd.f32 %v3576, %v3718
      %v3745 = vadd.f32 %v3577, %v3721
      %v3746 = vadd.f32 %v3578, %v3726
      %v3747 = vadd.f32 %v3579, %v3729
      %v3748 = vadd.f32 %v3580, %v3734
      %v3749 = vadd.f32 %v3581, %v3737
      %v3750 = vld [vmem:[%s325] sm:$0xf]
      %v3751 = vld [vmem:[%s325 + $0x4] sm:$0xf]
      %v3752 = vld [vmem:[%s325 + $0x8] sm:$0xf]
      %v3753 = vld [vmem:[%s325 + $0xc] sm:$0xf]
      %v3754 = vld [vmem:[%s325 + $0x10] sm:$0xf]
      %v3755 = vld [vmem:[%s325 + $0x14] sm:$0xf]
      %v3756 = vld [vmem:[%s325 + $0x18] sm:$0xf]
      %v3757 = vld [vmem:[%s325 + $0x1c] sm:$0xf]
      %v3758 = vld [vmem:[%s325 + $0x20] sm:$0xf]
      %v3759 = vld [vmem:[%s325 + $0x24] sm:$0xf]
      %s3760 = scalar_lea.vmem %s3, 1152
      %v3761 = vld [vmem:[%s3760] sm:$0xf]
      %v3762 = vld [vmem:[%s3760 + $0x4] sm:$0xf]
      %v3763 = vld [vmem:[%s3760 + $0x8] sm:$0xf]
      %v3764 = vld [vmem:[%s3760 + $0xc] sm:$0xf]
      %v3765 = vld [vmem:[%s3760 + $0x10] sm:$0xf]
      %v3766 = vld [vmem:[%s3760 + $0x14] sm:$0xf]
      %v3767 = vld [vmem:[%s3760 + $0x18] sm:$0xf]
      %v3768 = vld [vmem:[%s3760 + $0x1c] sm:$0xf]
      %v3769 = vld [vmem:[%s3760 + $0x20] sm:$0xf]
      %v3770 = vld [vmem:[%s3760 + $0x24] sm:$0xf]
      %v3771 = vld [vmem:[%s3760 + $0x28] sm:$0xf]
      %v3772 = vld [vmem:[%s3760 + $0x2c] sm:$0xf]
      %v3773 = vld [vmem:[%s3760 + $0x30] sm:$0xf]
      %v3774 = vld [vmem:[%s3760 + $0x34] sm:$0xf]
      %v3775 = vld [vmem:[%s3760 + $0x38] sm:$0xf]
      %v3776 = vld [vmem:[%s3760 + $0x3c] sm:$0xf]
      %v3777 = vld [vmem:[%s325 + $0x28] sm:$0x1]
      %s3778 = scalar_lea.vmem %s3, 1216
      %v3779 = vld [vmem:[%s3778] sm:$0xf]
      %v3780 = vld [vmem:[%s3778 + $0x4] sm:$0xf]
      %v3781 = vld [vmem:[%s3778 + $0x8] sm:$0xf]
      %v3782 = vld [vmem:[%s3778 + $0xc] sm:$0xf]
      %v3783 = vld [vmem:[%s3778 + $0x10] sm:$0xf]
      %v3784 = vld [vmem:[%s3778 + $0x14] sm:$0xf]
      %v3785 = vld [vmem:[%s3778 + $0x18] sm:$0xf]
      %v3786 = vld [vmem:[%s3778 + $0x1c] sm:$0xf]
      %v3787 = vld [vmem:[%s3778 + $0x20] sm:$0xf]
      %v3788 = vld [vmem:[%s3778 + $0x24] sm:$0xf]
      %v3789 = vld [vmem:[%s3778 + $0x28] sm:$0xf]
      %v3790 = vld [vmem:[%s3778 + $0x2c] sm:$0xf]
      %v3791 = vld [vmem:[%s3778 + $0x30] sm:$0xf]
      %v3792 = vld [vmem:[%s3778 + $0x34] sm:$0xf]
      %v3793 = vld [vmem:[%s3778 + $0x38] sm:$0xf]
      %v3794 = vld [vmem:[%s3778 + $0x3c] sm:$0xf]
      %v3806 = vunpack.c.l.b16 %v3750
      %v3807 = vunpack.c.l.b16 %v3751
      %v3808 = vunpack.c.l.b16 %v3752
      %v3809 = vunpack.c.l.b16 %v3753
      %v3810 = vunpack.c.l.b16 %v3754
      %v3811 = vunpack.c.l.b16 %v3755
      %v3812 = vunpack.c.l.b16 %v3756
      %v3813 = vunpack.c.l.b16 %v3757
      %v3814 = vunpack.c.l.b16 %v3758
      %v3815 = vunpack.c.l.b16 %v3759
      %v3816 = vunpack.c.l.b16 %v3777
      %v3817 = vpack.c.b16 %v3807, %v3806
      %v3818 = vpack.c.b16 %v3809, %v3808
      %v3819 = vpack.c.b16 %v3811, %v3810
      %v3820 = vpack.c.b16 %v3813, %v3812
      %v3821 = vpack.c.b16 %v3815, %v3814
      %v3822 = vpack.c.b16 %v3816, %v3816
      %v3824 = vshrl.u32 %v3817, 16
      %v3826 = vshll.u32 %v3817, 16
      %v3828 = vrot.slane %v3826, 1
      %v3829 = vor.u32 %v3824, %v3828
      %v3831 = vshll.u32 %v3818, 16
      %v3833 = vrot.slane %v3831, 1
      %v3834 = vsel %vm420, %v3829, %v3833
      %v3835 = vshrl.u32 %v3818, 16
      %v3837 = vor.u32 %v3835, %v3833
      %v3839 = vshll.u32 %v3819, 16
      %v3841 = vrot.slane %v3839, 1
      %v3842 = vsel %vm420, %v3837, %v3841
      %v3843 = vshrl.u32 %v3819, 16
      %v3845 = vor.u32 %v3843, %v3841
      %v3847 = vshll.u32 %v3820, 16
      %v3849 = vrot.slane %v3847, 1
      %v3850 = vsel %vm420, %v3845, %v3849
      %v3851 = vshrl.u32 %v3820, 16
      %v3853 = vor.u32 %v3851, %v3849
      %v3855 = vshll.u32 %v3821, 16
      %v3857 = vrot.slane %v3855, 1
      %v3858 = vsel %vm420, %v3853, %v3857
      %v3859 = vshrl.u32 %v3821, 16
      %v3861 = vor.u32 %v3859, %v3857
      %v3863 = vshll.u32 %v3822, 16
      %v3865 = vrot.slane %v3863, 1
      %v3866 = vsel %vm420, %v3861, %v3865
      %v3888 = vunpack.c.l.b16 %v3779
      %v3889 = vunpack.c.l.b16 %v3780
      %v3890 = vunpack.c.l.b16 %v3781
      %v3891 = vunpack.c.l.b16 %v3782
      %v3892 = vunpack.c.l.b16 %v3783
      %v3893 = vunpack.c.l.b16 %v3784
      %v3894 = vunpack.c.l.b16 %v3785
      %v3895 = vunpack.c.l.b16 %v3786
      %v3896 = vunpack.c.l.b16 %v3787
      %v3897 = vunpack.c.l.b16 %v3788
      %v3898 = vunpack.c.l.b16 %v3789
      %v3899 = vunpack.c.l.b16 %v3790
      %v3900 = vunpack.c.l.b16 %v3791
      %v3901 = vunpack.c.l.b16 %v3792
      %v3902 = vunpack.c.l.b16 %v3793
      %v3903 = vunpack.c.l.b16 %v3794
      %v3904 = vpack.c.b16 %v3889, %v3888
      %v3905 = vpack.c.b16 %v3891, %v3890
      %v3906 = vpack.c.b16 %v3893, %v3892
      %v3907 = vpack.c.b16 %v3895, %v3894
      %v3908 = vpack.c.b16 %v3897, %v3896
      %v3909 = vpack.c.b16 %v3899, %v3898
      %v3910 = vpack.c.b16 %v3901, %v3900
      %v3911 = vpack.c.b16 %v3903, %v3902
      %3920 = vmatprep.subr.bf16.mxu0 0
      %3921 = vmatpush1.bf16.msra.mxu0 %v3911
      %3922 = vmatprep.subr.bf16.mxu0 0
      %3923 = vmatpush1.bf16.msra.mxu0 %v3910
      %3924 = vmatprep.subr.bf16.mxu0 0
      %3925 = vmatpush1.bf16.msra.mxu0 %v3909
      %3926 = vmatprep.subr.bf16.mxu0 0
      %3927 = vmatpush1.bf16.msra.mxu0 %v3908
      %3928 = vmatprep.subr.bf16.mxu0 0
      %3929 = vmatpush1.bf16.msra.mxu0 %v3907
      %3930 = vmatprep.subr.bf16.mxu0 0
      %3931 = vmatpush1.bf16.msra.mxu0 %v3906
      %3932 = vmatprep.subr.bf16.mxu0 0
      %3933 = vmatpush1.bf16.msra.mxu0 %v3905
      %3934 = vmatprep.subr.bf16.mxu0 0
      %3935 = vmatpush1.bf16.msra.mxu0 %v3904
      %3936 = vmatprep.subr.bf16.mxu0 0
      %3937 = vmatpush2.bf16.msra.mxu0 0
      %3938 = vmatprep.subr.bf16.mxu0 0
      %3939 = vmatpush2.bf16.msra.mxu0 0
      %3940 = vmatprep.subr.bf16.mxu0 0
      %3941 = vmatpush2.bf16.msra.mxu0 0
      %3942 = vmatprep.subr.bf16.mxu0 0
      %3943 = vmatpush2.bf16.msra.mxu0 0
      %3944 = vmatprep.subr.bf16.mxu0 0
      %3945 = vmatpush2.bf16.msra.mxu0 0
      %3946 = vmatprep.subr.bf16.mxu0 0
      %3947 = vmatpush2.bf16.msra.mxu0 0
      %3948 = vmatprep.subr.bf16.mxu0 0
      %3949 = vmatpush2.bf16.msra.mxu0 0
      %3950 = vmatprep.subr.bf16.mxu0 0
      %3951 = vmatpush2.bf16.msra.mxu0 0
      %3952 = vmatprep.mubr.bf16.mxu0 0
      %3953 = vmatmul.mubr.bf16.gmra.mxu0 %v3834
      %v3954 = vpop.f32.mrf.mxu0
      %v3955 = vadd.f32 0.0, %v3954
      %v3956 = vpop.f32.mrf.mxu0
      %v3957 = vpop.f32.mrf.mxu0
      %v3958 = vadd.f32 0.0, %v3957
      %v3959 = vpop.f32.mrf.mxu0
      %3960 = vmatprep.mubr.bf16.mxu0 0
      %3961 = vmatmul.mubr.bf16.gmra.mxu0 %v3842
      %v3962 = vpop.f32.mrf.mxu0
      %v3963 = vadd.f32 0.0, %v3962
      %v3964 = vpop.f32.mrf.mxu0
      %v3965 = vpop.f32.mrf.mxu0
      %v3966 = vadd.f32 0.0, %v3965
      %v3967 = vpop.f32.mrf.mxu0
      %3968 = vmatprep.mubr.bf16.mxu0 0
      %3969 = vmatmul.mubr.bf16.gmra.mxu0 %v3850
      %v3970 = vpop.f32.mrf.mxu0
      %v3971 = vadd.f32 0.0, %v3970
      %v3972 = vpop.f32.mrf.mxu0
      %v3973 = vpop.f32.mrf.mxu0
      %v3974 = vadd.f32 0.0, %v3973
      %v3975 = vpop.f32.mrf.mxu0
      %3976 = vmatprep.mubr.bf16.mxu0 0
      %3977 = vmatmul.mubr.bf16.gmra.mxu0 %v3858
      %v3978 = vpop.f32.mrf.mxu0
      %v3979 = vadd.f32 0.0, %v3978
      %v3980 = vpop.f32.mrf.mxu0
      %v3981 = vpop.f32.mrf.mxu0
      %v3982 = vadd.f32 0.0, %v3981
      %v3983 = vpop.f32.mrf.mxu0
      %3984 = vmatprep.mubr.bf16.mxu0 0
      %3985 = vmatmul.mubr.bf16.gmra.mxu0 %v3866
      %v3986 = vpop.f32.mrf.mxu0
      %v3987 = vadd.f32 0.0, %v3986
      %v3988 = vpop.f32.mrf.mxu0
      %v3989 = vpop.f32.mrf.mxu0
      %v3990 = vadd.f32 0.0, %v3989
      %v3991 = vpop.f32.mrf.mxu0
      %3992 = vdwg.mxu0
      %v4014 = vunpack.c.l.b16 %v3761
      %v4015 = vunpack.c.l.b16 %v3762
      %v4016 = vunpack.c.l.b16 %v3763
      %v4017 = vunpack.c.l.b16 %v3764
      %v4018 = vunpack.c.l.b16 %v3765
      %v4019 = vunpack.c.l.b16 %v3766
      %v4020 = vunpack.c.l.b16 %v3767
      %v4021 = vunpack.c.l.b16 %v3768
      %v4022 = vunpack.c.l.b16 %v3769
      %v4023 = vunpack.c.l.b16 %v3770
      %v4024 = vunpack.c.l.b16 %v3771
      %v4025 = vunpack.c.l.b16 %v3772
      %v4026 = vunpack.c.l.b16 %v3773
      %v4027 = vunpack.c.l.b16 %v3774
      %v4028 = vunpack.c.l.b16 %v3775
      %v4029 = vunpack.c.l.b16 %v3776
      %v4030 = vpack.c.b16 %v4015, %v4014
      %v4031 = vpack.c.b16 %v4017, %v4016
      %v4032 = vpack.c.b16 %v4019, %v4018
      %v4033 = vpack.c.b16 %v4021, %v4020
      %v4034 = vpack.c.b16 %v4023, %v4022
      %v4035 = vpack.c.b16 %v4025, %v4024
      %v4036 = vpack.c.b16 %v4027, %v4026
      %v4037 = vpack.c.b16 %v4029, %v4028
      %4046 = vmatprep.subr.bf16.mxu0 0
      %4047 = vmatpush1.bf16.msra.mxu0 %v4037
      %4048 = vmatprep.subr.bf16.mxu0 0
      %4049 = vmatpush1.bf16.msra.mxu0 %v4036
      %4050 = vmatprep.subr.bf16.mxu0 0
      %4051 = vmatpush1.bf16.msra.mxu0 %v4035
      %4052 = vmatprep.subr.bf16.mxu0 0
      %4053 = vmatpush1.bf16.msra.mxu0 %v4034
      %4054 = vmatprep.subr.bf16.mxu0 0
      %4055 = vmatpush1.bf16.msra.mxu0 %v4033
      %4056 = vmatprep.subr.bf16.mxu0 0
      %4057 = vmatpush1.bf16.msra.mxu0 %v4032
      %4058 = vmatprep.subr.bf16.mxu0 0
      %4059 = vmatpush1.bf16.msra.mxu0 %v4031
      %4060 = vmatprep.subr.bf16.mxu0 0
      %4061 = vmatpush1.bf16.msra.mxu0 %v4030
      %4062 = vmatprep.subr.bf16.mxu0 0
      %4063 = vmatpush2.bf16.msra.mxu0 0
      %4064 = vmatprep.subr.bf16.mxu0 0
      %4065 = vmatpush2.bf16.msra.mxu0 0
      %4066 = vmatprep.subr.bf16.mxu0 0
      %4067 = vmatpush2.bf16.msra.mxu0 0
      %4068 = vmatprep.subr.bf16.mxu0 0
      %4069 = vmatpush2.bf16.msra.mxu0 0
      %4070 = vmatprep.subr.bf16.mxu0 0
      %4071 = vmatpush2.bf16.msra.mxu0 0
      %4072 = vmatprep.subr.bf16.mxu0 0
      %4073 = vmatpush2.bf16.msra.mxu0 0
      %4074 = vmatprep.subr.bf16.mxu0 0
      %4075 = vmatpush2.bf16.msra.mxu0 0
      %4076 = vmatprep.subr.bf16.mxu0 0
      %4077 = vmatpush2.bf16.msra.mxu0 0
      %4078 = vmatprep.mubr.bf16.mxu0 0
      %4079 = vmatmul.mubr.bf16.gmra.mxu0 %v3817
      %v4080 = vpop.f32.mrf.mxu0
      %v4081 = vadd.f32 %v3955, %v4080
      %v4082 = vpop.f32.mrf.mxu0
      %v4083 = vpop.f32.mrf.mxu0
      %v4084 = vadd.f32 %v3958, %v4083
      %v4085 = vpop.f32.mrf.mxu0
      %4086 = vmatprep.mubr.bf16.mxu0 0
      %4087 = vmatmul.mubr.bf16.gmra.mxu0 %v3818
      %v4088 = vpop.f32.mrf.mxu0
      %v4089 = vadd.f32 %v3963, %v4088
      %v4090 = vpop.f32.mrf.mxu0
      %v4091 = vpop.f32.mrf.mxu0
      %v4092 = vadd.f32 %v3966, %v4091
      %v4093 = vpop.f32.mrf.mxu0
      %4094 = vmatprep.mubr.bf16.mxu0 0
      %4095 = vmatmul.mubr.bf16.gmra.mxu0 %v3819
      %v4096 = vpop.f32.mrf.mxu0
      %v4097 = vadd.f32 %v3971, %v4096
      %v4098 = vpop.f32.mrf.mxu0
      %v4099 = vpop.f32.mrf.mxu0
      %v4100 = vadd.f32 %v3974, %v4099
      %v4101 = vpop.f32.mrf.mxu0
      %4102 = vmatprep.mubr.bf16.mxu0 0
      %4103 = vmatmul.mubr.bf16.gmra.mxu0 %v3820
      %v4104 = vpop.f32.mrf.mxu0
      %v4105 = vadd.f32 %v3979, %v4104
      %v4106 = vpop.f32.mrf.mxu0
      %v4107 = vpop.f32.mrf.mxu0
      %v4108 = vadd.f32 %v3982, %v4107
      %v4109 = vpop.f32.mrf.mxu0
      %4110 = vmatprep.mubr.bf16.mxu0 0
      %4111 = vmatmul.mubr.bf16.gmra.mxu0 %v3821
      %v4112 = vpop.f32.mrf.mxu0
      %v4113 = vadd.f32 %v3987, %v4112
      %v4114 = vpop.f32.mrf.mxu0
      %v4115 = vpop.f32.mrf.mxu0
      %v4116 = vadd.f32 %v3990, %v4115
      %v4117 = vpop.f32.mrf.mxu0
      %4118 = vdwg.mxu0
      %v4119 = vld [vmem:[%s325] sm:$0xe]
      %s4120 = scalar_lea.vmem %s3, 1280
      %v4121 = vld [vmem:[%s4120] sm:$0xf]
      %v4122 = vld [vmem:[%s4120 + $0x4] sm:$0xf]
      %v4123 = vld [vmem:[%s4120 + $0x8] sm:$0xf]
      %v4124 = vld [vmem:[%s4120 + $0xc] sm:$0xf]
      %v4125 = vld [vmem:[%s4120 + $0x10] sm:$0xf]
      %v4126 = vld [vmem:[%s4120 + $0x14] sm:$0xf]
      %v4127 = vld [vmem:[%s4120 + $0x18] sm:$0xf]
      %v4128 = vld [vmem:[%s4120 + $0x1c] sm:$0xf]
      %v4129 = vld [vmem:[%s4120 + $0x20] sm:$0xf]
      %v4130 = vld [vmem:[%s4120 + $0x24] sm:$0xf]
      %v4131 = vld [vmem:[%s4120 + $0x28] sm:$0xf]
      %v4132 = vld [vmem:[%s4120 + $0x2c] sm:$0xf]
      %v4133 = vld [vmem:[%s4120 + $0x30] sm:$0xf]
      %v4134 = vld [vmem:[%s4120 + $0x34] sm:$0xf]
      %v4135 = vld [vmem:[%s4120 + $0x38] sm:$0xf]
      %v4136 = vld [vmem:[%s4120 + $0x3c] sm:$0xf]
      %v4138 = vunpack.c.l.b16 %v4119
      %v4139 = vpack.c.b16 %v3807, %v4138
      %v4140 = vrot.slane %v4139, 1
      %v4141 = vrot.slane %v3818, 1
      %v4142 = vsel %vm738, %v4140, %v4141
      %v4143 = vrot.slane %v3819, 1
      %v4144 = vsel %vm738, %v4141, %v4143
      %v4145 = vrot.slane %v3820, 1
      %v4146 = vsel %vm738, %v4143, %v4145
      %v4147 = vrot.slane %v3821, 1
      %v4148 = vsel %vm738, %v4145, %v4147
      %v4149 = vrot.slane %v3822, 1
      %v4150 = vsel %vm738, %v4147, %v4149
      %v4172 = vunpack.c.l.b16 %v4121
      %v4173 = vunpack.c.l.b16 %v4122
      %v4174 = vunpack.c.l.b16 %v4123
      %v4175 = vunpack.c.l.b16 %v4124
      %v4176 = vunpack.c.l.b16 %v4125
      %v4177 = vunpack.c.l.b16 %v4126
      %v4178 = vunpack.c.l.b16 %v4127
      %v4179 = vunpack.c.l.b16 %v4128
      %v4180 = vunpack.c.l.b16 %v4129
      %v4181 = vunpack.c.l.b16 %v4130
      %v4182 = vunpack.c.l.b16 %v4131
      %v4183 = vunpack.c.l.b16 %v4132
      %v4184 = vunpack.c.l.b16 %v4133
      %v4185 = vunpack.c.l.b16 %v4134
      %v4186 = vunpack.c.l.b16 %v4135
      %v4187 = vunpack.c.l.b16 %v4136
      %v4188 = vpack.c.b16 %v4173, %v4172
      %v4189 = vpack.c.b16 %v4175, %v4174
      %v4190 = vpack.c.b16 %v4177, %v4176
      %v4191 = vpack.c.b16 %v4179, %v4178
      %v4192 = vpack.c.b16 %v4181, %v4180
      %v4193 = vpack.c.b16 %v4183, %v4182
      %v4194 = vpack.c.b16 %v4185, %v4184
      %v4195 = vpack.c.b16 %v4187, %v4186
      %4204 = vmatprep.subr.bf16.mxu0 0
      %4205 = vmatpush1.bf16.msra.mxu0 %v4195
      %4206 = vmatprep.subr.bf16.mxu0 0
      %4207 = vmatpush1.bf16.msra.mxu0 %v4194
      %4208 = vmatprep.subr.bf16.mxu0 0
      %4209 = vmatpush1.bf16.msra.mxu0 %v4193
      %4210 = vmatprep.subr.bf16.mxu0 0
      %4211 = vmatpush1.bf16.msra.mxu0 %v4192
      %4212 = vmatprep.subr.bf16.mxu0 0
      %4213 = vmatpush1.bf16.msra.mxu0 %v4191
      %4214 = vmatprep.subr.bf16.mxu0 0
      %4215 = vmatpush1.bf16.msra.mxu0 %v4190
      %4216 = vmatprep.subr.bf16.mxu0 0
      %4217 = vmatpush1.bf16.msra.mxu0 %v4189
      %4218 = vmatprep.subr.bf16.mxu0 0
      %4219 = vmatpush1.bf16.msra.mxu0 %v4188
      %4220 = vmatprep.subr.bf16.mxu0 0
      %4221 = vmatpush2.bf16.msra.mxu0 0
      %4222 = vmatprep.subr.bf16.mxu0 0
      %4223 = vmatpush2.bf16.msra.mxu0 0
      %4224 = vmatprep.subr.bf16.mxu0 0
      %4225 = vmatpush2.bf16.msra.mxu0 0
      %4226 = vmatprep.subr.bf16.mxu0 0
      %4227 = vmatpush2.bf16.msra.mxu0 0
      %4228 = vmatprep.subr.bf16.mxu0 0
      %4229 = vmatpush2.bf16.msra.mxu0 0
      %4230 = vmatprep.subr.bf16.mxu0 0
      %4231 = vmatpush2.bf16.msra.mxu0 0
      %4232 = vmatprep.subr.bf16.mxu0 0
      %4233 = vmatpush2.bf16.msra.mxu0 0
      %4234 = vmatprep.subr.bf16.mxu0 0
      %4235 = vmatpush2.bf16.msra.mxu0 0
      %4236 = vmatprep.mubr.bf16.mxu0 0
      %4237 = vmatmul.mubr.bf16.gmra.mxu0 %v4142
      %v4238 = vpop.f32.mrf.mxu0
      %v4239 = vadd.f32 0.0, %v4238
      %v4240 = vpop.f32.mrf.mxu0
      %v4241 = vpop.f32.mrf.mxu0
      %v4242 = vadd.f32 0.0, %v4241
      %v4243 = vpop.f32.mrf.mxu0
      %4244 = vmatprep.mubr.bf16.mxu0 0
      %4245 = vmatmul.mubr.bf16.gmra.mxu0 %v4144
      %v4246 = vpop.f32.mrf.mxu0
      %v4247 = vadd.f32 0.0, %v4246
      %v4248 = vpop.f32.mrf.mxu0
      %v4249 = vpop.f32.mrf.mxu0
      %v4250 = vadd.f32 0.0, %v4249
      %v4251 = vpop.f32.mrf.mxu0
      %4252 = vmatprep.mubr.bf16.mxu0 0
      %4253 = vmatmul.mubr.bf16.gmra.mxu0 %v4146
      %v4254 = vpop.f32.mrf.mxu0
      %v4255 = vadd.f32 0.0, %v4254
      %v4256 = vpop.f32.mrf.mxu0
      %v4257 = vpop.f32.mrf.mxu0
      %v4258 = vadd.f32 0.0, %v4257
      %v4259 = vpop.f32.mrf.mxu0
      %4260 = vmatprep.mubr.bf16.mxu0 0
      %4261 = vmatmul.mubr.bf16.gmra.mxu0 %v4148
      %v4262 = vpop.f32.mrf.mxu0
      %v4263 = vadd.f32 0.0, %v4262
      %v4264 = vpop.f32.mrf.mxu0
      %v4265 = vpop.f32.mrf.mxu0
      %v4266 = vadd.f32 0.0, %v4265
      %v4267 = vpop.f32.mrf.mxu0
      %4268 = vmatprep.mubr.bf16.mxu0 0
      %4269 = vmatmul.mubr.bf16.gmra.mxu0 %v4150
      %v4270 = vpop.f32.mrf.mxu0
      %v4271 = vadd.f32 0.0, %v4270
      %v4272 = vpop.f32.mrf.mxu0
      %v4273 = vpop.f32.mrf.mxu0
      %v4274 = vadd.f32 0.0, %v4273
      %v4275 = vpop.f32.mrf.mxu0
      %4276 = vdwg.mxu0
      %v4277 = vadd.f32 %v4081, %v4239
      %v4278 = vadd.f32 %v4084, %v4242
      %v4279 = vadd.f32 %v4089, %v4247
      %v4280 = vadd.f32 %v4092, %v4250
      %v4281 = vadd.f32 %v4097, %v4255
      %v4282 = vadd.f32 %v4100, %v4258
      %v4283 = vadd.f32 %v4105, %v4263
      %v4284 = vadd.f32 %v4108, %v4266
      %v4285 = vadd.f32 %v4113, %v4271
      %v4286 = vadd.f32 %v4116, %v4274
      %v4287 = vld [vmem:[%s325 + $0x4] sm:$0xe]
      %v4288 = vld [vmem:[%s325 + $0x8] sm:$0xf]
      %v4289 = vld [vmem:[%s325 + $0xc] sm:$0xf]
      %v4290 = vld [vmem:[%s325 + $0x10] sm:$0xf]
      %v4291 = vld [vmem:[%s325 + $0x14] sm:$0xf]
      %v4292 = vld [vmem:[%s325 + $0x18] sm:$0xf]
      %v4293 = vld [vmem:[%s325 + $0x1c] sm:$0xf]
      %v4294 = vld [vmem:[%s325 + $0x20] sm:$0xf]
      %v4295 = vld [vmem:[%s325 + $0x24] sm:$0xf]
      %v4296 = vld [vmem:[%s325 + $0x28] sm:$0xf]
      %v4297 = vld [vmem:[%s325 + $0x2c] sm:$0x1]
      %s4298 = scalar_lea.vmem %s3, 1344
      %v4299 = vld [vmem:[%s4298] sm:$0xf]
      %v4300 = vld [vmem:[%s4298 + $0x4] sm:$0xf]
      %v4301 = vld [vmem:[%s4298 + $0x8] sm:$0xf]
      %v4302 = vld [vmem:[%s4298 + $0xc] sm:$0xf]
      %v4303 = vld [vmem:[%s4298 + $0x10] sm:$0xf]
      %v4304 = vld [vmem:[%s4298 + $0x14] sm:$0xf]
      %v4305 = vld [vmem:[%s4298 + $0x18] sm:$0xf]
      %v4306 = vld [vmem:[%s4298 + $0x1c] sm:$0xf]
      %v4307 = vld [vmem:[%s4298 + $0x20] sm:$0xf]
      %v4308 = vld [vmem:[%s4298 + $0x24] sm:$0xf]
      %v4309 = vld [vmem:[%s4298 + $0x28] sm:$0xf]
      %v4310 = vld [vmem:[%s4298 + $0x2c] sm:$0xf]
      %v4311 = vld [vmem:[%s4298 + $0x30] sm:$0xf]
      %v4312 = vld [vmem:[%s4298 + $0x34] sm:$0xf]
      %v4313 = vld [vmem:[%s4298 + $0x38] sm:$0xf]
      %v4314 = vld [vmem:[%s4298 + $0x3c] sm:$0xf]
      %v4326 = vunpack.c.l.b16 %v4287
      %v4327 = vunpack.c.l.b16 %v4288
      %v4328 = vunpack.c.l.b16 %v4289
      %v4329 = vunpack.c.l.b16 %v4290
      %v4330 = vunpack.c.l.b16 %v4291
      %v4331 = vunpack.c.l.b16 %v4292
      %v4332 = vunpack.c.l.b16 %v4293
      %v4333 = vunpack.c.l.b16 %v4294
      %v4334 = vunpack.c.l.b16 %v4295
      %v4335 = vunpack.c.l.b16 %v4296
      %v4336 = vunpack.c.l.b16 %v4297
      %v4337 = vpack.c.b16 %v4327, %v4326
      %v4338 = vpack.c.b16 %v4329, %v4328
      %v4339 = vpack.c.b16 %v4331, %v4330
      %v4340 = vpack.c.b16 %v4333, %v4332
      %v4341 = vpack.c.b16 %v4335, %v4334
      %v4342 = vpack.c.b16 %v4336, %v4336
      %v4343 = vrot.slane %v4337, 1
      %v4344 = vrot.slane %v4338, 1
      %v4345 = vsel %vm738, %v4343, %v4344
      %v4346 = vrot.slane %v4339, 1
      %v4347 = vsel %vm738, %v4344, %v4346
      %v4348 = vrot.slane %v4340, 1
      %v4349 = vsel %vm738, %v4346, %v4348
      %v4350 = vrot.slane %v4341, 1
      %v4351 = vsel %vm738, %v4348, %v4350
      %v4352 = vrot.slane %v4342, 1
      %v4353 = vsel %vm738, %v4350, %v4352
      %v4375 = vunpack.c.l.b16 %v4299
      %v4376 = vunpack.c.l.b16 %v4300
      %v4377 = vunpack.c.l.b16 %v4301
      %v4378 = vunpack.c.l.b16 %v4302
      %v4379 = vunpack.c.l.b16 %v4303
      %v4380 = vunpack.c.l.b16 %v4304
      %v4381 = vunpack.c.l.b16 %v4305
      %v4382 = vunpack.c.l.b16 %v4306
      %v4383 = vunpack.c.l.b16 %v4307
      %v4384 = vunpack.c.l.b16 %v4308
      %v4385 = vunpack.c.l.b16 %v4309
      %v4386 = vunpack.c.l.b16 %v4310
      %v4387 = vunpack.c.l.b16 %v4311
      %v4388 = vunpack.c.l.b16 %v4312
      %v4389 = vunpack.c.l.b16 %v4313
      %v4390 = vunpack.c.l.b16 %v4314
      %v4391 = vpack.c.b16 %v4376, %v4375
      %v4392 = vpack.c.b16 %v4378, %v4377
      %v4393 = vpack.c.b16 %v4380, %v4379
      %v4394 = vpack.c.b16 %v4382, %v4381
      %v4395 = vpack.c.b16 %v4384, %v4383
      %v4396 = vpack.c.b16 %v4386, %v4385
      %v4397 = vpack.c.b16 %v4388, %v4387
      %v4398 = vpack.c.b16 %v4390, %v4389
      %4407 = vmatprep.subr.bf16.mxu0 0
      %4408 = vmatpush1.bf16.msra.mxu0 %v4398
      %4409 = vmatprep.subr.bf16.mxu0 0
      %4410 = vmatpush1.bf16.msra.mxu0 %v4397
      %4411 = vmatprep.subr.bf16.mxu0 0
      %4412 = vmatpush1.bf16.msra.mxu0 %v4396
      %4413 = vmatprep.subr.bf16.mxu0 0
      %4414 = vmatpush1.bf16.msra.mxu0 %v4395
      %4415 = vmatprep.subr.bf16.mxu0 0
      %4416 = vmatpush1.bf16.msra.mxu0 %v4394
      %4417 = vmatprep.subr.bf16.mxu0 0
      %4418 = vmatpush1.bf16.msra.mxu0 %v4393
      %4419 = vmatprep.subr.bf16.mxu0 0
      %4420 = vmatpush1.bf16.msra.mxu0 %v4392
      %4421 = vmatprep.subr.bf16.mxu0 0
      %4422 = vmatpush1.bf16.msra.mxu0 %v4391
      %4423 = vmatprep.subr.bf16.mxu0 0
      %4424 = vmatpush2.bf16.msra.mxu0 0
      %4425 = vmatprep.subr.bf16.mxu0 0
      %4426 = vmatpush2.bf16.msra.mxu0 0
      %4427 = vmatprep.subr.bf16.mxu0 0
      %4428 = vmatpush2.bf16.msra.mxu0 0
      %4429 = vmatprep.subr.bf16.mxu0 0
      %4430 = vmatpush2.bf16.msra.mxu0 0
      %4431 = vmatprep.subr.bf16.mxu0 0
      %4432 = vmatpush2.bf16.msra.mxu0 0
      %4433 = vmatprep.subr.bf16.mxu0 0
      %4434 = vmatpush2.bf16.msra.mxu0 0
      %4435 = vmatprep.subr.bf16.mxu0 0
      %4436 = vmatpush2.bf16.msra.mxu0 0
      %4437 = vmatprep.subr.bf16.mxu0 0
      %4438 = vmatpush2.bf16.msra.mxu0 0
      %4439 = vmatprep.mubr.bf16.mxu0 0
      %4440 = vmatmul.mubr.bf16.gmra.mxu0 %v4345
      %v4441 = vpop.f32.mrf.mxu0
      %v4442 = vadd.f32 0.0, %v4441
      %v4443 = vpop.f32.mrf.mxu0
      %v4444 = vpop.f32.mrf.mxu0
      %v4445 = vadd.f32 0.0, %v4444
      %v4446 = vpop.f32.mrf.mxu0
      %4447 = vmatprep.mubr.bf16.mxu0 0
      %4448 = vmatmul.mubr.bf16.gmra.mxu0 %v4347
      %v4449 = vpop.f32.mrf.mxu0
      %v4450 = vadd.f32 0.0, %v4449
      %v4451 = vpop.f32.mrf.mxu0
      %v4452 = vpop.f32.mrf.mxu0
      %v4453 = vadd.f32 0.0, %v4452
      %v4454 = vpop.f32.mrf.mxu0
      %4455 = vmatprep.mubr.bf16.mxu0 0
      %4456 = vmatmul.mubr.bf16.gmra.mxu0 %v4349
      %v4457 = vpop.f32.mrf.mxu0
      %v4458 = vadd.f32 0.0, %v4457
      %v4459 = vpop.f32.mrf.mxu0
      %v4460 = vpop.f32.mrf.mxu0
      %v4461 = vadd.f32 0.0, %v4460
      %v4462 = vpop.f32.mrf.mxu0
      %4463 = vmatprep.mubr.bf16.mxu0 0
      %4464 = vmatmul.mubr.bf16.gmra.mxu0 %v4351
      %v4465 = vpop.f32.mrf.mxu0
      %v4466 = vadd.f32 0.0, %v4465
      %v4467 = vpop.f32.mrf.mxu0
      %v4468 = vpop.f32.mrf.mxu0
      %v4469 = vadd.f32 0.0, %v4468
      %v4470 = vpop.f32.mrf.mxu0
      %4471 = vmatprep.mubr.bf16.mxu0 0
      %4472 = vmatmul.mubr.bf16.gmra.mxu0 %v4353
      %v4473 = vpop.f32.mrf.mxu0
      %v4474 = vadd.f32 0.0, %v4473
      %v4475 = vpop.f32.mrf.mxu0
      %v4476 = vpop.f32.mrf.mxu0
      %v4477 = vadd.f32 0.0, %v4476
      %v4478 = vpop.f32.mrf.mxu0
      %4479 = vdwg.mxu0
      %v4480 = vadd.f32 %v4277, %v4442
      %v4481 = vadd.f32 %v4278, %v4445
      %v4482 = vadd.f32 %v4279, %v4450
      %v4483 = vadd.f32 %v4280, %v4453
      %v4484 = vadd.f32 %v4281, %v4458
      %v4485 = vadd.f32 %v4282, %v4461
      %v4486 = vadd.f32 %v4283, %v4466
      %v4487 = vadd.f32 %v4284, %v4469
      %v4488 = vadd.f32 %v4285, %v4474
      %v4489 = vadd.f32 %v4286, %v4477
      %v4490 = vld [vmem:[%s325 + $0x2c] sm:$0x3]
      %s4491 = scalar_lea.vmem %s3, 1408
      %v4492 = vld [vmem:[%s4491] sm:$0xf]
      %v4493 = vld [vmem:[%s4491 + $0x4] sm:$0xf]
      %v4494 = vld [vmem:[%s4491 + $0x8] sm:$0xf]
      %v4495 = vld [vmem:[%s4491 + $0xc] sm:$0xf]
      %v4496 = vld [vmem:[%s4491 + $0x10] sm:$0xf]
      %v4497 = vld [vmem:[%s4491 + $0x14] sm:$0xf]
      %v4498 = vld [vmem:[%s4491 + $0x18] sm:$0xf]
      %v4499 = vld [vmem:[%s4491 + $0x1c] sm:$0xf]
      %v4500 = vld [vmem:[%s4491 + $0x20] sm:$0xf]
      %v4501 = vld [vmem:[%s4491 + $0x24] sm:$0xf]
      %v4502 = vld [vmem:[%s4491 + $0x28] sm:$0xf]
      %v4503 = vld [vmem:[%s4491 + $0x2c] sm:$0xf]
      %v4504 = vld [vmem:[%s4491 + $0x30] sm:$0xf]
      %v4505 = vld [vmem:[%s4491 + $0x34] sm:$0xf]
      %v4506 = vld [vmem:[%s4491 + $0x38] sm:$0xf]
      %v4507 = vld [vmem:[%s4491 + $0x3c] sm:$0xf]
      %v4509 = vunpack.c.l.b16 %v4490
      %v4510 = vpack.c.b16 %v4509, %v4509
      %v4512 = vshrl.u32 %v4337, 16
      %v4514 = vrot.slane %v4512, 1
      %v4515 = vshll.u32 %v4337, 16
      %v4517 = vrot.slane %v4515, 2
      %v4518 = vor.u32 %v4514, %v4517
      %v4520 = vshrl.u32 %v4338, 16
      %v4522 = vrot.slane %v4520, 1
      %v4523 = vshll.u32 %v4338, 16
      %v4525 = vrot.slane %v4523, 2
      %v4526 = vor.u32 %v4522, %v4525
      %v4527 = vsel %vm1110, %v4518, %v4526
      %v4529 = vshrl.u32 %v4339, 16
      %v4531 = vrot.slane %v4529, 1
      %v4532 = vshll.u32 %v4339, 16
      %v4534 = vrot.slane %v4532, 2
      %v4535 = vor.u32 %v4531, %v4534
      %v4536 = vsel %vm1110, %v4526, %v4535
      %v4538 = vshrl.u32 %v4340, 16
      %v4540 = vrot.slane %v4538, 1
      %v4541 = vshll.u32 %v4340, 16
      %v4543 = vrot.slane %v4541, 2
      %v4544 = vor.u32 %v4540, %v4543
      %v4545 = vsel %vm1110, %v4535, %v4544
      %v4547 = vshrl.u32 %v4341, 16
      %v4549 = vrot.slane %v4547, 1
      %v4550 = vshll.u32 %v4341, 16
      %v4552 = vrot.slane %v4550, 2
      %v4553 = vor.u32 %v4549, %v4552
      %v4554 = vsel %vm1110, %v4544, %v4553
      %v4556 = vshrl.u32 %v4510, 16
      %v4558 = vrot.slane %v4556, 1
      %v4559 = vshll.u32 %v4510, 16
      %v4561 = vrot.slane %v4559, 2
      %v4562 = vor.u32 %v4558, %v4561
      %v4563 = vsel %vm1110, %v4553, %v4562
      %v4585 = vunpack.c.l.b16 %v4492
      %v4586 = vunpack.c.l.b16 %v4493
      %v4587 = vunpack.c.l.b16 %v4494
      %v4588 = vunpack.c.l.b16 %v4495
      %v4589 = vunpack.c.l.b16 %v4496
      %v4590 = vunpack.c.l.b16 %v4497
      %v4591 = vunpack.c.l.b16 %v4498
      %v4592 = vunpack.c.l.b16 %v4499
      %v4593 = vunpack.c.l.b16 %v4500
      %v4594 = vunpack.c.l.b16 %v4501
      %v4595 = vunpack.c.l.b16 %v4502
      %v4596 = vunpack.c.l.b16 %v4503
      %v4597 = vunpack.c.l.b16 %v4504
      %v4598 = vunpack.c.l.b16 %v4505
      %v4599 = vunpack.c.l.b16 %v4506
      %v4600 = vunpack.c.l.b16 %v4507
      %v4601 = vpack.c.b16 %v4586, %v4585
      %v4602 = vpack.c.b16 %v4588, %v4587
      %v4603 = vpack.c.b16 %v4590, %v4589
      %v4604 = vpack.c.b16 %v4592, %v4591
      %v4605 = vpack.c.b16 %v4594, %v4593
      %v4606 = vpack.c.b16 %v4596, %v4595
      %v4607 = vpack.c.b16 %v4598, %v4597
      %v4608 = vpack.c.b16 %v4600, %v4599
      %4617 = vmatprep.subr.bf16.mxu0 0
      %4618 = vmatpush1.bf16.msra.mxu0 %v4608
      %4619 = vmatprep.subr.bf16.mxu0 0
      %4620 = vmatpush1.bf16.msra.mxu0 %v4607
      %4621 = vmatprep.subr.bf16.mxu0 0
      %4622 = vmatpush1.bf16.msra.mxu0 %v4606
      %4623 = vmatprep.subr.bf16.mxu0 0
      %4624 = vmatpush1.bf16.msra.mxu0 %v4605
      %4625 = vmatprep.subr.bf16.mxu0 0
      %4626 = vmatpush1.bf16.msra.mxu0 %v4604
      %4627 = vmatprep.subr.bf16.mxu0 0
      %4628 = vmatpush1.bf16.msra.mxu0 %v4603
      %4629 = vmatprep.subr.bf16.mxu0 0
      %4630 = vmatpush1.bf16.msra.mxu0 %v4602
      %4631 = vmatprep.subr.bf16.mxu0 0
      %4632 = vmatpush1.bf16.msra.mxu0 %v4601
      %4633 = vmatprep.subr.bf16.mxu0 0
      %4634 = vmatpush2.bf16.msra.mxu0 0
      %4635 = vmatprep.subr.bf16.mxu0 0
      %4636 = vmatpush2.bf16.msra.mxu0 0
      %4637 = vmatprep.subr.bf16.mxu0 0
      %4638 = vmatpush2.bf16.msra.mxu0 0
      %4639 = vmatprep.subr.bf16.mxu0 0
      %4640 = vmatpush2.bf16.msra.mxu0 0
      %4641 = vmatprep.subr.bf16.mxu0 0
      %4642 = vmatpush2.bf16.msra.mxu0 0
      %4643 = vmatprep.subr.bf16.mxu0 0
      %4644 = vmatpush2.bf16.msra.mxu0 0
      %4645 = vmatprep.subr.bf16.mxu0 0
      %4646 = vmatpush2.bf16.msra.mxu0 0
      %4647 = vmatprep.subr.bf16.mxu0 0
      %4648 = vmatpush2.bf16.msra.mxu0 0
      %4649 = vmatprep.mubr.bf16.mxu0 0
      %4650 = vmatmul.mubr.bf16.gmra.mxu0 %v4527
      %v4651 = vpop.f32.mrf.mxu0
      %v4652 = vadd.f32 0.0, %v4651
      %v4653 = vpop.f32.mrf.mxu0
      %v4654 = vpop.f32.mrf.mxu0
      %v4655 = vadd.f32 0.0, %v4654
      %v4656 = vpop.f32.mrf.mxu0
      %4657 = vmatprep.mubr.bf16.mxu0 0
      %4658 = vmatmul.mubr.bf16.gmra.mxu0 %v4536
      %v4659 = vpop.f32.mrf.mxu0
      %v4660 = vadd.f32 0.0, %v4659
      %v4661 = vpop.f32.mrf.mxu0
      %v4662 = vpop.f32.mrf.mxu0
      %v4663 = vadd.f32 0.0, %v4662
      %v4664 = vpop.f32.mrf.mxu0
      %4665 = vmatprep.mubr.bf16.mxu0 0
      %4666 = vmatmul.mubr.bf16.gmra.mxu0 %v4545
      %v4667 = vpop.f32.mrf.mxu0
      %v4668 = vadd.f32 0.0, %v4667
      %v4669 = vpop.f32.mrf.mxu0
      %v4670 = vpop.f32.mrf.mxu0
      %v4671 = vadd.f32 0.0, %v4670
      %v4672 = vpop.f32.mrf.mxu0
      %4673 = vmatprep.mubr.bf16.mxu0 0
      %4674 = vmatmul.mubr.bf16.gmra.mxu0 %v4554
      %v4675 = vpop.f32.mrf.mxu0
      %v4676 = vadd.f32 0.0, %v4675
      %v4677 = vpop.f32.mrf.mxu0
      %v4678 = vpop.f32.mrf.mxu0
      %v4679 = vadd.f32 0.0, %v4678
      %v4680 = vpop.f32.mrf.mxu0
      %4681 = vmatprep.mubr.bf16.mxu0 0
      %4682 = vmatmul.mubr.bf16.gmra.mxu0 %v4563
      %v4683 = vpop.f32.mrf.mxu0
      %v4684 = vadd.f32 0.0, %v4683
      %v4685 = vpop.f32.mrf.mxu0
      %v4686 = vpop.f32.mrf.mxu0
      %v4687 = vadd.f32 0.0, %v4686
      %v4688 = vpop.f32.mrf.mxu0
      %4689 = vdwg.mxu0
      %v4690 = vadd.f32 %v4480, %v4652
      %v4691 = vadd.f32 %v4481, %v4655
      %v4692 = vadd.f32 %v4482, %v4660
      %v4693 = vadd.f32 %v4483, %v4663
      %v4694 = vadd.f32 %v4484, %v4668
      %v4695 = vadd.f32 %v4485, %v4671
      %v4696 = vadd.f32 %v4486, %v4676
      %v4697 = vadd.f32 %v4487, %v4679
      %v4698 = vadd.f32 %v4488, %v4684
      %v4699 = vadd.f32 %v4489, %v4687
      %v4700 = vld [vmem:[%s325 + $0x4] sm:$0xc]
      %s4701 = scalar_lea.vmem %s3, 1472
      %v4702 = vld [vmem:[%s4701] sm:$0xf]
      %v4703 = vld [vmem:[%s4701 + $0x4] sm:$0xf]
      %v4704 = vld [vmem:[%s4701 + $0x8] sm:$0xf]
      %v4705 = vld [vmem:[%s4701 + $0xc] sm:$0xf]
      %v4706 = vld [vmem:[%s4701 + $0x10] sm:$0xf]
      %v4707 = vld [vmem:[%s4701 + $0x14] sm:$0xf]
      %v4708 = vld [vmem:[%s4701 + $0x18] sm:$0xf]
      %v4709 = vld [vmem:[%s4701 + $0x1c] sm:$0xf]
      %v4710 = vld [vmem:[%s4701 + $0x20] sm:$0xf]
      %v4711 = vld [vmem:[%s4701 + $0x24] sm:$0xf]
      %v4712 = vld [vmem:[%s4701 + $0x28] sm:$0xf]
      %v4713 = vld [vmem:[%s4701 + $0x2c] sm:$0xf]
      %v4714 = vld [vmem:[%s4701 + $0x30] sm:$0xf]
      %v4715 = vld [vmem:[%s4701 + $0x34] sm:$0xf]
      %v4716 = vld [vmem:[%s4701 + $0x38] sm:$0xf]
      %v4717 = vld [vmem:[%s4701 + $0x3c] sm:$0xf]
      %v4719 = vunpack.c.l.b16 %v4700
      %v4720 = vpack.c.b16 %v4327, %v4719
      %v4721 = vrot.slane %v4720, 2
      %v4722 = vrot.slane %v4338, 2
      %v4723 = vsel %vm1321, %v4721, %v4722
      %v4724 = vrot.slane %v4339, 2
      %v4725 = vsel %vm1321, %v4722, %v4724
      %v4726 = vrot.slane %v4340, 2
      %v4727 = vsel %vm1321, %v4724, %v4726
      %v4728 = vrot.slane %v4341, 2
      %v4729 = vsel %vm1321, %v4726, %v4728
      %v4730 = vrot.slane %v4510, 2
      %v4731 = vsel %vm1321, %v4728, %v4730
      %v4753 = vunpack.c.l.b16 %v4702
      %v4754 = vunpack.c.l.b16 %v4703
      %v4755 = vunpack.c.l.b16 %v4704
      %v4756 = vunpack.c.l.b16 %v4705
      %v4757 = vunpack.c.l.b16 %v4706
      %v4758 = vunpack.c.l.b16 %v4707
      %v4759 = vunpack.c.l.b16 %v4708
      %v4760 = vunpack.c.l.b16 %v4709
      %v4761 = vunpack.c.l.b16 %v4710
      %v4762 = vunpack.c.l.b16 %v4711
      %v4763 = vunpack.c.l.b16 %v4712
      %v4764 = vunpack.c.l.b16 %v4713
      %v4765 = vunpack.c.l.b16 %v4714
      %v4766 = vunpack.c.l.b16 %v4715
      %v4767 = vunpack.c.l.b16 %v4716
      %v4768 = vunpack.c.l.b16 %v4717
      %v4769 = vpack.c.b16 %v4754, %v4753
      %v4770 = vpack.c.b16 %v4756, %v4755
      %v4771 = vpack.c.b16 %v4758, %v4757
      %v4772 = vpack.c.b16 %v4760, %v4759
      %v4773 = vpack.c.b16 %v4762, %v4761
      %v4774 = vpack.c.b16 %v4764, %v4763
      %v4775 = vpack.c.b16 %v4766, %v4765
      %v4776 = vpack.c.b16 %v4768, %v4767
      %4785 = vmatprep.subr.bf16.mxu0 0
      %4786 = vmatpush1.bf16.msra.mxu0 %v4776
      %4787 = vmatprep.subr.bf16.mxu0 0
      %4788 = vmatpush1.bf16.msra.mxu0 %v4775
      %4789 = vmatprep.subr.bf16.mxu0 0
      %4790 = vmatpush1.bf16.msra.mxu0 %v4774
      %4791 = vmatprep.subr.bf16.mxu0 0
      %4792 = vmatpush1.bf16.msra.mxu0 %v4773
      %4793 = vmatprep.subr.bf16.mxu0 0
      %4794 = vmatpush1.bf16.msra.mxu0 %v4772
      %4795 = vmatprep.subr.bf16.mxu0 0
      %4796 = vmatpush1.bf16.msra.mxu0 %v4771
      %4797 = vmatprep.subr.bf16.mxu0 0
      %4798 = vmatpush1.bf16.msra.mxu0 %v4770
      %4799 = vmatprep.subr.bf16.mxu0 0
      %4800 = vmatpush1.bf16.msra.mxu0 %v4769
      %4801 = vmatprep.subr.bf16.mxu0 0
      %4802 = vmatpush2.bf16.msra.mxu0 0
      %4803 = vmatprep.subr.bf16.mxu0 0
      %4804 = vmatpush2.bf16.msra.mxu0 0
      %4805 = vmatprep.subr.bf16.mxu0 0
      %4806 = vmatpush2.bf16.msra.mxu0 0
      %4807 = vmatprep.subr.bf16.mxu0 0
      %4808 = vmatpush2.bf16.msra.mxu0 0
      %4809 = vmatprep.subr.bf16.mxu0 0
      %4810 = vmatpush2.bf16.msra.mxu0 0
      %4811 = vmatprep.subr.bf16.mxu0 0
      %4812 = vmatpush2.bf16.msra.mxu0 0
      %4813 = vmatprep.subr.bf16.mxu0 0
      %4814 = vmatpush2.bf16.msra.mxu0 0
      %4815 = vmatprep.subr.bf16.mxu0 0
      %4816 = vmatpush2.bf16.msra.mxu0 0
      %4817 = vmatprep.mubr.bf16.mxu0 0
      %4818 = vmatmul.mubr.bf16.gmra.mxu0 %v4723
      %v4819 = vpop.f32.mrf.mxu0
      %v4820 = vadd.f32 0.0, %v4819
      %v4821 = vpop.f32.mrf.mxu0
      %v4822 = vpop.f32.mrf.mxu0
      %v4823 = vadd.f32 0.0, %v4822
      %v4824 = vpop.f32.mrf.mxu0
      %4825 = vmatprep.mubr.bf16.mxu0 0
      %4826 = vmatmul.mubr.bf16.gmra.mxu0 %v4725
      %v4827 = vpop.f32.mrf.mxu0
      %v4828 = vadd.f32 0.0, %v4827
      %v4829 = vpop.f32.mrf.mxu0
      %v4830 = vpop.f32.mrf.mxu0
      %v4831 = vadd.f32 0.0, %v4830
      %v4832 = vpop.f32.mrf.mxu0
      %4833 = vmatprep.mubr.bf16.mxu0 0
      %4834 = vmatmul.mubr.bf16.gmra.mxu0 %v4727
      %v4835 = vpop.f32.mrf.mxu0
      %v4836 = vadd.f32 0.0, %v4835
      %v4837 = vpop.f32.mrf.mxu0
      %v4838 = vpop.f32.mrf.mxu0
      %v4839 = vadd.f32 0.0, %v4838
      %v4840 = vpop.f32.mrf.mxu0
      %4841 = vmatprep.mubr.bf16.mxu0 0
      %4842 = vmatmul.mubr.bf16.gmra.mxu0 %v4729
      %v4843 = vpop.f32.mrf.mxu0
      %v4844 = vadd.f32 0.0, %v4843
      %v4845 = vpop.f32.mrf.mxu0
      %v4846 = vpop.f32.mrf.mxu0
      %v4847 = vadd.f32 0.0, %v4846
      %v4848 = vpop.f32.mrf.mxu0
      %4849 = vmatprep.mubr.bf16.mxu0 0
      %4850 = vmatmul.mubr.bf16.gmra.mxu0 %v4731
      %v4851 = vpop.f32.mrf.mxu0
      %v4852 = vadd.f32 0.0, %v4851
      %v4853 = vpop.f32.mrf.mxu0
      %v4854 = vpop.f32.mrf.mxu0
      %v4855 = vadd.f32 0.0, %v4854
      %v4856 = vpop.f32.mrf.mxu0
      %4857 = vdwg.mxu0
      %v4858 = vadd.f32 %v4690, %v4820
      %v4859 = vadd.f32 %v4691, %v4823
      %v4860 = vadd.f32 %v4692, %v4828
      %v4861 = vadd.f32 %v4693, %v4831
      %v4862 = vadd.f32 %v4694, %v4836
      %v4863 = vadd.f32 %v4695, %v4839
      %v4864 = vadd.f32 %v4696, %v4844
      %v4865 = vadd.f32 %v4697, %v4847
      %v4866 = vadd.f32 %v4698, %v4852
      %v4867 = vadd.f32 %v4699, %v4855
      %v4868 = vld [vmem:[%s325 + $0x8] sm:$0xc]
      %v4869 = vld [vmem:[%s325 + $0xc] sm:$0xf]
      %v4870 = vld [vmem:[%s325 + $0x10] sm:$0xf]
      %v4871 = vld [vmem:[%s325 + $0x14] sm:$0xf]
      %v4872 = vld [vmem:[%s325 + $0x18] sm:$0xf]
      %v4873 = vld [vmem:[%s325 + $0x1c] sm:$0xf]
      %v4874 = vld [vmem:[%s325 + $0x20] sm:$0xf]
      %v4875 = vld [vmem:[%s325 + $0x24] sm:$0xf]
      %v4876 = vld [vmem:[%s325 + $0x28] sm:$0xf]
      %v4877 = vld [vmem:[%s325 + $0x2c] sm:$0xf]
      %v4878 = vld [vmem:[%s325 + $0x30] sm:$0x3]
      %s4879 = scalar_lea.vmem %s3, 1536
      %v4880 = vld [vmem:[%s4879] sm:$0xf]
      %v4881 = vld [vmem:[%s4879 + $0x4] sm:$0xf]
      %v4882 = vld [vmem:[%s4879 + $0x8] sm:$0xf]
      %v4883 = vld [vmem:[%s4879 + $0xc] sm:$0xf]
      %v4884 = vld [vmem:[%s4879 + $0x10] sm:$0xf]
      %v4885 = vld [vmem:[%s4879 + $0x14] sm:$0xf]
      %v4886 = vld [vmem:[%s4879 + $0x18] sm:$0xf]
      %v4887 = vld [vmem:[%s4879 + $0x1c] sm:$0xf]
      %v4888 = vld [vmem:[%s4879 + $0x20] sm:$0xf]
      %v4889 = vld [vmem:[%s4879 + $0x24] sm:$0xf]
      %v4890 = vld [vmem:[%s4879 + $0x28] sm:$0xf]
      %v4891 = vld [vmem:[%s4879 + $0x2c] sm:$0xf]
      %v4892 = vld [vmem:[%s4879 + $0x30] sm:$0xf]
      %v4893 = vld [vmem:[%s4879 + $0x34] sm:$0xf]
      %v4894 = vld [vmem:[%s4879 + $0x38] sm:$0xf]
      %v4895 = vld [vmem:[%s4879 + $0x3c] sm:$0xf]
      %v4907 = vunpack.c.l.b16 %v4868
      %v4908 = vunpack.c.l.b16 %v4869
      %v4909 = vunpack.c.l.b16 %v4870
      %v4910 = vunpack.c.l.b16 %v4871
      %v4911 = vunpack.c.l.b16 %v4872
      %v4912 = vunpack.c.l.b16 %v4873
      %v4913 = vunpack.c.l.b16 %v4874
      %v4914 = vunpack.c.l.b16 %v4875
      %v4915 = vunpack.c.l.b16 %v4876
      %v4916 = vunpack.c.l.b16 %v4877
      %v4917 = vunpack.c.l.b16 %v4878
      %v4918 = vpack.c.b16 %v4908, %v4907
      %v4919 = vpack.c.b16 %v4910, %v4909
      %v4920 = vpack.c.b16 %v4912, %v4911
      %v4921 = vpack.c.b16 %v4914, %v4913
      %v4922 = vpack.c.b16 %v4916, %v4915
      %v4923 = vpack.c.b16 %v4917, %v4917
      %v4924 = vrot.slane %v4918, 2
      %v4925 = vrot.slane %v4919, 2
      %v4926 = vsel %vm1321, %v4924, %v4925
      %v4927 = vrot.slane %v4920, 2
      %v4928 = vsel %vm1321, %v4925, %v4927
      %v4929 = vrot.slane %v4921, 2
      %v4930 = vsel %vm1321, %v4927, %v4929
      %v4931 = vrot.slane %v4922, 2
      %v4932 = vsel %vm1321, %v4929, %v4931
      %v4933 = vrot.slane %v4923, 2
      %v4934 = vsel %vm1321, %v4931, %v4933
      %v4956 = vunpack.c.l.b16 %v4880
      %v4957 = vunpack.c.l.b16 %v4881
      %v4958 = vunpack.c.l.b16 %v4882
      %v4959 = vunpack.c.l.b16 %v4883
      %v4960 = vunpack.c.l.b16 %v4884
      %v4961 = vunpack.c.l.b16 %v4885
      %v4962 = vunpack.c.l.b16 %v4886
      %v4963 = vunpack.c.l.b16 %v4887
      %v4964 = vunpack.c.l.b16 %v4888
      %v4965 = vunpack.c.l.b16 %v4889
      %v4966 = vunpack.c.l.b16 %v4890
      %v4967 = vunpack.c.l.b16 %v4891
      %v4968 = vunpack.c.l.b16 %v4892
      %v4969 = vunpack.c.l.b16 %v4893
      %v4970 = vunpack.c.l.b16 %v4894
      %v4971 = vunpack.c.l.b16 %v4895
      %v4972 = vpack.c.b16 %v4957, %v4956
      %v4973 = vpack.c.b16 %v4959, %v4958
      %v4974 = vpack.c.b16 %v4961, %v4960
      %v4975 = vpack.c.b16 %v4963, %v4962
      %v4976 = vpack.c.b16 %v4965, %v4964
      %v4977 = vpack.c.b16 %v4967, %v4966
      %v4978 = vpack.c.b16 %v4969, %v4968
      %v4979 = vpack.c.b16 %v4971, %v4970
      %4988 = vmatprep.subr.bf16.mxu0 0
      %4989 = vmatpush1.bf16.msra.mxu0 %v4979
      %4990 = vmatprep.subr.bf16.mxu0 0
      %4991 = vmatpush1.bf16.msra.mxu0 %v4978
      %4992 = vmatprep.subr.bf16.mxu0 0
      %4993 = vmatpush1.bf16.msra.mxu0 %v4977
      %4994 = vmatprep.subr.bf16.mxu0 0
      %4995 = vmatpush1.bf16.msra.mxu0 %v4976
      %4996 = vmatprep.subr.bf16.mxu0 0
      %4997 = vmatpush1.bf16.msra.mxu0 %v4975
      %4998 = vmatprep.subr.bf16.mxu0 0
      %4999 = vmatpush1.bf16.msra.mxu0 %v4974
      %5000 = vmatprep.subr.bf16.mxu0 0
      %5001 = vmatpush1.bf16.msra.mxu0 %v4973
      %5002 = vmatprep.subr.bf16.mxu0 0
      %5003 = vmatpush1.bf16.msra.mxu0 %v4972
      %5004 = vmatprep.subr.bf16.mxu0 0
      %5005 = vmatpush2.bf16.msra.mxu0 0
      %5006 = vmatprep.subr.bf16.mxu0 0
      %5007 = vmatpush2.bf16.msra.mxu0 0
      %5008 = vmatprep.subr.bf16.mxu0 0
      %5009 = vmatpush2.bf16.msra.mxu0 0
      %5010 = vmatprep.subr.bf16.mxu0 0
      %5011 = vmatpush2.bf16.msra.mxu0 0
      %5012 = vmatprep.subr.bf16.mxu0 0
      %5013 = vmatpush2.bf16.msra.mxu0 0
      %5014 = vmatprep.subr.bf16.mxu0 0
      %5015 = vmatpush2.bf16.msra.mxu0 0
      %5016 = vmatprep.subr.bf16.mxu0 0
      %5017 = vmatpush2.bf16.msra.mxu0 0
      %5018 = vmatprep.subr.bf16.mxu0 0
      %5019 = vmatpush2.bf16.msra.mxu0 0
      %5020 = vmatprep.mubr.bf16.mxu0 0
      %5021 = vmatmul.mubr.bf16.gmra.mxu0 %v4926
      %v5022 = vpop.f32.mrf.mxu0
      %v5023 = vadd.f32 0.0, %v5022
      %v5024 = vpop.f32.mrf.mxu0
      %v5025 = vpop.f32.mrf.mxu0
      %v5026 = vadd.f32 0.0, %v5025
      %v5027 = vpop.f32.mrf.mxu0
      %5028 = vmatprep.mubr.bf16.mxu0 0
      %5029 = vmatmul.mubr.bf16.gmra.mxu0 %v4928
      %v5030 = vpop.f32.mrf.mxu0
      %v5031 = vadd.f32 0.0, %v5030
      %v5032 = vpop.f32.mrf.mxu0
      %v5033 = vpop.f32.mrf.mxu0
      %v5034 = vadd.f32 0.0, %v5033
      %v5035 = vpop.f32.mrf.mxu0
      %5036 = vmatprep.mubr.bf16.mxu0 0
      %5037 = vmatmul.mubr.bf16.gmra.mxu0 %v4930
      %v5038 = vpop.f32.mrf.mxu0
      %v5039 = vadd.f32 0.0, %v5038
      %v5040 = vpop.f32.mrf.mxu0
      %v5041 = vpop.f32.mrf.mxu0
      %v5042 = vadd.f32 0.0, %v5041
      %v5043 = vpop.f32.mrf.mxu0
      %5044 = vmatprep.mubr.bf16.mxu0 0
      %5045 = vmatmul.mubr.bf16.gmra.mxu0 %v4932
      %v5046 = vpop.f32.mrf.mxu0
      %v5047 = vadd.f32 0.0, %v5046
      %v5048 = vpop.f32.mrf.mxu0
      %v5049 = vpop.f32.mrf.mxu0
      %v5050 = vadd.f32 0.0, %v5049
      %v5051 = vpop.f32.mrf.mxu0
      %5052 = vmatprep.mubr.bf16.mxu0 0
      %5053 = vmatmul.mubr.bf16.gmra.mxu0 %v4934
      %v5054 = vpop.f32.mrf.mxu0
      %v5055 = vadd.f32 0.0, %v5054
      %v5056 = vpop.f32.mrf.mxu0
      %v5057 = vpop.f32.mrf.mxu0
      %v5058 = vadd.f32 0.0, %v5057
      %v5059 = vpop.f32.mrf.mxu0
      %5060 = vdwg.mxu0
      %v5061 = vadd.f32 %v4858, %v5023
      %v5062 = vadd.f32 %v4859, %v5026
      %v5063 = vadd.f32 %v4860, %v5031
      %v5064 = vadd.f32 %v4861, %v5034
      %v5065 = vadd.f32 %v4862, %v5039
      %v5066 = vadd.f32 %v4863, %v5042
      %v5067 = vadd.f32 %v4864, %v5047
      %v5068 = vadd.f32 %v4865, %v5050
      %v5069 = vadd.f32 %v4866, %v5055
      %v5070 = vadd.f32 %v4867, %v5058
      %v5071 = vld [vmem:[%s325 + $0x30] sm:$0x7]
      %s5072 = scalar_lea.vmem %s3, 1600
      %v5073 = vld [vmem:[%s5072] sm:$0xf]
      %v5074 = vld [vmem:[%s5072 + $0x4] sm:$0xf]
      %v5075 = vld [vmem:[%s5072 + $0x8] sm:$0xf]
      %v5076 = vld [vmem:[%s5072 + $0xc] sm:$0xf]
      %v5077 = vld [vmem:[%s5072 + $0x10] sm:$0xf]
      %v5078 = vld [vmem:[%s5072 + $0x14] sm:$0xf]
      %v5079 = vld [vmem:[%s5072 + $0x18] sm:$0xf]
      %v5080 = vld [vmem:[%s5072 + $0x1c] sm:$0xf]
      %v5081 = vld [vmem:[%s5072 + $0x20] sm:$0xf]
      %v5082 = vld [vmem:[%s5072 + $0x24] sm:$0xf]
      %v5083 = vld [vmem:[%s5072 + $0x28] sm:$0xf]
      %v5084 = vld [vmem:[%s5072 + $0x2c] sm:$0xf]
      %v5085 = vld [vmem:[%s5072 + $0x30] sm:$0xf]
      %v5086 = vld [vmem:[%s5072 + $0x34] sm:$0xf]
      %v5087 = vld [vmem:[%s5072 + $0x38] sm:$0xf]
      %v5088 = vld [vmem:[%s5072 + $0x3c] sm:$0xf]
      %v5090 = vunpack.c.l.b16 %v5071
      %v5091 = vpack.c.b16 %v5090, %v5090
      %v5093 = vshrl.u32 %v4918, 16
      %v5095 = vrot.slane %v5093, 2
      %v5096 = vshll.u32 %v4918, 16
      %v5098 = vrot.slane %v5096, 3
      %v5099 = vor.u32 %v5095, %v5098
      %v5101 = vshrl.u32 %v4919, 16
      %v5103 = vrot.slane %v5101, 2
      %v5104 = vshll.u32 %v4919, 16
      %v5106 = vrot.slane %v5104, 3
      %v5107 = vor.u32 %v5103, %v5106
      %v5108 = vsel %vm1693, %v5099, %v5107
      %v5110 = vshrl.u32 %v4920, 16
      %v5112 = vrot.slane %v5110, 2
      %v5113 = vshll.u32 %v4920, 16
      %v5115 = vrot.slane %v5113, 3
      %v5116 = vor.u32 %v5112, %v5115
      %v5117 = vsel %vm1693, %v5107, %v5116
      %v5119 = vshrl.u32 %v4921, 16
      %v5121 = vrot.slane %v5119, 2
      %v5122 = vshll.u32 %v4921, 16
      %v5124 = vrot.slane %v5122, 3
      %v5125 = vor.u32 %v5121, %v5124
      %v5126 = vsel %vm1693, %v5116, %v5125
      %v5128 = vshrl.u32 %v4922, 16
      %v5130 = vrot.slane %v5128, 2
      %v5131 = vshll.u32 %v4922, 16
      %v5133 = vrot.slane %v5131, 3
      %v5134 = vor.u32 %v5130, %v5133
      %v5135 = vsel %vm1693, %v5125, %v5134
      %v5137 = vshrl.u32 %v5091, 16
      %v5139 = vrot.slane %v5137, 2
      %v5140 = vshll.u32 %v5091, 16
      %v5142 = vrot.slane %v5140, 3
      %v5143 = vor.u32 %v5139, %v5142
      %v5144 = vsel %vm1693, %v5134, %v5143
      %v5166 = vunpack.c.l.b16 %v5073
      %v5167 = vunpack.c.l.b16 %v5074
      %v5168 = vunpack.c.l.b16 %v5075
      %v5169 = vunpack.c.l.b16 %v5076
      %v5170 = vunpack.c.l.b16 %v5077
      %v5171 = vunpack.c.l.b16 %v5078
      %v5172 = vunpack.c.l.b16 %v5079
      %v5173 = vunpack.c.l.b16 %v5080
      %v5174 = vunpack.c.l.b16 %v5081
      %v5175 = vunpack.c.l.b16 %v5082
      %v5176 = vunpack.c.l.b16 %v5083
      %v5177 = vunpack.c.l.b16 %v5084
      %v5178 = vunpack.c.l.b16 %v5085
      %v5179 = vunpack.c.l.b16 %v5086
      %v5180 = vunpack.c.l.b16 %v5087
      %v5181 = vunpack.c.l.b16 %v5088
      %v5182 = vpack.c.b16 %v5167, %v5166
      %v5183 = vpack.c.b16 %v5169, %v5168
      %v5184 = vpack.c.b16 %v5171, %v5170
      %v5185 = vpack.c.b16 %v5173, %v5172
      %v5186 = vpack.c.b16 %v5175, %v5174
      %v5187 = vpack.c.b16 %v5177, %v5176
      %v5188 = vpack.c.b16 %v5179, %v5178
      %v5189 = vpack.c.b16 %v5181, %v5180
      %5198 = vmatprep.subr.bf16.mxu0 0
      %5199 = vmatpush1.bf16.msra.mxu0 %v5189
      %5200 = vmatprep.subr.bf16.mxu0 0
      %5201 = vmatpush1.bf16.msra.mxu0 %v5188
      %5202 = vmatprep.subr.bf16.mxu0 0
      %5203 = vmatpush1.bf16.msra.mxu0 %v5187
      %5204 = vmatprep.subr.bf16.mxu0 0
      %5205 = vmatpush1.bf16.msra.mxu0 %v5186
      %5206 = vmatprep.subr.bf16.mxu0 0
      %5207 = vmatpush1.bf16.msra.mxu0 %v5185
      %5208 = vmatprep.subr.bf16.mxu0 0
      %5209 = vmatpush1.bf16.msra.mxu0 %v5184
      %5210 = vmatprep.subr.bf16.mxu0 0
      %5211 = vmatpush1.bf16.msra.mxu0 %v5183
      %5212 = vmatprep.subr.bf16.mxu0 0
      %5213 = vmatpush1.bf16.msra.mxu0 %v5182
      %5214 = vmatprep.subr.bf16.mxu0 0
      %5215 = vmatpush2.bf16.msra.mxu0 0
      %5216 = vmatprep.subr.bf16.mxu0 0
      %5217 = vmatpush2.bf16.msra.mxu0 0
      %5218 = vmatprep.subr.bf16.mxu0 0
      %5219 = vmatpush2.bf16.msra.mxu0 0
      %5220 = vmatprep.subr.bf16.mxu0 0
      %5221 = vmatpush2.bf16.msra.mxu0 0
      %5222 = vmatprep.subr.bf16.mxu0 0
      %5223 = vmatpush2.bf16.msra.mxu0 0
      %5224 = vmatprep.subr.bf16.mxu0 0
      %5225 = vmatpush2.bf16.msra.mxu0 0
      %5226 = vmatprep.subr.bf16.mxu0 0
      %5227 = vmatpush2.bf16.msra.mxu0 0
      %5228 = vmatprep.subr.bf16.mxu0 0
      %5229 = vmatpush2.bf16.msra.mxu0 0
      %5230 = vmatprep.mubr.bf16.mxu0 0
      %5231 = vmatmul.mubr.bf16.gmra.mxu0 %v5108
      %v5232 = vpop.f32.mrf.mxu0
      %v5233 = vadd.f32 0.0, %v5232
      %v5234 = vpop.f32.mrf.mxu0
      %v5235 = vpop.f32.mrf.mxu0
      %v5236 = vadd.f32 0.0, %v5235
      %v5237 = vpop.f32.mrf.mxu0
      %5238 = vmatprep.mubr.bf16.mxu0 0
      %5239 = vmatmul.mubr.bf16.gmra.mxu0 %v5117
      %v5240 = vpop.f32.mrf.mxu0
      %v5241 = vadd.f32 0.0, %v5240
      %v5242 = vpop.f32.mrf.mxu0
      %v5243 = vpop.f32.mrf.mxu0
      %v5244 = vadd.f32 0.0, %v5243
      %v5245 = vpop.f32.mrf.mxu0
      %5246 = vmatprep.mubr.bf16.mxu0 0
      %5247 = vmatmul.mubr.bf16.gmra.mxu0 %v5126
      %v5248 = vpop.f32.mrf.mxu0
      %v5249 = vadd.f32 0.0, %v5248
      %v5250 = vpop.f32.mrf.mxu0
      %v5251 = vpop.f32.mrf.mxu0
      %v5252 = vadd.f32 0.0, %v5251
      %v5253 = vpop.f32.mrf.mxu0
      %5254 = vmatprep.mubr.bf16.mxu0 0
      %5255 = vmatmul.mubr.bf16.gmra.mxu0 %v5135
      %v5256 = vpop.f32.mrf.mxu0
      %v5257 = vadd.f32 0.0, %v5256
      %v5258 = vpop.f32.mrf.mxu0
      %v5259 = vpop.f32.mrf.mxu0
      %v5260 = vadd.f32 0.0, %v5259
      %v5261 = vpop.f32.mrf.mxu0
      %5262 = vmatprep.mubr.bf16.mxu0 0
      %5263 = vmatmul.mubr.bf16.gmra.mxu0 %v5144
      %v5264 = vpop.f32.mrf.mxu0
      %v5265 = vadd.f32 0.0, %v5264
      %v5266 = vpop.f32.mrf.mxu0
      %v5267 = vpop.f32.mrf.mxu0
      %v5268 = vadd.f32 0.0, %v5267
      %v5269 = vpop.f32.mrf.mxu0
      %5270 = vdwg.mxu0
      %v5271 = vadd.f32 %v5061, %v5233
      %v5272 = vadd.f32 %v5062, %v5236
      %v5273 = vadd.f32 %v5063, %v5241
      %v5274 = vadd.f32 %v5064, %v5244
      %v5275 = vadd.f32 %v5065, %v5249
      %v5276 = vadd.f32 %v5066, %v5252
      %v5277 = vadd.f32 %v5067, %v5257
      %v5278 = vadd.f32 %v5068, %v5260
      %v5279 = vadd.f32 %v5069, %v5265
      %v5280 = vadd.f32 %v5070, %v5268
      %v5281 = vld [vmem:[%s325 + $0x8] sm:$0x8]
      %s5282 = scalar_lea.vmem %s3, 1664
      %v5283 = vld [vmem:[%s5282] sm:$0xf]
      %v5284 = vld [vmem:[%s5282 + $0x4] sm:$0xf]
      %v5285 = vld [vmem:[%s5282 + $0x8] sm:$0xf]
      %v5286 = vld [vmem:[%s5282 + $0xc] sm:$0xf]
      %v5287 = vld [vmem:[%s5282 + $0x10] sm:$0xf]
      %v5288 = vld [vmem:[%s5282 + $0x14] sm:$0xf]
      %v5289 = vld [vmem:[%s5282 + $0x18] sm:$0xf]
      %v5290 = vld [vmem:[%s5282 + $0x1c] sm:$0xf]
      %v5291 = vld [vmem:[%s5282 + $0x20] sm:$0xf]
      %v5292 = vld [vmem:[%s5282 + $0x24] sm:$0xf]
      %v5293 = vld [vmem:[%s5282 + $0x28] sm:$0xf]
      %v5294 = vld [vmem:[%s5282 + $0x2c] sm:$0xf]
      %v5295 = vld [vmem:[%s5282 + $0x30] sm:$0xf]
      %v5296 = vld [vmem:[%s5282 + $0x34] sm:$0xf]
      %v5297 = vld [vmem:[%s5282 + $0x38] sm:$0xf]
      %v5298 = vld [vmem:[%s5282 + $0x3c] sm:$0xf]
      %v5300 = vunpack.c.l.b16 %v5281
      %v5301 = vpack.c.b16 %v4908, %v5300
      %v5302 = vrot.slane %v5301, 3
      %v5303 = vrot.slane %v4919, 3
      %v5304 = vsel %vm1904, %v5302, %v5303
      %v5305 = vrot.slane %v4920, 3
      %v5306 = vsel %vm1904, %v5303, %v5305
      %v5307 = vrot.slane %v4921, 3
      %v5308 = vsel %vm1904, %v5305, %v5307
      %v5309 = vrot.slane %v4922, 3
      %v5310 = vsel %vm1904, %v5307, %v5309
      %v5311 = vrot.slane %v5091, 3
      %v5312 = vsel %vm1904, %v5309, %v5311
      %v5334 = vunpack.c.l.b16 %v5283
      %v5335 = vunpack.c.l.b16 %v5284
      %v5336 = vunpack.c.l.b16 %v5285
      %v5337 = vunpack.c.l.b16 %v5286
      %v5338 = vunpack.c.l.b16 %v5287
      %v5339 = vunpack.c.l.b16 %v5288
      %v5340 = vunpack.c.l.b16 %v5289
      %v5341 = vunpack.c.l.b16 %v5290
      %v5342 = vunpack.c.l.b16 %v5291
      %v5343 = vunpack.c.l.b16 %v5292
      %v5344 = vunpack.c.l.b16 %v5293
      %v5345 = vunpack.c.l.b16 %v5294
      %v5346 = vunpack.c.l.b16 %v5295
      %v5347 = vunpack.c.l.b16 %v5296
      %v5348 = vunpack.c.l.b16 %v5297
      %v5349 = vunpack.c.l.b16 %v5298
      %v5350 = vpack.c.b16 %v5335, %v5334
      %v5351 = vpack.c.b16 %v5337, %v5336
      %v5352 = vpack.c.b16 %v5339, %v5338
      %v5353 = vpack.c.b16 %v5341, %v5340
      %v5354 = vpack.c.b16 %v5343, %v5342
      %v5355 = vpack.c.b16 %v5345, %v5344
      %v5356 = vpack.c.b16 %v5347, %v5346
      %v5357 = vpack.c.b16 %v5349, %v5348
      %5366 = vmatprep.subr.bf16.mxu0 0
      %5367 = vmatpush1.bf16.msra.mxu0 %v5357
      %5368 = vmatprep.subr.bf16.mxu0 0
      %5369 = vmatpush1.bf16.msra.mxu0 %v5356
      %5370 = vmatprep.subr.bf16.mxu0 0
      %5371 = vmatpush1.bf16.msra.mxu0 %v5355
      %5372 = vmatprep.subr.bf16.mxu0 0
      %5373 = vmatpush1.bf16.msra.mxu0 %v5354
      %5374 = vmatprep.subr.bf16.mxu0 0
      %5375 = vmatpush1.bf16.msra.mxu0 %v5353
      %5376 = vmatprep.subr.bf16.mxu0 0
      %5377 = vmatpush1.bf16.msra.mxu0 %v5352
      %5378 = vmatprep.subr.bf16.mxu0 0
      %5379 = vmatpush1.bf16.msra.mxu0 %v5351
      %5380 = vmatprep.subr.bf16.mxu0 0
      %5381 = vmatpush1.bf16.msra.mxu0 %v5350
      %5382 = vmatprep.subr.bf16.mxu0 0
      %5383 = vmatpush2.bf16.msra.mxu0 0
      %5384 = vmatprep.subr.bf16.mxu0 0
      %5385 = vmatpush2.bf16.msra.mxu0 0
      %5386 = vmatprep.subr.bf16.mxu0 0
      %5387 = vmatpush2.bf16.msra.mxu0 0
      %5388 = vmatprep.subr.bf16.mxu0 0
      %5389 = vmatpush2.bf16.msra.mxu0 0
      %5390 = vmatprep.subr.bf16.mxu0 0
      %5391 = vmatpush2.bf16.msra.mxu0 0
      %5392 = vmatprep.subr.bf16.mxu0 0
      %5393 = vmatpush2.bf16.msra.mxu0 0
      %5394 = vmatprep.subr.bf16.mxu0 0
      %5395 = vmatpush2.bf16.msra.mxu0 0
      %5396 = vmatprep.subr.bf16.mxu0 0
      %5397 = vmatpush2.bf16.msra.mxu0 0
      %5398 = vmatprep.mubr.bf16.mxu0 0
      %5399 = vmatmul.mubr.bf16.gmra.mxu0 %v5304
      %v5400 = vpop.f32.mrf.mxu0
      %v5401 = vadd.f32 0.0, %v5400
      %v5402 = vpop.f32.mrf.mxu0
      %v5403 = vpop.f32.mrf.mxu0
      %v5404 = vadd.f32 0.0, %v5403
      %v5405 = vpop.f32.mrf.mxu0
      %5406 = vmatprep.mubr.bf16.mxu0 0
      %5407 = vmatmul.mubr.bf16.gmra.mxu0 %v5306
      %v5408 = vpop.f32.mrf.mxu0
      %v5409 = vadd.f32 0.0, %v5408
      %v5410 = vpop.f32.mrf.mxu0
      %v5411 = vpop.f32.mrf.mxu0
      %v5412 = vadd.f32 0.0, %v5411
      %v5413 = vpop.f32.mrf.mxu0
      %5414 = vmatprep.mubr.bf16.mxu0 0
      %5415 = vmatmul.mubr.bf16.gmra.mxu0 %v5308
      %v5416 = vpop.f32.mrf.mxu0
      %v5417 = vadd.f32 0.0, %v5416
      %v5418 = vpop.f32.mrf.mxu0
      %v5419 = vpop.f32.mrf.mxu0
      %v5420 = vadd.f32 0.0, %v5419
      %v5421 = vpop.f32.mrf.mxu0
      %5422 = vmatprep.mubr.bf16.mxu0 0
      %5423 = vmatmul.mubr.bf16.gmra.mxu0 %v5310
      %v5424 = vpop.f32.mrf.mxu0
      %v5425 = vadd.f32 0.0, %v5424
      %v5426 = vpop.f32.mrf.mxu0
      %v5427 = vpop.f32.mrf.mxu0
      %v5428 = vadd.f32 0.0, %v5427
      %v5429 = vpop.f32.mrf.mxu0
      %5430 = vmatprep.mubr.bf16.mxu0 0
      %5431 = vmatmul.mubr.bf16.gmra.mxu0 %v5312
      %v5432 = vpop.f32.mrf.mxu0
      %v5433 = vadd.f32 0.0, %v5432
      %v5434 = vpop.f32.mrf.mxu0
      %v5435 = vpop.f32.mrf.mxu0
      %v5436 = vadd.f32 0.0, %v5435
      %v5437 = vpop.f32.mrf.mxu0
      %5438 = vdwg.mxu0
      %v5439 = vadd.f32 %v5271, %v5401
      %v5440 = vadd.f32 %v5272, %v5404
      %v5441 = vadd.f32 %v5273, %v5409
      %v5442 = vadd.f32 %v5274, %v5412
      %v5443 = vadd.f32 %v5275, %v5417
      %v5444 = vadd.f32 %v5276, %v5420
      %v5445 = vadd.f32 %v5277, %v5425
      %v5446 = vadd.f32 %v5278, %v5428
      %v5447 = vadd.f32 %v5279, %v5433
      %v5448 = vadd.f32 %v5280, %v5436
      %p5449 = scmp.eq.s32.totalorder %s346, 0
      %s5450 = scalar_select %p5449, 1, 0
      %v5451 = vstv %s5450
      %vm5452 = vcmp.eq.s32.totalorder %v5451, 1
      %v5453 = vsel %vm5452, 0.0, %v3740
      %v5454 = vsel %vm5452, 0.0, %v3741
      %v5455 = vsel %vm5452, 0.0, %v3742
      %v5456 = vsel %vm5452, 0.0, %v3743
      %v5457 = vsel %vm5452, 0.0, %v3744
      %v5458 = vsel %vm5452, 0.0, %v3745
      %v5459 = vsel %vm5452, 0.0, %v3746
      %v5460 = vsel %vm5452, 0.0, %v3747
      %v5461 = vsel %vm5452, 0.0, %v3748
      %v5462 = vsel %vm5452, 0.0, %v3749
      %v5463 = vadd.f32 %v2042, %v5453
      %v5464 = vadd.f32 %v2043, %v5454
      %v5465 = vadd.f32 %v2044, %v5455
      %v5466 = vadd.f32 %v2045, %v5456
      %v5467 = vadd.f32 %v2046, %v5457
      %v5468 = vadd.f32 %v2047, %v5458
      %v5469 = vadd.f32 %v2048, %v5459
      %v5470 = vadd.f32 %v2049, %v5460
      %v5471 = vadd.f32 %v2050, %v5461
      %v5472 = vadd.f32 %v2051, %v5462
      %p5473 = scmp.eq.s32.totalorder %s346, 7
      %s5474 = scalar_select %p5473, 1, 0
      %v5475 = vstv %s5474
      %vm5476 = vcmp.eq.s32.totalorder %v5475, 1
      %v5477 = vsel %vm5476, 0.0, %v5439
      %v5478 = vsel %vm5476, 0.0, %v5440
      %v5479 = vsel %vm5476, 0.0, %v5441
      %v5480 = vsel %vm5476, 0.0, %v5442
      %v5481 = vsel %vm5476, 0.0, %v5443
      %v5482 = vsel %vm5476, 0.0, %v5444
      %v5483 = vsel %vm5476, 0.0, %v5445
      %v5484 = vsel %vm5476, 0.0, %v5446
      %v5485 = vsel %vm5476, 0.0, %v5447
      %v5486 = vsel %vm5476, 0.0, %v5448
      %v5487 = vadd.f32 %v5463, %v5477
      %v5488 = vadd.f32 %v5464, %v5478
      %v5489 = vadd.f32 %v5465, %v5479
      %v5490 = vadd.f32 %v5466, %v5480
      %v5491 = vadd.f32 %v5467, %v5481
      %v5492 = vadd.f32 %v5468, %v5482
      %v5493 = vadd.f32 %v5469, %v5483
      %v5494 = vadd.f32 %v5470, %v5484
      %v5495 = vadd.f32 %v5471, %v5485
      %v5496 = vadd.f32 %v5472, %v5486
      %v5497 = vld [vmem:[%s4] sm:$0x1]
      %v5499 = vlaneseq
      %v5500 = vshrl.u32 %v5499, 7
      %v5501 = vsub.s32 0, %v5500
      %v5502 = vrot.slane %v5497, %v5501
      %v5504 = vadd.f32 %v5487, %v5502
      %v5505 = vadd.f32 %v5488, %v5502
      %v5506 = vadd.f32 %v5489, %v5502
      %v5507 = vadd.f32 %v5490, %v5502
      %v5508 = vadd.f32 %v5491, %v5502
      %v5509 = vadd.f32 %v5492, %v5502
      %v5510 = vadd.f32 %v5493, %v5502
      %v5511 = vadd.f32 %v5494, %v5502
      %v5512 = vadd.f32 %v5495, %v5502
      %v5513 = vadd.f32 %v5496, %v5502
      %v5514 = vmax.f32 %v5504, 0.0
      %v5515 = vmax.f32 %v5505, 0.0
      %v5516 = vmax.f32 %v5506, 0.0
      %v5517 = vmax.f32 %v5507, 0.0
      %v5518 = vmax.f32 %v5508, 0.0
      %v5519 = vmax.f32 %v5509, 0.0
      %v5520 = vmax.f32 %v5510, 0.0
      %v5521 = vmax.f32 %v5511, 0.0
      %v5522 = vmax.f32 %v5512, 0.0
      %v5523 = vmax.f32 %v5513, 0.0
      %v5524 = vld [vmem:[%s5] sm:$0xff]
      %v5525 = vld [vmem:[%s5 + $0x8] sm:$0xff]
      %v5526 = vld [vmem:[%s5 + $0x10] sm:$0xff]
      %v5527 = vld [vmem:[%s5 + $0x18] sm:$0xff]
      %v5528 = vld [vmem:[%s5 + $0x20] sm:$0xff]
      %v5529 = vld [vmem:[%s5 + $0x28] sm:$0xff]
      %v5530 = vld [vmem:[%s5 + $0x30] sm:$0xff]
      %v5531 = vld [vmem:[%s5 + $0x38] sm:$0xff]
      %v5532 = vld [vmem:[%s5 + $0x40] sm:$0xff]
      %v5533 = vld [vmem:[%s5 + $0x48] sm:$0xff]
      %5535 = vset.pattern.permute.xlu0 0
      %5536 = vperm.xlu0 %5535, %v5524
      %v5537 = vpop.permute.xlu0 %5536
      %5540 = vset.pattern.permute.xlu0 0
      %5541 = vperm.xlu0 %5540, %v5525
      %v5542 = vpop.permute.xlu0 %5541
      %5545 = vset.pattern.permute.xlu0 0
      %5546 = vperm.xlu0 %5545, %v5526
      %v5547 = vpop.permute.xlu0 %5546
      %5550 = vset.pattern.permute.xlu0 0
      %5551 = vperm.xlu0 %5550, %v5527
      %v5552 = vpop.permute.xlu0 %5551
      %5555 = vset.pattern.permute.xlu0 0
      %5556 = vperm.xlu0 %5555, %v5528
      %v5557 = vpop.permute.xlu0 %5556
      %5560 = vset.pattern.permute.xlu0 0
      %5561 = vperm.xlu0 %5560, %v5529
      %v5562 = vpop.permute.xlu0 %5561
      %5565 = vset.pattern.permute.xlu0 0
      %5566 = vperm.xlu0 %5565, %v5530
      %v5567 = vpop.permute.xlu0 %5566
      %5570 = vset.pattern.permute.xlu0 0
      %5571 = vperm.xlu0 %5570, %v5531
      %v5572 = vpop.permute.xlu0 %5571
      %5575 = vset.pattern.permute.xlu0 0
      %5576 = vperm.xlu0 %5575, %v5532
      %v5577 = vpop.permute.xlu0 %5576
      %5580 = vset.pattern.permute.xlu0 0
      %5581 = vperm.xlu0 %5580, %v5533
      %v5582 = vpop.permute.xlu0 %5581
      %v5584 = vmul.f32 %v5514, %v5537
      %v5585 = vmul.f32 %v5515, %v5542
      %v5586 = vmul.f32 %v5516, %v5547
      %v5587 = vmul.f32 %v5517, %v5552
      %v5588 = vmul.f32 %v5518, %v5557
      %v5589 = vmul.f32 %v5519, %v5562
      %v5590 = vmul.f32 %v5520, %v5567
      %v5591 = vmul.f32 %v5521, %v5572
      %v5592 = vmul.f32 %v5522, %v5577
      %v5593 = vmul.f32 %v5523, %v5582
      %5594 = vst [vmem:[%s333] sm:$0xf] 0
      %5595 = vst [vmem:[%s333 + $0x4] sm:$0xf] 0
      %5596 = vst [vmem:[%s333 + $0x8] sm:$0xf] 0
      %5597 = vst [vmem:[%s333 + $0xc] sm:$0xf] 0
      %5598 = vst [vmem:[%s333 + $0x10] sm:$0xf] 0
      %5599 = vst [vmem:[%s333 + $0x14] sm:$0xf] 0
      %5600 = vst [vmem:[%s333 + $0x18] sm:$0xf] 0
      %5601 = vst [vmem:[%s333 + $0x1c] sm:$0xf] 0
      %5602 = vst [vmem:[%s333 + $0x20] sm:$0xf] 0
      %5603 = vst [vmem:[%s333 + $0x24] sm:$0xf] 0
      %5604 = vst [vmem:[%s333 + $0x28] sm:$0xf] 0
      %5605 = vst [vmem:[%s333 + $0x2c] sm:$0xf] 0
      %5606 = vst [vmem:[%s333 + $0x30] sm:$0xf] 0
      %5607 = vst [vmem:[%s333 + $0x34] sm:$0x7] 0
      %v5608 = vpack.c.bf16 %v5585, %v5584
      %v5609 = vpack.c.bf16 %v5587, %v5586
      %v5610 = vpack.c.bf16 %v5589, %v5588
      %v5611 = vpack.c.bf16 %v5591, %v5590
      %v5612 = vpack.c.bf16 %v5593, %v5592
      %v5618 = vunpack.c.l.b16 %v5608
      %v5619 = vunpack.c.h.b16 %v5608
      %v5620 = vunpack.c.l.b16 %v5609
      %v5621 = vunpack.c.h.b16 %v5609
      %v5622 = vunpack.c.l.b16 %v5610
      %v5623 = vunpack.c.h.b16 %v5610
      %v5624 = vunpack.c.l.b16 %v5611
      %v5625 = vunpack.c.h.b16 %v5611
      %v5626 = vunpack.c.l.b16 %v5612
      %v5627 = vunpack.c.h.b16 %v5612
      %v5628 = vpack.c.b16 %v5618, %v5618
      %v5629 = vpack.c.b16 %v5619, %v5619
      %v5630 = vpack.c.b16 %v5620, %v5620
      %v5631 = vpack.c.b16 %v5621, %v5621
      %v5632 = vpack.c.b16 %v5622, %v5622
      %v5633 = vpack.c.b16 %v5623, %v5623
      %v5634 = vpack.c.b16 %v5624, %v5624
      %v5635 = vpack.c.b16 %v5625, %v5625
      %v5636 = vpack.c.b16 %v5626, %v5626
      %v5637 = vpack.c.b16 %v5627, %v5627
      %vm5638 = vsmask.f32 1280
      %vm5639 = vsmask.f32 5392
      %vm5640 = vmor %vm5638, %vm5639
      %v5642 = vshrl.u32 %v5628, 16
      %v5644 = vrot.slane %v5642, 6
      %v5645 = vshll.u32 %v5628, 16
      %v5647 = vrot.slane %v5645, 7
      %v5648 = vor.u32 %v5644, %v5647
      %v5649 = vrot.slane %v5648, 4
      %v5651 = vshrl.u32 %v5629, 16
      %v5653 = vrot.slane %v5651, 6
      %v5654 = vshll.u32 %v5629, 16
      %v5656 = vrot.slane %v5654, 7
      %v5657 = vor.u32 %v5653, %v5656
      %v5658 = vsel %vm5640, %v5649, %v5657
      %v5659 = vrot.slane %v5657, 4
      %v5661 = vshrl.u32 %v5630, 16
      %v5663 = vrot.slane %v5661, 6
      %v5664 = vshll.u32 %v5630, 16
      %v5666 = vrot.slane %v5664, 7
      %v5667 = vor.u32 %v5663, %v5666
      %v5668 = vsel %vm5640, %v5659, %v5667
      %v5669 = vrot.slane %v5667, 4
      %v5671 = vshrl.u32 %v5631, 16
      %v5673 = vrot.slane %v5671, 6
      %v5674 = vshll.u32 %v5631, 16
      %v5676 = vrot.slane %v5674, 7
      %v5677 = vor.u32 %v5673, %v5676
      %v5678 = vsel %vm5640, %v5669, %v5677
      %v5679 = vrot.slane %v5677, 4
      %v5681 = vshrl.u32 %v5632, 16
      %v5683 = vrot.slane %v5681, 6
      %v5684 = vshll.u32 %v5632, 16
      %v5686 = vrot.slane %v5684, 7
      %v5687 = vor.u32 %v5683, %v5686
      %v5688 = vsel %vm5640, %v5679, %v5687
      %v5689 = vrot.slane %v5687, 4
      %v5691 = vshrl.u32 %v5633, 16
      %v5693 = vrot.slane %v5691, 6
      %v5694 = vshll.u32 %v5633, 16
      %v5696 = vrot.slane %v5694, 7
      %v5697 = vor.u32 %v5693, %v5696
      %v5698 = vsel %vm5640, %v5689, %v5697
      %v5699 = vrot.slane %v5697, 4
      %v5701 = vshrl.u32 %v5634, 16
      %v5703 = vrot.slane %v5701, 6
      %v5704 = vshll.u32 %v5634, 16
      %v5706 = vrot.slane %v5704, 7
      %v5707 = vor.u32 %v5703, %v5706
      %v5708 = vsel %vm5640, %v5699, %v5707
      %v5709 = vrot.slane %v5707, 4
      %v5711 = vshrl.u32 %v5635, 16
      %v5713 = vrot.slane %v5711, 6
      %v5714 = vshll.u32 %v5635, 16
      %v5716 = vrot.slane %v5714, 7
      %v5717 = vor.u32 %v5713, %v5716
      %v5718 = vsel %vm5640, %v5709, %v5717
      %v5719 = vrot.slane %v5717, 4
      %v5721 = vshrl.u32 %v5636, 16
      %v5723 = vrot.slane %v5721, 6
      %v5724 = vshll.u32 %v5636, 16
      %v5726 = vrot.slane %v5724, 7
      %v5727 = vor.u32 %v5723, %v5726
      %v5728 = vsel %vm5640, %v5719, %v5727
      %v5729 = vrot.slane %v5727, 4
      %v5731 = vshrl.u32 %v5637, 16
      %v5733 = vrot.slane %v5731, 6
      %v5734 = vshll.u32 %v5637, 16
      %v5736 = vrot.slane %v5734, 7
      %v5737 = vor.u32 %v5733, %v5736
      %v5738 = vsel %vm5640, %v5729, %v5737
      %v5739 = vrot.slane %v5737, 4
      %vm5751 = vcmask 1043457
      %vm5752 = vsmask.f32 7942
      %vm5753 = vmand %vm5751, %vm5752
      %v5754 = vld [vmem:[%s333 + $0x4] sm:$0xe]
      %v5755 = vsel %vm5753, %v5648, %v5754
      %5756 = vst [vmem:[%s333 + $0x4] sm:$0xe] %v5755
      %5757 = vst [vmem:[%s333 + $0x8] sm:$0xf] %v5658
      %5758 = vst [vmem:[%s333 + $0xc] sm:$0xf] %v5668
      %5759 = vst [vmem:[%s333 + $0x10] sm:$0xf] %v5678
      %5760 = vst [vmem:[%s333 + $0x14] sm:$0xf] %v5688
      %5761 = vst [vmem:[%s333 + $0x18] sm:$0xf] %v5698
      %5762 = vst [vmem:[%s333 + $0x1c] sm:$0xf] %v5708
      %5763 = vst [vmem:[%s333 + $0x20] sm:$0xf] %v5718
      %5764 = vst [vmem:[%s333 + $0x24] sm:$0xf] %v5728
      %5765 = vst [vmem:[%s333 + $0x28] sm:$0xf] %v5738
      %vm5766 = vcmask 1041408
      %vm5767 = vmand %vm5766, %vm5638
      %v5768 = vld [vmem:[%s333 + $0x2c] sm:$0x3]
      %v5769 = vsel %vm5767, %v5739, %v5768
      %5770 = vst [vmem:[%s333 + $0x2c] sm:$0x3] %v5769
      %p5771 = scmp.lt.s32.totalorder %s17, 15
      %s5772 = scalar_select %p5771, %s17, 15
      %s5773 = smul.addr %s5772, 14
      %s5774 = smul.addr %s5773, 4
      %s5775 = scalar_lea.vmem %s6, %s5774
      // Predicated region
      $region45: #{basic_block_forward.2} parent=43 // pred_check
        %p5776 = pneg %p188
      $region46: #{basic_block_forward.2} parent=43 // pred_check_branch
        %5778 = sbr.rel (%p5776) target = $region48
      $region47: #{basic_block_forward.2} parent=43 // pred_region
        _
      $region48: #{basic_block_forward.2} parent=43 // pred_fallthru
        _
    $region44: #{basic_block_forward.2} parent=5 // pred_fallthru
      _
    %p5779 = scmp.le.s32.totalorder 2, %s12
    // Predicated region
    $region49: #{basic_block_forward.2} parent=5 // pred_check
      %p5780 = pneg %p5779
    $region50: #{basic_block_forward.2} parent=5 // pred_check_branch
      %5782 = sbr.rel (%p5780) target = $region52
    $region51: #{basic_block_forward.2} parent=5 // pred_region
      %s5783 = ssub.s32 %s12, 2
      // Predicated region
      $region53: #{basic_block_forward.2} parent=51 // pred_check
        %p5784 = pneg %p194
      $region54: #{basic_block_forward.2} parent=51 // pred_check_branch
        %5786 = sbr.rel (%p5784) target = $region56
      $region55: #{basic_block_forward.2} parent=51 // pred_region
        %p5787 = scmp.lt.s32.totalorder %s18, 15
        %s5788 = scalar_select %p5787, %s18, 15
        %s5789 = smul.addr %s5788, 14
        %s5790 = smul.addr %s5789, 4
        %s5791 = scalar_lea.vmem %s6, %s5790
      $region56: #{basic_block_forward.2} parent=51 // pred_fallthru
        _
    $region52: #{basic_block_forward.2} parent=5 // pred_fallthru
      _
  $region6: #{basic_block_forward.2} parent=0 // loop_footer
    %s16 = sadd.s32 1, %s12
  $region7: #{basic_block_forward.2} parent=0 // loop_footer_branch
    %11 = sbr.rel target = $region3
  $region8: #{basic_block_forward.2} parent=0 // loop_exit
    _

</llo_original>
